<compile_context>
chip_gen: v5e
topology: v5e:2x2
jax: 0.10.0
libtpu: 0.0.40
codegen_flags: <defaults>
</compile_context>

<pallas_src>
import functools

import numpy as np
import jax
import jax.numpy as jnp
from jax.experimental import pallas as pl
from jax.experimental.pallas import tpu as pltpu


# Re-seed sin/cos from the hardware polynomial every 4 octaves: worst-case
# recurrence error ~2^3 * few ulp ~ 1.5e-6, comfortably inside the 1e-5 budget,
# while cutting transcendental evaluations ~3-5x for n_freq=10.
_RESEED_EVERY = 4


def _make_freq_band(n_freq: int, log_scale: bool = True):
    if n_freq <= 0:
        return []
    if log_scale:
        return [float(2.0 ** i) for i in range(n_freq)]
    return [float(v) for v in np.linspace(1.0, 2.0 ** (n_freq - 1), n_freq)]


def _freqs_are_doublings(freqs):
    # Guard (per review): the doubling recurrence is only exact for a band of
    # consecutive powers of two starting at 1.
    if not freqs or freqs[0] != 1.0:
        return False
    return all(freqs[k] == 2.0 * freqs[k - 1] for k in range(1, len(freqs)))


def _vmem_budget_bytes():
    try:
        cap = pltpu.get_tpu_info().vmem_capacity_bytes
    except Exception:
        cap = 64 << 20  # v7x physical VMEM: the most conservative current chip
    return min(int(cap * 0.45), 40 << 20)


def _term_values(x, freqs, use_recurrence, reseed_every=_RESEED_EVERY):
    """Yields the 2*n_freq+1 embedding terms of `x` (f32) in PyTorch concat order."""
    yield x
    s = c = None
    for k, f in enumerate(freqs):
        if (not use_recurrence) or (k % reseed_every == 0):
            fx = x * jnp.float32(f)          # exact when f is a power of two
            s, c = jnp.sin(fx), jnp.cos(fx)  # fresh seed (or linear-band path)
        else:
            # Double-angle recurrence: sin(2a) = 2 sin a cos a, cos(2a) = cos^2 - sin^2.
            s2 = s * c
            s2 = s2 + s2
            c = c * c - s * s
            s = s2
        yield s
        yield c


# --------------------------------------------------------------------------
# Primary ("fused layout") kernel: writes the PyTorch layout in one pass.
# --------------------------------------------------------------------------
def _fused_kernel(xt_ref, o_ref, s_ref, *, freqs, use_recurrence, t_chunk):
    # xt_ref: (C, L)       block of x^T  (N on lanes -> fully lane-dense compute)
    # o_ref : (L, out_c)   block of the final (N, out_c) output
    # s_ref : (P, t_chunk) f32 scratch; row b*C+c holds term_b(channel c)
    c_dim = xt_ref.shape[0]
    L, out_c = o_ref.shape
    p_rows = s_ref.shape[0]

    if p_rows > out_c:  # keep the padding rows defined (they are sliced away below)
        s_ref[out_c:, :] = jnp.zeros((p_rows - out_c, t_chunk), jnp.float32)

    for j in range(L // t_chunk):
        # Keep s/c recurrence state and all temporaries chunk-sized so they stay
        # in vregs across octaves (review item on bounded live ranges).
        xt = xt_ref[:, j * t_chunk:(j + 1) * t_chunk].astype(jnp.float32)  # (C, chunk)
        for b, v in enumerate(_term_values(xt, freqs, use_recurrence)):
            s_ref[b * c_dim:(b + 1) * c_dim, :] = v
        # XLU transpose (terms on sublanes -> terms on lanes) gives the exact
        # PyTorch column order; the store then goes straight to HBM in final layout.
        tj = jnp.transpose(s_ref[...], (1, 0))          # (chunk, P)
        o_ref[j * t_chunk:(j + 1) * t_chunk, :] = tj[:, :out_c].astype(o_ref.dtype)


def _nerf_embedding_fused(x, freqs, use_recurrence, out_dtype=None):
    n, c_dim = x.shape
    n_terms = 2 * len(freqs) + 1
    out_c = c_dim * n_terms
    out_dtype = jnp.dtype(out_dtype) if out_dtype is not None else x.dtype
    p_rows = ((out_c + 7) // 8) * 8

    # --- VMEM-aware lane-block selection (f32 accounting for temporaries) ----
    out_lane_pad = ((out_c + 127) // 128) * 128
    p_lane_pad = ((p_rows + 127) // 128) * 128

    def vmem_bytes(L):
        return (2 * 8 * L * 4                                    # in blocks (2 bufs, sublane-padded)
                + 2 * L * out_lane_pad * jnp.dtype(out_dtype).itemsize  # out blocks (2 bufs)
                + p_rows * 512 * 4                               # term scratch
                + 512 * p_lane_pad * 4)                          # transposed temp

    budget = _vmem_budget_bytes()
    lane_block = 4096
    while lane_block > 512 and vmem_bytes(lane_block) > budget:
        lane_block //= 2
    # Keep >= 2 grid steps whenever possible so both v7x TensorCores get work.
    while lane_block > 128 and pl.cdiv(n, lane_block) < 2:
        lane_block //= 2
    t_chunk = min(512, lane_block)

    # One cheap pass over input-sized data (~1/21 of the output traffic); it lets
    # the kernel compute with N on the lane axis (100% lane utilization).
    xt = x.T  # (C, N)

    kernel = functools.partial(_fused_kernel, freqs=tuple(freqs),
                               use_recurrence=use_recurrence, t_chunk=t_chunk)
    return pl.pallas_call(
        kernel,
        out_shape=jax.ShapeDtypeStruct((n, out_c), out_dtype),
        grid=(pl.cdiv(n, lane_block),),
        in_specs=[pl.BlockSpec((c_dim, lane_block), lambda i: (0, i))],
        out_specs=pl.BlockSpec((lane_block, out_c), lambda i: (i, 0)),
        scratch_shapes=[pltpu.VMEM((p_rows, t_chunk), jnp.float32)],
        compiler_params=pltpu.CompilerParams(
            dimension_semantics=("parallel",),
            vmem_limit_bytes=int(max(vmem_bytes(lane_block) + (8 << 20), 16 << 20)),
        ),
    )(xt)


# --------------------------------------------------------------------------
# Fallback ("slab") kernel: previous known-good design (lane-dense compute,
# term-major slab) + XLA reorder.  Only used if the fused path fails to lower.
# --------------------------------------------------------------------------
def _slab_kernel(x_ref, o_ref, *, freqs, use_recurrence):
    x = x_ref[...].astype(jnp.float32)
    for t, v in enumerate(_term_values(x, freqs, use_recurrence)):
        o_ref[t] = v.astype(o_ref.dtype)


def _nerf_embedding_slab(x, freqs, use_recurrence, out_dtype=None,
                         rows_block=128, lanes=1024):
    n, c = x.shape
    n_terms = 2 * len(freqs) + 1
    out_c = c * n_terms
    out_dtype = jnp.dtype(out_dtype) if out_dtype is not None else x.dtype

    budget = _vmem_budget_bytes()
    while rows_block > 8 and 2 * (1 + n_terms) * rows_block * lanes * 4 > budget:
        rows_block //= 2

    m = n * c
    total_rows = int(pl.cdiv(m, lanes))
    if total_rows < rows_block:
        rows_block = max(8, int(pl.cdiv(total_rows, 8)) * 8)
    rows_pad = int(pl.cdiv(total_rows, rows_block)) * rows_block
    m_pad = rows_pad * lanes

    x_flat = jnp.reshape(x, (m,))
    if m_pad != m:
        x_flat = jnp.pad(x_flat, (0, m_pad - m))
    x2d = jnp.reshape(x_flat, (rows_pad, lanes))

    working = 2 * (1 + n_terms) * rows_block * lanes * 4
    out3d = pl.pallas_call(
        functools.partial(_slab_kernel, freqs=tuple(freqs),
                          use_recurrence=use_recurrence),
        out_shape=jax.ShapeDtypeStruct((n_terms, rows_pad, lanes), out_dtype),
        grid=(rows_pad // rows_block,),
        in_specs=[pl.BlockSpec((rows_block, lanes), lambda i: (i, 0))],
        out_specs=pl.BlockSpec((n_terms, rows_block, lanes), lambda i: (0, i, 0)),
        compiler_params=pltpu.CompilerParams(
            dimension_semantics=("parallel",),
            vmem_limit_bytes=int(working + (8 << 20)),
        ),
    )(x2d)

    out_flat = jnp.reshape(out3d, (n_terms, m_pad))[:, :m]
    out = jnp.reshape(out_flat, (n_terms, n, c))
    return jnp.transpose(out, (1, 0, 2)).reshape(n, out_c)


# --------------------------------------------------------------------------
# Public wrapper
# --------------------------------------------------------------------------
_FUSED_PATH_OK = True  # set False after a lowering failure so we don't retry


def nerf_embedding(x, n_freq: int, log_scale: bool = True, out_dtype=None):
    """Pallas equivalent of Embedding(inputC, n_freq, logScale).forward(x).

    x: (N, C) float array.  Returns (N, C*(2*n_freq+1)) in the PyTorch
    channel-concatenation layout.  out_dtype may be set to bf16 to halve the
    output HBM traffic when the consumer allows it (math stays f32).
    """
    global _FUSED_PATH_OK
    assert x.ndim == 2, "expected (N, C) input"
    freqs = _make_freq_band(n_freq, log_scale)
    use_recurrence = log_scale and _freqs_are_doublings(freqs)

    if _FUSED_PATH_OK:
        try:
            out = _nerf_embedding_fused(x, freqs, use_recurrence, out_dtype)
            return jax.block_until_ready(out)
        except Exception:
            # TODO(synk): the fused path relies on an in-kernel 2-D f32 transpose;
            # if Mosaic rejects it on some toolchain we fall back to the slab
            # kernel (extra XLA reorder pass) rather than failing the op.
            _FUSED_PATH_OK = False
    return _nerf_embedding_slab(x, freqs, use_recurrence, out_dtype)


def nerf_embedding_ref(x, n_freq: int, log_scale: bool = True):
    freqs = _make_freq_band(n_freq, log_scale)
    outs = [x]
    for f in freqs:
        outs.append(jnp.sin(f * x))
        outs.append(jnp.cos(f * x))
    return jnp.concatenate(outs, axis=1)


if __name__ == "__main__":
    key = jax.random.PRNGKey(0)
    cases = [
        ((133, 3), 10, True),   # NeRF xyz encoding; ragged N -> edge blocks
        ((256, 3), 4, True),    # NeRF view-dir encoding; two grid steps
        ((64, 3), 4, False),    # linear frequency band -> no recurrence path
        ((96, 2), 6, True),     # different channel count
    ]
    for (N, C), NF, LOG in cases:
        key, sub = jax.random.split(key)
        x = jax.random.normal(sub, (N, C), dtype=jnp.float32)

        out = jax.block_until_ready(nerf_embedding(x, n_freq=NF, log_scale=LOG))
        ref = nerf_embedding_ref(x, n_freq=NF, log_scale=LOG)

        assert out.shape == (N, C * (2 * NF + 1)), out.shape
        assert jnp.allclose(out, ref, atol=1e-5, rtol=1e-5), \
            f"mismatch vs reference for shape {(N, C)}, n_freq={NF}, log={LOG}"

    print("KERNEL_OK")
</pallas_src>

<mosaic_0001>
module attributes {stable_mosaic.version = 11 : i64} {
  func.func @_fused_kernel(%arg0: i32, %arg1: memref<3x128xf32, #tpu.memory_space<vmem>>, %arg2: memref<128x63xf32, #tpu.memory_space<vmem>>, %arg3: memref<64x128xf32, #tpu.memory_space<vmem>>) attributes {dimension_semantics = [#tpu.dimension_semantics<parallel>], iteration_bounds = array<i64: 2>, scalar_prefetch = 0 : i64, scratch_operands = 1 : i64, tpu.core_type = #tpu.core_type<tc>, window_params = [{transform_indices = @transform_0, window_bounds = array<i64: 3, 128>}, {transform_indices = @transform_1, window_bounds = array<i64: 128, 63>}]} {
    %cst = arith.constant 0.000000e+00 : f32
    %0 = vector.broadcast %cst : f32 to vector<1x128xf32>
    %c63 = arith.constant 63 : index
    %c0 = arith.constant 0 : index
    %1 = vector.load %arg3[%c63, %c0] : memref<64x128xf32, #tpu.memory_space<vmem>>, vector<1x128xf32>
    tpu.vector_store %arg3[%c63, %c0], %0 {strides = array<i32>} : memref<64x128xf32, #tpu.memory_space<vmem>>, vector<1x128xf32>,
    %c0_0 = arith.constant 0 : index
    %c0_1 = arith.constant 0 : index
    %2 = vector.load %arg1[%c0_0, %c0_1] : memref<3x128xf32, #tpu.memory_space<vmem>>, vector<3x128xf32>
    %c0_2 = arith.constant 0 : index
    %c0_3 = arith.constant 0 : index
    %3 = vector.load %arg3[%c0_2, %c0_3] : memref<64x128xf32, #tpu.memory_space<vmem>>, vector<3x128xf32>
    tpu.vector_store %arg3[%c0_2, %c0_3], %2 {strides = array<i32>} : memref<64x128xf32, #tpu.memory_space<vmem>>, vector<3x128xf32>,
    %cst_4 = arith.constant 1.000000e+00 : f32
    %4 = vector.broadcast %cst_4 : f32 to vector<3x128xf32>
    %5 = arith.mulf %2, %4 : vector<3x128xf32>
    %6 = math.sin %5 : vector<3x128xf32>
    %7 = math.cos %5 : vector<3x128xf32>
    %c3 = arith.constant 3 : index
    %c0_5 = arith.constant 0 : index
    %8 = vector.load %arg3[%c3, %c0_5] : memref<64x128xf32, #tpu.memory_space<vmem>>, vector<3x128xf32>
    tpu.vector_store %arg3[%c3, %c0_5], %6 {strides = array<i32>} : memref<64x128xf32, #tpu.memory_space<vmem>>, vector<3x128xf32>,
    %c6 = arith.constant 6 : index
    %c0_6 = arith.constant 0 : index
    %9 = vector.load %arg3[%c6, %c0_6] : memref<64x128xf32, #tpu.memory_space<vmem>>, vector<3x128xf32>
    tpu.vector_store %arg3[%c6, %c0_6], %7 {strides = array<i32>} : memref<64x128xf32, #tpu.memory_space<vmem>>, vector<3x128xf32>,
    %10 = arith.mulf %6, %7 : vector<3x128xf32>
    %11 = arith.addf %10, %10 : vector<3x128xf32>
    %12 = arith.mulf %7, %7 : vector<3x128xf32>
    %13 = arith.mulf %6, %6 : vector<3x128xf32>
    %14 = arith.subf %12, %13 : vector<3x128xf32>
    %c9 = arith.constant 9 : index
    %c0_7 = arith.constant 0 : index
    %15 = vector.load %arg3[%c9, %c0_7] : memref<64x128xf32, #tpu.memory_space<vmem>>, vector<3x128xf32>
    tpu.vector_store %arg3[%c9, %c0_7], %11 {strides = array<i32>} : memref<64x128xf32, #tpu.memory_space<vmem>>, vector<3x128xf32>,
    %c12 = arith.constant 12 : index
    %c0_8 = arith.constant 0 : index
    %16 = vector.load %arg3[%c12, %c0_8] : memref<64x128xf32, #tpu.memory_space<vmem>>, vector<3x128xf32>
    tpu.vector_store %arg3[%c12, %c0_8], %14 {strides = array<i32>} : memref<64x128xf32, #tpu.memory_space<vmem>>, vector<3x128xf32>,
    %17 = arith.mulf %11, %14 : vector<3x128xf32>
    %18 = arith.addf %17, %17 : vector<3x128xf32>
    %19 = arith.mulf %14, %14 : vector<3x128xf32>
    %20 = arith.mulf %11, %11 : vector<3x128xf32>
    %21 = arith.subf %19, %20 : vector<3x128xf32>
    %c15 = arith.constant 15 : index
    %c0_9 = arith.constant 0 : index
    %22 = vector.load %arg3[%c15, %c0_9] : memref<64x128xf32, #tpu.memory_space<vmem>>, vector<3x128xf32>
    tpu.vector_store %arg3[%c15, %c0_9], %18 {strides = array<i32>} : memref<64x128xf32, #tpu.memory_space<vmem>>, vector<3x128xf32>,
    %c18 = arith.constant 18 : index
    %c0_10 = arith.constant 0 : index
    %23 = vector.load %arg3[%c18, %c0_10] : memref<64x128xf32, #tpu.memory_space<vmem>>, vector<3x128xf32>
    tpu.vector_store %arg3[%c18, %c0_10], %21 {strides = array<i32>} : memref<64x128xf32, #tpu.memory_space<vmem>>, vector<3x128xf32>,
    %24 = arith.mulf %18, %21 : vector<3x128xf32>
    %25 = arith.addf %24, %24 : vector<3x128xf32>
    %26 = arith.mulf %21, %21 : vector<3x128xf32>
    %27 = arith.mulf %18, %18 : vector<3x128xf32>
    %28 = arith.subf %26, %27 : vector<3x128xf32>
    %c21 = arith.constant 21 : index
    %c0_11 = arith.constant 0 : index
    %29 = vector.load %arg3[%c21, %c0_11] : memref<64x128xf32, #tpu.memory_space<vmem>>, vector<3x128xf32>
    tpu.vector_store %arg3[%c21, %c0_11], %25 {strides = array<i32>} : memref<64x128xf32, #tpu.memory_space<vmem>>, vector<3x128xf32>,
    %c24 = arith.constant 24 : index
    %c0_12 = arith.constant 0 : index
    %30 = vector.load %arg3[%c24, %c0_12] : memref<64x128xf32, #tpu.memory_space<vmem>>, vector<3x128xf32>
    tpu.vector_store %arg3[%c24, %c0_12], %28 {strides = array<i32>} : memref<64x128xf32, #tpu.memory_space<vmem>>, vector<3x128xf32>,
    %cst_13 = arith.constant 1.600000e+01 : f32
    %31 = vector.broadcast %cst_13 : f32 to vector<3x128xf32>
    %32 = arith.mulf %2, %31 : vector<3x128xf32>
    %33 = math.sin %32 : vector<3x128xf32>
    %34 = math.cos %32 : vector<3x128xf32>
    %c27 = arith.constant 27 : index
    %c0_14 = arith.constant 0 : index
    %35 = vector.load %arg3[%c27, %c0_14] : memref<64x128xf32, #tpu.memory_space<vmem>>, vector<3x128xf32>
    tpu.vector_store %arg3[%c27, %c0_14], %33 {strides = array<i32>} : memref<64x128xf32, #tpu.memory_space<vmem>>, vector<3x128xf32>,
    %c30 = arith.constant 30 : index
    %c0_15 = arith.constant 0 : index
    %36 = vector.load %arg3[%c30, %c0_15] : memref<64x128xf32, #tpu.memory_space<vmem>>, vector<3x128xf32>
    tpu.vector_store %arg3[%c30, %c0_15], %34 {strides = array<i32>} : memref<64x128xf32, #tpu.memory_space<vmem>>, vector<3x128xf32>,
    %37 = arith.mulf %33, %34 : vector<3x128xf32>
    %38 = arith.addf %37, %37 : vector<3x128xf32>
    %39 = arith.mulf %34, %34 : vector<3x128xf32>
    %40 = arith.mulf %33, %33 : vector<3x128xf32>
    %41 = arith.subf %39, %40 : vector<3x128xf32>
    %c33 = arith.constant 33 : index
    %c0_16 = arith.constant 0 : index
    %42 = vector.load %arg3[%c33, %c0_16] : memref<64x128xf32, #tpu.memory_space<vmem>>, vector<3x128xf32>
    tpu.vector_store %arg3[%c33, %c0_16], %38 {strides = array<i32>} : memref<64x128xf32, #tpu.memory_space<vmem>>, vector<3x128xf32>,
    %c36 = arith.constant 36 : index
    %c0_17 = arith.constant 0 : index
    %43 = vector.load %arg3[%c36, %c0_17] : memref<64x128xf32, #tpu.memory_space<vmem>>, vector<3x128xf32>
    tpu.vector_store %arg3[%c36, %c0_17], %41 {strides = array<i32>} : memref<64x128xf32, #tpu.memory_space<vmem>>, vector<3x128xf32>,
    %44 = arith.mulf %38, %41 : vector<3x128xf32>
    %45 = arith.addf %44, %44 : vector<3x128xf32>
    %46 = arith.mulf %41, %41 : vector<3x128xf32>
    %47 = arith.mulf %38, %38 : vector<3x128xf32>
    %48 = arith.subf %46, %47 : vector<3x128xf32>
    %c39 = arith.constant 39 : index
    %c0_18 = arith.constant 0 : index
    %49 = vector.load %arg3[%c39, %c0_18] : memref<64x128xf32, #tpu.memory_space<vmem>>, vector<3x128xf32>
    tpu.vector_store %arg3[%c39, %c0_18], %45 {strides = array<i32>} : memref<64x128xf32, #tpu.memory_space<vmem>>, vector<3x128xf32>,
    %c42 = arith.constant 42 : index
    %c0_19 = arith.constant 0 : index
    %50 = vector.load %arg3[%c42, %c0_19] : memref<64x128xf32, #tpu.memory_space<vmem>>, vector<3x128xf32>
    tpu.vector_store %arg3[%c42, %c0_19], %48 {strides = array<i32>} : memref<64x128xf32, #tpu.memory_space<vmem>>, vector<3x128xf32>,
    %51 = arith.mulf %45, %48 : vector<3x128xf32>
    %52 = arith.addf %51, %51 : vector<3x128xf32>
    %53 = arith.mulf %48, %48 : vector<3x128xf32>
    %54 = arith.mulf %45, %45 : vector<3x128xf32>
    %55 = arith.subf %53, %54 : vector<3x128xf32>
    %c45 = arith.constant 45 : index
    %c0_20 = arith.constant 0 : index
    %56 = vector.load %arg3[%c45, %c0_20] : memref<64x128xf32, #tpu.memory_space<vmem>>, vector<3x128xf32>
    tpu.vector_store %arg3[%c45, %c0_20], %52 {strides = array<i32>} : memref<64x128xf32, #tpu.memory_space<vmem>>, vector<3x128xf32>,
    %c48 = arith.constant 48 : index
    %c0_21 = arith.constant 0 : index
    %57 = vector.load %arg3[%c48, %c0_21] : memref<64x128xf32, #tpu.memory_space<vmem>>, vector<3x128xf32>
    tpu.vector_store %arg3[%c48, %c0_21], %55 {strides = array<i32>} : memref<64x128xf32, #tpu.memory_space<vmem>>, vector<3x128xf32>,
    %cst_22 = arith.constant 2.560000e+02 : f32
    %58 = vector.broadcast %cst_22 : f32 to vector<3x128xf32>
    %59 = arith.mulf %2, %58 : vector<3x128xf32>
    %60 = math.sin %59 : vector<3x128xf32>
    %61 = math.cos %59 : vector<3x128xf32>
    %c51 = arith.constant 51 : index
    %c0_23 = arith.constant 0 : index
    %62 = vector.load %arg3[%c51, %c0_23] : memref<64x128xf32, #tpu.memory_space<vmem>>, vector<3x128xf32>
    tpu.vector_store %arg3[%c51, %c0_23], %60 {strides = array<i32>} : memref<64x128xf32, #tpu.memory_space<vmem>>, vector<3x128xf32>,
    %c54 = arith.constant 54 : index
    %c0_24 = arith.constant 0 : index
    %63 = vector.load %arg3[%c54, %c0_24] : memref<64x128xf32, #tpu.memory_space<vmem>>, vector<3x128xf32>
    tpu.vector_store %arg3[%c54, %c0_24], %61 {strides = array<i32>} : memref<64x128xf32, #tpu.memory_space<vmem>>, vector<3x128xf32>,
    %64 = arith.mulf %60, %61 : vector<3x128xf32>
    %65 = arith.addf %64, %64 : vector<3x128xf32>
    %66 = arith.mulf %61, %61 : vector<3x128xf32>
    %67 = arith.mulf %60, %60 : vector<3x128xf32>
    %68 = arith.subf %66, %67 : vector<3x128xf32>
    %c57 = arith.constant 57 : index
    %c0_25 = arith.constant 0 : index
    %69 = vector.load %arg3[%c57, %c0_25] : memref<64x128xf32, #tpu.memory_space<vmem>>, vector<3x128xf32>
    tpu.vector_store %arg3[%c57, %c0_25], %65 {strides = array<i32>} : memref<64x128xf32, #tpu.memory_space<vmem>>, vector<3x128xf32>,
    %c60 = arith.constant 60 : index
    %c0_26 = arith.constant 0 : index
    %70 = vector.load %arg3[%c60, %c0_26] : memref<64x128xf32, #tpu.memory_space<vmem>>, vector<3x128xf32>
    tpu.vector_store %arg3[%c60, %c0_26], %68 {strides = array<i32>} : memref<64x128xf32, #tpu.memory_space<vmem>>, vector<3x128xf32>,
    %c0_27 = arith.constant 0 : index
    %c0_28 = arith.constant 0 : index
    %71 = vector.load %arg3[%c0_27, %c0_28] : memref<64x128xf32, #tpu.memory_space<vmem>>, vector<64x128xf32>
    %72 = tpu.transpose %71, [1, 0] : vector<64x128xf32> -> vector<128x64xf32>
    %73 = vector.extract_strided_slice %72 {offsets = [0, 0], sizes = [128, 63], strides = [1, 1]} : vector<128x64xf32> to vector<128x63xf32>
    %c0_29 = arith.constant 0 : index
    %c0_30 = arith.constant 0 : index
    %74 = vector.load %arg2[%c0_29, %c0_30] : memref<128x63xf32, #tpu.memory_space<vmem>>, vector<128x63xf32>
    tpu.vector_store %arg2[%c0_29, %c0_30], %73 {strides = array<i32>} : memref<128x63xf32, #tpu.memory_space<vmem>>, vector<128x63xf32>,
    return
  }
  func.func @transform_0(%arg0: i32) -> (i32, i32) {
    %c0_i32 = arith.constant 0 : i32
    %c0_i32_0 = arith.constant 0 : i32
    return %c0_i32, %arg0 : i32, i32
  }
  func.func @transform_1(%arg0: i32) -> (i32, i32) {
    %c0_i32 = arith.constant 0 : i32
    %c0_i32_0 = arith.constant 0 : i32
    return %arg0, %c0_i32 : i32, i32
  }
}

module attributes {stable_mosaic.version = 11 : i64} {
  func.func @_slab_kernel(%arg0: i32, %arg1: memref<8x1024xf32, #tpu.memory_space<vmem>>, %arg2: memref<21x8x1024xf32, #tpu.memory_space<vmem>>) attributes {dimension_semantics = [#tpu.dimension_semantics<parallel>], iteration_bounds = array<i64: 1>, scalar_prefetch = 0 : i64, scratch_operands = 0 : i64, tpu.core_type = #tpu.core_type<tc>, window_params = [{transform_indices = @transform_0, window_bounds = array<i64: 8, 1024>}, {transform_indices = @transform_1, window_bounds = array<i64: 21, 8, 1024>}]} {
    %c0 = arith.constant 0 : index
    %c0_0 = arith.constant 0 : index
    %0 = vector.load %arg1[%c0, %c0_0] : memref<8x1024xf32, #tpu.memory_space<vmem>>, vector<8x1024xf32>
    %c0_1 = arith.constant 0 : index
    %c0_2 = arith.constant 0 : index
    %c0_3 = arith.constant 0 : index
    %1 = vector.load %arg2[%c0_1, %c0_2, %c0_3] : memref<21x8x1024xf32, #tpu.memory_space<vmem>>, vector<1x8x1024xf32>
    %2 = vector.shape_cast %1 : vector<1x8x1024xf32> to vector<8x1024xf32>
    %3 = vector.shape_cast %0 : vector<8x1024xf32> to vector<1x8x1024xf32>
    tpu.vector_store %arg2[%c0_1, %c0_2, %c0_3], %3 {strides = array<i32>} : memref<21x8x1024xf32, #tpu.memory_space<vmem>>, vector<1x8x1024xf32>,
    %cst = arith.constant 1.000000e+00 : f32
    %4 = vector.broadcast %cst : f32 to vector<8x1024xf32>
    %5 = arith.mulf %0, %4 : vector<8x1024xf32>
    %6 = math.sin %5 : vector<8x1024xf32>
    %7 = math.cos %5 : vector<8x1024xf32>
    %c1 = arith.constant 1 : index
    %c0_4 = arith.constant 0 : index
    %c0_5 = arith.constant 0 : index
    %8 = vector.load %arg2[%c1, %c0_4, %c0_5] : memref<21x8x1024xf32, #tpu.memory_space<vmem>>, vector<1x8x1024xf32>
    %9 = vector.shape_cast %8 : vector<1x8x1024xf32> to vector<8x1024xf32>
    %10 = vector.shape_cast %6 : vector<8x1024xf32> to vector<1x8x1024xf32>
    tpu.vector_store %arg2[%c1, %c0_4, %c0_5], %10 {strides = array<i32>} : memref<21x8x1024xf32, #tpu.memory_space<vmem>>, vector<1x8x1024xf32>,
    %c2 = arith.constant 2 : index
    %c0_6 = arith.constant 0 : index
    %c0_7 = arith.constant 0 : index
    %11 = vector.load %arg2[%c2, %c0_6, %c0_7] : memref<21x8x1024xf32, #tpu.memory_space<vmem>>, vector<1x8x1024xf32>
    %12 = vector.shape_cast %11 : vector<1x8x1024xf32> to vector<8x1024xf32>
    %13 = vector.shape_cast %7 : vector<8x1024xf32> to vector<1x8x1024xf32>
    tpu.vector_store %arg2[%c2, %c0_6, %c0_7], %13 {strides = array<i32>} : memref<21x8x1024xf32, #tpu.memory_space<vmem>>, vector<1x8x1024xf32>,
    %14 = arith.mulf %6, %7 : vector<8x1024xf32>
    %15 = arith.addf %14, %14 : vector<8x1024xf32>
    %16 = arith.mulf %7, %7 : vector<8x1024xf32>
    %17 = arith.mulf %6, %6 : vector<8x1024xf32>
    %18 = arith.subf %16, %17 : vector<8x1024xf32>
    %c3 = arith.constant 3 : index
    %c0_8 = arith.constant 0 : index
    %c0_9 = arith.constant 0 : index
    %19 = vector.load %arg2[%c3, %c0_8, %c0_9] : memref<21x8x1024xf32, #tpu.memory_space<vmem>>, vector<1x8x1024xf32>
    %20 = vector.shape_cast %19 : vector<1x8x1024xf32> to vector<8x1024xf32>
    %21 = vector.shape_cast %15 : vector<8x1024xf32> to vector<1x8x1024xf32>
    tpu.vector_store %arg2[%c3, %c0_8, %c0_9], %21 {strides = array<i32>} : memref<21x8x1024xf32, #tpu.memory_space<vmem>>, vector<1x8x1024xf32>,
    %c4 = arith.constant 4 : index
    %c0_10 = arith.constant 0 : index
    %c0_11 = arith.constant 0 : index
    %22 = vector.load %arg2[%c4, %c0_10, %c0_11] : memref<21x8x1024xf32, #tpu.memory_space<vmem>>, vector<1x8x1024xf32>
    %23 = vector.shape_cast %22 : vector<1x8x1024xf32> to vector<8x1024xf32>
    %24 = vector.shape_cast %18 : vector<8x1024xf32> to vector<1x8x1024xf32>
    tpu.vector_store %arg2[%c4, %c0_10, %c0_11], %24 {strides = array<i32>} : memref<21x8x1024xf32, #tpu.memory_space<vmem>>, vector<1x8x1024xf32>,
    %25 = arith.mulf %15, %18 : vector<8x1024xf32>
    %26 = arith.addf %25, %25 : vector<8x1024xf32>
    %27 = arith.mulf %18, %18 : vector<8x1024xf32>
    %28 = arith.mulf %15, %15 : vector<8x1024xf32>
    %29 = arith.subf %27, %28 : vector<8x1024xf32>
    %c5 = arith.constant 5 : index
    %c0_12 = arith.constant 0 : index
    %c0_13 = arith.constant 0 : index
    %30 = vector.load %arg2[%c5, %c0_12, %c0_13] : memref<21x8x1024xf32, #tpu.memory_space<vmem>>, vector<1x8x1024xf32>
    %31 = vector.shape_cast %30 : vector<1x8x1024xf32> to vector<8x1024xf32>
    %32 = vector.shape_cast %26 : vector<8x1024xf32> to vector<1x8x1024xf32>
    tpu.vector_store %arg2[%c5, %c0_12, %c0_13], %32 {strides = array<i32>} : memref<21x8x1024xf32, #tpu.memory_space<vmem>>, vector<1x8x1024xf32>,
    %c6 = arith.constant 6 : index
    %c0_14 = arith.constant 0 : index
    %c0_15 = arith.constant 0 : index
    %33 = vector.load %arg2[%c6, %c0_14, %c0_15] : memref<21x8x1024xf32, #tpu.memory_space<vmem>>, vector<1x8x1024xf32>
    %34 = vector.shape_cast %33 : vector<1x8x1024xf32> to vector<8x1024xf32>
    %35 = vector.shape_cast %29 : vector<8x1024xf32> to vector<1x8x1024xf32>
    tpu.vector_store %arg2[%c6, %c0_14, %c0_15], %35 {strides = array<i32>} : memref<21x8x1024xf32, #tpu.memory_space<vmem>>, vector<1x8x1024xf32>,
    %36 = arith.mulf %26, %29 : vector<8x1024xf32>
    %37 = arith.addf %36, %36 : vector<8x1024xf32>
    %38 = arith.mulf %29, %29 : vector<8x1024xf32>
    %39 = arith.mulf %26, %26 : vector<8x1024xf32>
    %40 = arith.subf %38, %39 : vector<8x1024xf32>
    %c7 = arith.constant 7 : index
    %c0_16 = arith.constant 0 : index
    %c0_17 = arith.constant 0 : index
    %41 = vector.load %arg2[%c7, %c0_16, %c0_17] : memref<21x8x1024xf32, #tpu.memory_space<vmem>>, vector<1x8x1024xf32>
    %42 = vector.shape_cast %41 : vector<1x8x1024xf32> to vector<8x1024xf32>
    %43 = vector.shape_cast %37 : vector<8x1024xf32> to vector<1x8x1024xf32>
    tpu.vector_store %arg2[%c7, %c0_16, %c0_17], %43 {strides = array<i32>} : memref<21x8x1024xf32, #tpu.memory_space<vmem>>, vector<1x8x1024xf32>,
    %c8 = arith.constant 8 : index
    %c0_18 = arith.constant 0 : index
    %c0_19 = arith.constant 0 : index
    %44 = vector.load %arg2[%c8, %c0_18, %c0_19] : memref<21x8x1024xf32, #tpu.memory_space<vmem>>, vector<1x8x1024xf32>
    %45 = vector.shape_cast %44 : vector<1x8x1024xf32> to vector<8x1024xf32>
    %46 = vector.shape_cast %40 : vector<8x1024xf32> to vector<1x8x1024xf32>
    tpu.vector_store %arg2[%c8, %c0_18, %c0_19], %46 {strides = array<i32>} : memref<21x8x1024xf32, #tpu.memory_space<vmem>>, vector<1x8x1024xf32>,
    %cst_20 = arith.constant 1.600000e+01 : f32
    %47 = vector.broadcast %cst_20 : f32 to vector<8x1024xf32>
    %48 = arith.mulf %0, %47 : vector<8x1024xf32>
    %49 = math.sin %48 : vector<8x1024xf32>
    %50 = math.cos %48 : vector<8x1024xf32>
    %c9 = arith.constant 9 : index
    %c0_21 = arith.constant 0 : index
    %c0_22 = arith.constant 0 : index
    %51 = vector.load %arg2[%c9, %c0_21, %c0_22] : memref<21x8x1024xf32, #tpu.memory_space<vmem>>, vector<1x8x1024xf32>
    %52 = vector.shape_cast %51 : vector<1x8x1024xf32> to vector<8x1024xf32>
    %53 = vector.shape_cast %49 : vector<8x1024xf32> to vector<1x8x1024xf32>
    tpu.vector_store %arg2[%c9, %c0_21, %c0_22], %53 {strides = array<i32>} : memref<21x8x1024xf32, #tpu.memory_space<vmem>>, vector<1x8x1024xf32>,
    %c10 = arith.constant 10 : index
    %c0_23 = arith.constant 0 : index
    %c0_24 = arith.constant 0 : index
    %54 = vector.load %arg2[%c10, %c0_23, %c0_24] : memref<21x8x1024xf32, #tpu.memory_space<vmem>>, vector<1x8x1024xf32>
    %55 = vector.shape_cast %54 : vector<1x8x1024xf32> to vector<8x1024xf32>
    %56 = vector.shape_cast %50 : vector<8x1024xf32> to vector<1x8x1024xf32>
    tpu.vector_store %arg2[%c10, %c0_23, %c0_24], %56 {strides = array<i32>} : memref<21x8x1024xf32, #tpu.memory_space<vmem>>, vector<1x8x1024xf32>,
    %57 = arith.mulf %49, %50 : vector<8x1024xf32>
    %58 = arith.addf %57, %57 : vector<8x1024xf32>
    %59 = arith.mulf %50, %50 : vector<8x1024xf32>
    %60 = arith.mulf %49, %49 : vector<8x1024xf32>
    %61 = arith.subf %59, %60 : vector<8x1024xf32>
    %c11 = arith.constant 11 : index
    %c0_25 = arith.constant 0 : index
    %c0_26 = arith.constant 0 : index
    %62 = vector.load %arg2[%c11, %c0_25, %c0_26] : memref<21x8x1024xf32, #tpu.memory_space<vmem>>, vector<1x8x1024xf32>
    %63 = vector.shape_cast %62 : vector<1x8x1024xf32> to vector<8x1024xf32>
    %64 = vector.shape_cast %58 : vector<8x1024xf32> to vector<1x8x1024xf32>
    tpu.vector_store %arg2[%c11, %c0_25, %c0_26], %64 {strides = array<i32>} : memref<21x8x1024xf32, #tpu.memory_space<vmem>>, vector<1x8x1024xf32>,
    %c12 = arith.constant 12 : index
    %c0_27 = arith.constant 0 : index
    %c0_28 = arith.constant 0 : index
    %65 = vector.load %arg2[%c12, %c0_27, %c0_28] : memref<21x8x1024xf32, #tpu.memory_space<vmem>>, vector<1x8x1024xf32>
    %66 = vector.shape_cast %65 : vector<1x8x1024xf32> to vector<8x1024xf32>
    %67 = vector.shape_cast %61 : vector<8x1024xf32> to vector<1x8x1024xf32>
    tpu.vector_store %arg2[%c12, %c0_27, %c0_28], %67 {strides = array<i32>} : memref<21x8x1024xf32, #tpu.memory_space<vmem>>, vector<1x8x1024xf32>,
    %68 = arith.mulf %58, %61 : vector<8x1024xf32>
    %69 = arith.addf %68, %68 : vector<8x1024xf32>
    %70 = arith.mulf %61, %61 : vector<8x1024xf32>
    %71 = arith.mulf %58, %58 : vector<8x1024xf32>
    %72 = arith.subf %70, %71 : vector<8x1024xf32>
    %c13 = arith.constant 13 : index
    %c0_29 = arith.constant 0 : index
    %c0_30 = arith.constant 0 : index
    %73 = vector.load %arg2[%c13, %c0_29, %c0_30] : memref<21x8x1024xf32, #tpu.memory_space<vmem>>, vector<1x8x1024xf32>
    %74 = vector.shape_cast %73 : vector<1x8x1024xf32> to vector<8x1024xf32>
    %75 = vector.shape_cast %69 : vector<8x1024xf32> to vector<1x8x1024xf32>
    tpu.vector_store %arg2[%c13, %c0_29, %c0_30], %75 {strides = array<i32>} : memref<21x8x1024xf32, #tpu.memory_space<vmem>>, vector<1x8x1024xf32>,
    %c14 = arith.constant 14 : index
    %c0_31 = arith.constant 0 : index
    %c0_32 = arith.constant 0 : index
    %76 = vector.load %arg2[%c14, %c0_31, %c0_32] : memref<21x8x1024xf32, #tpu.memory_space<vmem>>, vector<1x8x1024xf32>
    %77 = vector.shape_cast %76 : vector<1x8x1024xf32> to vector<8x1024xf32>
    %78 = vector.shape_cast %72 : vector<8x1024xf32> to vector<1x8x1024xf32>
    tpu.vector_store %arg2[%c14, %c0_31, %c0_32], %78 {strides = array<i32>} : memref<21x8x1024xf32, #tpu.memory_space<vmem>>, vector<1x8x1024xf32>,
    %79 = arith.mulf %69, %72 : vector<8x1024xf32>
    %80 = arith.addf %79, %79 : vector<8x1024xf32>
    %81 = arith.mulf %72, %72 : vector<8x1024xf32>
    %82 = arith.mulf %69, %69 : vector<8x1024xf32>
    %83 = arith.subf %81, %82 : vector<8x1024xf32>
    %c15 = arith.constant 15 : index
    %c0_33 = arith.constant 0 : index
    %c0_34 = arith.constant 0 : index
    %84 = vector.load %arg2[%c15, %c0_33, %c0_34] : memref<21x8x1024xf32, #tpu.memory_space<vmem>>, vector<1x8x1024xf32>
    %85 = vector.shape_cast %84 : vector<1x8x1024xf32> to vector<8x1024xf32>
    %86 = vector.shape_cast %80 : vector<8x1024xf32> to vector<1x8x1024xf32>
    tpu.vector_store %arg2[%c15, %c0_33, %c0_34], %86 {strides = array<i32>} : memref<21x8x1024xf32, #tpu.memory_space<vmem>>, vector<1x8x1024xf32>,
    %c16 = arith.constant 16 : index
    %c0_35 = arith.constant 0 : index
    %c0_36 = arith.constant 0 : index
    %87 = vector.load %arg2[%c16, %c0_35, %c0_36] : memref<21x8x1024xf32, #tpu.memory_space<vmem>>, vector<1x8x1024xf32>
    %88 = vector.shape_cast %87 : vector<1x8x1024xf32> to vector<8x1024xf32>
    %89 = vector.shape_cast %83 : vector<8x1024xf32> to vector<1x8x1024xf32>
    tpu.vector_store %arg2[%c16, %c0_35, %c0_36], %89 {strides = array<i32>} : memref<21x8x1024xf32, #tpu.memory_space<vmem>>, vector<1x8x1024xf32>,
    %cst_37 = arith.constant 2.560000e+02 : f32
    %90 = vector.broadcast %cst_37 : f32 to vector<8x1024xf32>
    %91 = arith.mulf %0, %90 : vector<8x1024xf32>
    %92 = math.sin %91 : vector<8x1024xf32>
    %93 = math.cos %91 : vector<8x1024xf32>
    %c17 = arith.constant 17 : index
    %c0_38 = arith.constant 0 : index
    %c0_39 = arith.constant 0 : index
    %94 = vector.load %arg2[%c17, %c0_38, %c0_39] : memref<21x8x1024xf32, #tpu.memory_space<vmem>>, vector<1x8x1024xf32>
    %95 = vector.shape_cast %94 : vector<1x8x1024xf32> to vector<8x1024xf32>
    %96 = vector.shape_cast %92 : vector<8x1024xf32> to vector<1x8x1024xf32>
    tpu.vector_store %arg2[%c17, %c0_38, %c0_39], %96 {strides = array<i32>} : memref<21x8x1024xf32, #tpu.memory_space<vmem>>, vector<1x8x1024xf32>,
    %c18 = arith.constant 18 : index
    %c0_40 = arith.constant 0 : index
    %c0_41 = arith.constant 0 : index
    %97 = vector.load %arg2[%c18, %c0_40, %c0_41] : memref<21x8x1024xf32, #tpu.memory_space<vmem>>, vector<1x8x1024xf32>
    %98 = vector.shape_cast %97 : vector<1x8x1024xf32> to vector<8x1024xf32>
    %99 = vector.shape_cast %93 : vector<8x1024xf32> to vector<1x8x1024xf32>
    tpu.vector_store %arg2[%c18, %c0_40, %c0_41], %99 {strides = array<i32>} : memref<21x8x1024xf32, #tpu.memory_space<vmem>>, vector<1x8x1024xf32>,
    %100 = arith.mulf %92, %93 : vector<8x1024xf32>
    %101 = arith.addf %100, %100 : vector<8x1024xf32>
    %102 = arith.mulf %93, %93 : vector<8x1024xf32>
    %103 = arith.mulf %92, %92 : vector<8x1024xf32>
    %104 = arith.subf %102, %103 : vector<8x1024xf32>
    %c19 = arith.constant 19 : index
    %c0_42 = arith.constant 0 : index
    %c0_43 = arith.constant 0 : index
    %105 = vector.load %arg2[%c19, %c0_42, %c0_43] : memref<21x8x1024xf32, #tpu.memory_space<vmem>>, vector<1x8x1024xf32>
    %106 = vector.shape_cast %105 : vector<1x8x1024xf32> to vector<8x1024xf32>
    %107 = vector.shape_cast %101 : vector<8x1024xf32> to vector<1x8x1024xf32>
    tpu.vector_store %arg2[%c19, %c0_42, %c0_43], %107 {strides = array<i32>} : memref<21x8x1024xf32, #tpu.memory_space<vmem>>, vector<1x8x1024xf32>,
    %c20 = arith.constant 20 : index
    %c0_44 = arith.constant 0 : index
    %c0_45 = arith.constant 0 : index
    %108 = vector.load %arg2[%c20, %c0_44, %c0_45] : memref<21x8x1024xf32, #tpu.memory_space<vmem>>, vector<1x8x1024xf32>
    %109 = vector.shape_cast %108 : vector<1x8x1024xf32> to vector<8x1024xf32>
    %110 = vector.shape_cast %104 : vector<8x1024xf32> to vector<1x8x1024xf32>
    tpu.vector_store %arg2[%c20, %c0_44, %c0_45], %110 {strides = array<i32>} : memref<21x8x1024xf32, #tpu.memory_space<vmem>>, vector<1x8x1024xf32>,
    return
  }
  func.func @transform_0(%arg0: i32) -> (i32, i32) {
    %c0_i32 = arith.constant 0 : i32
    %c0_i32_0 = arith.constant 0 : i32
    return %arg0, %c0_i32 : i32, i32
  }
  func.func @transform_1(%arg0: i32) -> (i32, i32, i32) {
    %c0_i32 = arith.constant 0 : i32
    %c0_i32_0 = arith.constant 0 : i32
    %c0_i32_1 = arith.constant 0 : i32
    return %c0_i32, %arg0, %c0_i32_0 : i32, i32, i32
  }
}

</mosaic_0001>

<llo_original>
// kernel: tpu_custom_call.1
$region0: #{tpu_custom_call.1}
  #allocation0 [shape = 'u32[]', space=smem, size = 0x4, offset = 0x4, fixed_abs, tag = 'smem constant byte address 0x4 - core index']
  #allocation1 [shape = 'u32[72,128]{1,0:T(1,128)}', space=vmem, size = 0x9000, scoped, tag = 'internal scratch']
  #allocation2 [shape = 'f32[64,128]{1,0:T(8,128)}', space=vmem, size = 0x8000, scoped, tag = 'scratch operand']
  %s0 = inlined_call_operand.hbm [shape: f32[3,133], index: 0, kind: input, shape index: {}]
  %s1 = inlined_call_operand.vmem [shape: f32[133,63], index: 1, kind: output, shape index: {}]
  %s2 = sld [smem:[#allocation0]]
  $region89: #{tpu_custom_call.1} parent=0
    _
  %s4 = ssub.s32 1, %s2
  %s5 = scalar_select 0, %s4, %s2
  $region1: #{tpu_custom_call.1} parent=0
    #allocation3 [shape = 'u8[4096]{0}', space=vmem, size = 0x1000, scoped, tag = 'input window, operand 0']
    #allocation4 [shape = 's32[2]{0}', space=sflag, size = 0x8, scoped, tag = 'scoped memory for tpu_custom_call.1']
    #allocation5 [shape = 'u8[131072]{0}', space=vmem, size = 0x20000, scoped, tag = 'output window, operand 0']
    %6 = vsyncpa [#allocation4], 0
    %s7 = scalar_lea.sflag [#allocation4], 1
    %8 = vsyncpa %s7, 0
    loop: start=0, step=1, limit=4
    $region2: #{tpu_custom_call.1} parent=1 // loop_pre_header
      _
    $region3: #{tpu_custom_call.1} parent=1 // loop_header
      %s10 = sphi 0, %s14
      %p11 = scmp.ge.s32.totalorder %s10, 4
      %s20 = sphi 0, %s22
      %s23 = sphi 0, %s20
      %s24 = sphi 0, %s23
      %s40 = sphi 0, %s24
      %s46 = sphi 0, %s48
      %s49 = sphi 0, %s46
      %s50 = sphi 0, %s49
      %s66 = sphi 0, %s50
    $region4: #{tpu_custom_call.1} parent=1 // loop_header_branch
      %13 = sbr.rel (%p11) target = $region8
    $region5: #{tpu_custom_call.1} parent=1 // loop_body
      %s15 = ssub.s32 %s10, 1
      %s16 = ssub.s32 %s10, 2
      %s17 = sadd.s32 %s10, 1
      %s18 = ssub.s32 %s10, %s17
      %p19 = scmp.eq.s32.totalorder %s18, 0
      %s21 = sadd.s32 %s20, 1
      %s22 = scalar_select %p19, %s20, %s21
      %p25 = pneg %p19
      %p26 = scmp.eq.s32.totalorder %s10, 1
      %p27 = por %p25, %p26
      %p28 = scmp.ne.s32.totalorder %s20, %s23
      %p29 = scmp.eq.s32.totalorder %s10, 0
      %p30 = por %p28, %p29
      %p31 = scmp.ne.s32.totalorder %s20, %s23
      %p32 = scmp.eq.s32.totalorder %s15, 1
      %p33 = por %p31, %p32
      %p34 = scmp.ne.s32.totalorder %s23, %s24
      %p35 = scmp.eq.s32.totalorder %s15, 0
      %p36 = por %p34, %p35
      %p37 = scmp.ne.s32.totalorder %s23, %s24
      %p38 = scmp.eq.s32.totalorder %s16, 1
      %p39 = por %p37, %p38
      %p41 = scmp.ne.s32.totalorder %s24, %s40
      %p42 = scmp.eq.s32.totalorder %s16, 0
      %p43 = por %p41, %p42
      %s44 = ssub.s32 %s10, %s17
      %p45 = scmp.eq.s32.totalorder %s44, 0
      %s47 = sadd.s32 %s46, 1
      %s48 = scalar_select %p45, %s46, %s47
      %p51 = pneg %p45
      %p52 = scmp.eq.s32.totalorder %s10, 1
      %p53 = por %p51, %p52
      %p54 = scmp.ne.s32.totalorder %s46, %s49
      %p55 = scmp.eq.s32.totalorder %s10, 0
      %p56 = por %p54, %p55
      %p57 = scmp.ne.s32.totalorder %s46, %s49
      %p58 = scmp.eq.s32.totalorder %s15, 1
      %p59 = por %p57, %p58
      %p60 = scmp.ne.s32.totalorder %s49, %s50
      %p61 = scmp.eq.s32.totalorder %s15, 0
      %p62 = por %p60, %p61
      %p63 = scmp.ne.s32.totalorder %s49, %s50
      %p64 = scmp.eq.s32.totalorder %s16, 1
      %p65 = por %p63, %p64
      %p67 = scmp.ne.s32.totalorder %s50, %s66
      %p68 = scmp.eq.s32.totalorder %s16, 0
      %p69 = por %p67, %p68
      %p70 = scmp.le.s32.totalorder 1, %s10
      %p71 = scmp.lt.s32.totalorder %s10, 3
      %p72 = pnand %p70, %p71
      %p73 = pneg %p72
      // Predicated region
      $region9: #{tpu_custom_call.1} parent=5 // pred_check
        _
      $region10: #{tpu_custom_call.1} parent=5 // pred_check_branch
        %75 = sbr.rel (%p72) target = $region12
      $region11: #{tpu_custom_call.1} parent=5 // pred_region
        %s76 = ssub.s32 %s10, 1
      $region12: #{tpu_custom_call.1} parent=5 // pred_fallthru
        _
      %p77 = scmp.lt.s32.totalorder %s10, 2
      // Predicated region
      $region13: #{tpu_custom_call.1} parent=5 // pred_check
        %p78 = pneg %p77
      $region14: #{tpu_custom_call.1} parent=5 // pred_check_branch
        %80 = sbr.rel (%p78) target = $region16
      $region15: #{tpu_custom_call.1} parent=5 // pred_region
        // Predicated region
        $region17: #{tpu_custom_call.1} parent=15 // pred_check
          %p81 = pneg %p30
        $region18: #{tpu_custom_call.1} parent=15 // pred_check_branch
          %83 = sbr.rel (%p81) target = $region20
        $region19: #{tpu_custom_call.1} parent=15 // pred_region
          %s84 = sand.u32 %s20, 1
          %s85 = scalar_lea.sflag [#allocation4], %s84
          %s86 = sand.u32 %s20, 1
          %s87 = smul.addr %s86, 4
          %s88 = scalar_lea.vmem [#allocation3], %s87
          %90 = vsyncadd %s85, 0
          %s91 = smul.addr %s10, 4
          %s92 = scalar_lea.hbm %s0, %s91
          %s94 = sshll.u32 %s92, 4
          %s95 = int_to_ptr.hbm [resolvable:$true] %s94
          %s96 = sshll.u32 %s88, 4
          %s97 = int_to_ptr.vmem [resolvable:$true] %s96
          %99 = dma.hbm_to_vmem [thread:$0]  %s95, 64, %s97, %s85
        $region20: #{tpu_custom_call.1} parent=15 // pred_fallthru
          _
      $region16: #{tpu_custom_call.1} parent=5 // pred_fallthru
        _
      %p100 = scmp.le.s32.totalorder 1, %s10
      %p101 = scmp.lt.s32.totalorder %s10, 3
      %p102 = pnand %p100, %p101
      %p103 = pneg %p102
      // Predicated region
      $region21: #{tpu_custom_call.1} parent=5 // pred_check
        _
      $region22: #{tpu_custom_call.1} parent=5 // pred_check_branch
        %105 = sbr.rel (%p102) target = $region24
      $region23: #{tpu_custom_call.1} parent=5 // pred_region
        %s106 = ssub.s32 %s10, 1
        %s107 = sand.u32 %s23, 1
        %s108 = scalar_lea.sflag [#allocation4], %s107
        %s109 = sand.u32 %s23, 1
        %s110 = smul.addr %s109, 4
        %s111 = scalar_lea.vmem [#allocation3], %s110
        // Predicated region
        $region25: #{tpu_custom_call.1} parent=23 // pred_check
          %p112 = pneg %p36
        $region26: #{tpu_custom_call.1} parent=23 // pred_check_branch
          %114 = sbr.rel (%p112) target = $region28
        $region27: #{tpu_custom_call.1} parent=23 // pred_region
          %116 = dma.done %s108, 64
        $region28: #{tpu_custom_call.1} parent=23 // pred_fallthru
          _
        %s117 = sand.u32 %s23, 1
        %s118 = scalar_lea.sflag [#allocation4], %s117
        %s119 = sand.u32 %s23, 1
        %s120 = smul.addr %s119, 4
        %s121 = scalar_lea.vmem [#allocation3], %s120
        %p122 = pneg %p36
        %p123 = pneg %p33
        %p124 = pneg %p62
        %p125 = pneg %p59
        %s126 = sand.u32 %s49, 1
        %s127 = sand.u32 %s49, 1
        %s128 = smul.addr %s127, 128
        %s129 = scalar_lea.vmem [#allocation5], %s128
        %s130 = smul.u32 16, %s15
        %s131 = ssub.s32 17, %s130
        %p132 = scmp.lt.s32.totalorder %s131, 16
        %s133 = scalar_select %p132, %s131, 16
        %s134 = smul.u32 8, %s133
        %135 = vst [vmem:[#allocation2 + $0x3f] sm:$0x1] 0.0
        %v136 = vld [vmem:[%s111] sm:$0x7]
        %137 = vst [vmem:[#allocation2] sm:$0x7] %v136
        %v138 = vand.u32 2147483647, %v136
        %vm139 = vcmp.le.f32.partialorder %v138, 0.7853982
        %vm140 = vcmp.lt.s32.totalorder %v136, 0
        %v141 = vand.u32 %v136, 2139095040
        %v142 = vshrl.u32 %v141, 23
        %v143 = vsub.s32 %v142, 127
        %v144 = vand.u32 2147483647, %v136
        %v145 = vand.u32 %v144, 8388607
        %v146 = vor.u32 %v145, 8388608
        %v147 = vsub.s32 0, %v146
        %v148 = vadd.s32 %v143, 1
        %vm149 = vcmp.gt.s32.totalorder %v148, 0
        %v150 = vsel %vm149, %v148, 0
        %v151 = vshrl.u32 %v150, 5
        %v152 = vand.u32 %v150, 31
        %v153 = vsub.s32 32, %v152
        %v154 = vshrl.u32 683565275, %v153
        %v155 = vshll.u32 683565275, %v152
        %v156 = vshrl.u32 2475754826, %v153
        %v157 = vor.u32 %v155, %v156
        %v158 = vshll.u32 2475754826, %v152
        %v159 = vshrl.u32 2131351028, %v153
        %v160 = vor.u32 %v158, %v159
        %v161 = vshll.u32 2131351028, %v152
        %v162 = vshrl.u32 2102212464, %v153
        %v163 = vor.u32 %v161, %v162
        %v164 = vshll.u32 2102212464, %v152
        %v165 = vshrl.u32 920167782, %v153
        %v166 = vor.u32 %v164, %v165
        %v167 = vshll.u32 920167782, %v152
        %v168 = vshrl.u32 1326507024, %v153
        %v169 = vor.u32 %v167, %v168
        %vm170 = vcmp.lt.s32.totalorder %v151, 1
        %vm171 = vcmp.lt.s32.totalorder %v151, 2
        %vm172 = vcmp.lt.s32.totalorder %v151, 3
        %vm173 = vcmp.lt.s32.totalorder %v151, 4
        %v174 = vsel %vm170, %v154, %v157
        %v175 = vsel %vm173, %v163, 2102212464
        %v176 = vsel %vm172, %v160, %v175
        %v177 = vsel %vm171, %v174, %v176
        %v178 = vsel %vm170, %v157, %v160
        %v179 = vsel %vm173, %v166, 920167782
        %v180 = vsel %vm172, %v163, %v179
        %v181 = vsel %vm171, %v178, %v180
        %v182 = vsel %vm170, %v160, %v163
        %v183 = vsel %vm173, %v169, 1326507024
        %v184 = vsel %vm172, %v166, %v183
        %v185 = vsel %vm171, %v182, %v184
        %v186 = vshll.u32 %v146, 8
        %v187 = vand.u32 %v186, 65535
        %v188 = vshrl.u32 %v186, 16
        %v189 = vand.u32 %v185, 65535
        %v190 = vshrl.u32 %v185, 16
        %v191 = vmul.u32 %v187, %v189
        %v192 = vmul.u32 %v187, %v190
        %v193 = vmul.u32 %v188, %v189
        %v194 = vmul.u32 %v188, %v190
        %v195 = vshll.u32 %v192, 16
        %v196 = vshrl.u32 %v192, 16
        %v197 = vshll.u32 %v193, 16
        %v198 = vshrl.u32 %v193, 16
        %vm199 = vc.u32 %v191, %v195
        %v200 = vsel %vm199, 1, 0
        %v201 = vadd.s32 %v191, %v195
        %v202 = vadd.s32 %v194, %v200
        %vm203 = vc.u32 %v201, %v197
        %v204 = vsel %vm203, 1, 0
        %v205 = vadd.s32 %v201, %v197
        %v206 = vadd.s32 %v202, %v204
        %v207 = vadd.s32 %v206, %v196
        %v208 = vadd.s32 %v207, %v198
        %v209 = vand.u32 %v186, 65535
        %v210 = vshrl.u32 %v186, 16
        %v211 = vand.u32 %v181, 65535
        %v212 = vshrl.u32 %v181, 16
        %v213 = vmul.u32 %v209, %v211
        %v214 = vmul.u32 %v209, %v212
        %v215 = vmul.u32 %v210, %v211
        %v216 = vmul.u32 %v210, %v212
        %v217 = vshll.u32 %v214, 16
        %v218 = vshrl.u32 %v214, 16
        %v219 = vshll.u32 %v215, 16
        %v220 = vshrl.u32 %v215, 16
        %vm221 = vc.u32 %v213, %v217
        %v222 = vsel %vm221, 1, 0
        %v223 = vadd.s32 %v213, %v217
        %v224 = vadd.s32 %v216, %v222
        %vm225 = vc.u32 %v223, %v219
        %v226 = vsel %vm225, 1, 0
        %v227 = vadd.s32 %v223, %v219
        %v228 = vadd.s32 %v224, %v226
        %v229 = vadd.s32 %v228, %v218
        %v230 = vadd.s32 %v229, %v220
        %v231 = vmul.u32 %v186, %v177
        %v232 = vadd.s32 %v208, %v227
        %vm233 = vc.u32 %v208, %v227
        %v234 = vadd.s32 %v230, 1
        %v235 = vsel %vm233, %v234, %v230
        %v236 = vadd.s32 %v231, %v235
        %v237 = vadd.s32 %v236, 536870912
        %v238 = vshrl.u32 %v237, 30
        %v239 = vshll.u32 %v238, 30
        %v240 = vsub.s32 %v236, %v239
        %vm241 = vcmp.lt.s32.totalorder %v240, 0
        %v242 = vsub.s32 0, %v240
        %v243 = vsel %vm241, %v242, %v240
        %v244 = vclz %v243
        %v245 = vsub.s32 %v244, 2
        %vm246 = vcmp.gt.s32.totalorder 0, %v245
        %v247 = vsel %vm246, 0, %v245
        %v248 = vsub.s32 32, %v247
        %v249 = vshll.u32 %v240, %v247
        %v250 = vshrl.u32 %v232, %v248
        %v251 = vor.u32 %v249, %v250
        %v252 = vsub.s32 4294967266, %v247
        %v253 = vadd.s32 %v252, 127
        %v254 = vshll.u32 %v253, 23
        %v255 = vor.u32 4788187, %v254
        %v256 = vand.u32 2147483647, %v255
        %v258 = vcvt.s32.f32 %v251
        %v259 = vmul.f32 %v258, %v256
        %v260 = vxor.u32 %v259, 2147483648
        %v261 = vsel %vm140, %v260, %v259
        %v262 = vsub.s32 4, %v238
        %v263 = vsel %vm140, %v262, %v238
        %v264 = vsel %vm139, %v136, %v261
        %v265 = vsel %vm139, 0, %v263
        %v266 = vmul.f32 %v264, %v264
        %v267 = vmul.f32 %v266, -0.001358992
        %v268 = vadd.f32 %v267, 0.041655596
        %v269 = vmul.f32 %v266, %v268
        %v270 = vadd.f32 %v269, -0.4999988
        %v271 = vmul.f32 %v266, %v270
        %v272 = vadd.f32 1.0, %v271
        %v273 = vmul.f32 %v264, %v264
        %v274 = vmul.f32 %v273, -0.00019511016
        %v275 = vadd.f32 %v274, 0.008332121
        %v276 = vmul.f32 %v273, %v275
        %v277 = vadd.f32 %v276, -0.16666654
        %v278 = vmul.f32 %v273, %v277
        %v279 = vadd.f32 %v278, 1.0
        %v280 = vmul.f32 %v279, %v264
        %vm281 = vweird.f32 %v136
        %v282 = vadd.s32 %v265, 3
        %v283 = vand.u32 %v282, 3
        %vm284 = vcmp.lt.s32.totalorder %v283, 2
        %vm285 = vcmp.eq.s32.totalorder %v283, 0
        %v286 = vxor.u32 %v280, 2147483648
        %v287 = vsel %vm285, %v272, %v286
        %vm288 = vcmp.eq.s32.totalorder %v283, 2
        %v289 = vxor.u32 %v272, 2147483648
        %v290 = vsel %vm288, %v289, %v280
        %v291 = vsel %vm284, %v287, %v290
        %v292 = vsel %vm281, nan, %v291
        %v293 = vand.u32 2147483647, %v136
        %vm294 = vcmp.le.f32.partialorder %v293, 0.7853982
        %vm295 = vcmp.lt.s32.totalorder %v136, 0
        %v296 = vand.u32 %v136, 2139095040
        %v297 = vshrl.u32 %v296, 23
        %v298 = vsub.s32 %v297, 127
        %v299 = vand.u32 2147483647, %v136
        %v300 = vand.u32 %v299, 8388607
        %v301 = vor.u32 %v300, 8388608
        %v302 = vsub.s32 0, %v301
        %v303 = vadd.s32 %v298, 1
        %vm304 = vcmp.gt.s32.totalorder %v303, 0
        %v305 = vsel %vm304, %v303, 0
        %v306 = vshrl.u32 %v305, 5
        %v307 = vand.u32 %v305, 31
        %v308 = vsub.s32 32, %v307
        %v309 = vshrl.u32 683565275, %v308
        %v310 = vshll.u32 683565275, %v307
        %v311 = vshrl.u32 2475754826, %v308
        %v312 = vor.u32 %v310, %v311
        %v313 = vshll.u32 2475754826, %v307
        %v314 = vshrl.u32 2131351028, %v308
        %v315 = vor.u32 %v313, %v314
        %v316 = vshll.u32 2131351028, %v307
        %v317 = vshrl.u32 2102212464, %v308
        %v318 = vor.u32 %v316, %v317
        %v319 = vshll.u32 2102212464, %v307
        %v320 = vshrl.u32 920167782, %v308
        %v321 = vor.u32 %v319, %v320
        %v322 = vshll.u32 920167782, %v307
        %v323 = vshrl.u32 1326507024, %v308
        %v324 = vor.u32 %v322, %v323
        %vm325 = vcmp.lt.s32.totalorder %v306, 1
        %vm326 = vcmp.lt.s32.totalorder %v306, 2
        %vm327 = vcmp.lt.s32.totalorder %v306, 3
        %vm328 = vcmp.lt.s32.totalorder %v306, 4
        %v329 = vsel %vm325, %v309, %v312
        %v330 = vsel %vm328, %v318, 2102212464
        %v331 = vsel %vm327, %v315, %v330
        %v332 = vsel %vm326, %v329, %v331
        %v333 = vsel %vm325, %v312, %v315
        %v334 = vsel %vm328, %v321, 920167782
        %v335 = vsel %vm327, %v318, %v334
        %v336 = vsel %vm326, %v333, %v335
        %v337 = vsel %vm325, %v315, %v318
        %v338 = vsel %vm328, %v324, 1326507024
        %v339 = vsel %vm327, %v321, %v338
        %v340 = vsel %vm326, %v337, %v339
        %v341 = vshll.u32 %v301, 8
        %v342 = vand.u32 %v341, 65535
        %v343 = vshrl.u32 %v341, 16
        %v344 = vand.u32 %v340, 65535
        %v345 = vshrl.u32 %v340, 16
        %v346 = vmul.u32 %v342, %v344
        %v347 = vmul.u32 %v342, %v345
        %v348 = vmul.u32 %v343, %v344
        %v349 = vmul.u32 %v343, %v345
        %v350 = vshll.u32 %v347, 16
        %v351 = vshrl.u32 %v347, 16
        %v352 = vshll.u32 %v348, 16
        %v353 = vshrl.u32 %v348, 16
        %vm354 = vc.u32 %v346, %v350
        %v355 = vsel %vm354, 1, 0
        %v356 = vadd.s32 %v346, %v350
        %v357 = vadd.s32 %v349, %v355
        %vm358 = vc.u32 %v356, %v352
        %v359 = vsel %vm358, 1, 0
        %v360 = vadd.s32 %v356, %v352
        %v361 = vadd.s32 %v357, %v359
        %v362 = vadd.s32 %v361, %v351
        %v363 = vadd.s32 %v362, %v353
        %v364 = vand.u32 %v341, 65535
        %v365 = vshrl.u32 %v341, 16
        %v366 = vand.u32 %v336, 65535
        %v367 = vshrl.u32 %v336, 16
        %v368 = vmul.u32 %v364, %v366
        %v369 = vmul.u32 %v364, %v367
        %v370 = vmul.u32 %v365, %v366
        %v371 = vmul.u32 %v365, %v367
        %v372 = vshll.u32 %v369, 16
        %v373 = vshrl.u32 %v369, 16
        %v374 = vshll.u32 %v370, 16
        %v375 = vshrl.u32 %v370, 16
        %vm376 = vc.u32 %v368, %v372
        %v377 = vsel %vm376, 1, 0
        %v378 = vadd.s32 %v368, %v372
        %v379 = vadd.s32 %v371, %v377
        %vm380 = vc.u32 %v378, %v374
        %v381 = vsel %vm380, 1, 0
        %v382 = vadd.s32 %v378, %v374
        %v383 = vadd.s32 %v379, %v381
        %v384 = vadd.s32 %v383, %v373
        %v385 = vadd.s32 %v384, %v375
        %v386 = vmul.u32 %v341, %v332
        %v387 = vadd.s32 %v363, %v382
        %vm388 = vc.u32 %v363, %v382
        %v389 = vadd.s32 %v385, 1
        %v390 = vsel %vm388, %v389, %v385
        %v391 = vadd.s32 %v386, %v390
        %v392 = vadd.s32 %v391, 536870912
        %v393 = vshrl.u32 %v392, 30
        %v394 = vshll.u32 %v393, 30
        %v395 = vsub.s32 %v391, %v394
        %vm396 = vcmp.lt.s32.totalorder %v395, 0
        %v397 = vsub.s32 0, %v395
        %v398 = vsel %vm396, %v397, %v395
        %v399 = vclz %v398
        %v400 = vsub.s32 %v399, 2
        %vm401 = vcmp.gt.s32.totalorder 0, %v400
        %v402 = vsel %vm401, 0, %v400
        %v403 = vsub.s32 32, %v402
        %v404 = vshll.u32 %v395, %v402
        %v405 = vshrl.u32 %v387, %v403
        %v406 = vor.u32 %v404, %v405
        %v407 = vsub.s32 4294967266, %v402
        %v408 = vadd.s32 %v407, 127
        %v409 = vshll.u32 %v408, 23
        %v410 = vor.u32 4788187, %v409
        %v411 = vand.u32 2147483647, %v410
        %v413 = vcvt.s32.f32 %v406
        %v414 = vmul.f32 %v413, %v411
        %v415 = vxor.u32 %v414, 2147483648
        %v416 = vsel %vm295, %v415, %v414
        %v417 = vsub.s32 4, %v393
        %v418 = vsel %vm295, %v417, %v393
        %v419 = vsel %vm294, %v136, %v416
        %v420 = vsel %vm294, 0, %v418
        %v421 = vmul.f32 %v419, %v419
        %v422 = vmul.f32 %v421, -0.001358992
        %v423 = vadd.f32 %v422, 0.041655596
        %v424 = vmul.f32 %v421, %v423
        %v425 = vadd.f32 %v424, -0.4999988
        %v426 = vmul.f32 %v421, %v425
        %v427 = vadd.f32 1.0, %v426
        %v428 = vmul.f32 %v419, %v419
        %v429 = vmul.f32 %v428, -0.00019511016
        %v430 = vadd.f32 %v429, 0.008332121
        %v431 = vmul.f32 %v428, %v430
        %v432 = vadd.f32 %v431, -0.16666654
        %v433 = vmul.f32 %v428, %v432
        %v434 = vadd.f32 %v433, 1.0
        %v435 = vmul.f32 %v434, %v419
        %vm436 = vweird.f32 %v136
        %v437 = vand.u32 %v420, 3
        %vm438 = vcmp.lt.s32.totalorder %v437, 2
        %vm439 = vcmp.eq.s32.totalorder %v437, 0
        %v440 = vxor.u32 %v435, 2147483648
        %v441 = vsel %vm439, %v427, %v440
        %vm442 = vcmp.eq.s32.totalorder %v437, 2
        %v443 = vxor.u32 %v427, 2147483648
        %v444 = vsel %vm442, %v443, %v435
        %v445 = vsel %vm438, %v441, %v444
        %v446 = vsel %vm436, nan, %v445
        %447 = vst [vmem:[#allocation2 + $0x3] sm:$0x7] %v292
        %448 = vst [vmem:[#allocation2 + $0x6] sm:$0x7] %v446
        %v449 = vmul.f32 %v292, %v446
        %v450 = vadd.f32 %v449, %v449
        %v451 = vmul.f32 %v446, %v446
        %v452 = vmul.f32 %v292, %v292
        %v453 = vsub.f32 %v451, %v452
        %454 = vst [vmem:[#allocation2 + $0x9] sm:$0x7] %v450
        %455 = vst [vmem:[#allocation2 + $0xc] sm:$0x7] %v453
        %v456 = vmul.f32 %v450, %v453
        %v457 = vadd.f32 %v456, %v456
        %v458 = vmul.f32 %v453, %v453
        %v459 = vmul.f32 %v450, %v450
        %v460 = vsub.f32 %v458, %v459
        %461 = vst [vmem:[#allocation2 + $0xf] sm:$0x7] %v457
        %462 = vst [vmem:[#allocation2 + $0x12] sm:$0x7] %v460
        %v463 = vmul.f32 %v457, %v460
        %v464 = vadd.f32 %v463, %v463
        %v465 = vmul.f32 %v460, %v460
        %v466 = vmul.f32 %v457, %v457
        %v467 = vsub.f32 %v465, %v466
        %468 = vst [vmem:[#allocation2 + $0x15] sm:$0x7] %v464
        %469 = vst [vmem:[#allocation2 + $0x18] sm:$0x7] %v467
        %v470 = vmul.f32 %v136, 16.0
        %v471 = vand.u32 2147483647, %v470
        %vm472 = vcmp.le.f32.partialorder %v471, 0.7853982
        %vm473 = vcmp.lt.s32.totalorder %v470, 0
        %v474 = vand.u32 %v470, 2139095040
        %v475 = vshrl.u32 %v474, 23
        %v476 = vsub.s32 %v475, 127
        %v477 = vand.u32 2147483647, %v470
        %v478 = vand.u32 %v477, 8388607
        %v479 = vor.u32 %v478, 8388608
        %v480 = vsub.s32 0, %v479
        %v481 = vadd.s32 %v476, 1
        %vm482 = vcmp.gt.s32.totalorder %v481, 0
        %v483 = vsel %vm482, %v481, 0
        %v484 = vshrl.u32 %v483, 5
        %v485 = vand.u32 %v483, 31
        %v486 = vsub.s32 32, %v485
        %v487 = vshrl.u32 683565275, %v486
        %v488 = vshll.u32 683565275, %v485
        %v489 = vshrl.u32 2475754826, %v486
        %v490 = vor.u32 %v488, %v489
        %v491 = vshll.u32 2475754826, %v485
        %v492 = vshrl.u32 2131351028, %v486
        %v493 = vor.u32 %v491, %v492
        %v494 = vshll.u32 2131351028, %v485
        %v495 = vshrl.u32 2102212464, %v486
        %v496 = vor.u32 %v494, %v495
        %v497 = vshll.u32 2102212464, %v485
        %v498 = vshrl.u32 920167782, %v486
        %v499 = vor.u32 %v497, %v498
        %v500 = vshll.u32 920167782, %v485
        %v501 = vshrl.u32 1326507024, %v486
        %v502 = vor.u32 %v500, %v501
        %vm503 = vcmp.lt.s32.totalorder %v484, 1
        %vm504 = vcmp.lt.s32.totalorder %v484, 2
        %vm505 = vcmp.lt.s32.totalorder %v484, 3
        %vm506 = vcmp.lt.s32.totalorder %v484, 4
        %v507 = vsel %vm503, %v487, %v490
        %v508 = vsel %vm506, %v496, 2102212464
        %v509 = vsel %vm505, %v493, %v508
        %v510 = vsel %vm504, %v507, %v509
        %v511 = vsel %vm503, %v490, %v493
        %v512 = vsel %vm506, %v499, 920167782
        %v513 = vsel %vm505, %v496, %v512
        %v514 = vsel %vm504, %v511, %v513
        %v515 = vsel %vm503, %v493, %v496
        %v516 = vsel %vm506, %v502, 1326507024
        %v517 = vsel %vm505, %v499, %v516
        %v518 = vsel %vm504, %v515, %v517
        %v519 = vshll.u32 %v479, 8
        %v520 = vand.u32 %v519, 65535
        %v521 = vshrl.u32 %v519, 16
        %v522 = vand.u32 %v518, 65535
        %v523 = vshrl.u32 %v518, 16
        %v524 = vmul.u32 %v520, %v522
        %v525 = vmul.u32 %v520, %v523
        %v526 = vmul.u32 %v521, %v522
        %v527 = vmul.u32 %v521, %v523
        %v528 = vshll.u32 %v525, 16
        %v529 = vshrl.u32 %v525, 16
        %v530 = vshll.u32 %v526, 16
        %v531 = vshrl.u32 %v526, 16
        %vm532 = vc.u32 %v524, %v528
        %v533 = vsel %vm532, 1, 0
        %v534 = vadd.s32 %v524, %v528
        %v535 = vadd.s32 %v527, %v533
        %vm536 = vc.u32 %v534, %v530
        %v537 = vsel %vm536, 1, 0
        %v538 = vadd.s32 %v534, %v530
        %v539 = vadd.s32 %v535, %v537
        %v540 = vadd.s32 %v539, %v529
        %v541 = vadd.s32 %v540, %v531
        %v542 = vand.u32 %v519, 65535
        %v543 = vshrl.u32 %v519, 16
        %v544 = vand.u32 %v514, 65535
        %v545 = vshrl.u32 %v514, 16
        %v546 = vmul.u32 %v542, %v544
        %v547 = vmul.u32 %v542, %v545
        %v548 = vmul.u32 %v543, %v544
        %v549 = vmul.u32 %v543, %v545
        %v550 = vshll.u32 %v547, 16
        %v551 = vshrl.u32 %v547, 16
        %v552 = vshll.u32 %v548, 16
        %v553 = vshrl.u32 %v548, 16
        %vm554 = vc.u32 %v546, %v550
        %v555 = vsel %vm554, 1, 0
        %v556 = vadd.s32 %v546, %v550
        %v557 = vadd.s32 %v549, %v555
        %vm558 = vc.u32 %v556, %v552
        %v559 = vsel %vm558, 1, 0
        %v560 = vadd.s32 %v556, %v552
        %v561 = vadd.s32 %v557, %v559
        %v562 = vadd.s32 %v561, %v551
        %v563 = vadd.s32 %v562, %v553
        %v564 = vmul.u32 %v519, %v510
        %v565 = vadd.s32 %v541, %v560
        %vm566 = vc.u32 %v541, %v560
        %v567 = vadd.s32 %v563, 1
        %v568 = vsel %vm566, %v567, %v563
        %v569 = vadd.s32 %v564, %v568
        %v570 = vadd.s32 %v569, 536870912
        %v571 = vshrl.u32 %v570, 30
        %v572 = vshll.u32 %v571, 30
        %v573 = vsub.s32 %v569, %v572
        %vm574 = vcmp.lt.s32.totalorder %v573, 0
        %v575 = vsub.s32 0, %v573
        %v576 = vsel %vm574, %v575, %v573
        %v577 = vclz %v576
        %v578 = vsub.s32 %v577, 2
        %vm579 = vcmp.gt.s32.totalorder 0, %v578
        %v580 = vsel %vm579, 0, %v578
        %v581 = vsub.s32 32, %v580
        %v582 = vshll.u32 %v573, %v580
        %v583 = vshrl.u32 %v565, %v581
        %v584 = vor.u32 %v582, %v583
        %v585 = vsub.s32 4294967266, %v580
        %v586 = vadd.s32 %v585, 127
        %v587 = vshll.u32 %v586, 23
        %v588 = vor.u32 4788187, %v587
        %v589 = vand.u32 2147483647, %v588
        %v591 = vcvt.s32.f32 %v584
        %v592 = vmul.f32 %v591, %v589
        %v593 = vxor.u32 %v592, 2147483648
        %v594 = vsel %vm473, %v593, %v592
        %v595 = vsub.s32 4, %v571
        %v596 = vsel %vm473, %v595, %v571
        %v597 = vsel %vm472, %v470, %v594
        %v598 = vsel %vm472, 0, %v596
        %v599 = vmul.f32 %v597, %v597
        %v600 = vmul.f32 %v599, -0.001358992
        %v601 = vadd.f32 %v600, 0.041655596
        %v602 = vmul.f32 %v599, %v601
        %v603 = vadd.f32 %v602, -0.4999988
        %v604 = vmul.f32 %v599, %v603
        %v605 = vadd.f32 1.0, %v604
        %v606 = vmul.f32 %v597, %v597
        %v607 = vmul.f32 %v606, -0.00019511016
        %v608 = vadd.f32 %v607, 0.008332121
        %v609 = vmul.f32 %v606, %v608
        %v610 = vadd.f32 %v609, -0.16666654
        %v611 = vmul.f32 %v606, %v610
        %v612 = vadd.f32 %v611, 1.0
        %v613 = vmul.f32 %v612, %v597
        %vm614 = vweird.f32 %v470
        %v615 = vadd.s32 %v598, 3
        %v616 = vand.u32 %v615, 3
        %vm617 = vcmp.lt.s32.totalorder %v616, 2
        %vm618 = vcmp.eq.s32.totalorder %v616, 0
        %v619 = vxor.u32 %v613, 2147483648
        %v620 = vsel %vm618, %v605, %v619
        %vm621 = vcmp.eq.s32.totalorder %v616, 2
        %v622 = vxor.u32 %v605, 2147483648
        %v623 = vsel %vm621, %v622, %v613
        %v624 = vsel %vm617, %v620, %v623
        %v625 = vsel %vm614, nan, %v624
        %v626 = vand.u32 2147483647, %v470
        %vm627 = vcmp.le.f32.partialorder %v626, 0.7853982
        %vm628 = vcmp.lt.s32.totalorder %v470, 0
        %v629 = vand.u32 %v470, 2139095040
        %v630 = vshrl.u32 %v629, 23
        %v631 = vsub.s32 %v630, 127
        %v632 = vand.u32 2147483647, %v470
        %v633 = vand.u32 %v632, 8388607
        %v634 = vor.u32 %v633, 8388608
        %v635 = vsub.s32 0, %v634
        %v636 = vadd.s32 %v631, 1
        %vm637 = vcmp.gt.s32.totalorder %v636, 0
        %v638 = vsel %vm637, %v636, 0
        %v639 = vshrl.u32 %v638, 5
        %v640 = vand.u32 %v638, 31
        %v641 = vsub.s32 32, %v640
        %v642 = vshrl.u32 683565275, %v641
        %v643 = vshll.u32 683565275, %v640
        %v644 = vshrl.u32 2475754826, %v641
        %v645 = vor.u32 %v643, %v644
        %v646 = vshll.u32 2475754826, %v640
        %v647 = vshrl.u32 2131351028, %v641
        %v648 = vor.u32 %v646, %v647
        %v649 = vshll.u32 2131351028, %v640
        %v650 = vshrl.u32 2102212464, %v641
        %v651 = vor.u32 %v649, %v650
        %v652 = vshll.u32 2102212464, %v640
        %v653 = vshrl.u32 920167782, %v641
        %v654 = vor.u32 %v652, %v653
        %v655 = vshll.u32 920167782, %v640
        %v656 = vshrl.u32 1326507024, %v641
        %v657 = vor.u32 %v655, %v656
        %vm658 = vcmp.lt.s32.totalorder %v639, 1
        %vm659 = vcmp.lt.s32.totalorder %v639, 2
        %vm660 = vcmp.lt.s32.totalorder %v639, 3
        %vm661 = vcmp.lt.s32.totalorder %v639, 4
        %v662 = vsel %vm658, %v642, %v645
        %v663 = vsel %vm661, %v651, 2102212464
        %v664 = vsel %vm660, %v648, %v663
        %v665 = vsel %vm659, %v662, %v664
        %v666 = vsel %vm658, %v645, %v648
        %v667 = vsel %vm661, %v654, 920167782
        %v668 = vsel %vm660, %v651, %v667
        %v669 = vsel %vm659, %v666, %v668
        %v670 = vsel %vm658, %v648, %v651
        %v671 = vsel %vm661, %v657, 1326507024
        %v672 = vsel %vm660, %v654, %v671
        %v673 = vsel %vm659, %v670, %v672
        %v674 = vshll.u32 %v634, 8
        %v675 = vand.u32 %v674, 65535
        %v676 = vshrl.u32 %v674, 16
        %v677 = vand.u32 %v673, 65535
        %v678 = vshrl.u32 %v673, 16
        %v679 = vmul.u32 %v675, %v677
        %v680 = vmul.u32 %v675, %v678
        %v681 = vmul.u32 %v676, %v677
        %v682 = vmul.u32 %v676, %v678
        %v683 = vshll.u32 %v680, 16
        %v684 = vshrl.u32 %v680, 16
        %v685 = vshll.u32 %v681, 16
        %v686 = vshrl.u32 %v681, 16
        %vm687 = vc.u32 %v679, %v683
        %v688 = vsel %vm687, 1, 0
        %v689 = vadd.s32 %v679, %v683
        %v690 = vadd.s32 %v682, %v688
        %vm691 = vc.u32 %v689, %v685
        %v692 = vsel %vm691, 1, 0
        %v693 = vadd.s32 %v689, %v685
        %v694 = vadd.s32 %v690, %v692
        %v695 = vadd.s32 %v694, %v684
        %v696 = vadd.s32 %v695, %v686
        %v697 = vand.u32 %v674, 65535
        %v698 = vshrl.u32 %v674, 16
        %v699 = vand.u32 %v669, 65535
        %v700 = vshrl.u32 %v669, 16
        %v701 = vmul.u32 %v697, %v699
        %v702 = vmul.u32 %v697, %v700
        %v703 = vmul.u32 %v698, %v699
        %v704 = vmul.u32 %v698, %v700
        %v705 = vshll.u32 %v702, 16
        %v706 = vshrl.u32 %v702, 16
        %v707 = vshll.u32 %v703, 16
        %v708 = vshrl.u32 %v703, 16
        %vm709 = vc.u32 %v701, %v705
        %v710 = vsel %vm709, 1, 0
        %v711 = vadd.s32 %v701, %v705
        %v712 = vadd.s32 %v704, %v710
        %vm713 = vc.u32 %v711, %v707
        %v714 = vsel %vm713, 1, 0
        %v715 = vadd.s32 %v711, %v707
        %v716 = vadd.s32 %v712, %v714
        %v717 = vadd.s32 %v716, %v706
        %v718 = vadd.s32 %v717, %v708
        %v719 = vmul.u32 %v674, %v665
        %v720 = vadd.s32 %v696, %v715
        %vm721 = vc.u32 %v696, %v715
        %v722 = vadd.s32 %v718, 1
        %v723 = vsel %vm721, %v722, %v718
        %v724 = vadd.s32 %v719, %v723
        %v725 = vadd.s32 %v724, 536870912
        %v726 = vshrl.u32 %v725, 30
        %v727 = vshll.u32 %v726, 30
        %v728 = vsub.s32 %v724, %v727
        %vm729 = vcmp.lt.s32.totalorder %v728, 0
        %v730 = vsub.s32 0, %v728
        %v731 = vsel %vm729, %v730, %v728
        %v732 = vclz %v731
        %v733 = vsub.s32 %v732, 2
        %vm734 = vcmp.gt.s32.totalorder 0, %v733
        %v735 = vsel %vm734, 0, %v733
        %v736 = vsub.s32 32, %v735
        %v737 = vshll.u32 %v728, %v735
        %v738 = vshrl.u32 %v720, %v736
        %v739 = vor.u32 %v737, %v738
        %v740 = vsub.s32 4294967266, %v735
        %v741 = vadd.s32 %v740, 127
        %v742 = vshll.u32 %v741, 23
        %v743 = vor.u32 4788187, %v742
        %v744 = vand.u32 2147483647, %v743
        %v746 = vcvt.s32.f32 %v739
        %v747 = vmul.f32 %v746, %v744
        %v748 = vxor.u32 %v747, 2147483648
        %v749 = vsel %vm628, %v748, %v747
        %v750 = vsub.s32 4, %v726
        %v751 = vsel %vm628, %v750, %v726
        %v752 = vsel %vm627, %v470, %v749
        %v753 = vsel %vm627, 0, %v751
        %v754 = vmul.f32 %v752, %v752
        %v755 = vmul.f32 %v754, -0.001358992
        %v756 = vadd.f32 %v755, 0.041655596
        %v757 = vmul.f32 %v754, %v756
        %v758 = vadd.f32 %v757, -0.4999988
        %v759 = vmul.f32 %v754, %v758
        %v760 = vadd.f32 1.0, %v759
        %v761 = vmul.f32 %v752, %v752
        %v762 = vmul.f32 %v761, -0.00019511016
        %v763 = vadd.f32 %v762, 0.008332121
        %v764 = vmul.f32 %v761, %v763
        %v765 = vadd.f32 %v764, -0.16666654
        %v766 = vmul.f32 %v761, %v765
        %v767 = vadd.f32 %v766, 1.0
        %v768 = vmul.f32 %v767, %v752
        %vm769 = vweird.f32 %v470
        %v770 = vand.u32 %v753, 3
        %vm771 = vcmp.lt.s32.totalorder %v770, 2
        %vm772 = vcmp.eq.s32.totalorder %v770, 0
        %v773 = vxor.u32 %v768, 2147483648
        %v774 = vsel %vm772, %v760, %v773
        %vm775 = vcmp.eq.s32.totalorder %v770, 2
        %v776 = vxor.u32 %v760, 2147483648
        %v777 = vsel %vm775, %v776, %v768
        %v778 = vsel %vm771, %v774, %v777
        %v779 = vsel %vm769, nan, %v778
        %780 = vst [vmem:[#allocation2 + $0x1b] sm:$0x7] %v625
        %781 = vst [vmem:[#allocation2 + $0x1e] sm:$0x7] %v779
        %v782 = vmul.f32 %v625, %v779
        %v783 = vadd.f32 %v782, %v782
        %v784 = vmul.f32 %v779, %v779
        %v785 = vmul.f32 %v625, %v625
        %v786 = vsub.f32 %v784, %v785
        %787 = vst [vmem:[#allocation2 + $0x21] sm:$0x7] %v783
        %788 = vst [vmem:[#allocation2 + $0x24] sm:$0x7] %v786
        %v789 = vmul.f32 %v783, %v786
        %v790 = vadd.f32 %v789, %v789
        %v791 = vmul.f32 %v786, %v786
        %v792 = vmul.f32 %v783, %v783
        %v793 = vsub.f32 %v791, %v792
        %794 = vst [vmem:[#allocation2 + $0x27] sm:$0x7] %v790
        %795 = vst [vmem:[#allocation2 + $0x2a] sm:$0x7] %v793
        %v796 = vmul.f32 %v790, %v793
        %v797 = vadd.f32 %v796, %v796
        %v798 = vmul.f32 %v793, %v793
        %v799 = vmul.f32 %v790, %v790
        %v800 = vsub.f32 %v798, %v799
        %801 = vst [vmem:[#allocation2 + $0x2d] sm:$0x7] %v797
        %802 = vst [vmem:[#allocation2 + $0x30] sm:$0x7] %v800
        %v803 = vmul.f32 %v136, 256.0
        %v804 = vand.u32 2147483647, %v803
        %vm805 = vcmp.le.f32.partialorder %v804, 0.7853982
        %vm806 = vcmp.lt.s32.totalorder %v803, 0
        %v807 = vand.u32 %v803, 2139095040
        %v808 = vshrl.u32 %v807, 23
        %v809 = vsub.s32 %v808, 127
        %v810 = vand.u32 2147483647, %v803
        %v811 = vand.u32 %v810, 8388607
        %v812 = vor.u32 %v811, 8388608
        %v813 = vsub.s32 0, %v812
        %v814 = vadd.s32 %v809, 1
        %vm815 = vcmp.gt.s32.totalorder %v814, 0
        %v816 = vsel %vm815, %v814, 0
        %v817 = vshrl.u32 %v816, 5
        %v818 = vand.u32 %v816, 31
        %v819 = vsub.s32 32, %v818
        %v820 = vshrl.u32 683565275, %v819
        %v821 = vshll.u32 683565275, %v818
        %v822 = vshrl.u32 2475754826, %v819
        %v823 = vor.u32 %v821, %v822
        %v824 = vshll.u32 2475754826, %v818
        %v825 = vshrl.u32 2131351028, %v819
        %v826 = vor.u32 %v824, %v825
        %v827 = vshll.u32 2131351028, %v818
        %v828 = vshrl.u32 2102212464, %v819
        %v829 = vor.u32 %v827, %v828
        %v830 = vshll.u32 2102212464, %v818
        %v831 = vshrl.u32 920167782, %v819
        %v832 = vor.u32 %v830, %v831
        %v833 = vshll.u32 920167782, %v818
        %v834 = vshrl.u32 1326507024, %v819
        %v835 = vor.u32 %v833, %v834
        %vm836 = vcmp.lt.s32.totalorder %v817, 1
        %vm837 = vcmp.lt.s32.totalorder %v817, 2
        %vm838 = vcmp.lt.s32.totalorder %v817, 3
        %vm839 = vcmp.lt.s32.totalorder %v817, 4
        %v840 = vsel %vm836, %v820, %v823
        %v841 = vsel %vm839, %v829, 2102212464
        %v842 = vsel %vm838, %v826, %v841
        %v843 = vsel %vm837, %v840, %v842
        %v844 = vsel %vm836, %v823, %v826
        %v845 = vsel %vm839, %v832, 920167782
        %v846 = vsel %vm838, %v829, %v845
        %v847 = vsel %vm837, %v844, %v846
        %v848 = vsel %vm836, %v826, %v829
        %v849 = vsel %vm839, %v835, 1326507024
        %v850 = vsel %vm838, %v832, %v849
        %v851 = vsel %vm837, %v848, %v850
        %v852 = vshll.u32 %v812, 8
        %v853 = vand.u32 %v852, 65535
        %v854 = vshrl.u32 %v852, 16
        %v855 = vand.u32 %v851, 65535
        %v856 = vshrl.u32 %v851, 16
        %v857 = vmul.u32 %v853, %v855
        %v858 = vmul.u32 %v853, %v856
        %v859 = vmul.u32 %v854, %v855
        %v860 = vmul.u32 %v854, %v856
        %v861 = vshll.u32 %v858, 16
        %v862 = vshrl.u32 %v858, 16
        %v863 = vshll.u32 %v859, 16
        %v864 = vshrl.u32 %v859, 16
        %vm865 = vc.u32 %v857, %v861
        %v866 = vsel %vm865, 1, 0
        %v867 = vadd.s32 %v857, %v861
        %v868 = vadd.s32 %v860, %v866
        %vm869 = vc.u32 %v867, %v863
        %v870 = vsel %vm869, 1, 0
        %v871 = vadd.s32 %v867, %v863
        %v872 = vadd.s32 %v868, %v870
        %v873 = vadd.s32 %v872, %v862
        %v874 = vadd.s32 %v873, %v864
        %v875 = vand.u32 %v852, 65535
        %v876 = vshrl.u32 %v852, 16
        %v877 = vand.u32 %v847, 65535
        %v878 = vshrl.u32 %v847, 16
        %v879 = vmul.u32 %v875, %v877
        %v880 = vmul.u32 %v875, %v878
        %v881 = vmul.u32 %v876, %v877
        %v882 = vmul.u32 %v876, %v878
        %v883 = vshll.u32 %v880, 16
        %v884 = vshrl.u32 %v880, 16
        %v885 = vshll.u32 %v881, 16
        %v886 = vshrl.u32 %v881, 16
        %vm887 = vc.u32 %v879, %v883
        %v888 = vsel %vm887, 1, 0
        %v889 = vadd.s32 %v879, %v883
        %v890 = vadd.s32 %v882, %v888
        %vm891 = vc.u32 %v889, %v885
        %v892 = vsel %vm891, 1, 0
        %v893 = vadd.s32 %v889, %v885
        %v894 = vadd.s32 %v890, %v892
        %v895 = vadd.s32 %v894, %v884
        %v896 = vadd.s32 %v895, %v886
        %v897 = vmul.u32 %v852, %v843
        %v898 = vadd.s32 %v874, %v893
        %vm899 = vc.u32 %v874, %v893
        %v900 = vadd.s32 %v896, 1
        %v901 = vsel %vm899, %v900, %v896
        %v902 = vadd.s32 %v897, %v901
        %v903 = vadd.s32 %v902, 536870912
        %v904 = vshrl.u32 %v903, 30
        %v905 = vshll.u32 %v904, 30
        %v906 = vsub.s32 %v902, %v905
        %vm907 = vcmp.lt.s32.totalorder %v906, 0
        %v908 = vsub.s32 0, %v906
        %v909 = vsel %vm907, %v908, %v906
        %v910 = vclz %v909
        %v911 = vsub.s32 %v910, 2
        %vm912 = vcmp.gt.s32.totalorder 0, %v911
        %v913 = vsel %vm912, 0, %v911
        %v914 = vsub.s32 32, %v913
        %v915 = vshll.u32 %v906, %v913
        %v916 = vshrl.u32 %v898, %v914
        %v917 = vor.u32 %v915, %v916
        %v918 = vsub.s32 4294967266, %v913
        %v919 = vadd.s32 %v918, 127
        %v920 = vshll.u32 %v919, 23
        %v921 = vor.u32 4788187, %v920
        %v922 = vand.u32 2147483647, %v921
        %v924 = vcvt.s32.f32 %v917
        %v925 = vmul.f32 %v924, %v922
        %v926 = vxor.u32 %v925, 2147483648
        %v927 = vsel %vm806, %v926, %v925
        %v928 = vsub.s32 4, %v904
        %v929 = vsel %vm806, %v928, %v904
        %v930 = vsel %vm805, %v803, %v927
        %v931 = vsel %vm805, 0, %v929
        %v932 = vmul.f32 %v930, %v930
        %v933 = vmul.f32 %v932, -0.001358992
        %v934 = vadd.f32 %v933, 0.041655596
        %v935 = vmul.f32 %v932, %v934
        %v936 = vadd.f32 %v935, -0.4999988
        %v937 = vmul.f32 %v932, %v936
        %v938 = vadd.f32 1.0, %v937
        %v939 = vmul.f32 %v930, %v930
        %v940 = vmul.f32 %v939, -0.00019511016
        %v941 = vadd.f32 %v940, 0.008332121
        %v942 = vmul.f32 %v939, %v941
        %v943 = vadd.f32 %v942, -0.16666654
        %v944 = vmul.f32 %v939, %v943
        %v945 = vadd.f32 %v944, 1.0
        %v946 = vmul.f32 %v945, %v930
        %vm947 = vweird.f32 %v803
        %v948 = vadd.s32 %v931, 3
        %v949 = vand.u32 %v948, 3
        %vm950 = vcmp.lt.s32.totalorder %v949, 2
        %vm951 = vcmp.eq.s32.totalorder %v949, 0
        %v952 = vxor.u32 %v946, 2147483648
        %v953 = vsel %vm951, %v938, %v952
        %vm954 = vcmp.eq.s32.totalorder %v949, 2
        %v955 = vxor.u32 %v938, 2147483648
        %v956 = vsel %vm954, %v955, %v946
        %v957 = vsel %vm950, %v953, %v956
        %v958 = vsel %vm947, nan, %v957
        %v959 = vand.u32 2147483647, %v803
        %vm960 = vcmp.le.f32.partialorder %v959, 0.7853982
        %vm961 = vcmp.lt.s32.totalorder %v803, 0
        %v962 = vand.u32 %v803, 2139095040
        %v963 = vshrl.u32 %v962, 23
        %v964 = vsub.s32 %v963, 127
        %v965 = vand.u32 2147483647, %v803
        %v966 = vand.u32 %v965, 8388607
        %v967 = vor.u32 %v966, 8388608
        %v968 = vsub.s32 0, %v967
        %v969 = vadd.s32 %v964, 1
        %vm970 = vcmp.gt.s32.totalorder %v969, 0
        %v971 = vsel %vm970, %v969, 0
        %v972 = vshrl.u32 %v971, 5
        %v973 = vand.u32 %v971, 31
        %v974 = vsub.s32 32, %v973
        %v975 = vshrl.u32 683565275, %v974
        %v976 = vshll.u32 683565275, %v973
        %v977 = vshrl.u32 2475754826, %v974
        %v978 = vor.u32 %v976, %v977
        %v979 = vshll.u32 2475754826, %v973
        %v980 = vshrl.u32 2131351028, %v974
        %v981 = vor.u32 %v979, %v980
        %v982 = vshll.u32 2131351028, %v973
        %v983 = vshrl.u32 2102212464, %v974
        %v984 = vor.u32 %v982, %v983
        %v985 = vshll.u32 2102212464, %v973
        %v986 = vshrl.u32 920167782, %v974
        %v987 = vor.u32 %v985, %v986
        %v988 = vshll.u32 920167782, %v973
        %v989 = vshrl.u32 1326507024, %v974
        %v990 = vor.u32 %v988, %v989
        %vm991 = vcmp.lt.s32.totalorder %v972, 1
        %vm992 = vcmp.lt.s32.totalorder %v972, 2
        %vm993 = vcmp.lt.s32.totalorder %v972, 3
        %vm994 = vcmp.lt.s32.totalorder %v972, 4
        %v995 = vsel %vm991, %v975, %v978
        %v996 = vsel %vm994, %v984, 2102212464
        %v997 = vsel %vm993, %v981, %v996
        %v998 = vsel %vm992, %v995, %v997
        %v999 = vsel %vm991, %v978, %v981
        %v1000 = vsel %vm994, %v987, 920167782
        %v1001 = vsel %vm993, %v984, %v1000
        %v1002 = vsel %vm992, %v999, %v1001
        %v1003 = vsel %vm991, %v981, %v984
        %v1004 = vsel %vm994, %v990, 1326507024
        %v1005 = vsel %vm993, %v987, %v1004
        %v1006 = vsel %vm992, %v1003, %v1005
        %v1007 = vshll.u32 %v967, 8
        %v1008 = vand.u32 %v1007, 65535
        %v1009 = vshrl.u32 %v1007, 16
        %v1010 = vand.u32 %v1006, 65535
        %v1011 = vshrl.u32 %v1006, 16
        %v1012 = vmul.u32 %v1008, %v1010
        %v1013 = vmul.u32 %v1008, %v1011
        %v1014 = vmul.u32 %v1009, %v1010
        %v1015 = vmul.u32 %v1009, %v1011
        %v1016 = vshll.u32 %v1013, 16
        %v1017 = vshrl.u32 %v1013, 16
        %v1018 = vshll.u32 %v1014, 16
        %v1019 = vshrl.u32 %v1014, 16
        %vm1020 = vc.u32 %v1012, %v1016
        %v1021 = vsel %vm1020, 1, 0
        %v1022 = vadd.s32 %v1012, %v1016
        %v1023 = vadd.s32 %v1015, %v1021
        %vm1024 = vc.u32 %v1022, %v1018
        %v1025 = vsel %vm1024, 1, 0
        %v1026 = vadd.s32 %v1022, %v1018
        %v1027 = vadd.s32 %v1023, %v1025
        %v1028 = vadd.s32 %v1027, %v1017
        %v1029 = vadd.s32 %v1028, %v1019
        %v1030 = vand.u32 %v1007, 65535
        %v1031 = vshrl.u32 %v1007, 16
        %v1032 = vand.u32 %v1002, 65535
        %v1033 = vshrl.u32 %v1002, 16
        %v1034 = vmul.u32 %v1030, %v1032
        %v1035 = vmul.u32 %v1030, %v1033
        %v1036 = vmul.u32 %v1031, %v1032
        %v1037 = vmul.u32 %v1031, %v1033
        %v1038 = vshll.u32 %v1035, 16
        %v1039 = vshrl.u32 %v1035, 16
        %v1040 = vshll.u32 %v1036, 16
        %v1041 = vshrl.u32 %v1036, 16
        %vm1042 = vc.u32 %v1034, %v1038
        %v1043 = vsel %vm1042, 1, 0
        %v1044 = vadd.s32 %v1034, %v1038
        %v1045 = vadd.s32 %v1037, %v1043
        %vm1046 = vc.u32 %v1044, %v1040
        %v1047 = vsel %vm1046, 1, 0
        %v1048 = vadd.s32 %v1044, %v1040
        %v1049 = vadd.s32 %v1045, %v1047
        %v1050 = vadd.s32 %v1049, %v1039
        %v1051 = vadd.s32 %v1050, %v1041
        %v1052 = vmul.u32 %v1007, %v998
        %v1053 = vadd.s32 %v1029, %v1048
        %vm1054 = vc.u32 %v1029, %v1048
        %v1055 = vadd.s32 %v1051, 1
        %v1056 = vsel %vm1054, %v1055, %v1051
        %v1057 = vadd.s32 %v1052, %v1056
        %v1058 = vadd.s32 %v1057, 536870912
        %v1059 = vshrl.u32 %v1058, 30
        %v1060 = vshll.u32 %v1059, 30
        %v1061 = vsub.s32 %v1057, %v1060
        %vm1062 = vcmp.lt.s32.totalorder %v1061, 0
        %v1063 = vsub.s32 0, %v1061
        %v1064 = vsel %vm1062, %v1063, %v1061
        %v1065 = vclz %v1064
        %v1066 = vsub.s32 %v1065, 2
        %vm1067 = vcmp.gt.s32.totalorder 0, %v1066
        %v1068 = vsel %vm1067, 0, %v1066
        %v1069 = vsub.s32 32, %v1068
        %v1070 = vshll.u32 %v1061, %v1068
        %v1071 = vshrl.u32 %v1053, %v1069
        %v1072 = vor.u32 %v1070, %v1071
        %v1073 = vsub.s32 4294967266, %v1068
        %v1074 = vadd.s32 %v1073, 127
        %v1075 = vshll.u32 %v1074, 23
        %v1076 = vor.u32 4788187, %v1075
        %v1077 = vand.u32 2147483647, %v1076
        %v1079 = vcvt.s32.f32 %v1072
        %v1080 = vmul.f32 %v1079, %v1077
        %v1081 = vxor.u32 %v1080, 2147483648
        %v1082 = vsel %vm961, %v1081, %v1080
        %v1083 = vsub.s32 4, %v1059
        %v1084 = vsel %vm961, %v1083, %v1059
        %v1085 = vsel %vm960, %v803, %v1082
        %v1086 = vsel %vm960, 0, %v1084
        %v1087 = vmul.f32 %v1085, %v1085
        %v1088 = vmul.f32 %v1087, -0.001358992
        %v1089 = vadd.f32 %v1088, 0.041655596
        %v1090 = vmul.f32 %v1087, %v1089
        %v1091 = vadd.f32 %v1090, -0.4999988
        %v1092 = vmul.f32 %v1087, %v1091
        %v1093 = vadd.f32 1.0, %v1092
        %v1094 = vmul.f32 %v1085, %v1085
        %v1095 = vmul.f32 %v1094, -0.00019511016
        %v1096 = vadd.f32 %v1095, 0.008332121
        %v1097 = vmul.f32 %v1094, %v1096
        %v1098 = vadd.f32 %v1097, -0.16666654
        %v1099 = vmul.f32 %v1094, %v1098
        %v1100 = vadd.f32 %v1099, 1.0
        %v1101 = vmul.f32 %v1100, %v1085
        %vm1102 = vweird.f32 %v803
        %v1103 = vand.u32 %v1086, 3
        %vm1104 = vcmp.lt.s32.totalorder %v1103, 2
        %vm1105 = vcmp.eq.s32.totalorder %v1103, 0
        %v1106 = vxor.u32 %v1101, 2147483648
        %v1107 = vsel %vm1105, %v1093, %v1106
        %vm1108 = vcmp.eq.s32.totalorder %v1103, 2
        %v1109 = vxor.u32 %v1093, 2147483648
        %v1110 = vsel %vm1108, %v1109, %v1101
        %v1111 = vsel %vm1104, %v1107, %v1110
        %v1112 = vsel %vm1102, nan, %v1111
        %1113 = vst [vmem:[#allocation2 + $0x33] sm:$0x7] %v958
        %1114 = vst [vmem:[#allocation2 + $0x36] sm:$0x7] %v1112
        %v1115 = vmul.f32 %v958, %v1112
        %v1116 = vadd.f32 %v1115, %v1115
        %v1117 = vmul.f32 %v1112, %v1112
        %v1118 = vmul.f32 %v958, %v958
        %v1119 = vsub.f32 %v1117, %v1118
        %1120 = vst [vmem:[#allocation2 + $0x39] sm:$0x7] %v1116
        %1121 = vst [vmem:[#allocation2 + $0x3c] sm:$0x7] %v1119
        %v1122 = vld [vmem:[#allocation2] sm:$0xff]
        %v1123 = vld [vmem:[#allocation2 + $0x8] sm:$0xff]
        %v1124 = vld [vmem:[#allocation2 + $0x10] sm:$0xff]
        %v1125 = vld [vmem:[#allocation2 + $0x18] sm:$0xff]
        %v1126 = vld [vmem:[#allocation2 + $0x20] sm:$0xff]
        %v1127 = vld [vmem:[#allocation2 + $0x28] sm:$0xff]
        %v1128 = vld [vmem:[#allocation2 + $0x30] sm:$0xff]
        %v1129 = vld [vmem:[#allocation2 + $0x38] sm:$0xff]
        %1130 = vxpose.xlu0.b32.start [1/16] %v1122, 128
        %1131 = vxpose.xlu0.b32.cont [2/16] %v1123, 128
        %1132 = vxpose.xlu0.b32.cont [3/16] %v1124, 128
        %1133 = vxpose.xlu0.b32.cont [4/16] %v1125, 128
        %1134 = vxpose.xlu0.b32.cont [5/16] %v1126, 128
        %1135 = vxpose.xlu0.b32.cont [6/16] %v1127, 128
        %1136 = vxpose.xlu0.b32.cont [7/16] %v1128, 128
        %1137 = vxpose.xlu0.b32.cont [8/16] %v1129, 128
        %1138 = vxpose.xlu0.b32.cont [9/16] 0.0, 128
        %1139 = vxpose.xlu0.b32.cont [10/16] 0.0, 128
        %1140 = vxpose.xlu0.b32.cont [11/16] 0.0, 128
        %1141 = vxpose.xlu0.b32.cont [12/16] 0.0, 128
        %1142 = vxpose.xlu0.b32.cont [13/16] 0.0, 128
        %1143 = vxpose.xlu0.b32.cont [14/16] 0.0, 128
        %1144 = vxpose.xlu0.b32.cont [15/16] 0.0, 128
        %1145 = vxpose.xlu0.b32.end [16/16] 0.0, 128
        %v1146 = vpop.trf.xlu0
        %v1147 = vpop.trf.xlu0
        %v1148 = vpop.trf.xlu0
        %v1149 = vpop.trf.xlu0
        %v1150 = vpop.trf.xlu0
        %v1151 = vpop.trf.xlu0
        %v1152 = vpop.trf.xlu0
        %v1153 = vpop.trf.xlu0
        %v1154 = vpop.trf.xlu0
        %v1155 = vpop.trf.xlu0
        %v1156 = vpop.trf.xlu0
        %v1157 = vpop.trf.xlu0
        %v1158 = vpop.trf.xlu0
        %v1159 = vpop.trf.xlu0
        %v1160 = vpop.trf.xlu0
        %v1161 = vpop.trf.xlu0
        %vm1162 = vcmask 515072
        %1163 = vst.msk [vmem:[%s129] sm:$0xff] %vm1162, %v1146
        %1164 = vst.msk [vmem:[%s129 + $0x8] sm:$0xff] %vm1162, %v1147
        %1165 = vst.msk [vmem:[%s129 + $0x10] sm:$0xff] %vm1162, %v1148
        %1166 = vst.msk [vmem:[%s129 + $0x18] sm:$0xff] %vm1162, %v1149
        %1167 = vst.msk [vmem:[%s129 + $0x20] sm:$0xff] %vm1162, %v1150
        %1168 = vst.msk [vmem:[%s129 + $0x28] sm:$0xff] %vm1162, %v1151
        %1169 = vst.msk [vmem:[%s129 + $0x30] sm:$0xff] %vm1162, %v1152
        %1170 = vst.msk [vmem:[%s129 + $0x38] sm:$0xff] %vm1162, %v1153
        %1171 = vst.msk [vmem:[%s129 + $0x40] sm:$0xff] %vm1162, %v1154
        %1172 = vst.msk [vmem:[%s129 + $0x48] sm:$0xff] %vm1162, %v1155
        %1173 = vst.msk [vmem:[%s129 + $0x50] sm:$0xff] %vm1162, %v1156
        %1174 = vst.msk [vmem:[%s129 + $0x58] sm:$0xff] %vm1162, %v1157
        %1175 = vst.msk [vmem:[%s129 + $0x60] sm:$0xff] %vm1162, %v1158
        %1176 = vst.msk [vmem:[%s129 + $0x68] sm:$0xff] %vm1162, %v1159
        %1177 = vst.msk [vmem:[%s129 + $0x70] sm:$0xff] %vm1162, %v1160
        %1178 = vst.msk [vmem:[%s129 + $0x78] sm:$0xff] %vm1162, %v1161
        %s1179 = sand.u32 %s49, 1
        %s1180 = sand.u32 %s49, 1
        %s1181 = smul.addr %s1180, 128
        %s1182 = scalar_lea.vmem [#allocation5], %s1181
        // Predicated region
        $region29: #{tpu_custom_call.1} parent=23 // pred_check
          %p1183 = pneg %p59
        $region30: #{tpu_custom_call.1} parent=23 // pred_check_branch
          %1185 = sbr.rel (%p1183) target = $region32
        $region31: #{tpu_custom_call.1} parent=23 // pred_region
          %s1186 = smul.u32 16, %s15
          %s1187 = ssub.s32 17, %s1186
          %p1188 = scmp.lt.s32.totalorder %s1187, 16
          %s1189 = scalar_select %p1188, %s1187, 16
          %s1190 = smul.u32 8, %s1189
          %p1191 = scmp.ne.s32.totalorder 0, %s1190
          %s1192 = smul.addr %s1186, 8
          %s1193 = scalar_lea.vmem %s1, %s1192
          // Predicated region
          $region33: #{tpu_custom_call.1} parent=31 // pred_check
            %p1194 = pneg %p1191
          $region34: #{tpu_custom_call.1} parent=31 // pred_check_branch
            %1196 = sbr.rel (%p1194) target = $region36
          $region35: #{tpu_custom_call.1} parent=31 // pred_region
            // Predicated region
            $region37: #{tpu_custom_call.1} parent=35 // pred_check
              _
            $region38: #{tpu_custom_call.1} parent=35 // pred_check_branch
              %1198 = sbr.rel (0) target = $region40
            $region39: #{tpu_custom_call.1} parent=35 // pred_region
              // Predicated region
              $region59: #{tpu_custom_call.1} parent=39 // pred_check
                _
              $region60: #{tpu_custom_call.1} parent=39 // pred_check_branch
                %1278 = sbr.rel (0) target = $region62
              $region61: #{tpu_custom_call.1} parent=39 // pred_region
                %s1279 = sshrl.u32 %s1189, 4
                // While loop
                $region63: #{tpu_custom_call.1} parent=61 // loop_pre_header
                  _
                $region64: #{tpu_custom_call.1} parent=61 // loop_header
                  %s1281 = sphi 0, %s1283
                  %p1282 = scmp.ge.s32.totalorder %s1281, %s1279
                  %s1286 = sphi 0, %s1323
                  %s1287 = sphi %s1182, %s1326
                  %s1288 = sphi %s1193, %s1327
                $region65: #{tpu_custom_call.1} parent=61 // loop_header_branch
                  %1285 = sbr.rel (%p1282) target = $region69
                $region66: #{tpu_custom_call.1} parent=61 // loop_body
                  %v1289 = vld [vmem:[%s1287] sm:$0xff]
                  %1290 = vst [vmem:[%s1288] sm:$0xff] %v1289
                  %v1291 = vld [vmem:[%s1287 + $0x8] sm:$0xff]
                  %1292 = vst [vmem:[%s1288 + $0x8] sm:$0xff] %v1291
                  %v1293 = vld [vmem:[%s1287 + $0x10] sm:$0xff]
                  %1294 = vst [vmem:[%s1288 + $0x10] sm:$0xff] %v1293
                  %v1295 = vld [vmem:[%s1287 + $0x18] sm:$0xff]
                  %1296 = vst [vmem:[%s1288 + $0x18] sm:$0xff] %v1295
                  %v1297 = vld [vmem:[%s1287 + $0x20] sm:$0xff]
                  %1298 = vst [vmem:[%s1288 + $0x20] sm:$0xff] %v1297
                  %v1299 = vld [vmem:[%s1287 + $0x28] sm:$0xff]
                  %1300 = vst [vmem:[%s1288 + $0x28] sm:$0xff] %v1299
                  %v1301 = vld [vmem:[%s1287 + $0x30] sm:$0xff]
                  %1302 = vst [vmem:[%s1288 + $0x30] sm:$0xff] %v1301
                  %v1303 = vld [vmem:[%s1287 + $0x38] sm:$0xff]
                  %1304 = vst [vmem:[%s1288 + $0x38] sm:$0xff] %v1303
                  %v1305 = vld [vmem:[%s1287 + $0x40] sm:$0xff]
                  %1306 = vst [vmem:[%s1288 + $0x40] sm:$0xff] %v1305
                  %v1307 = vld [vmem:[%s1287 + $0x48] sm:$0xff]
                  %1308 = vst [vmem:[%s1288 + $0x48] sm:$0xff] %v1307
                  %v1309 = vld [vmem:[%s1287 + $0x50] sm:$0xff]
                  %1310 = vst [vmem:[%s1288 + $0x50] sm:$0xff] %v1309
                  %v1311 = vld [vmem:[%s1287 + $0x58] sm:$0xff]
                  %1312 = vst [vmem:[%s1288 + $0x58] sm:$0xff] %v1311
                  %v1313 = vld [vmem:[%s1287 + $0x60] sm:$0xff]
                  %1314 = vst [vmem:[%s1288 + $0x60] sm:$0xff] %v1313
                  %v1315 = vld [vmem:[%s1287 + $0x68] sm:$0xff]
                  %1316 = vst [vmem:[%s1288 + $0x68] sm:$0xff] %v1315
                  %v1317 = vld [vmem:[%s1287 + $0x70] sm:$0xff]
                  %1318 = vst [vmem:[%s1288 + $0x70] sm:$0xff] %v1317
                  %v1319 = vld [vmem:[%s1287 + $0x78] sm:$0xff]
                  %1320 = vst [vmem:[%s1288 + $0x78] sm:$0xff] %v1319
                  %s1321 = sadd.s32 1, %s1286
                  %p1322 = scmp.ge.s32.totalorder %s1321, %s1279
                  %s1323 = scalar_select %p1322, 0, %s1321
                  %s1324 = smul.u32 %s1323, 128
                  %s1325 = smul.u32 %s1323, 128
                  %s1326 = scalar_lea.vmem %s1182, %s1324 [#allocation5]
                  %s1327 = scalar_lea.vmem %s1193, %s1325
                $region67: #{tpu_custom_call.1} parent=61 // loop_footer
                  %s1283 = sadd.s32 %s1281, 1
                $region68: #{tpu_custom_call.1} parent=61 // loop_footer_branch
                  %1280 = sbr.rel target = $region64
                $region69: #{tpu_custom_call.1} parent=61 // loop_exit
                  _
                %s1328 = sshrl.u32 %s1189, 4
                %s1329 = sand.u32 %s1189, 15
                %s1330 = smul.u32 %s1328, 16
                %s1331 = smul.u32 8, %s1330
                %s1332 = scalar_lea.vmem %s1182, %s1331 [#allocation5]
                %s1333 = smul.u32 8, %s1330
                %s1334 = scalar_lea.vmem %s1193, %s1333
                // While loop
                $region70: #{tpu_custom_call.1} parent=61 // loop_pre_header
                  _
                $region71: #{tpu_custom_call.1} parent=61 // loop_header
                  %s1336 = sphi 0, %s1338
                  %p1337 = scmp.ge.s32.totalorder %s1336, %s1329
                  %s1341 = sphi 0, %s1348
                  %s1342 = sphi %s1332, %s1351
                  %s1343 = sphi %s1334, %s1352
                $region72: #{tpu_custom_call.1} parent=61 // loop_header_branch
                  %1340 = sbr.rel (%p1337) target = $region76
                $region73: #{tpu_custom_call.1} parent=61 // loop_body
                  %v1344 = vld [vmem:[%s1342] sm:$0xff]
                  %1345 = vst [vmem:[%s1343] sm:$0xff] %v1344
                  %s1346 = sadd.s32 1, %s1341
                  %p1347 = scmp.ge.s32.totalorder %s1346, %s1329
                  %s1348 = scalar_select %p1347, 0, %s1346
                  %s1349 = smul.u32 %s1348, 8
                  %s1350 = smul.u32 %s1348, 8
                  %s1351 = scalar_lea.vmem %s1332, %s1349 [#allocation5]
                  %s1352 = scalar_lea.vmem %s1334, %s1350
                $region74: #{tpu_custom_call.1} parent=61 // loop_footer
                  %s1338 = sadd.s32 %s1336, 1
                $region75: #{tpu_custom_call.1} parent=61 // loop_footer_branch
                  %1335 = sbr.rel target = $region71
                $region76: #{tpu_custom_call.1} parent=61 // loop_exit
                  _
              $region62: #{tpu_custom_call.1} parent=39 // pred_fallthru
                _
              // Predicated region
              $region77: #{tpu_custom_call.1} parent=39 // pred_check
                _
              $region78: #{tpu_custom_call.1} parent=39 // pred_check_branch
                %1354 = sbr.rel target = $region80
              $region79: #{tpu_custom_call.1} parent=39 // pred_region
                _
              $region80: #{tpu_custom_call.1} parent=39 // pred_fallthru
                _
            $region40: #{tpu_custom_call.1} parent=35 // pred_fallthru
              _
            // Predicated region
            $region41: #{tpu_custom_call.1} parent=35 // pred_check
              _
            $region42: #{tpu_custom_call.1} parent=35 // pred_check_branch
              %1200 = sbr.rel target = $region44
            $region43: #{tpu_custom_call.1} parent=35 // pred_region
              %s1202 = ssub.s32 256, 1
              %s1203 = sshrl.u32 %s1189, 4
              // While loop
              $region45: #{tpu_custom_call.1} parent=43 // loop_pre_header
                _
              $region46: #{tpu_custom_call.1} parent=43 // loop_header
                %s1205 = sphi 0, %s1207
                %p1206 = scmp.ge.s32.totalorder %s1205, %s1203
                %s1210 = sphi 0, %s1247
                %s1211 = sphi %s1182, %s1250
                %s1212 = sphi %s1193, %s1251
              $region47: #{tpu_custom_call.1} parent=43 // loop_header_branch
                %1209 = sbr.rel (%p1206) target = $region51
              $region48: #{tpu_custom_call.1} parent=43 // loop_body
                %v1213 = vld [vmem:[%s1211] sm:%s1202]
                %1214 = vst [vmem:[%s1212] sm:%s1202] %v1213
                %v1215 = vld [vmem:[%s1211 + $0x8] sm:%s1202]
                %1216 = vst [vmem:[%s1212 + $0x8] sm:%s1202] %v1215
                %v1217 = vld [vmem:[%s1211 + $0x10] sm:%s1202]
                %1218 = vst [vmem:[%s1212 + $0x10] sm:%s1202] %v1217
                %v1219 = vld [vmem:[%s1211 + $0x18] sm:%s1202]
                %1220 = vst [vmem:[%s1212 + $0x18] sm:%s1202] %v1219
                %v1221 = vld [vmem:[%s1211 + $0x20] sm:%s1202]
                %1222 = vst [vmem:[%s1212 + $0x20] sm:%s1202] %v1221
                %v1223 = vld [vmem:[%s1211 + $0x28] sm:%s1202]
                %1224 = vst [vmem:[%s1212 + $0x28] sm:%s1202] %v1223
                %v1225 = vld [vmem:[%s1211 + $0x30] sm:%s1202]
                %1226 = vst [vmem:[%s1212 + $0x30] sm:%s1202] %v1225
                %v1227 = vld [vmem:[%s1211 + $0x38] sm:%s1202]
                %1228 = vst [vmem:[%s1212 + $0x38] sm:%s1202] %v1227
                %v1229 = vld [vmem:[%s1211 + $0x40] sm:%s1202]
                %1230 = vst [vmem:[%s1212 + $0x40] sm:%s1202] %v1229
                %v1231 = vld [vmem:[%s1211 + $0x48] sm:%s1202]
                %1232 = vst [vmem:[%s1212 + $0x48] sm:%s1202] %v1231
                %v1233 = vld [vmem:[%s1211 + $0x50] sm:%s1202]
                %1234 = vst [vmem:[%s1212 + $0x50] sm:%s1202] %v1233
                %v1235 = vld [vmem:[%s1211 + $0x58] sm:%s1202]
                %1236 = vst [vmem:[%s1212 + $0x58] sm:%s1202] %v1235
                %v1237 = vld [vmem:[%s1211 + $0x60] sm:%s1202]
                %1238 = vst [vmem:[%s1212 + $0x60] sm:%s1202] %v1237
                %v1239 = vld [vmem:[%s1211 + $0x68] sm:%s1202]
                %1240 = vst [vmem:[%s1212 + $0x68] sm:%s1202] %v1239
                %v1241 = vld [vmem:[%s1211 + $0x70] sm:%s1202]
                %1242 = vst [vmem:[%s1212 + $0x70] sm:%s1202] %v1241
                %v1243 = vld [vmem:[%s1211 + $0x78] sm:%s1202]
                %1244 = vst [vmem:[%s1212 + $0x78] sm:%s1202] %v1243
                %s1245 = sadd.s32 1, %s1210
                %p1246 = scmp.ge.s32.totalorder %s1245, %s1203
                %s1247 = scalar_select %p1246, 0, %s1245
                %s1248 = smul.u32 %s1247, 128
                %s1249 = smul.u32 %s1247, 128
                %s1250 = scalar_lea.vmem %s1182, %s1248 [#allocation5]
                %s1251 = scalar_lea.vmem %s1193, %s1249
              $region49: #{tpu_custom_call.1} parent=43 // loop_footer
                %s1207 = sadd.s32 %s1205, 1
              $region50: #{tpu_custom_call.1} parent=43 // loop_footer_branch
                %1204 = sbr.rel target = $region46
              $region51: #{tpu_custom_call.1} parent=43 // loop_exit
                _
              %s1252 = sshrl.u32 %s1189, 4
              %s1253 = sand.u32 %s1189, 15
              %s1254 = smul.u32 %s1252, 16
              %s1255 = smul.u32 8, %s1254
              %s1256 = scalar_lea.vmem %s1182, %s1255 [#allocation5]
              %s1257 = smul.u32 8, %s1254
              %s1258 = scalar_lea.vmem %s1193, %s1257
              // While loop
              $region52: #{tpu_custom_call.1} parent=43 // loop_pre_header
                _
              $region53: #{tpu_custom_call.1} parent=43 // loop_header
                %s1260 = sphi 0, %s1262
                %p1261 = scmp.ge.s32.totalorder %s1260, %s1253
                %s1265 = sphi 0, %s1272
                %s1266 = sphi %s1256, %s1275
                %s1267 = sphi %s1258, %s1276
              $region54: #{tpu_custom_call.1} parent=43 // loop_header_branch
                %1264 = sbr.rel (%p1261) target = $region58
              $region55: #{tpu_custom_call.1} parent=43 // loop_body
                %v1268 = vld [vmem:[%s1266] sm:%s1202]
                %1269 = vst [vmem:[%s1267] sm:%s1202] %v1268
                %s1270 = sadd.s32 1, %s1265
                %p1271 = scmp.ge.s32.totalorder %s1270, %s1253
                %s1272 = scalar_select %p1271, 0, %s1270
                %s1273 = smul.u32 %s1272, 8
                %s1274 = smul.u32 %s1272, 8
                %s1275 = scalar_lea.vmem %s1256, %s1273 [#allocation5]
                %s1276 = scalar_lea.vmem %s1258, %s1274
              $region56: #{tpu_custom_call.1} parent=43 // loop_footer
                %s1262 = sadd.s32 %s1260, 1
              $region57: #{tpu_custom_call.1} parent=43 // loop_footer_branch
                %1259 = sbr.rel target = $region53
              $region58: #{tpu_custom_call.1} parent=43 // loop_exit
                _
            $region44: #{tpu_custom_call.1} parent=35 // pred_fallthru
              _
          $region36: #{tpu_custom_call.1} parent=31 // pred_fallthru
            _
          %1355 = vnop
        $region32: #{tpu_custom_call.1} parent=23 // pred_fallthru
          _
      $region24: #{tpu_custom_call.1} parent=5 // pred_fallthru
        _
      %p1356 = scmp.le.s32.totalorder 2, %s10
      // Predicated region
      $region81: #{tpu_custom_call.1} parent=5 // pred_check
        %p1357 = pneg %p1356
      $region82: #{tpu_custom_call.1} parent=5 // pred_check_branch
        %1359 = sbr.rel (%p1357) target = $region84
      $region83: #{tpu_custom_call.1} parent=5 // pred_region
        %s1360 = ssub.s32 %s10, 2
        // Predicated region
        $region85: #{tpu_custom_call.1} parent=83 // pred_check
          %p1361 = pneg %p65
        $region86: #{tpu_custom_call.1} parent=83 // pred_check_branch
          %1363 = sbr.rel (%p1361) target = $region88
        $region87: #{tpu_custom_call.1} parent=83 // pred_region
          %s1364 = sand.u32 %s50, 1
          %s1365 = sand.u32 %s50, 1
          %s1366 = smul.addr %s1365, 128
          %s1367 = scalar_lea.vmem [#allocation5], %s1366
        $region88: #{tpu_custom_call.1} parent=83 // pred_fallthru
          _
      $region84: #{tpu_custom_call.1} parent=5 // pred_fallthru
        _
    $region6: #{tpu_custom_call.1} parent=1 // loop_footer
      %s14 = sadd.s32 1, %s10
    $region7: #{tpu_custom_call.1} parent=1 // loop_footer_branch
      %9 = sbr.rel target = $region3
    $region8: #{tpu_custom_call.1} parent=1 // loop_exit
      _
    %1368 = vsyncpa [#allocation4], 1
    %s1369 = scalar_lea.sflag [#allocation4], 1
    %1370 = vsyncpa %s1369, 1

// kernel: tpu_custom_call.1
$region0: #{tpu_custom_call.1}
  #allocation0 [shape = 'u32[]', space=smem, size = 0x4, offset = 0x4, fixed_abs, tag = 'smem constant byte address 0x4 - core index']
  #allocation1 [shape = 'u32[72,128]{1,0:T(1,128)}', space=vmem, size = 0x9000, scoped, tag = 'internal scratch']
  %s0 = inlined_call_operand.hbm [shape: f32[8,1024], index: 0, kind: input, shape index: {}]
  %s1 = inlined_call_operand.hbm [shape: f32[21,8,1024], index: 1, kind: output, shape index: {}]
  %s2 = sld [smem:[#allocation0]]
  $region18: #{tpu_custom_call.1} parent=0
    _
  %s4 = ssub.s32 1, %s2
  %s5 = scalar_select 0, %s4, %s2
  $region1: #{tpu_custom_call.1} parent=0
    #allocation2 [shape = 'u8[32768]{0}', space=vmem, size = 0x8000, scoped, tag = 'input window, operand 0, single buffered']
    #allocation3 [shape = 's32[1]{0}', space=sflag, size = 0x4, scoped, tag = 'scoped memory for tpu_custom_call.1']
    #allocation4 [shape = 's32[1]{0}', space=sflag, size = 0x4, scoped, tag = 'scoped memory for tpu_custom_call.1']
    #allocation5 [shape = 'u8[688128]{0}', space=vmem, size = 0xa8000, scoped, tag = 'output window, operand 0, single buffered']
    %6 = vsyncpa [#allocation3], 0
    %7 = vsyncpa [#allocation4], 0
    // Predicated region
    $region2: #{tpu_custom_call.1} parent=1 // pred_check
      _
    $region3: #{tpu_custom_call.1} parent=1 // pred_check_branch
      %9 = sbr.rel (0) target = $region5
    $region4: #{tpu_custom_call.1} parent=1 // pred_region
      %11 = vsyncadd [#allocation3], 0
      %s13 = sshll.u32 %s0, 4
      %s14 = int_to_ptr.hbm [resolvable:$true] %s13
      %s15 = sshll.u32 [#allocation2], 4
      %s16 = int_to_ptr.vmem [resolvable:$true] %s15
      %18 = dma.hbm_to_vmem [thread:$0]  %s14, 1024, %s16, [#allocation3]
    $region5: #{tpu_custom_call.1} parent=1 // pred_fallthru
      _
    // Predicated region
    $region6: #{tpu_custom_call.1} parent=1 // pred_check
      _
    $region7: #{tpu_custom_call.1} parent=1 // pred_check_branch
      %20 = sbr.rel (0) target = $region9
    $region8: #{tpu_custom_call.1} parent=1 // pred_region
      %22 = dma.done [#allocation3], 1024
    $region9: #{tpu_custom_call.1} parent=1 // pred_fallthru
      _
    %v23 = vld [vmem:[#allocation2] sm:$0xff]
    %v24 = vld [vmem:[#allocation2 + $0x8] sm:$0xff]
    %v25 = vld [vmem:[#allocation2 + $0x10] sm:$0xff]
    %v26 = vld [vmem:[#allocation2 + $0x18] sm:$0xff]
    %v27 = vld [vmem:[#allocation2 + $0x20] sm:$0xff]
    %v28 = vld [vmem:[#allocation2 + $0x28] sm:$0xff]
    %v29 = vld [vmem:[#allocation2 + $0x30] sm:$0xff]
    %v30 = vld [vmem:[#allocation2 + $0x38] sm:$0xff]
    %31 = vst [vmem:[#allocation5] sm:$0xff] %v23
    %32 = vst [vmem:[#allocation5 + $0x8] sm:$0xff] %v24
    %33 = vst [vmem:[#allocation5 + $0x10] sm:$0xff] %v25
    %34 = vst [vmem:[#allocation5 + $0x18] sm:$0xff] %v26
    %35 = vst [vmem:[#allocation5 + $0x20] sm:$0xff] %v27
    %36 = vst [vmem:[#allocation5 + $0x28] sm:$0xff] %v28
    %37 = vst [vmem:[#allocation5 + $0x30] sm:$0xff] %v29
    %38 = vst [vmem:[#allocation5 + $0x38] sm:$0xff] %v30
    %v39 = vand.u32 2147483647, %v23
    %vm40 = vcmp.le.f32.partialorder %v39, 0.7853982
    %vm41 = vcmp.lt.s32.totalorder %v23, 0
    %v42 = vand.u32 %v23, 2139095040
    %v43 = vshrl.u32 %v42, 23
    %v44 = vsub.s32 %v43, 127
    %v45 = vand.u32 2147483647, %v23
    %v46 = vand.u32 %v45, 8388607
    %v47 = vor.u32 %v46, 8388608
    %v48 = vsub.s32 0, %v47
    %v49 = vadd.s32 %v44, 1
    %vm50 = vcmp.gt.s32.totalorder %v49, 0
    %v51 = vsel %vm50, %v49, 0
    %v52 = vshrl.u32 %v51, 5
    %v53 = vand.u32 %v51, 31
    %v54 = vsub.s32 32, %v53
    %v55 = vshrl.u32 683565275, %v54
    %v56 = vshll.u32 683565275, %v53
    %v57 = vshrl.u32 2475754826, %v54
    %v58 = vor.u32 %v56, %v57
    %v59 = vshll.u32 2475754826, %v53
    %v60 = vshrl.u32 2131351028, %v54
    %v61 = vor.u32 %v59, %v60
    %v62 = vshll.u32 2131351028, %v53
    %v63 = vshrl.u32 2102212464, %v54
    %v64 = vor.u32 %v62, %v63
    %v65 = vshll.u32 2102212464, %v53
    %v66 = vshrl.u32 920167782, %v54
    %v67 = vor.u32 %v65, %v66
    %v68 = vshll.u32 920167782, %v53
    %v69 = vshrl.u32 1326507024, %v54
    %v70 = vor.u32 %v68, %v69
    %vm71 = vcmp.lt.s32.totalorder %v52, 1
    %vm72 = vcmp.lt.s32.totalorder %v52, 2
    %vm73 = vcmp.lt.s32.totalorder %v52, 3
    %vm74 = vcmp.lt.s32.totalorder %v52, 4
    %v75 = vsel %vm71, %v55, %v58
    %v76 = vsel %vm74, %v64, 2102212464
    %v77 = vsel %vm73, %v61, %v76
    %v78 = vsel %vm72, %v75, %v77
    %v79 = vsel %vm71, %v58, %v61
    %v80 = vsel %vm74, %v67, 920167782
    %v81 = vsel %vm73, %v64, %v80
    %v82 = vsel %vm72, %v79, %v81
    %v83 = vsel %vm71, %v61, %v64
    %v84 = vsel %vm74, %v70, 1326507024
    %v85 = vsel %vm73, %v67, %v84
    %v86 = vsel %vm72, %v83, %v85
    %v87 = vshll.u32 %v47, 8
    %v88 = vand.u32 %v87, 65535
    %v89 = vshrl.u32 %v87, 16
    %v90 = vand.u32 %v86, 65535
    %v91 = vshrl.u32 %v86, 16
    %v92 = vmul.u32 %v88, %v90
    %v93 = vmul.u32 %v88, %v91
    %v94 = vmul.u32 %v89, %v90
    %v95 = vmul.u32 %v89, %v91
    %v96 = vshll.u32 %v93, 16
    %v97 = vshrl.u32 %v93, 16
    %v98 = vshll.u32 %v94, 16
    %v99 = vshrl.u32 %v94, 16
    %vm100 = vc.u32 %v92, %v96
    %v101 = vsel %vm100, 1, 0
    %v102 = vadd.s32 %v92, %v96
    %v103 = vadd.s32 %v95, %v101
    %vm104 = vc.u32 %v102, %v98
    %v105 = vsel %vm104, 1, 0
    %v106 = vadd.s32 %v102, %v98
    %v107 = vadd.s32 %v103, %v105
    %v108 = vadd.s32 %v107, %v97
    %v109 = vadd.s32 %v108, %v99
    %v110 = vand.u32 %v87, 65535
    %v111 = vshrl.u32 %v87, 16
    %v112 = vand.u32 %v82, 65535
    %v113 = vshrl.u32 %v82, 16
    %v114 = vmul.u32 %v110, %v112
    %v115 = vmul.u32 %v110, %v113
    %v116 = vmul.u32 %v111, %v112
    %v117 = vmul.u32 %v111, %v113
    %v118 = vshll.u32 %v115, 16
    %v119 = vshrl.u32 %v115, 16
    %v120 = vshll.u32 %v116, 16
    %v121 = vshrl.u32 %v116, 16
    %vm122 = vc.u32 %v114, %v118
    %v123 = vsel %vm122, 1, 0
    %v124 = vadd.s32 %v114, %v118
    %v125 = vadd.s32 %v117, %v123
    %vm126 = vc.u32 %v124, %v120
    %v127 = vsel %vm126, 1, 0
    %v128 = vadd.s32 %v124, %v120
    %v129 = vadd.s32 %v125, %v127
    %v130 = vadd.s32 %v129, %v119
    %v131 = vadd.s32 %v130, %v121
    %v132 = vmul.u32 %v87, %v78
    %v133 = vadd.s32 %v109, %v128
    %vm134 = vc.u32 %v109, %v128
    %v135 = vadd.s32 %v131, 1
    %v136 = vsel %vm134, %v135, %v131
    %v137 = vadd.s32 %v132, %v136
    %v138 = vadd.s32 %v137, 536870912
    %v139 = vshrl.u32 %v138, 30
    %v140 = vshll.u32 %v139, 30
    %v141 = vsub.s32 %v137, %v140
    %vm142 = vcmp.lt.s32.totalorder %v141, 0
    %v143 = vsub.s32 0, %v141
    %v144 = vsel %vm142, %v143, %v141
    %v145 = vclz %v144
    %v146 = vsub.s32 %v145, 2
    %vm147 = vcmp.gt.s32.totalorder 0, %v146
    %v148 = vsel %vm147, 0, %v146
    %v149 = vsub.s32 32, %v148
    %v150 = vshll.u32 %v141, %v148
    %v151 = vshrl.u32 %v133, %v149
    %v152 = vor.u32 %v150, %v151
    %v153 = vsub.s32 4294967266, %v148
    %v154 = vadd.s32 %v153, 127
    %v155 = vshll.u32 %v154, 23
    %v156 = vor.u32 4788187, %v155
    %v157 = vand.u32 2147483647, %v156
    %v159 = vcvt.s32.f32 %v152
    %v160 = vmul.f32 %v159, %v157
    %v161 = vxor.u32 %v160, 2147483648
    %v162 = vsel %vm41, %v161, %v160
    %v163 = vsub.s32 4, %v139
    %v164 = vsel %vm41, %v163, %v139
    %v165 = vsel %vm40, %v23, %v162
    %v166 = vsel %vm40, 0, %v164
    %v167 = vmul.f32 %v165, %v165
    %v168 = vmul.f32 %v167, -0.001358992
    %v169 = vadd.f32 %v168, 0.041655596
    %v170 = vmul.f32 %v167, %v169
    %v171 = vadd.f32 %v170, -0.4999988
    %v172 = vmul.f32 %v167, %v171
    %v173 = vadd.f32 1.0, %v172
    %v174 = vmul.f32 %v165, %v165
    %v175 = vmul.f32 %v174, -0.00019511016
    %v176 = vadd.f32 %v175, 0.008332121
    %v177 = vmul.f32 %v174, %v176
    %v178 = vadd.f32 %v177, -0.16666654
    %v179 = vmul.f32 %v174, %v178
    %v180 = vadd.f32 %v179, 1.0
    %v181 = vmul.f32 %v180, %v165
    %vm182 = vweird.f32 %v23
    %v183 = vadd.s32 %v166, 3
    %v184 = vand.u32 %v183, 3
    %vm185 = vcmp.lt.s32.totalorder %v184, 2
    %vm186 = vcmp.eq.s32.totalorder %v184, 0
    %v187 = vxor.u32 %v181, 2147483648
    %v188 = vsel %vm186, %v173, %v187
    %vm189 = vcmp.eq.s32.totalorder %v184, 2
    %v190 = vxor.u32 %v173, 2147483648
    %v191 = vsel %vm189, %v190, %v181
    %v192 = vsel %vm185, %v188, %v191
    %v193 = vsel %vm182, nan, %v192
    %v194 = vand.u32 2147483647, %v24
    %vm195 = vcmp.le.f32.partialorder %v194, 0.7853982
    %vm196 = vcmp.lt.s32.totalorder %v24, 0
    %v197 = vand.u32 %v24, 2139095040
    %v198 = vshrl.u32 %v197, 23
    %v199 = vsub.s32 %v198, 127
    %v200 = vand.u32 2147483647, %v24
    %v201 = vand.u32 %v200, 8388607
    %v202 = vor.u32 %v201, 8388608
    %v203 = vsub.s32 0, %v202
    %v204 = vadd.s32 %v199, 1
    %vm205 = vcmp.gt.s32.totalorder %v204, 0
    %v206 = vsel %vm205, %v204, 0
    %v207 = vshrl.u32 %v206, 5
    %v208 = vand.u32 %v206, 31
    %v209 = vsub.s32 32, %v208
    %v210 = vshrl.u32 683565275, %v209
    %v211 = vshll.u32 683565275, %v208
    %v212 = vshrl.u32 2475754826, %v209
    %v213 = vor.u32 %v211, %v212
    %v214 = vshll.u32 2475754826, %v208
    %v215 = vshrl.u32 2131351028, %v209
    %v216 = vor.u32 %v214, %v215
    %v217 = vshll.u32 2131351028, %v208
    %v218 = vshrl.u32 2102212464, %v209
    %v219 = vor.u32 %v217, %v218
    %v220 = vshll.u32 2102212464, %v208
    %v221 = vshrl.u32 920167782, %v209
    %v222 = vor.u32 %v220, %v221
    %v223 = vshll.u32 920167782, %v208
    %v224 = vshrl.u32 1326507024, %v209
    %v225 = vor.u32 %v223, %v224
    %vm226 = vcmp.lt.s32.totalorder %v207, 1
    %vm227 = vcmp.lt.s32.totalorder %v207, 2
    %vm228 = vcmp.lt.s32.totalorder %v207, 3
    %vm229 = vcmp.lt.s32.totalorder %v207, 4
    %v230 = vsel %vm226, %v210, %v213
    %v231 = vsel %vm229, %v219, 2102212464
    %v232 = vsel %vm228, %v216, %v231
    %v233 = vsel %vm227, %v230, %v232
    %v234 = vsel %vm226, %v213, %v216
    %v235 = vsel %vm229, %v222, 920167782
    %v236 = vsel %vm228, %v219, %v235
    %v237 = vsel %vm227, %v234, %v236
    %v238 = vsel %vm226, %v216, %v219
    %v239 = vsel %vm229, %v225, 1326507024
    %v240 = vsel %vm228, %v222, %v239
    %v241 = vsel %vm227, %v238, %v240
    %v242 = vshll.u32 %v202, 8
    %v243 = vand.u32 %v242, 65535
    %v244 = vshrl.u32 %v242, 16
    %v245 = vand.u32 %v241, 65535
    %v246 = vshrl.u32 %v241, 16
    %v247 = vmul.u32 %v243, %v245
    %v248 = vmul.u32 %v243, %v246
    %v249 = vmul.u32 %v244, %v245
    %v250 = vmul.u32 %v244, %v246
    %v251 = vshll.u32 %v248, 16
    %v252 = vshrl.u32 %v248, 16
    %v253 = vshll.u32 %v249, 16
    %v254 = vshrl.u32 %v249, 16
    %vm255 = vc.u32 %v247, %v251
    %v256 = vsel %vm255, 1, 0
    %v257 = vadd.s32 %v247, %v251
    %v258 = vadd.s32 %v250, %v256
    %vm259 = vc.u32 %v257, %v253
    %v260 = vsel %vm259, 1, 0
    %v261 = vadd.s32 %v257, %v253
    %v262 = vadd.s32 %v258, %v260
    %v263 = vadd.s32 %v262, %v252
    %v264 = vadd.s32 %v263, %v254
    %v265 = vand.u32 %v242, 65535
    %v266 = vshrl.u32 %v242, 16
    %v267 = vand.u32 %v237, 65535
    %v268 = vshrl.u32 %v237, 16
    %v269 = vmul.u32 %v265, %v267
    %v270 = vmul.u32 %v265, %v268
    %v271 = vmul.u32 %v266, %v267
    %v272 = vmul.u32 %v266, %v268
    %v273 = vshll.u32 %v270, 16
    %v274 = vshrl.u32 %v270, 16
    %v275 = vshll.u32 %v271, 16
    %v276 = vshrl.u32 %v271, 16
    %vm277 = vc.u32 %v269, %v273
    %v278 = vsel %vm277, 1, 0
    %v279 = vadd.s32 %v269, %v273
    %v280 = vadd.s32 %v272, %v278
    %vm281 = vc.u32 %v279, %v275
    %v282 = vsel %vm281, 1, 0
    %v283 = vadd.s32 %v279, %v275
    %v284 = vadd.s32 %v280, %v282
    %v285 = vadd.s32 %v284, %v274
    %v286 = vadd.s32 %v285, %v276
    %v287 = vmul.u32 %v242, %v233
    %v288 = vadd.s32 %v264, %v283
    %vm289 = vc.u32 %v264, %v283
    %v290 = vadd.s32 %v286, 1
    %v291 = vsel %vm289, %v290, %v286
    %v292 = vadd.s32 %v287, %v291
    %v293 = vadd.s32 %v292, 536870912
    %v294 = vshrl.u32 %v293, 30
    %v295 = vshll.u32 %v294, 30
    %v296 = vsub.s32 %v292, %v295
    %vm297 = vcmp.lt.s32.totalorder %v296, 0
    %v298 = vsub.s32 0, %v296
    %v299 = vsel %vm297, %v298, %v296
    %v300 = vclz %v299
    %v301 = vsub.s32 %v300, 2
    %vm302 = vcmp.gt.s32.totalorder 0, %v301
    %v303 = vsel %vm302, 0, %v301
    %v304 = vsub.s32 32, %v303
    %v305 = vshll.u32 %v296, %v303
    %v306 = vshrl.u32 %v288, %v304
    %v307 = vor.u32 %v305, %v306
    %v308 = vsub.s32 4294967266, %v303
    %v309 = vadd.s32 %v308, 127
    %v310 = vshll.u32 %v309, 23
    %v311 = vor.u32 4788187, %v310
    %v312 = vand.u32 2147483647, %v311
    %v314 = vcvt.s32.f32 %v307
    %v315 = vmul.f32 %v314, %v312
    %v316 = vxor.u32 %v315, 2147483648
    %v317 = vsel %vm196, %v316, %v315
    %v318 = vsub.s32 4, %v294
    %v319 = vsel %vm196, %v318, %v294
    %v320 = vsel %vm195, %v24, %v317
    %v321 = vsel %vm195, 0, %v319
    %v322 = vmul.f32 %v320, %v320
    %v323 = vmul.f32 %v322, -0.001358992
    %v324 = vadd.f32 %v323, 0.041655596
    %v325 = vmul.f32 %v322, %v324
    %v326 = vadd.f32 %v325, -0.4999988
    %v327 = vmul.f32 %v322, %v326
    %v328 = vadd.f32 1.0, %v327
    %v329 = vmul.f32 %v320, %v320
    %v330 = vmul.f32 %v329, -0.00019511016
    %v331 = vadd.f32 %v330, 0.008332121
    %v332 = vmul.f32 %v329, %v331
    %v333 = vadd.f32 %v332, -0.16666654
    %v334 = vmul.f32 %v329, %v333
    %v335 = vadd.f32 %v334, 1.0
    %v336 = vmul.f32 %v335, %v320
    %vm337 = vweird.f32 %v24
    %v338 = vadd.s32 %v321, 3
    %v339 = vand.u32 %v338, 3
    %vm340 = vcmp.lt.s32.totalorder %v339, 2
    %vm341 = vcmp.eq.s32.totalorder %v339, 0
    %v342 = vxor.u32 %v336, 2147483648
    %v343 = vsel %vm341, %v328, %v342
    %vm344 = vcmp.eq.s32.totalorder %v339, 2
    %v345 = vxor.u32 %v328, 2147483648
    %v346 = vsel %vm344, %v345, %v336
    %v347 = vsel %vm340, %v343, %v346
    %v348 = vsel %vm337, nan, %v347
    %v349 = vand.u32 2147483647, %v25
    %vm350 = vcmp.le.f32.partialorder %v349, 0.7853982
    %vm351 = vcmp.lt.s32.totalorder %v25, 0
    %v352 = vand.u32 %v25, 2139095040
    %v353 = vshrl.u32 %v352, 23
    %v354 = vsub.s32 %v353, 127
    %v355 = vand.u32 2147483647, %v25
    %v356 = vand.u32 %v355, 8388607
    %v357 = vor.u32 %v356, 8388608
    %v358 = vsub.s32 0, %v357
    %v359 = vadd.s32 %v354, 1
    %vm360 = vcmp.gt.s32.totalorder %v359, 0
    %v361 = vsel %vm360, %v359, 0
    %v362 = vshrl.u32 %v361, 5
    %v363 = vand.u32 %v361, 31
    %v364 = vsub.s32 32, %v363
    %v365 = vshrl.u32 683565275, %v364
    %v366 = vshll.u32 683565275, %v363
    %v367 = vshrl.u32 2475754826, %v364
    %v368 = vor.u32 %v366, %v367
    %v369 = vshll.u32 2475754826, %v363
    %v370 = vshrl.u32 2131351028, %v364
    %v371 = vor.u32 %v369, %v370
    %v372 = vshll.u32 2131351028, %v363
    %v373 = vshrl.u32 2102212464, %v364
    %v374 = vor.u32 %v372, %v373
    %v375 = vshll.u32 2102212464, %v363
    %v376 = vshrl.u32 920167782, %v364
    %v377 = vor.u32 %v375, %v376
    %v378 = vshll.u32 920167782, %v363
    %v379 = vshrl.u32 1326507024, %v364
    %v380 = vor.u32 %v378, %v379
    %vm381 = vcmp.lt.s32.totalorder %v362, 1
    %vm382 = vcmp.lt.s32.totalorder %v362, 2
    %vm383 = vcmp.lt.s32.totalorder %v362, 3
    %vm384 = vcmp.lt.s32.totalorder %v362, 4
    %v385 = vsel %vm381, %v365, %v368
    %v386 = vsel %vm384, %v374, 2102212464
    %v387 = vsel %vm383, %v371, %v386
    %v388 = vsel %vm382, %v385, %v387
    %v389 = vsel %vm381, %v368, %v371
    %v390 = vsel %vm384, %v377, 920167782
    %v391 = vsel %vm383, %v374, %v390
    %v392 = vsel %vm382, %v389, %v391
    %v393 = vsel %vm381, %v371, %v374
    %v394 = vsel %vm384, %v380, 1326507024
    %v395 = vsel %vm383, %v377, %v394
    %v396 = vsel %vm382, %v393, %v395
    %v397 = vshll.u32 %v357, 8
    %v398 = vand.u32 %v397, 65535
    %v399 = vshrl.u32 %v397, 16
    %v400 = vand.u32 %v396, 65535
    %v401 = vshrl.u32 %v396, 16
    %v402 = vmul.u32 %v398, %v400
    %v403 = vmul.u32 %v398, %v401
    %v404 = vmul.u32 %v399, %v400
    %v405 = vmul.u32 %v399, %v401
    %v406 = vshll.u32 %v403, 16
    %v407 = vshrl.u32 %v403, 16
    %v408 = vshll.u32 %v404, 16
    %v409 = vshrl.u32 %v404, 16
    %vm410 = vc.u32 %v402, %v406
    %v411 = vsel %vm410, 1, 0
    %v412 = vadd.s32 %v402, %v406
    %v413 = vadd.s32 %v405, %v411
    %vm414 = vc.u32 %v412, %v408
    %v415 = vsel %vm414, 1, 0
    %v416 = vadd.s32 %v412, %v408
    %v417 = vadd.s32 %v413, %v415
    %v418 = vadd.s32 %v417, %v407
    %v419 = vadd.s32 %v418, %v409
    %v420 = vand.u32 %v397, 65535
    %v421 = vshrl.u32 %v397, 16
    %v422 = vand.u32 %v392, 65535
    %v423 = vshrl.u32 %v392, 16
    %v424 = vmul.u32 %v420, %v422
    %v425 = vmul.u32 %v420, %v423
    %v426 = vmul.u32 %v421, %v422
    %v427 = vmul.u32 %v421, %v423
    %v428 = vshll.u32 %v425, 16
    %v429 = vshrl.u32 %v425, 16
    %v430 = vshll.u32 %v426, 16
    %v431 = vshrl.u32 %v426, 16
    %vm432 = vc.u32 %v424, %v428
    %v433 = vsel %vm432, 1, 0
    %v434 = vadd.s32 %v424, %v428
    %v435 = vadd.s32 %v427, %v433
    %vm436 = vc.u32 %v434, %v430
    %v437 = vsel %vm436, 1, 0
    %v438 = vadd.s32 %v434, %v430
    %v439 = vadd.s32 %v435, %v437
    %v440 = vadd.s32 %v439, %v429
    %v441 = vadd.s32 %v440, %v431
    %v442 = vmul.u32 %v397, %v388
    %v443 = vadd.s32 %v419, %v438
    %vm444 = vc.u32 %v419, %v438
    %v445 = vadd.s32 %v441, 1
    %v446 = vsel %vm444, %v445, %v441
    %v447 = vadd.s32 %v442, %v446
    %v448 = vadd.s32 %v447, 536870912
    %v449 = vshrl.u32 %v448, 30
    %v450 = vshll.u32 %v449, 30
    %v451 = vsub.s32 %v447, %v450
    %vm452 = vcmp.lt.s32.totalorder %v451, 0
    %v453 = vsub.s32 0, %v451
    %v454 = vsel %vm452, %v453, %v451
    %v455 = vclz %v454
    %v456 = vsub.s32 %v455, 2
    %vm457 = vcmp.gt.s32.totalorder 0, %v456
    %v458 = vsel %vm457, 0, %v456
    %v459 = vsub.s32 32, %v458
    %v460 = vshll.u32 %v451, %v458
    %v461 = vshrl.u32 %v443, %v459
    %v462 = vor.u32 %v460, %v461
    %v463 = vsub.s32 4294967266, %v458
    %v464 = vadd.s32 %v463, 127
    %v465 = vshll.u32 %v464, 23
    %v466 = vor.u32 4788187, %v465
    %v467 = vand.u32 2147483647, %v466
    %v469 = vcvt.s32.f32 %v462
    %v470 = vmul.f32 %v469, %v467
    %v471 = vxor.u32 %v470, 2147483648
    %v472 = vsel %vm351, %v471, %v470
    %v473 = vsub.s32 4, %v449
    %v474 = vsel %vm351, %v473, %v449
    %v475 = vsel %vm350, %v25, %v472
    %v476 = vsel %vm350, 0, %v474
    %v477 = vmul.f32 %v475, %v475
    %v478 = vmul.f32 %v477, -0.001358992
    %v479 = vadd.f32 %v478, 0.041655596
    %v480 = vmul.f32 %v477, %v479
    %v481 = vadd.f32 %v480, -0.4999988
    %v482 = vmul.f32 %v477, %v481
    %v483 = vadd.f32 1.0, %v482
    %v484 = vmul.f32 %v475, %v475
    %v485 = vmul.f32 %v484, -0.00019511016
    %v486 = vadd.f32 %v485, 0.008332121
    %v487 = vmul.f32 %v484, %v486
    %v488 = vadd.f32 %v487, -0.16666654
    %v489 = vmul.f32 %v484, %v488
    %v490 = vadd.f32 %v489, 1.0
    %v491 = vmul.f32 %v490, %v475
    %vm492 = vweird.f32 %v25
    %v493 = vadd.s32 %v476, 3
    %v494 = vand.u32 %v493, 3
    %vm495 = vcmp.lt.s32.totalorder %v494, 2
    %vm496 = vcmp.eq.s32.totalorder %v494, 0
    %v497 = vxor.u32 %v491, 2147483648
    %v498 = vsel %vm496, %v483, %v497
    %vm499 = vcmp.eq.s32.totalorder %v494, 2
    %v500 = vxor.u32 %v483, 2147483648
    %v501 = vsel %vm499, %v500, %v491
    %v502 = vsel %vm495, %v498, %v501
    %v503 = vsel %vm492, nan, %v502
    %v504 = vand.u32 2147483647, %v26
    %vm505 = vcmp.le.f32.partialorder %v504, 0.7853982
    %vm506 = vcmp.lt.s32.totalorder %v26, 0
    %v507 = vand.u32 %v26, 2139095040
    %v508 = vshrl.u32 %v507, 23
    %v509 = vsub.s32 %v508, 127
    %v510 = vand.u32 2147483647, %v26
    %v511 = vand.u32 %v510, 8388607
    %v512 = vor.u32 %v511, 8388608
    %v513 = vsub.s32 0, %v512
    %v514 = vadd.s32 %v509, 1
    %vm515 = vcmp.gt.s32.totalorder %v514, 0
    %v516 = vsel %vm515, %v514, 0
    %v517 = vshrl.u32 %v516, 5
    %v518 = vand.u32 %v516, 31
    %v519 = vsub.s32 32, %v518
    %v520 = vshrl.u32 683565275, %v519
    %v521 = vshll.u32 683565275, %v518
    %v522 = vshrl.u32 2475754826, %v519
    %v523 = vor.u32 %v521, %v522
    %v524 = vshll.u32 2475754826, %v518
    %v525 = vshrl.u32 2131351028, %v519
    %v526 = vor.u32 %v524, %v525
    %v527 = vshll.u32 2131351028, %v518
    %v528 = vshrl.u32 2102212464, %v519
    %v529 = vor.u32 %v527, %v528
    %v530 = vshll.u32 2102212464, %v518
    %v531 = vshrl.u32 920167782, %v519
    %v532 = vor.u32 %v530, %v531
    %v533 = vshll.u32 920167782, %v518
    %v534 = vshrl.u32 1326507024, %v519
    %v535 = vor.u32 %v533, %v534
    %vm536 = vcmp.lt.s32.totalorder %v517, 1
    %vm537 = vcmp.lt.s32.totalorder %v517, 2
    %vm538 = vcmp.lt.s32.totalorder %v517, 3
    %vm539 = vcmp.lt.s32.totalorder %v517, 4
    %v540 = vsel %vm536, %v520, %v523
    %v541 = vsel %vm539, %v529, 2102212464
    %v542 = vsel %vm538, %v526, %v541
    %v543 = vsel %vm537, %v540, %v542
    %v544 = vsel %vm536, %v523, %v526
    %v545 = vsel %vm539, %v532, 920167782
    %v546 = vsel %vm538, %v529, %v545
    %v547 = vsel %vm537, %v544, %v546
    %v548 = vsel %vm536, %v526, %v529
    %v549 = vsel %vm539, %v535, 1326507024
    %v550 = vsel %vm538, %v532, %v549
    %v551 = vsel %vm537, %v548, %v550
    %v552 = vshll.u32 %v512, 8
    %v553 = vand.u32 %v552, 65535
    %v554 = vshrl.u32 %v552, 16
    %v555 = vand.u32 %v551, 65535
    %v556 = vshrl.u32 %v551, 16
    %v557 = vmul.u32 %v553, %v555
    %v558 = vmul.u32 %v553, %v556
    %v559 = vmul.u32 %v554, %v555
    %v560 = vmul.u32 %v554, %v556
    %v561 = vshll.u32 %v558, 16
    %v562 = vshrl.u32 %v558, 16
    %v563 = vshll.u32 %v559, 16
    %v564 = vshrl.u32 %v559, 16
    %vm565 = vc.u32 %v557, %v561
    %v566 = vsel %vm565, 1, 0
    %v567 = vadd.s32 %v557, %v561
    %v568 = vadd.s32 %v560, %v566
    %vm569 = vc.u32 %v567, %v563
    %v570 = vsel %vm569, 1, 0
    %v571 = vadd.s32 %v567, %v563
    %v572 = vadd.s32 %v568, %v570
    %v573 = vadd.s32 %v572, %v562
    %v574 = vadd.s32 %v573, %v564
    %v575 = vand.u32 %v552, 65535
    %v576 = vshrl.u32 %v552, 16
    %v577 = vand.u32 %v547, 65535
    %v578 = vshrl.u32 %v547, 16
    %v579 = vmul.u32 %v575, %v577
    %v580 = vmul.u32 %v575, %v578
    %v581 = vmul.u32 %v576, %v577
    %v582 = vmul.u32 %v576, %v578
    %v583 = vshll.u32 %v580, 16
    %v584 = vshrl.u32 %v580, 16
    %v585 = vshll.u32 %v581, 16
    %v586 = vshrl.u32 %v581, 16
    %vm587 = vc.u32 %v579, %v583
    %v588 = vsel %vm587, 1, 0
    %v589 = vadd.s32 %v579, %v583
    %v590 = vadd.s32 %v582, %v588
    %vm591 = vc.u32 %v589, %v585
    %v592 = vsel %vm591, 1, 0
    %v593 = vadd.s32 %v589, %v585
    %v594 = vadd.s32 %v590, %v592
    %v595 = vadd.s32 %v594, %v584
    %v596 = vadd.s32 %v595, %v586
    %v597 = vmul.u32 %v552, %v543
    %v598 = vadd.s32 %v574, %v593
    %vm599 = vc.u32 %v574, %v593
    %v600 = vadd.s32 %v596, 1
    %v601 = vsel %vm599, %v600, %v596
    %v602 = vadd.s32 %v597, %v601
    %v603 = vadd.s32 %v602, 536870912
    %v604 = vshrl.u32 %v603, 30
    %v605 = vshll.u32 %v604, 30
    %v606 = vsub.s32 %v602, %v605
    %vm607 = vcmp.lt.s32.totalorder %v606, 0
    %v608 = vsub.s32 0, %v606
    %v609 = vsel %vm607, %v608, %v606
    %v610 = vclz %v609
    %v611 = vsub.s32 %v610, 2
    %vm612 = vcmp.gt.s32.totalorder 0, %v611
    %v613 = vsel %vm612, 0, %v611
    %v614 = vsub.s32 32, %v613
    %v615 = vshll.u32 %v606, %v613
    %v616 = vshrl.u32 %v598, %v614
    %v617 = vor.u32 %v615, %v616
    %v618 = vsub.s32 4294967266, %v613
    %v619 = vadd.s32 %v618, 127
    %v620 = vshll.u32 %v619, 23
    %v621 = vor.u32 4788187, %v620
    %v622 = vand.u32 2147483647, %v621
    %v624 = vcvt.s32.f32 %v617
    %v625 = vmul.f32 %v624, %v622
    %v626 = vxor.u32 %v625, 2147483648
    %v627 = vsel %vm506, %v626, %v625
    %v628 = vsub.s32 4, %v604
    %v629 = vsel %vm506, %v628, %v604
    %v630 = vsel %vm505, %v26, %v627
    %v631 = vsel %vm505, 0, %v629
    %v632 = vmul.f32 %v630, %v630
    %v633 = vmul.f32 %v632, -0.001358992
    %v634 = vadd.f32 %v633, 0.041655596
    %v635 = vmul.f32 %v632, %v634
    %v636 = vadd.f32 %v635, -0.4999988
    %v637 = vmul.f32 %v632, %v636
    %v638 = vadd.f32 1.0, %v637
    %v639 = vmul.f32 %v630, %v630
    %v640 = vmul.f32 %v639, -0.00019511016
    %v641 = vadd.f32 %v640, 0.008332121
    %v642 = vmul.f32 %v639, %v641
    %v643 = vadd.f32 %v642, -0.16666654
    %v644 = vmul.f32 %v639, %v643
    %v645 = vadd.f32 %v644, 1.0
    %v646 = vmul.f32 %v645, %v630
    %vm647 = vweird.f32 %v26
    %v648 = vadd.s32 %v631, 3
    %v649 = vand.u32 %v648, 3
    %vm650 = vcmp.lt.s32.totalorder %v649, 2
    %vm651 = vcmp.eq.s32.totalorder %v649, 0
    %v652 = vxor.u32 %v646, 2147483648
    %v653 = vsel %vm651, %v638, %v652
    %vm654 = vcmp.eq.s32.totalorder %v649, 2
    %v655 = vxor.u32 %v638, 2147483648
    %v656 = vsel %vm654, %v655, %v646
    %v657 = vsel %vm650, %v653, %v656
    %v658 = vsel %vm647, nan, %v657
    %v659 = vand.u32 2147483647, %v27
    %vm660 = vcmp.le.f32.partialorder %v659, 0.7853982
    %vm661 = vcmp.lt.s32.totalorder %v27, 0
    %v662 = vand.u32 %v27, 2139095040
    %v663 = vshrl.u32 %v662, 23
    %v664 = vsub.s32 %v663, 127
    %v665 = vand.u32 2147483647, %v27
    %v666 = vand.u32 %v665, 8388607
    %v667 = vor.u32 %v666, 8388608
    %v668 = vsub.s32 0, %v667
    %v669 = vadd.s32 %v664, 1
    %vm670 = vcmp.gt.s32.totalorder %v669, 0
    %v671 = vsel %vm670, %v669, 0
    %v672 = vshrl.u32 %v671, 5
    %v673 = vand.u32 %v671, 31
    %v674 = vsub.s32 32, %v673
    %v675 = vshrl.u32 683565275, %v674
    %v676 = vshll.u32 683565275, %v673
    %v677 = vshrl.u32 2475754826, %v674
    %v678 = vor.u32 %v676, %v677
    %v679 = vshll.u32 2475754826, %v673
    %v680 = vshrl.u32 2131351028, %v674
    %v681 = vor.u32 %v679, %v680
    %v682 = vshll.u32 2131351028, %v673
    %v683 = vshrl.u32 2102212464, %v674
    %v684 = vor.u32 %v682, %v683
    %v685 = vshll.u32 2102212464, %v673
    %v686 = vshrl.u32 920167782, %v674
    %v687 = vor.u32 %v685, %v686
    %v688 = vshll.u32 920167782, %v673
    %v689 = vshrl.u32 1326507024, %v674
    %v690 = vor.u32 %v688, %v689
    %vm691 = vcmp.lt.s32.totalorder %v672, 1
    %vm692 = vcmp.lt.s32.totalorder %v672, 2
    %vm693 = vcmp.lt.s32.totalorder %v672, 3
    %vm694 = vcmp.lt.s32.totalorder %v672, 4
    %v695 = vsel %vm691, %v675, %v678
    %v696 = vsel %vm694, %v684, 2102212464
    %v697 = vsel %vm693, %v681, %v696
    %v698 = vsel %vm692, %v695, %v697
    %v699 = vsel %vm691, %v678, %v681
    %v700 = vsel %vm694, %v687, 920167782
    %v701 = vsel %vm693, %v684, %v700
    %v702 = vsel %vm692, %v699, %v701
    %v703 = vsel %vm691, %v681, %v684
    %v704 = vsel %vm694, %v690, 1326507024
    %v705 = vsel %vm693, %v687, %v704
    %v706 = vsel %vm692, %v703, %v705
    %v707 = vshll.u32 %v667, 8
    %v708 = vand.u32 %v707, 65535
    %v709 = vshrl.u32 %v707, 16
    %v710 = vand.u32 %v706, 65535
    %v711 = vshrl.u32 %v706, 16
    %v712 = vmul.u32 %v708, %v710
    %v713 = vmul.u32 %v708, %v711
    %v714 = vmul.u32 %v709, %v710
    %v715 = vmul.u32 %v709, %v711
    %v716 = vshll.u32 %v713, 16
    %v717 = vshrl.u32 %v713, 16
    %v718 = vshll.u32 %v714, 16
    %v719 = vshrl.u32 %v714, 16
    %vm720 = vc.u32 %v712, %v716
    %v721 = vsel %vm720, 1, 0
    %v722 = vadd.s32 %v712, %v716
    %v723 = vadd.s32 %v715, %v721
    %vm724 = vc.u32 %v722, %v718
    %v725 = vsel %vm724, 1, 0
    %v726 = vadd.s32 %v722, %v718
    %v727 = vadd.s32 %v723, %v725
    %v728 = vadd.s32 %v727, %v717
    %v729 = vadd.s32 %v728, %v719
    %v730 = vand.u32 %v707, 65535
    %v731 = vshrl.u32 %v707, 16
    %v732 = vand.u32 %v702, 65535
    %v733 = vshrl.u32 %v702, 16
    %v734 = vmul.u32 %v730, %v732
    %v735 = vmul.u32 %v730, %v733
    %v736 = vmul.u32 %v731, %v732
    %v737 = vmul.u32 %v731, %v733
    %v738 = vshll.u32 %v735, 16
    %v739 = vshrl.u32 %v735, 16
    %v740 = vshll.u32 %v736, 16
    %v741 = vshrl.u32 %v736, 16
    %vm742 = vc.u32 %v734, %v738
    %v743 = vsel %vm742, 1, 0
    %v744 = vadd.s32 %v734, %v738
    %v745 = vadd.s32 %v737, %v743
    %vm746 = vc.u32 %v744, %v740
    %v747 = vsel %vm746, 1, 0
    %v748 = vadd.s32 %v744, %v740
    %v749 = vadd.s32 %v745, %v747
    %v750 = vadd.s32 %v749, %v739
    %v751 = vadd.s32 %v750, %v741
    %v752 = vmul.u32 %v707, %v698
    %v753 = vadd.s32 %v729, %v748
    %vm754 = vc.u32 %v729, %v748
    %v755 = vadd.s32 %v751, 1
    %v756 = vsel %vm754, %v755, %v751
    %v757 = vadd.s32 %v752, %v756
    %v758 = vadd.s32 %v757, 536870912
    %v759 = vshrl.u32 %v758, 30
    %v760 = vshll.u32 %v759, 30
    %v761 = vsub.s32 %v757, %v760
    %vm762 = vcmp.lt.s32.totalorder %v761, 0
    %v763 = vsub.s32 0, %v761
    %v764 = vsel %vm762, %v763, %v761
    %v765 = vclz %v764
    %v766 = vsub.s32 %v765, 2
    %vm767 = vcmp.gt.s32.totalorder 0, %v766
    %v768 = vsel %vm767, 0, %v766
    %v769 = vsub.s32 32, %v768
    %v770 = vshll.u32 %v761, %v768
    %v771 = vshrl.u32 %v753, %v769
    %v772 = vor.u32 %v770, %v771
    %v773 = vsub.s32 4294967266, %v768
    %v774 = vadd.s32 %v773, 127
    %v775 = vshll.u32 %v774, 23
    %v776 = vor.u32 4788187, %v775
    %v777 = vand.u32 2147483647, %v776
    %v779 = vcvt.s32.f32 %v772
    %v780 = vmul.f32 %v779, %v777
    %v781 = vxor.u32 %v780, 2147483648
    %v782 = vsel %vm661, %v781, %v780
    %v783 = vsub.s32 4, %v759
    %v784 = vsel %vm661, %v783, %v759
    %v785 = vsel %vm660, %v27, %v782
    %v786 = vsel %vm660, 0, %v784
    %v787 = vmul.f32 %v785, %v785
    %v788 = vmul.f32 %v787, -0.001358992
    %v789 = vadd.f32 %v788, 0.041655596
    %v790 = vmul.f32 %v787, %v789
    %v791 = vadd.f32 %v790, -0.4999988
    %v792 = vmul.f32 %v787, %v791
    %v793 = vadd.f32 1.0, %v792
    %v794 = vmul.f32 %v785, %v785
    %v795 = vmul.f32 %v794, -0.00019511016
    %v796 = vadd.f32 %v795, 0.008332121
    %v797 = vmul.f32 %v794, %v796
    %v798 = vadd.f32 %v797, -0.16666654
    %v799 = vmul.f32 %v794, %v798
    %v800 = vadd.f32 %v799, 1.0
    %v801 = vmul.f32 %v800, %v785
    %vm802 = vweird.f32 %v27
    %v803 = vadd.s32 %v786, 3
    %v804 = vand.u32 %v803, 3
    %vm805 = vcmp.lt.s32.totalorder %v804, 2
    %vm806 = vcmp.eq.s32.totalorder %v804, 0
    %v807 = vxor.u32 %v801, 2147483648
    %v808 = vsel %vm806, %v793, %v807
    %vm809 = vcmp.eq.s32.totalorder %v804, 2
    %v810 = vxor.u32 %v793, 2147483648
    %v811 = vsel %vm809, %v810, %v801
    %v812 = vsel %vm805, %v808, %v811
    %v813 = vsel %vm802, nan, %v812
    %v814 = vand.u32 2147483647, %v28
    %vm815 = vcmp.le.f32.partialorder %v814, 0.7853982
    %vm816 = vcmp.lt.s32.totalorder %v28, 0
    %v817 = vand.u32 %v28, 2139095040
    %v818 = vshrl.u32 %v817, 23
    %v819 = vsub.s32 %v818, 127
    %v820 = vand.u32 2147483647, %v28
    %v821 = vand.u32 %v820, 8388607
    %v822 = vor.u32 %v821, 8388608
    %v823 = vsub.s32 0, %v822
    %v824 = vadd.s32 %v819, 1
    %vm825 = vcmp.gt.s32.totalorder %v824, 0
    %v826 = vsel %vm825, %v824, 0
    %v827 = vshrl.u32 %v826, 5
    %v828 = vand.u32 %v826, 31
    %v829 = vsub.s32 32, %v828
    %v830 = vshrl.u32 683565275, %v829
    %v831 = vshll.u32 683565275, %v828
    %v832 = vshrl.u32 2475754826, %v829
    %v833 = vor.u32 %v831, %v832
    %v834 = vshll.u32 2475754826, %v828
    %v835 = vshrl.u32 2131351028, %v829
    %v836 = vor.u32 %v834, %v835
    %v837 = vshll.u32 2131351028, %v828
    %v838 = vshrl.u32 2102212464, %v829
    %v839 = vor.u32 %v837, %v838
    %v840 = vshll.u32 2102212464, %v828
    %v841 = vshrl.u32 920167782, %v829
    %v842 = vor.u32 %v840, %v841
    %v843 = vshll.u32 920167782, %v828
    %v844 = vshrl.u32 1326507024, %v829
    %v845 = vor.u32 %v843, %v844
    %vm846 = vcmp.lt.s32.totalorder %v827, 1
    %vm847 = vcmp.lt.s32.totalorder %v827, 2
    %vm848 = vcmp.lt.s32.totalorder %v827, 3
    %vm849 = vcmp.lt.s32.totalorder %v827, 4
    %v850 = vsel %vm846, %v830, %v833
    %v851 = vsel %vm849, %v839, 2102212464
    %v852 = vsel %vm848, %v836, %v851
    %v853 = vsel %vm847, %v850, %v852
    %v854 = vsel %vm846, %v833, %v836
    %v855 = vsel %vm849, %v842, 920167782
    %v856 = vsel %vm848, %v839, %v855
    %v857 = vsel %vm847, %v854, %v856
    %v858 = vsel %vm846, %v836, %v839
    %v859 = vsel %vm849, %v845, 1326507024
    %v860 = vsel %vm848, %v842, %v859
    %v861 = vsel %vm847, %v858, %v860
    %v862 = vshll.u32 %v822, 8
    %v863 = vand.u32 %v862, 65535
    %v864 = vshrl.u32 %v862, 16
    %v865 = vand.u32 %v861, 65535
    %v866 = vshrl.u32 %v861, 16
    %v867 = vmul.u32 %v863, %v865
    %v868 = vmul.u32 %v863, %v866
    %v869 = vmul.u32 %v864, %v865
    %v870 = vmul.u32 %v864, %v866
    %v871 = vshll.u32 %v868, 16
    %v872 = vshrl.u32 %v868, 16
    %v873 = vshll.u32 %v869, 16
    %v874 = vshrl.u32 %v869, 16
    %vm875 = vc.u32 %v867, %v871
    %v876 = vsel %vm875, 1, 0
    %v877 = vadd.s32 %v867, %v871
    %v878 = vadd.s32 %v870, %v876
    %vm879 = vc.u32 %v877, %v873
    %v880 = vsel %vm879, 1, 0
    %v881 = vadd.s32 %v877, %v873
    %v882 = vadd.s32 %v878, %v880
    %v883 = vadd.s32 %v882, %v872
    %v884 = vadd.s32 %v883, %v874
    %v885 = vand.u32 %v862, 65535
    %v886 = vshrl.u32 %v862, 16
    %v887 = vand.u32 %v857, 65535
    %v888 = vshrl.u32 %v857, 16
    %v889 = vmul.u32 %v885, %v887
    %v890 = vmul.u32 %v885, %v888
    %v891 = vmul.u32 %v886, %v887
    %v892 = vmul.u32 %v886, %v888
    %v893 = vshll.u32 %v890, 16
    %v894 = vshrl.u32 %v890, 16
    %v895 = vshll.u32 %v891, 16
    %v896 = vshrl.u32 %v891, 16
    %vm897 = vc.u32 %v889, %v893
    %v898 = vsel %vm897, 1, 0
    %v899 = vadd.s32 %v889, %v893
    %v900 = vadd.s32 %v892, %v898
    %vm901 = vc.u32 %v899, %v895
    %v902 = vsel %vm901, 1, 0
    %v903 = vadd.s32 %v899, %v895
    %v904 = vadd.s32 %v900, %v902
    %v905 = vadd.s32 %v904, %v894
    %v906 = vadd.s32 %v905, %v896
    %v907 = vmul.u32 %v862, %v853
    %v908 = vadd.s32 %v884, %v903
    %vm909 = vc.u32 %v884, %v903
    %v910 = vadd.s32 %v906, 1
    %v911 = vsel %vm909, %v910, %v906
    %v912 = vadd.s32 %v907, %v911
    %v913 = vadd.s32 %v912, 536870912
    %v914 = vshrl.u32 %v913, 30
    %v915 = vshll.u32 %v914, 30
    %v916 = vsub.s32 %v912, %v915
    %vm917 = vcmp.lt.s32.totalorder %v916, 0
    %v918 = vsub.s32 0, %v916
    %v919 = vsel %vm917, %v918, %v916
    %v920 = vclz %v919
    %v921 = vsub.s32 %v920, 2
    %vm922 = vcmp.gt.s32.totalorder 0, %v921
    %v923 = vsel %vm922, 0, %v921
    %v924 = vsub.s32 32, %v923
    %v925 = vshll.u32 %v916, %v923
    %v926 = vshrl.u32 %v908, %v924
    %v927 = vor.u32 %v925, %v926
    %v928 = vsub.s32 4294967266, %v923
    %v929 = vadd.s32 %v928, 127
    %v930 = vshll.u32 %v929, 23
    %v931 = vor.u32 4788187, %v930
    %v932 = vand.u32 2147483647, %v931
    %v934 = vcvt.s32.f32 %v927
    %v935 = vmul.f32 %v934, %v932
    %v936 = vxor.u32 %v935, 2147483648
    %v937 = vsel %vm816, %v936, %v935
    %v938 = vsub.s32 4, %v914
    %v939 = vsel %vm816, %v938, %v914
    %v940 = vsel %vm815, %v28, %v937
    %v941 = vsel %vm815, 0, %v939
    %v942 = vmul.f32 %v940, %v940
    %v943 = vmul.f32 %v942, -0.001358992
    %v944 = vadd.f32 %v943, 0.041655596
    %v945 = vmul.f32 %v942, %v944
    %v946 = vadd.f32 %v945, -0.4999988
    %v947 = vmul.f32 %v942, %v946
    %v948 = vadd.f32 1.0, %v947
    %v949 = vmul.f32 %v940, %v940
    %v950 = vmul.f32 %v949, -0.00019511016
    %v951 = vadd.f32 %v950, 0.008332121
    %v952 = vmul.f32 %v949, %v951
    %v953 = vadd.f32 %v952, -0.16666654
    %v954 = vmul.f32 %v949, %v953
    %v955 = vadd.f32 %v954, 1.0
    %v956 = vmul.f32 %v955, %v940
    %vm957 = vweird.f32 %v28
    %v958 = vadd.s32 %v941, 3
    %v959 = vand.u32 %v958, 3
    %vm960 = vcmp.lt.s32.totalorder %v959, 2
    %vm961 = vcmp.eq.s32.totalorder %v959, 0
    %v962 = vxor.u32 %v956, 2147483648
    %v963 = vsel %vm961, %v948, %v962
    %vm964 = vcmp.eq.s32.totalorder %v959, 2
    %v965 = vxor.u32 %v948, 2147483648
    %v966 = vsel %vm964, %v965, %v956
    %v967 = vsel %vm960, %v963, %v966
    %v968 = vsel %vm957, nan, %v967
    %v969 = vand.u32 2147483647, %v29
    %vm970 = vcmp.le.f32.partialorder %v969, 0.7853982
    %vm971 = vcmp.lt.s32.totalorder %v29, 0
    %v972 = vand.u32 %v29, 2139095040
    %v973 = vshrl.u32 %v972, 23
    %v974 = vsub.s32 %v973, 127
    %v975 = vand.u32 2147483647, %v29
    %v976 = vand.u32 %v975, 8388607
    %v977 = vor.u32 %v976, 8388608
    %v978 = vsub.s32 0, %v977
    %v979 = vadd.s32 %v974, 1
    %vm980 = vcmp.gt.s32.totalorder %v979, 0
    %v981 = vsel %vm980, %v979, 0
    %v982 = vshrl.u32 %v981, 5
    %v983 = vand.u32 %v981, 31
    %v984 = vsub.s32 32, %v983
    %v985 = vshrl.u32 683565275, %v984
    %v986 = vshll.u32 683565275, %v983
    %v987 = vshrl.u32 2475754826, %v984
    %v988 = vor.u32 %v986, %v987
    %v989 = vshll.u32 2475754826, %v983
    %v990 = vshrl.u32 2131351028, %v984
    %v991 = vor.u32 %v989, %v990
    %v992 = vshll.u32 2131351028, %v983
    %v993 = vshrl.u32 2102212464, %v984
    %v994 = vor.u32 %v992, %v993
    %v995 = vshll.u32 2102212464, %v983
    %v996 = vshrl.u32 920167782, %v984
    %v997 = vor.u32 %v995, %v996
    %v998 = vshll.u32 920167782, %v983
    %v999 = vshrl.u32 1326507024, %v984
    %v1000 = vor.u32 %v998, %v999
    %vm1001 = vcmp.lt.s32.totalorder %v982, 1
    %vm1002 = vcmp.lt.s32.totalorder %v982, 2
    %vm1003 = vcmp.lt.s32.totalorder %v982, 3
    %vm1004 = vcmp.lt.s32.totalorder %v982, 4
    %v1005 = vsel %vm1001, %v985, %v988
    %v1006 = vsel %vm1004, %v994, 2102212464
    %v1007 = vsel %vm1003, %v991, %v1006
    %v1008 = vsel %vm1002, %v1005, %v1007
    %v1009 = vsel %vm1001, %v988, %v991
    %v1010 = vsel %vm1004, %v997, 920167782
    %v1011 = vsel %vm1003, %v994, %v1010
    %v1012 = vsel %vm1002, %v1009, %v1011
    %v1013 = vsel %vm1001, %v991, %v994
    %v1014 = vsel %vm1004, %v1000, 1326507024
    %v1015 = vsel %vm1003, %v997, %v1014
    %v1016 = vsel %vm1002, %v1013, %v1015
    %v1017 = vshll.u32 %v977, 8
    %v1018 = vand.u32 %v1017, 65535
    %v1019 = vshrl.u32 %v1017, 16
    %v1020 = vand.u32 %v1016, 65535
    %v1021 = vshrl.u32 %v1016, 16
    %v1022 = vmul.u32 %v1018, %v1020
    %v1023 = vmul.u32 %v1018, %v1021
    %v1024 = vmul.u32 %v1019, %v1020
    %v1025 = vmul.u32 %v1019, %v1021
    %v1026 = vshll.u32 %v1023, 16
    %v1027 = vshrl.u32 %v1023, 16
    %v1028 = vshll.u32 %v1024, 16
    %v1029 = vshrl.u32 %v1024, 16
    %vm1030 = vc.u32 %v1022, %v1026
    %v1031 = vsel %vm1030, 1, 0
    %v1032 = vadd.s32 %v1022, %v1026
    %v1033 = vadd.s32 %v1025, %v1031
    %vm1034 = vc.u32 %v1032, %v1028
    %v1035 = vsel %vm1034, 1, 0
    %v1036 = vadd.s32 %v1032, %v1028
    %v1037 = vadd.s32 %v1033, %v1035
    %v1038 = vadd.s32 %v1037, %v1027
    %v1039 = vadd.s32 %v1038, %v1029
    %v1040 = vand.u32 %v1017, 65535
    %v1041 = vshrl.u32 %v1017, 16
    %v1042 = vand.u32 %v1012, 65535
    %v1043 = vshrl.u32 %v1012, 16
    %v1044 = vmul.u32 %v1040, %v1042
    %v1045 = vmul.u32 %v1040, %v1043
    %v1046 = vmul.u32 %v1041, %v1042
    %v1047 = vmul.u32 %v1041, %v1043
    %v1048 = vshll.u32 %v1045, 16
    %v1049 = vshrl.u32 %v1045, 16
    %v1050 = vshll.u32 %v1046, 16
    %v1051 = vshrl.u32 %v1046, 16
    %vm1052 = vc.u32 %v1044, %v1048
    %v1053 = vsel %vm1052, 1, 0
    %v1054 = vadd.s32 %v1044, %v1048
    %v1055 = vadd.s32 %v1047, %v1053
    %vm1056 = vc.u32 %v1054, %v1050
    %v1057 = vsel %vm1056, 1, 0
    %v1058 = vadd.s32 %v1054, %v1050
    %v1059 = vadd.s32 %v1055, %v1057
    %v1060 = vadd.s32 %v1059, %v1049
    %v1061 = vadd.s32 %v1060, %v1051
    %v1062 = vmul.u32 %v1017, %v1008
    %v1063 = vadd.s32 %v1039, %v1058
    %vm1064 = vc.u32 %v1039, %v1058
    %v1065 = vadd.s32 %v1061, 1
    %v1066 = vsel %vm1064, %v1065, %v1061
    %v1067 = vadd.s32 %v1062, %v1066
    %v1068 = vadd.s32 %v1067, 536870912
    %v1069 = vshrl.u32 %v1068, 30
    %v1070 = vshll.u32 %v1069, 30
    %v1071 = vsub.s32 %v1067, %v1070
    %vm1072 = vcmp.lt.s32.totalorder %v1071, 0
    %v1073 = vsub.s32 0, %v1071
    %v1074 = vsel %vm1072, %v1073, %v1071
    %v1075 = vclz %v1074
    %v1076 = vsub.s32 %v1075, 2
    %vm1077 = vcmp.gt.s32.totalorder 0, %v1076
    %v1078 = vsel %vm1077, 0, %v1076
    %v1079 = vsub.s32 32, %v1078
    %v1080 = vshll.u32 %v1071, %v1078
    %v1081 = vshrl.u32 %v1063, %v1079
    %v1082 = vor.u32 %v1080, %v1081
    %v1083 = vsub.s32 4294967266, %v1078
    %v1084 = vadd.s32 %v1083, 127
    %v1085 = vshll.u32 %v1084, 23
    %v1086 = vor.u32 4788187, %v1085
    %v1087 = vand.u32 2147483647, %v1086
    %v1089 = vcvt.s32.f32 %v1082
    %v1090 = vmul.f32 %v1089, %v1087
    %v1091 = vxor.u32 %v1090, 2147483648
    %v1092 = vsel %vm971, %v1091, %v1090
    %v1093 = vsub.s32 4, %v1069
    %v1094 = vsel %vm971, %v1093, %v1069
    %v1095 = vsel %vm970, %v29, %v1092
    %v1096 = vsel %vm970, 0, %v1094
    %v1097 = vmul.f32 %v1095, %v1095
    %v1098 = vmul.f32 %v1097, -0.001358992
    %v1099 = vadd.f32 %v1098, 0.041655596
    %v1100 = vmul.f32 %v1097, %v1099
    %v1101 = vadd.f32 %v1100, -0.4999988
    %v1102 = vmul.f32 %v1097, %v1101
    %v1103 = vadd.f32 1.0, %v1102
    %v1104 = vmul.f32 %v1095, %v1095
    %v1105 = vmul.f32 %v1104, -0.00019511016
    %v1106 = vadd.f32 %v1105, 0.008332121
    %v1107 = vmul.f32 %v1104, %v1106
    %v1108 = vadd.f32 %v1107, -0.16666654
    %v1109 = vmul.f32 %v1104, %v1108
    %v1110 = vadd.f32 %v1109, 1.0
    %v1111 = vmul.f32 %v1110, %v1095
    %vm1112 = vweird.f32 %v29
    %v1113 = vadd.s32 %v1096, 3
    %v1114 = vand.u32 %v1113, 3
    %vm1115 = vcmp.lt.s32.totalorder %v1114, 2
    %vm1116 = vcmp.eq.s32.totalorder %v1114, 0
    %v1117 = vxor.u32 %v1111, 2147483648
    %v1118 = vsel %vm1116, %v1103, %v1117
    %vm1119 = vcmp.eq.s32.totalorder %v1114, 2
    %v1120 = vxor.u32 %v1103, 2147483648
    %v1121 = vsel %vm1119, %v1120, %v1111
    %v1122 = vsel %vm1115, %v1118, %v1121
    %v1123 = vsel %vm1112, nan, %v1122
    %v1124 = vand.u32 2147483647, %v30
    %vm1125 = vcmp.le.f32.partialorder %v1124, 0.7853982
    %vm1126 = vcmp.lt.s32.totalorder %v30, 0
    %v1127 = vand.u32 %v30, 2139095040
    %v1128 = vshrl.u32 %v1127, 23
    %v1129 = vsub.s32 %v1128, 127
    %v1130 = vand.u32 2147483647, %v30
    %v1131 = vand.u32 %v1130, 8388607
    %v1132 = vor.u32 %v1131, 8388608
    %v1133 = vsub.s32 0, %v1132
    %v1134 = vadd.s32 %v1129, 1
    %vm1135 = vcmp.gt.s32.totalorder %v1134, 0
    %v1136 = vsel %vm1135, %v1134, 0
    %v1137 = vshrl.u32 %v1136, 5
    %v1138 = vand.u32 %v1136, 31
    %v1139 = vsub.s32 32, %v1138
    %v1140 = vshrl.u32 683565275, %v1139
    %v1141 = vshll.u32 683565275, %v1138
    %v1142 = vshrl.u32 2475754826, %v1139
    %v1143 = vor.u32 %v1141, %v1142
    %v1144 = vshll.u32 2475754826, %v1138
    %v1145 = vshrl.u32 2131351028, %v1139
    %v1146 = vor.u32 %v1144, %v1145
    %v1147 = vshll.u32 2131351028, %v1138
    %v1148 = vshrl.u32 2102212464, %v1139
    %v1149 = vor.u32 %v1147, %v1148
    %v1150 = vshll.u32 2102212464, %v1138
    %v1151 = vshrl.u32 920167782, %v1139
    %v1152 = vor.u32 %v1150, %v1151
    %v1153 = vshll.u32 920167782, %v1138
    %v1154 = vshrl.u32 1326507024, %v1139
    %v1155 = vor.u32 %v1153, %v1154
    %vm1156 = vcmp.lt.s32.totalorder %v1137, 1
    %vm1157 = vcmp.lt.s32.totalorder %v1137, 2
    %vm1158 = vcmp.lt.s32.totalorder %v1137, 3
    %vm1159 = vcmp.lt.s32.totalorder %v1137, 4
    %v1160 = vsel %vm1156, %v1140, %v1143
    %v1161 = vsel %vm1159, %v1149, 2102212464
    %v1162 = vsel %vm1158, %v1146, %v1161
    %v1163 = vsel %vm1157, %v1160, %v1162
    %v1164 = vsel %vm1156, %v1143, %v1146
    %v1165 = vsel %vm1159, %v1152, 920167782
    %v1166 = vsel %vm1158, %v1149, %v1165
    %v1167 = vsel %vm1157, %v1164, %v1166
    %v1168 = vsel %vm1156, %v1146, %v1149
    %v1169 = vsel %vm1159, %v1155, 1326507024
    %v1170 = vsel %vm1158, %v1152, %v1169
    %v1171 = vsel %vm1157, %v1168, %v1170
    %v1172 = vshll.u32 %v1132, 8
    %v1173 = vand.u32 %v1172, 65535
    %v1174 = vshrl.u32 %v1172, 16
    %v1175 = vand.u32 %v1171, 65535
    %v1176 = vshrl.u32 %v1171, 16
    %v1177 = vmul.u32 %v1173, %v1175
    %v1178 = vmul.u32 %v1173, %v1176
    %v1179 = vmul.u32 %v1174, %v1175
    %v1180 = vmul.u32 %v1174, %v1176
    %v1181 = vshll.u32 %v1178, 16
    %v1182 = vshrl.u32 %v1178, 16
    %v1183 = vshll.u32 %v1179, 16
    %v1184 = vshrl.u32 %v1179, 16
    %vm1185 = vc.u32 %v1177, %v1181
    %v1186 = vsel %vm1185, 1, 0
    %v1187 = vadd.s32 %v1177, %v1181
    %v1188 = vadd.s32 %v1180, %v1186
    %vm1189 = vc.u32 %v1187, %v1183
    %v1190 = vsel %vm1189, 1, 0
    %v1191 = vadd.s32 %v1187, %v1183
    %v1192 = vadd.s32 %v1188, %v1190
    %v1193 = vadd.s32 %v1192, %v1182
    %v1194 = vadd.s32 %v1193, %v1184
    %v1195 = vand.u32 %v1172, 65535
    %v1196 = vshrl.u32 %v1172, 16
    %v1197 = vand.u32 %v1167, 65535
    %v1198 = vshrl.u32 %v1167, 16
    %v1199 = vmul.u32 %v1195, %v1197
    %v1200 = vmul.u32 %v1195, %v1198
    %v1201 = vmul.u32 %v1196, %v1197
    %v1202 = vmul.u32 %v1196, %v1198
    %v1203 = vshll.u32 %v1200, 16
    %v1204 = vshrl.u32 %v1200, 16
    %v1205 = vshll.u32 %v1201, 16
    %v1206 = vshrl.u32 %v1201, 16
    %vm1207 = vc.u32 %v1199, %v1203
    %v1208 = vsel %vm1207, 1, 0
    %v1209 = vadd.s32 %v1199, %v1203
    %v1210 = vadd.s32 %v1202, %v1208
    %vm1211 = vc.u32 %v1209, %v1205
    %v1212 = vsel %vm1211, 1, 0
    %v1213 = vadd.s32 %v1209, %v1205
    %v1214 = vadd.s32 %v1210, %v1212
    %v1215 = vadd.s32 %v1214, %v1204
    %v1216 = vadd.s32 %v1215, %v1206
    %v1217 = vmul.u32 %v1172, %v1163
    %v1218 = vadd.s32 %v1194, %v1213
    %vm1219 = vc.u32 %v1194, %v1213
    %v1220 = vadd.s32 %v1216, 1
    %v1221 = vsel %vm1219, %v1220, %v1216
    %v1222 = vadd.s32 %v1217, %v1221
    %v1223 = vadd.s32 %v1222, 536870912
    %v1224 = vshrl.u32 %v1223, 30
    %v1225 = vshll.u32 %v1224, 30
    %v1226 = vsub.s32 %v1222, %v1225
    %vm1227 = vcmp.lt.s32.totalorder %v1226, 0
    %v1228 = vsub.s32 0, %v1226
    %v1229 = vsel %vm1227, %v1228, %v1226
    %v1230 = vclz %v1229
    %v1231 = vsub.s32 %v1230, 2
    %vm1232 = vcmp.gt.s32.totalorder 0, %v1231
    %v1233 = vsel %vm1232, 0, %v1231
    %v1234 = vsub.s32 32, %v1233
    %v1235 = vshll.u32 %v1226, %v1233
    %v1236 = vshrl.u32 %v1218, %v1234
    %v1237 = vor.u32 %v1235, %v1236
    %v1238 = vsub.s32 4294967266, %v1233
    %v1239 = vadd.s32 %v1238, 127
    %v1240 = vshll.u32 %v1239, 23
    %v1241 = vor.u32 4788187, %v1240
    %v1242 = vand.u32 2147483647, %v1241
    %v1244 = vcvt.s32.f32 %v1237
    %v1245 = vmul.f32 %v1244, %v1242
    %v1246 = vxor.u32 %v1245, 2147483648
    %v1247 = vsel %vm1126, %v1246, %v1245
    %v1248 = vsub.s32 4, %v1224
    %v1249 = vsel %vm1126, %v1248, %v1224
    %v1250 = vsel %vm1125, %v30, %v1247
    %v1251 = vsel %vm1125, 0, %v1249
    %v1252 = vmul.f32 %v1250, %v1250
    %v1253 = vmul.f32 %v1252, -0.001358992
    %v1254 = vadd.f32 %v1253, 0.041655596
    %v1255 = vmul.f32 %v1252, %v1254
    %v1256 = vadd.f32 %v1255, -0.4999988
    %v1257 = vmul.f32 %v1252, %v1256
    %v1258 = vadd.f32 1.0, %v1257
    %v1259 = vmul.f32 %v1250, %v1250
    %v1260 = vmul.f32 %v1259, -0.00019511016
    %v1261 = vadd.f32 %v1260, 0.008332121
    %v1262 = vmul.f32 %v1259, %v1261
    %v1263 = vadd.f32 %v1262, -0.16666654
    %v1264 = vmul.f32 %v1259, %v1263
    %v1265 = vadd.f32 %v1264, 1.0
    %v1266 = vmul.f32 %v1265, %v1250
    %vm1267 = vweird.f32 %v30
    %v1268 = vadd.s32 %v1251, 3
    %v1269 = vand.u32 %v1268, 3
    %vm1270 = vcmp.lt.s32.totalorder %v1269, 2
    %vm1271 = vcmp.eq.s32.totalorder %v1269, 0
    %v1272 = vxor.u32 %v1266, 2147483648
    %v1273 = vsel %vm1271, %v1258, %v1272
    %vm1274 = vcmp.eq.s32.totalorder %v1269, 2
    %v1275 = vxor.u32 %v1258, 2147483648
    %v1276 = vsel %vm1274, %v1275, %v1266
    %v1277 = vsel %vm1270, %v1273, %v1276
    %v1278 = vsel %vm1267, nan, %v1277
    %v1279 = vand.u32 2147483647, %v23
    %vm1280 = vcmp.le.f32.partialorder %v1279, 0.7853982
    %vm1281 = vcmp.lt.s32.totalorder %v23, 0
    %v1282 = vand.u32 %v23, 2139095040
    %v1283 = vshrl.u32 %v1282, 23
    %v1284 = vsub.s32 %v1283, 127
    %v1285 = vand.u32 2147483647, %v23
    %v1286 = vand.u32 %v1285, 8388607
    %v1287 = vor.u32 %v1286, 8388608
    %v1288 = vsub.s32 0, %v1287
    %v1289 = vadd.s32 %v1284, 1
    %vm1290 = vcmp.gt.s32.totalorder %v1289, 0
    %v1291 = vsel %vm1290, %v1289, 0
    %v1292 = vshrl.u32 %v1291, 5
    %v1293 = vand.u32 %v1291, 31
    %v1294 = vsub.s32 32, %v1293
    %v1295 = vshrl.u32 683565275, %v1294
    %v1296 = vshll.u32 683565275, %v1293
    %v1297 = vshrl.u32 2475754826, %v1294
    %v1298 = vor.u32 %v1296, %v1297
    %v1299 = vshll.u32 2475754826, %v1293
    %v1300 = vshrl.u32 2131351028, %v1294
    %v1301 = vor.u32 %v1299, %v1300
    %v1302 = vshll.u32 2131351028, %v1293
    %v1303 = vshrl.u32 2102212464, %v1294
    %v1304 = vor.u32 %v1302, %v1303
    %v1305 = vshll.u32 2102212464, %v1293
    %v1306 = vshrl.u32 920167782, %v1294
    %v1307 = vor.u32 %v1305, %v1306
    %v1308 = vshll.u32 920167782, %v1293
    %v1309 = vshrl.u32 1326507024, %v1294
    %v1310 = vor.u32 %v1308, %v1309
    %vm1311 = vcmp.lt.s32.totalorder %v1292, 1
    %vm1312 = vcmp.lt.s32.totalorder %v1292, 2
    %vm1313 = vcmp.lt.s32.totalorder %v1292, 3
    %vm1314 = vcmp.lt.s32.totalorder %v1292, 4
    %v1315 = vsel %vm1311, %v1295, %v1298
    %v1316 = vsel %vm1314, %v1304, 2102212464
    %v1317 = vsel %vm1313, %v1301, %v1316
    %v1318 = vsel %vm1312, %v1315, %v1317
    %v1319 = vsel %vm1311, %v1298, %v1301
    %v1320 = vsel %vm1314, %v1307, 920167782
    %v1321 = vsel %vm1313, %v1304, %v1320
    %v1322 = vsel %vm1312, %v1319, %v1321
    %v1323 = vsel %vm1311, %v1301, %v1304
    %v1324 = vsel %vm1314, %v1310, 1326507024
    %v1325 = vsel %vm1313, %v1307, %v1324
    %v1326 = vsel %vm1312, %v1323, %v1325
    %v1327 = vshll.u32 %v1287, 8
    %v1328 = vand.u32 %v1327, 65535
    %v1329 = vshrl.u32 %v1327, 16
    %v1330 = vand.u32 %v1326, 65535
    %v1331 = vshrl.u32 %v1326, 16
    %v1332 = vmul.u32 %v1328, %v1330
    %v1333 = vmul.u32 %v1328, %v1331
    %v1334 = vmul.u32 %v1329, %v1330
    %v1335 = vmul.u32 %v1329, %v1331
    %v1336 = vshll.u32 %v1333, 16
    %v1337 = vshrl.u32 %v1333, 16
    %v1338 = vshll.u32 %v1334, 16
    %v1339 = vshrl.u32 %v1334, 16
    %vm1340 = vc.u32 %v1332, %v1336
    %v1341 = vsel %vm1340, 1, 0
    %v1342 = vadd.s32 %v1332, %v1336
    %v1343 = vadd.s32 %v1335, %v1341
    %vm1344 = vc.u32 %v1342, %v1338
    %v1345 = vsel %vm1344, 1, 0
    %v1346 = vadd.s32 %v1342, %v1338
    %v1347 = vadd.s32 %v1343, %v1345
    %v1348 = vadd.s32 %v1347, %v1337
    %v1349 = vadd.s32 %v1348, %v1339
    %v1350 = vand.u32 %v1327, 65535
    %v1351 = vshrl.u32 %v1327, 16
    %v1352 = vand.u32 %v1322, 65535
    %v1353 = vshrl.u32 %v1322, 16
    %v1354 = vmul.u32 %v1350, %v1352
    %v1355 = vmul.u32 %v1350, %v1353
    %v1356 = vmul.u32 %v1351, %v1352
    %v1357 = vmul.u32 %v1351, %v1353
    %v1358 = vshll.u32 %v1355, 16
    %v1359 = vshrl.u32 %v1355, 16
    %v1360 = vshll.u32 %v1356, 16
    %v1361 = vshrl.u32 %v1356, 16
    %vm1362 = vc.u32 %v1354, %v1358
    %v1363 = vsel %vm1362, 1, 0
    %v1364 = vadd.s32 %v1354, %v1358
    %v1365 = vadd.s32 %v1357, %v1363
    %vm1366 = vc.u32 %v1364, %v1360
    %v1367 = vsel %vm1366, 1, 0
    %v1368 = vadd.s32 %v1364, %v1360
    %v1369 = vadd.s32 %v1365, %v1367
    %v1370 = vadd.s32 %v1369, %v1359
    %v1371 = vadd.s32 %v1370, %v1361
    %v1372 = vmul.u32 %v1327, %v1318
    %v1373 = vadd.s32 %v1349, %v1368
    %vm1374 = vc.u32 %v1349, %v1368
    %v1375 = vadd.s32 %v1371, 1
    %v1376 = vsel %vm1374, %v1375, %v1371
    %v1377 = vadd.s32 %v1372, %v1376
    %v1378 = vadd.s32 %v1377, 536870912
    %v1379 = vshrl.u32 %v1378, 30
    %v1380 = vshll.u32 %v1379, 30
    %v1381 = vsub.s32 %v1377, %v1380
    %vm1382 = vcmp.lt.s32.totalorder %v1381, 0
    %v1383 = vsub.s32 0, %v1381
    %v1384 = vsel %vm1382, %v1383, %v1381
    %v1385 = vclz %v1384
    %v1386 = vsub.s32 %v1385, 2
    %vm1387 = vcmp.gt.s32.totalorder 0, %v1386
    %v1388 = vsel %vm1387, 0, %v1386
    %v1389 = vsub.s32 32, %v1388
    %v1390 = vshll.u32 %v1381, %v1388
    %v1391 = vshrl.u32 %v1373, %v1389
    %v1392 = vor.u32 %v1390, %v1391
    %v1393 = vsub.s32 4294967266, %v1388
    %v1394 = vadd.s32 %v1393, 127
    %v1395 = vshll.u32 %v1394, 23
    %v1396 = vor.u32 4788187, %v1395
    %v1397 = vand.u32 2147483647, %v1396
    %v1399 = vcvt.s32.f32 %v1392
    %v1400 = vmul.f32 %v1399, %v1397
    %v1401 = vxor.u32 %v1400, 2147483648
    %v1402 = vsel %vm1281, %v1401, %v1400
    %v1403 = vsub.s32 4, %v1379
    %v1404 = vsel %vm1281, %v1403, %v1379
    %v1405 = vsel %vm1280, %v23, %v1402
    %v1406 = vsel %vm1280, 0, %v1404
    %v1407 = vmul.f32 %v1405, %v1405
    %v1408 = vmul.f32 %v1407, -0.001358992
    %v1409 = vadd.f32 %v1408, 0.041655596
    %v1410 = vmul.f32 %v1407, %v1409
    %v1411 = vadd.f32 %v1410, -0.4999988
    %v1412 = vmul.f32 %v1407, %v1411
    %v1413 = vadd.f32 1.0, %v1412
    %v1414 = vmul.f32 %v1405, %v1405
    %v1415 = vmul.f32 %v1414, -0.00019511016
    %v1416 = vadd.f32 %v1415, 0.008332121
    %v1417 = vmul.f32 %v1414, %v1416
    %v1418 = vadd.f32 %v1417, -0.16666654
    %v1419 = vmul.f32 %v1414, %v1418
    %v1420 = vadd.f32 %v1419, 1.0
    %v1421 = vmul.f32 %v1420, %v1405
    %vm1422 = vweird.f32 %v23
    %v1423 = vand.u32 %v1406, 3
    %vm1424 = vcmp.lt.s32.totalorder %v1423, 2
    %vm1425 = vcmp.eq.s32.totalorder %v1423, 0
    %v1426 = vxor.u32 %v1421, 2147483648
    %v1427 = vsel %vm1425, %v1413, %v1426
    %vm1428 = vcmp.eq.s32.totalorder %v1423, 2
    %v1429 = vxor.u32 %v1413, 2147483648
    %v1430 = vsel %vm1428, %v1429, %v1421
    %v1431 = vsel %vm1424, %v1427, %v1430
    %v1432 = vsel %vm1422, nan, %v1431
    %v1433 = vand.u32 2147483647, %v24
    %vm1434 = vcmp.le.f32.partialorder %v1433, 0.7853982
    %vm1435 = vcmp.lt.s32.totalorder %v24, 0
    %v1436 = vand.u32 %v24, 2139095040
    %v1437 = vshrl.u32 %v1436, 23
    %v1438 = vsub.s32 %v1437, 127
    %v1439 = vand.u32 2147483647, %v24
    %v1440 = vand.u32 %v1439, 8388607
    %v1441 = vor.u32 %v1440, 8388608
    %v1442 = vsub.s32 0, %v1441
    %v1443 = vadd.s32 %v1438, 1
    %vm1444 = vcmp.gt.s32.totalorder %v1443, 0
    %v1445 = vsel %vm1444, %v1443, 0
    %v1446 = vshrl.u32 %v1445, 5
    %v1447 = vand.u32 %v1445, 31
    %v1448 = vsub.s32 32, %v1447
    %v1449 = vshrl.u32 683565275, %v1448
    %v1450 = vshll.u32 683565275, %v1447
    %v1451 = vshrl.u32 2475754826, %v1448
    %v1452 = vor.u32 %v1450, %v1451
    %v1453 = vshll.u32 2475754826, %v1447
    %v1454 = vshrl.u32 2131351028, %v1448
    %v1455 = vor.u32 %v1453, %v1454
    %v1456 = vshll.u32 2131351028, %v1447
    %v1457 = vshrl.u32 2102212464, %v1448
    %v1458 = vor.u32 %v1456, %v1457
    %v1459 = vshll.u32 2102212464, %v1447
    %v1460 = vshrl.u32 920167782, %v1448
    %v1461 = vor.u32 %v1459, %v1460
    %v1462 = vshll.u32 920167782, %v1447
    %v1463 = vshrl.u32 1326507024, %v1448
    %v1464 = vor.u32 %v1462, %v1463
    %vm1465 = vcmp.lt.s32.totalorder %v1446, 1
    %vm1466 = vcmp.lt.s32.totalorder %v1446, 2
    %vm1467 = vcmp.lt.s32.totalorder %v1446, 3
    %vm1468 = vcmp.lt.s32.totalorder %v1446, 4
    %v1469 = vsel %vm1465, %v1449, %v1452
    %v1470 = vsel %vm1468, %v1458, 2102212464
    %v1471 = vsel %vm1467, %v1455, %v1470
    %v1472 = vsel %vm1466, %v1469, %v1471
    %v1473 = vsel %vm1465, %v1452, %v1455
    %v1474 = vsel %vm1468, %v1461, 920167782
    %v1475 = vsel %vm1467, %v1458, %v1474
    %v1476 = vsel %vm1466, %v1473, %v1475
    %v1477 = vsel %vm1465, %v1455, %v1458
    %v1478 = vsel %vm1468, %v1464, 1326507024
    %v1479 = vsel %vm1467, %v1461, %v1478
    %v1480 = vsel %vm1466, %v1477, %v1479
    %v1481 = vshll.u32 %v1441, 8
    %v1482 = vand.u32 %v1481, 65535
    %v1483 = vshrl.u32 %v1481, 16
    %v1484 = vand.u32 %v1480, 65535
    %v1485 = vshrl.u32 %v1480, 16
    %v1486 = vmul.u32 %v1482, %v1484
    %v1487 = vmul.u32 %v1482, %v1485
    %v1488 = vmul.u32 %v1483, %v1484
    %v1489 = vmul.u32 %v1483, %v1485
    %v1490 = vshll.u32 %v1487, 16
    %v1491 = vshrl.u32 %v1487, 16
    %v1492 = vshll.u32 %v1488, 16
    %v1493 = vshrl.u32 %v1488, 16
    %vm1494 = vc.u32 %v1486, %v1490
    %v1495 = vsel %vm1494, 1, 0
    %v1496 = vadd.s32 %v1486, %v1490
    %v1497 = vadd.s32 %v1489, %v1495
    %vm1498 = vc.u32 %v1496, %v1492
    %v1499 = vsel %vm1498, 1, 0
    %v1500 = vadd.s32 %v1496, %v1492
    %v1501 = vadd.s32 %v1497, %v1499
    %v1502 = vadd.s32 %v1501, %v1491
    %v1503 = vadd.s32 %v1502, %v1493
    %v1504 = vand.u32 %v1481, 65535
    %v1505 = vshrl.u32 %v1481, 16
    %v1506 = vand.u32 %v1476, 65535
    %v1507 = vshrl.u32 %v1476, 16
    %v1508 = vmul.u32 %v1504, %v1506
    %v1509 = vmul.u32 %v1504, %v1507
    %v1510 = vmul.u32 %v1505, %v1506
    %v1511 = vmul.u32 %v1505, %v1507
    %v1512 = vshll.u32 %v1509, 16
    %v1513 = vshrl.u32 %v1509, 16
    %v1514 = vshll.u32 %v1510, 16
    %v1515 = vshrl.u32 %v1510, 16
    %vm1516 = vc.u32 %v1508, %v1512
    %v1517 = vsel %vm1516, 1, 0
    %v1518 = vadd.s32 %v1508, %v1512
    %v1519 = vadd.s32 %v1511, %v1517
    %vm1520 = vc.u32 %v1518, %v1514
    %v1521 = vsel %vm1520, 1, 0
    %v1522 = vadd.s32 %v1518, %v1514
    %v1523 = vadd.s32 %v1519, %v1521
    %v1524 = vadd.s32 %v1523, %v1513
    %v1525 = vadd.s32 %v1524, %v1515
    %v1526 = vmul.u32 %v1481, %v1472
    %v1527 = vadd.s32 %v1503, %v1522
    %vm1528 = vc.u32 %v1503, %v1522
    %v1529 = vadd.s32 %v1525, 1
    %v1530 = vsel %vm1528, %v1529, %v1525
    %v1531 = vadd.s32 %v1526, %v1530
    %v1532 = vadd.s32 %v1531, 536870912
    %v1533 = vshrl.u32 %v1532, 30
    %v1534 = vshll.u32 %v1533, 30
    %v1535 = vsub.s32 %v1531, %v1534
    %vm1536 = vcmp.lt.s32.totalorder %v1535, 0
    %v1537 = vsub.s32 0, %v1535
    %v1538 = vsel %vm1536, %v1537, %v1535
    %v1539 = vclz %v1538
    %v1540 = vsub.s32 %v1539, 2
    %vm1541 = vcmp.gt.s32.totalorder 0, %v1540
    %v1542 = vsel %vm1541, 0, %v1540
    %v1543 = vsub.s32 32, %v1542
    %v1544 = vshll.u32 %v1535, %v1542
    %v1545 = vshrl.u32 %v1527, %v1543
    %v1546 = vor.u32 %v1544, %v1545
    %v1547 = vsub.s32 4294967266, %v1542
    %v1548 = vadd.s32 %v1547, 127
    %v1549 = vshll.u32 %v1548, 23
    %v1550 = vor.u32 4788187, %v1549
    %v1551 = vand.u32 2147483647, %v1550
    %v1553 = vcvt.s32.f32 %v1546
    %v1554 = vmul.f32 %v1553, %v1551
    %v1555 = vxor.u32 %v1554, 2147483648
    %v1556 = vsel %vm1435, %v1555, %v1554
    %v1557 = vsub.s32 4, %v1533
    %v1558 = vsel %vm1435, %v1557, %v1533
    %v1559 = vsel %vm1434, %v24, %v1556
    %v1560 = vsel %vm1434, 0, %v1558
    %v1561 = vmul.f32 %v1559, %v1559
    %v1562 = vmul.f32 %v1561, -0.001358992
    %v1563 = vadd.f32 %v1562, 0.041655596
    %v1564 = vmul.f32 %v1561, %v1563
    %v1565 = vadd.f32 %v1564, -0.4999988
    %v1566 = vmul.f32 %v1561, %v1565
    %v1567 = vadd.f32 1.0, %v1566
    %v1568 = vmul.f32 %v1559, %v1559
    %v1569 = vmul.f32 %v1568, -0.00019511016
    %v1570 = vadd.f32 %v1569, 0.008332121
    %v1571 = vmul.f32 %v1568, %v1570
    %v1572 = vadd.f32 %v1571, -0.16666654
    %v1573 = vmul.f32 %v1568, %v1572
    %v1574 = vadd.f32 %v1573, 1.0
    %v1575 = vmul.f32 %v1574, %v1559
    %vm1576 = vweird.f32 %v24
    %v1577 = vand.u32 %v1560, 3
    %vm1578 = vcmp.lt.s32.totalorder %v1577, 2
    %vm1579 = vcmp.eq.s32.totalorder %v1577, 0
    %v1580 = vxor.u32 %v1575, 2147483648
    %v1581 = vsel %vm1579, %v1567, %v1580
    %vm1582 = vcmp.eq.s32.totalorder %v1577, 2
    %v1583 = vxor.u32 %v1567, 2147483648
    %v1584 = vsel %vm1582, %v1583, %v1575
    %v1585 = vsel %vm1578, %v1581, %v1584
    %v1586 = vsel %vm1576, nan, %v1585
    %v1587 = vand.u32 2147483647, %v25
    %vm1588 = vcmp.le.f32.partialorder %v1587, 0.7853982
    %vm1589 = vcmp.lt.s32.totalorder %v25, 0
    %v1590 = vand.u32 %v25, 2139095040
    %v1591 = vshrl.u32 %v1590, 23
    %v1592 = vsub.s32 %v1591, 127
    %v1593 = vand.u32 2147483647, %v25
    %v1594 = vand.u32 %v1593, 8388607
    %v1595 = vor.u32 %v1594, 8388608
    %v1596 = vsub.s32 0, %v1595
    %v1597 = vadd.s32 %v1592, 1
    %vm1598 = vcmp.gt.s32.totalorder %v1597, 0
    %v1599 = vsel %vm1598, %v1597, 0
    %v1600 = vshrl.u32 %v1599, 5
    %v1601 = vand.u32 %v1599, 31
    %v1602 = vsub.s32 32, %v1601
    %v1603 = vshrl.u32 683565275, %v1602
    %v1604 = vshll.u32 683565275, %v1601
    %v1605 = vshrl.u32 2475754826, %v1602
    %v1606 = vor.u32 %v1604, %v1605
    %v1607 = vshll.u32 2475754826, %v1601
    %v1608 = vshrl.u32 2131351028, %v1602
    %v1609 = vor.u32 %v1607, %v1608
    %v1610 = vshll.u32 2131351028, %v1601
    %v1611 = vshrl.u32 2102212464, %v1602
    %v1612 = vor.u32 %v1610, %v1611
    %v1613 = vshll.u32 2102212464, %v1601
    %v1614 = vshrl.u32 920167782, %v1602
    %v1615 = vor.u32 %v1613, %v1614
    %v1616 = vshll.u32 920167782, %v1601
    %v1617 = vshrl.u32 1326507024, %v1602
    %v1618 = vor.u32 %v1616, %v1617
    %vm1619 = vcmp.lt.s32.totalorder %v1600, 1
    %vm1620 = vcmp.lt.s32.totalorder %v1600, 2
    %vm1621 = vcmp.lt.s32.totalorder %v1600, 3
    %vm1622 = vcmp.lt.s32.totalorder %v1600, 4
    %v1623 = vsel %vm1619, %v1603, %v1606
    %v1624 = vsel %vm1622, %v1612, 2102212464
    %v1625 = vsel %vm1621, %v1609, %v1624
    %v1626 = vsel %vm1620, %v1623, %v1625
    %v1627 = vsel %vm1619, %v1606, %v1609
    %v1628 = vsel %vm1622, %v1615, 920167782
    %v1629 = vsel %vm1621, %v1612, %v1628
    %v1630 = vsel %vm1620, %v1627, %v1629
    %v1631 = vsel %vm1619, %v1609, %v1612
    %v1632 = vsel %vm1622, %v1618, 1326507024
    %v1633 = vsel %vm1621, %v1615, %v1632
    %v1634 = vsel %vm1620, %v1631, %v1633
    %v1635 = vshll.u32 %v1595, 8
    %v1636 = vand.u32 %v1635, 65535
    %v1637 = vshrl.u32 %v1635, 16
    %v1638 = vand.u32 %v1634, 65535
    %v1639 = vshrl.u32 %v1634, 16
    %v1640 = vmul.u32 %v1636, %v1638
    %v1641 = vmul.u32 %v1636, %v1639
    %v1642 = vmul.u32 %v1637, %v1638
    %v1643 = vmul.u32 %v1637, %v1639
    %v1644 = vshll.u32 %v1641, 16
    %v1645 = vshrl.u32 %v1641, 16
    %v1646 = vshll.u32 %v1642, 16
    %v1647 = vshrl.u32 %v1642, 16
    %vm1648 = vc.u32 %v1640, %v1644
    %v1649 = vsel %vm1648, 1, 0
    %v1650 = vadd.s32 %v1640, %v1644
    %v1651 = vadd.s32 %v1643, %v1649
    %vm1652 = vc.u32 %v1650, %v1646
    %v1653 = vsel %vm1652, 1, 0
    %v1654 = vadd.s32 %v1650, %v1646
    %v1655 = vadd.s32 %v1651, %v1653
    %v1656 = vadd.s32 %v1655, %v1645
    %v1657 = vadd.s32 %v1656, %v1647
    %v1658 = vand.u32 %v1635, 65535
    %v1659 = vshrl.u32 %v1635, 16
    %v1660 = vand.u32 %v1630, 65535
    %v1661 = vshrl.u32 %v1630, 16
    %v1662 = vmul.u32 %v1658, %v1660
    %v1663 = vmul.u32 %v1658, %v1661
    %v1664 = vmul.u32 %v1659, %v1660
    %v1665 = vmul.u32 %v1659, %v1661
    %v1666 = vshll.u32 %v1663, 16
    %v1667 = vshrl.u32 %v1663, 16
    %v1668 = vshll.u32 %v1664, 16
    %v1669 = vshrl.u32 %v1664, 16
    %vm1670 = vc.u32 %v1662, %v1666
    %v1671 = vsel %vm1670, 1, 0
    %v1672 = vadd.s32 %v1662, %v1666
    %v1673 = vadd.s32 %v1665, %v1671
    %vm1674 = vc.u32 %v1672, %v1668
    %v1675 = vsel %vm1674, 1, 0
    %v1676 = vadd.s32 %v1672, %v1668
    %v1677 = vadd.s32 %v1673, %v1675
    %v1678 = vadd.s32 %v1677, %v1667
    %v1679 = vadd.s32 %v1678, %v1669
    %v1680 = vmul.u32 %v1635, %v1626
    %v1681 = vadd.s32 %v1657, %v1676
    %vm1682 = vc.u32 %v1657, %v1676
    %v1683 = vadd.s32 %v1679, 1
    %v1684 = vsel %vm1682, %v1683, %v1679
    %v1685 = vadd.s32 %v1680, %v1684
    %v1686 = vadd.s32 %v1685, 536870912
    %v1687 = vshrl.u32 %v1686, 30
    %v1688 = vshll.u32 %v1687, 30
    %v1689 = vsub.s32 %v1685, %v1688
    %vm1690 = vcmp.lt.s32.totalorder %v1689, 0
    %v1691 = vsub.s32 0, %v1689
    %v1692 = vsel %vm1690, %v1691, %v1689
    %v1693 = vclz %v1692
    %v1694 = vsub.s32 %v1693, 2
    %vm1695 = vcmp.gt.s32.totalorder 0, %v1694
    %v1696 = vsel %vm1695, 0, %v1694
    %v1697 = vsub.s32 32, %v1696
    %v1698 = vshll.u32 %v1689, %v1696
    %v1699 = vshrl.u32 %v1681, %v1697
    %v1700 = vor.u32 %v1698, %v1699
    %v1701 = vsub.s32 4294967266, %v1696
    %v1702 = vadd.s32 %v1701, 127
    %v1703 = vshll.u32 %v1702, 23
    %v1704 = vor.u32 4788187, %v1703
    %v1705 = vand.u32 2147483647, %v1704
    %v1707 = vcvt.s32.f32 %v1700
    %v1708 = vmul.f32 %v1707, %v1705
    %v1709 = vxor.u32 %v1708, 2147483648
    %v1710 = vsel %vm1589, %v1709, %v1708
    %v1711 = vsub.s32 4, %v1687
    %v1712 = vsel %vm1589, %v1711, %v1687
    %v1713 = vsel %vm1588, %v25, %v1710
    %v1714 = vsel %vm1588, 0, %v1712
    %v1715 = vmul.f32 %v1713, %v1713
    %v1716 = vmul.f32 %v1715, -0.001358992
    %v1717 = vadd.f32 %v1716, 0.041655596
    %v1718 = vmul.f32 %v1715, %v1717
    %v1719 = vadd.f32 %v1718, -0.4999988
    %v1720 = vmul.f32 %v1715, %v1719
    %v1721 = vadd.f32 1.0, %v1720
    %v1722 = vmul.f32 %v1713, %v1713
    %v1723 = vmul.f32 %v1722, -0.00019511016
    %v1724 = vadd.f32 %v1723, 0.008332121
    %v1725 = vmul.f32 %v1722, %v1724
    %v1726 = vadd.f32 %v1725, -0.16666654
    %v1727 = vmul.f32 %v1722, %v1726
    %v1728 = vadd.f32 %v1727, 1.0
    %v1729 = vmul.f32 %v1728, %v1713
    %vm1730 = vweird.f32 %v25
    %v1731 = vand.u32 %v1714, 3
    %vm1732 = vcmp.lt.s32.totalorder %v1731, 2
    %vm1733 = vcmp.eq.s32.totalorder %v1731, 0
    %v1734 = vxor.u32 %v1729, 2147483648
    %v1735 = vsel %vm1733, %v1721, %v1734
    %vm1736 = vcmp.eq.s32.totalorder %v1731, 2
    %v1737 = vxor.u32 %v1721, 2147483648
    %v1738 = vsel %vm1736, %v1737, %v1729
    %v1739 = vsel %vm1732, %v1735, %v1738
    %v1740 = vsel %vm1730, nan, %v1739
    %v1741 = vand.u32 2147483647, %v26
    %vm1742 = vcmp.le.f32.partialorder %v1741, 0.7853982
    %vm1743 = vcmp.lt.s32.totalorder %v26, 0
    %v1744 = vand.u32 %v26, 2139095040
    %v1745 = vshrl.u32 %v1744, 23
    %v1746 = vsub.s32 %v1745, 127
    %v1747 = vand.u32 2147483647, %v26
    %v1748 = vand.u32 %v1747, 8388607
    %v1749 = vor.u32 %v1748, 8388608
    %v1750 = vsub.s32 0, %v1749
    %v1751 = vadd.s32 %v1746, 1
    %vm1752 = vcmp.gt.s32.totalorder %v1751, 0
    %v1753 = vsel %vm1752, %v1751, 0
    %v1754 = vshrl.u32 %v1753, 5
    %v1755 = vand.u32 %v1753, 31
    %v1756 = vsub.s32 32, %v1755
    %v1757 = vshrl.u32 683565275, %v1756
    %v1758 = vshll.u32 683565275, %v1755
    %v1759 = vshrl.u32 2475754826, %v1756
    %v1760 = vor.u32 %v1758, %v1759
    %v1761 = vshll.u32 2475754826, %v1755
    %v1762 = vshrl.u32 2131351028, %v1756
    %v1763 = vor.u32 %v1761, %v1762
    %v1764 = vshll.u32 2131351028, %v1755
    %v1765 = vshrl.u32 2102212464, %v1756
    %v1766 = vor.u32 %v1764, %v1765
    %v1767 = vshll.u32 2102212464, %v1755
    %v1768 = vshrl.u32 920167782, %v1756
    %v1769 = vor.u32 %v1767, %v1768
    %v1770 = vshll.u32 920167782, %v1755
    %v1771 = vshrl.u32 1326507024, %v1756
    %v1772 = vor.u32 %v1770, %v1771
    %vm1773 = vcmp.lt.s32.totalorder %v1754, 1
    %vm1774 = vcmp.lt.s32.totalorder %v1754, 2
    %vm1775 = vcmp.lt.s32.totalorder %v1754, 3
    %vm1776 = vcmp.lt.s32.totalorder %v1754, 4
    %v1777 = vsel %vm1773, %v1757, %v1760
    %v1778 = vsel %vm1776, %v1766, 2102212464
    %v1779 = vsel %vm1775, %v1763, %v1778
    %v1780 = vsel %vm1774, %v1777, %v1779
    %v1781 = vsel %vm1773, %v1760, %v1763
    %v1782 = vsel %vm1776, %v1769, 920167782
    %v1783 = vsel %vm1775, %v1766, %v1782
    %v1784 = vsel %vm1774, %v1781, %v1783
    %v1785 = vsel %vm1773, %v1763, %v1766
    %v1786 = vsel %vm1776, %v1772, 1326507024
    %v1787 = vsel %vm1775, %v1769, %v1786
    %v1788 = vsel %vm1774, %v1785, %v1787
    %v1789 = vshll.u32 %v1749, 8
    %v1790 = vand.u32 %v1789, 65535
    %v1791 = vshrl.u32 %v1789, 16
    %v1792 = vand.u32 %v1788, 65535
    %v1793 = vshrl.u32 %v1788, 16
    %v1794 = vmul.u32 %v1790, %v1792
    %v1795 = vmul.u32 %v1790, %v1793
    %v1796 = vmul.u32 %v1791, %v1792
    %v1797 = vmul.u32 %v1791, %v1793
    %v1798 = vshll.u32 %v1795, 16
    %v1799 = vshrl.u32 %v1795, 16
    %v1800 = vshll.u32 %v1796, 16
    %v1801 = vshrl.u32 %v1796, 16
    %vm1802 = vc.u32 %v1794, %v1798
    %v1803 = vsel %vm1802, 1, 0
    %v1804 = vadd.s32 %v1794, %v1798
    %v1805 = vadd.s32 %v1797, %v1803
    %vm1806 = vc.u32 %v1804, %v1800
    %v1807 = vsel %vm1806, 1, 0
    %v1808 = vadd.s32 %v1804, %v1800
    %v1809 = vadd.s32 %v1805, %v1807
    %v1810 = vadd.s32 %v1809, %v1799
    %v1811 = vadd.s32 %v1810, %v1801
    %v1812 = vand.u32 %v1789, 65535
    %v1813 = vshrl.u32 %v1789, 16
    %v1814 = vand.u32 %v1784, 65535
    %v1815 = vshrl.u32 %v1784, 16
    %v1816 = vmul.u32 %v1812, %v1814
    %v1817 = vmul.u32 %v1812, %v1815
    %v1818 = vmul.u32 %v1813, %v1814
    %v1819 = vmul.u32 %v1813, %v1815
    %v1820 = vshll.u32 %v1817, 16
    %v1821 = vshrl.u32 %v1817, 16
    %v1822 = vshll.u32 %v1818, 16
    %v1823 = vshrl.u32 %v1818, 16
    %vm1824 = vc.u32 %v1816, %v1820
    %v1825 = vsel %vm1824, 1, 0
    %v1826 = vadd.s32 %v1816, %v1820
    %v1827 = vadd.s32 %v1819, %v1825
    %vm1828 = vc.u32 %v1826, %v1822
    %v1829 = vsel %vm1828, 1, 0
    %v1830 = vadd.s32 %v1826, %v1822
    %v1831 = vadd.s32 %v1827, %v1829
    %v1832 = vadd.s32 %v1831, %v1821
    %v1833 = vadd.s32 %v1832, %v1823
    %v1834 = vmul.u32 %v1789, %v1780
    %v1835 = vadd.s32 %v1811, %v1830
    %vm1836 = vc.u32 %v1811, %v1830
    %v1837 = vadd.s32 %v1833, 1
    %v1838 = vsel %vm1836, %v1837, %v1833
    %v1839 = vadd.s32 %v1834, %v1838
    %v1840 = vadd.s32 %v1839, 536870912
    %v1841 = vshrl.u32 %v1840, 30
    %v1842 = vshll.u32 %v1841, 30
    %v1843 = vsub.s32 %v1839, %v1842
    %vm1844 = vcmp.lt.s32.totalorder %v1843, 0
    %v1845 = vsub.s32 0, %v1843
    %v1846 = vsel %vm1844, %v1845, %v1843
    %v1847 = vclz %v1846
    %v1848 = vsub.s32 %v1847, 2
    %vm1849 = vcmp.gt.s32.totalorder 0, %v1848
    %v1850 = vsel %vm1849, 0, %v1848
    %v1851 = vsub.s32 32, %v1850
    %v1852 = vshll.u32 %v1843, %v1850
    %v1853 = vshrl.u32 %v1835, %v1851
    %v1854 = vor.u32 %v1852, %v1853
    %v1855 = vsub.s32 4294967266, %v1850
    %v1856 = vadd.s32 %v1855, 127
    %v1857 = vshll.u32 %v1856, 23
    %v1858 = vor.u32 4788187, %v1857
    %v1859 = vand.u32 2147483647, %v1858
    %v1861 = vcvt.s32.f32 %v1854
    %v1862 = vmul.f32 %v1861, %v1859
    %v1863 = vxor.u32 %v1862, 2147483648
    %v1864 = vsel %vm1743, %v1863, %v1862
    %v1865 = vsub.s32 4, %v1841
    %v1866 = vsel %vm1743, %v1865, %v1841
    %v1867 = vsel %vm1742, %v26, %v1864
    %v1868 = vsel %vm1742, 0, %v1866
    %v1869 = vmul.f32 %v1867, %v1867
    %v1870 = vmul.f32 %v1869, -0.001358992
    %v1871 = vadd.f32 %v1870, 0.041655596
    %v1872 = vmul.f32 %v1869, %v1871
    %v1873 = vadd.f32 %v1872, -0.4999988
    %v1874 = vmul.f32 %v1869, %v1873
    %v1875 = vadd.f32 1.0, %v1874
    %v1876 = vmul.f32 %v1867, %v1867
    %v1877 = vmul.f32 %v1876, -0.00019511016
    %v1878 = vadd.f32 %v1877, 0.008332121
    %v1879 = vmul.f32 %v1876, %v1878
    %v1880 = vadd.f32 %v1879, -0.16666654
    %v1881 = vmul.f32 %v1876, %v1880
    %v1882 = vadd.f32 %v1881, 1.0
    %v1883 = vmul.f32 %v1882, %v1867
    %vm1884 = vweird.f32 %v26
    %v1885 = vand.u32 %v1868, 3
    %vm1886 = vcmp.lt.s32.totalorder %v1885, 2
    %vm1887 = vcmp.eq.s32.totalorder %v1885, 0
    %v1888 = vxor.u32 %v1883, 2147483648
    %v1889 = vsel %vm1887, %v1875, %v1888
    %vm1890 = vcmp.eq.s32.totalorder %v1885, 2
    %v1891 = vxor.u32 %v1875, 2147483648
    %v1892 = vsel %vm1890, %v1891, %v1883
    %v1893 = vsel %vm1886, %v1889, %v1892
    %v1894 = vsel %vm1884, nan, %v1893
    %v1895 = vand.u32 2147483647, %v27
    %vm1896 = vcmp.le.f32.partialorder %v1895, 0.7853982
    %vm1897 = vcmp.lt.s32.totalorder %v27, 0
    %v1898 = vand.u32 %v27, 2139095040
    %v1899 = vshrl.u32 %v1898, 23
    %v1900 = vsub.s32 %v1899, 127
    %v1901 = vand.u32 2147483647, %v27
    %v1902 = vand.u32 %v1901, 8388607
    %v1903 = vor.u32 %v1902, 8388608
    %v1904 = vsub.s32 0, %v1903
    %v1905 = vadd.s32 %v1900, 1
    %vm1906 = vcmp.gt.s32.totalorder %v1905, 0
    %v1907 = vsel %vm1906, %v1905, 0
    %v1908 = vshrl.u32 %v1907, 5
    %v1909 = vand.u32 %v1907, 31
    %v1910 = vsub.s32 32, %v1909
    %v1911 = vshrl.u32 683565275, %v1910
    %v1912 = vshll.u32 683565275, %v1909
    %v1913 = vshrl.u32 2475754826, %v1910
    %v1914 = vor.u32 %v1912, %v1913
    %v1915 = vshll.u32 2475754826, %v1909
    %v1916 = vshrl.u32 2131351028, %v1910
    %v1917 = vor.u32 %v1915, %v1916
    %v1918 = vshll.u32 2131351028, %v1909
    %v1919 = vshrl.u32 2102212464, %v1910
    %v1920 = vor.u32 %v1918, %v1919
    %v1921 = vshll.u32 2102212464, %v1909
    %v1922 = vshrl.u32 920167782, %v1910
    %v1923 = vor.u32 %v1921, %v1922
    %v1924 = vshll.u32 920167782, %v1909
    %v1925 = vshrl.u32 1326507024, %v1910
    %v1926 = vor.u32 %v1924, %v1925
    %vm1927 = vcmp.lt.s32.totalorder %v1908, 1
    %vm1928 = vcmp.lt.s32.totalorder %v1908, 2
    %vm1929 = vcmp.lt.s32.totalorder %v1908, 3
    %vm1930 = vcmp.lt.s32.totalorder %v1908, 4
    %v1931 = vsel %vm1927, %v1911, %v1914
    %v1932 = vsel %vm1930, %v1920, 2102212464
    %v1933 = vsel %vm1929, %v1917, %v1932
    %v1934 = vsel %vm1928, %v1931, %v1933
    %v1935 = vsel %vm1927, %v1914, %v1917
    %v1936 = vsel %vm1930, %v1923, 920167782
    %v1937 = vsel %vm1929, %v1920, %v1936
    %v1938 = vsel %vm1928, %v1935, %v1937
    %v1939 = vsel %vm1927, %v1917, %v1920
    %v1940 = vsel %vm1930, %v1926, 1326507024
    %v1941 = vsel %vm1929, %v1923, %v1940
    %v1942 = vsel %vm1928, %v1939, %v1941
    %v1943 = vshll.u32 %v1903, 8
    %v1944 = vand.u32 %v1943, 65535
    %v1945 = vshrl.u32 %v1943, 16
    %v1946 = vand.u32 %v1942, 65535
    %v1947 = vshrl.u32 %v1942, 16
    %v1948 = vmul.u32 %v1944, %v1946
    %v1949 = vmul.u32 %v1944, %v1947
    %v1950 = vmul.u32 %v1945, %v1946
    %v1951 = vmul.u32 %v1945, %v1947
    %v1952 = vshll.u32 %v1949, 16
    %v1953 = vshrl.u32 %v1949, 16
    %v1954 = vshll.u32 %v1950, 16
    %v1955 = vshrl.u32 %v1950, 16
    %vm1956 = vc.u32 %v1948, %v1952
    %v1957 = vsel %vm1956, 1, 0
    %v1958 = vadd.s32 %v1948, %v1952
    %v1959 = vadd.s32 %v1951, %v1957
    %vm1960 = vc.u32 %v1958, %v1954
    %v1961 = vsel %vm1960, 1, 0
    %v1962 = vadd.s32 %v1958, %v1954
    %v1963 = vadd.s32 %v1959, %v1961
    %v1964 = vadd.s32 %v1963, %v1953
    %v1965 = vadd.s32 %v1964, %v1955
    %v1966 = vand.u32 %v1943, 65535
    %v1967 = vshrl.u32 %v1943, 16
    %v1968 = vand.u32 %v1938, 65535
    %v1969 = vshrl.u32 %v1938, 16
    %v1970 = vmul.u32 %v1966, %v1968
    %v1971 = vmul.u32 %v1966, %v1969
    %v1972 = vmul.u32 %v1967, %v1968
    %v1973 = vmul.u32 %v1967, %v1969
    %v1974 = vshll.u32 %v1971, 16
    %v1975 = vshrl.u32 %v1971, 16
    %v1976 = vshll.u32 %v1972, 16
    %v1977 = vshrl.u32 %v1972, 16
    %vm1978 = vc.u32 %v1970, %v1974
    %v1979 = vsel %vm1978, 1, 0
    %v1980 = vadd.s32 %v1970, %v1974
    %v1981 = vadd.s32 %v1973, %v1979
    %vm1982 = vc.u32 %v1980, %v1976
    %v1983 = vsel %vm1982, 1, 0
    %v1984 = vadd.s32 %v1980, %v1976
    %v1985 = vadd.s32 %v1981, %v1983
    %v1986 = vadd.s32 %v1985, %v1975
    %v1987 = vadd.s32 %v1986, %v1977
    %v1988 = vmul.u32 %v1943, %v1934
    %v1989 = vadd.s32 %v1965, %v1984
    %vm1990 = vc.u32 %v1965, %v1984
    %v1991 = vadd.s32 %v1987, 1
    %v1992 = vsel %vm1990, %v1991, %v1987
    %v1993 = vadd.s32 %v1988, %v1992
    %v1994 = vadd.s32 %v1993, 536870912
    %v1995 = vshrl.u32 %v1994, 30
    %v1996 = vshll.u32 %v1995, 30
    %v1997 = vsub.s32 %v1993, %v1996
    %vm1998 = vcmp.lt.s32.totalorder %v1997, 0
    %v1999 = vsub.s32 0, %v1997
    %v2000 = vsel %vm1998, %v1999, %v1997
    %v2001 = vclz %v2000
    %v2002 = vsub.s32 %v2001, 2
    %vm2003 = vcmp.gt.s32.totalorder 0, %v2002
    %v2004 = vsel %vm2003, 0, %v2002
    %v2005 = vsub.s32 32, %v2004
    %v2006 = vshll.u32 %v1997, %v2004
    %v2007 = vshrl.u32 %v1989, %v2005
    %v2008 = vor.u32 %v2006, %v2007
    %v2009 = vsub.s32 4294967266, %v2004
    %v2010 = vadd.s32 %v2009, 127
    %v2011 = vshll.u32 %v2010, 23
    %v2012 = vor.u32 4788187, %v2011
    %v2013 = vand.u32 2147483647, %v2012
    %v2015 = vcvt.s32.f32 %v2008
    %v2016 = vmul.f32 %v2015, %v2013
    %v2017 = vxor.u32 %v2016, 2147483648
    %v2018 = vsel %vm1897, %v2017, %v2016
    %v2019 = vsub.s32 4, %v1995
    %v2020 = vsel %vm1897, %v2019, %v1995
    %v2021 = vsel %vm1896, %v27, %v2018
    %v2022 = vsel %vm1896, 0, %v2020
    %v2023 = vmul.f32 %v2021, %v2021
    %v2024 = vmul.f32 %v2023, -0.001358992
    %v2025 = vadd.f32 %v2024, 0.041655596
    %v2026 = vmul.f32 %v2023, %v2025
    %v2027 = vadd.f32 %v2026, -0.4999988
    %v2028 = vmul.f32 %v2023, %v2027
    %v2029 = vadd.f32 1.0, %v2028
    %v2030 = vmul.f32 %v2021, %v2021
    %v2031 = vmul.f32 %v2030, -0.00019511016
    %v2032 = vadd.f32 %v2031, 0.008332121
    %v2033 = vmul.f32 %v2030, %v2032
    %v2034 = vadd.f32 %v2033, -0.16666654
    %v2035 = vmul.f32 %v2030, %v2034
    %v2036 = vadd.f32 %v2035, 1.0
    %v2037 = vmul.f32 %v2036, %v2021
    %vm2038 = vweird.f32 %v27
    %v2039 = vand.u32 %v2022, 3
    %vm2040 = vcmp.lt.s32.totalorder %v2039, 2
    %vm2041 = vcmp.eq.s32.totalorder %v2039, 0
    %v2042 = vxor.u32 %v2037, 2147483648
    %v2043 = vsel %vm2041, %v2029, %v2042
    %vm2044 = vcmp.eq.s32.totalorder %v2039, 2
    %v2045 = vxor.u32 %v2029, 2147483648
    %v2046 = vsel %vm2044, %v2045, %v2037
    %v2047 = vsel %vm2040, %v2043, %v2046
    %v2048 = vsel %vm2038, nan, %v2047
    %v2049 = vand.u32 2147483647, %v28
    %vm2050 = vcmp.le.f32.partialorder %v2049, 0.7853982
    %vm2051 = vcmp.lt.s32.totalorder %v28, 0
    %v2052 = vand.u32 %v28, 2139095040
    %v2053 = vshrl.u32 %v2052, 23
    %v2054 = vsub.s32 %v2053, 127
    %v2055 = vand.u32 2147483647, %v28
    %v2056 = vand.u32 %v2055, 8388607
    %v2057 = vor.u32 %v2056, 8388608
    %v2058 = vsub.s32 0, %v2057
    %v2059 = vadd.s32 %v2054, 1
    %vm2060 = vcmp.gt.s32.totalorder %v2059, 0
    %v2061 = vsel %vm2060, %v2059, 0
    %v2062 = vshrl.u32 %v2061, 5
    %v2063 = vand.u32 %v2061, 31
    %v2064 = vsub.s32 32, %v2063
    %v2065 = vshrl.u32 683565275, %v2064
    %v2066 = vshll.u32 683565275, %v2063
    %v2067 = vshrl.u32 2475754826, %v2064
    %v2068 = vor.u32 %v2066, %v2067
    %v2069 = vshll.u32 2475754826, %v2063
    %v2070 = vshrl.u32 2131351028, %v2064
    %v2071 = vor.u32 %v2069, %v2070
    %v2072 = vshll.u32 2131351028, %v2063
    %v2073 = vshrl.u32 2102212464, %v2064
    %v2074 = vor.u32 %v2072, %v2073
    %v2075 = vshll.u32 2102212464, %v2063
    %v2076 = vshrl.u32 920167782, %v2064
    %v2077 = vor.u32 %v2075, %v2076
    %v2078 = vshll.u32 920167782, %v2063
    %v2079 = vshrl.u32 1326507024, %v2064
    %v2080 = vor.u32 %v2078, %v2079
    %vm2081 = vcmp.lt.s32.totalorder %v2062, 1
    %vm2082 = vcmp.lt.s32.totalorder %v2062, 2
    %vm2083 = vcmp.lt.s32.totalorder %v2062, 3
    %vm2084 = vcmp.lt.s32.totalorder %v2062, 4
    %v2085 = vsel %vm2081, %v2065, %v2068
    %v2086 = vsel %vm2084, %v2074, 2102212464
    %v2087 = vsel %vm2083, %v2071, %v2086
    %v2088 = vsel %vm2082, %v2085, %v2087
    %v2089 = vsel %vm2081, %v2068, %v2071
    %v2090 = vsel %vm2084, %v2077, 920167782
    %v2091 = vsel %vm2083, %v2074, %v2090
    %v2092 = vsel %vm2082, %v2089, %v2091
    %v2093 = vsel %vm2081, %v2071, %v2074
    %v2094 = vsel %vm2084, %v2080, 1326507024
    %v2095 = vsel %vm2083, %v2077, %v2094
    %v2096 = vsel %vm2082, %v2093, %v2095
    %v2097 = vshll.u32 %v2057, 8
    %v2098 = vand.u32 %v2097, 65535
    %v2099 = vshrl.u32 %v2097, 16
    %v2100 = vand.u32 %v2096, 65535
    %v2101 = vshrl.u32 %v2096, 16
    %v2102 = vmul.u32 %v2098, %v2100
    %v2103 = vmul.u32 %v2098, %v2101
    %v2104 = vmul.u32 %v2099, %v2100
    %v2105 = vmul.u32 %v2099, %v2101
    %v2106 = vshll.u32 %v2103, 16
    %v2107 = vshrl.u32 %v2103, 16
    %v2108 = vshll.u32 %v2104, 16
    %v2109 = vshrl.u32 %v2104, 16
    %vm2110 = vc.u32 %v2102, %v2106
    %v2111 = vsel %vm2110, 1, 0
    %v2112 = vadd.s32 %v2102, %v2106
    %v2113 = vadd.s32 %v2105, %v2111
    %vm2114 = vc.u32 %v2112, %v2108
    %v2115 = vsel %vm2114, 1, 0
    %v2116 = vadd.s32 %v2112, %v2108
    %v2117 = vadd.s32 %v2113, %v2115
    %v2118 = vadd.s32 %v2117, %v2107
    %v2119 = vadd.s32 %v2118, %v2109
    %v2120 = vand.u32 %v2097, 65535
    %v2121 = vshrl.u32 %v2097, 16
    %v2122 = vand.u32 %v2092, 65535
    %v2123 = vshrl.u32 %v2092, 16
    %v2124 = vmul.u32 %v2120, %v2122
    %v2125 = vmul.u32 %v2120, %v2123
    %v2126 = vmul.u32 %v2121, %v2122
    %v2127 = vmul.u32 %v2121, %v2123
    %v2128 = vshll.u32 %v2125, 16
    %v2129 = vshrl.u32 %v2125, 16
    %v2130 = vshll.u32 %v2126, 16
    %v2131 = vshrl.u32 %v2126, 16
    %vm2132 = vc.u32 %v2124, %v2128
    %v2133 = vsel %vm2132, 1, 0
    %v2134 = vadd.s32 %v2124, %v2128
    %v2135 = vadd.s32 %v2127, %v2133
    %vm2136 = vc.u32 %v2134, %v2130
    %v2137 = vsel %vm2136, 1, 0
    %v2138 = vadd.s32 %v2134, %v2130
    %v2139 = vadd.s32 %v2135, %v2137
    %v2140 = vadd.s32 %v2139, %v2129
    %v2141 = vadd.s32 %v2140, %v2131
    %v2142 = vmul.u32 %v2097, %v2088
    %v2143 = vadd.s32 %v2119, %v2138
    %vm2144 = vc.u32 %v2119, %v2138
    %v2145 = vadd.s32 %v2141, 1
    %v2146 = vsel %vm2144, %v2145, %v2141
    %v2147 = vadd.s32 %v2142, %v2146
    %v2148 = vadd.s32 %v2147, 536870912
    %v2149 = vshrl.u32 %v2148, 30
    %v2150 = vshll.u32 %v2149, 30
    %v2151 = vsub.s32 %v2147, %v2150
    %vm2152 = vcmp.lt.s32.totalorder %v2151, 0
    %v2153 = vsub.s32 0, %v2151
    %v2154 = vsel %vm2152, %v2153, %v2151
    %v2155 = vclz %v2154
    %v2156 = vsub.s32 %v2155, 2
    %vm2157 = vcmp.gt.s32.totalorder 0, %v2156
    %v2158 = vsel %vm2157, 0, %v2156
    %v2159 = vsub.s32 32, %v2158
    %v2160 = vshll.u32 %v2151, %v2158
    %v2161 = vshrl.u32 %v2143, %v2159
    %v2162 = vor.u32 %v2160, %v2161
    %v2163 = vsub.s32 4294967266, %v2158
    %v2164 = vadd.s32 %v2163, 127
    %v2165 = vshll.u32 %v2164, 23
    %v2166 = vor.u32 4788187, %v2165
    %v2167 = vand.u32 2147483647, %v2166
    %v2169 = vcvt.s32.f32 %v2162
    %v2170 = vmul.f32 %v2169, %v2167
    %v2171 = vxor.u32 %v2170, 2147483648
    %v2172 = vsel %vm2051, %v2171, %v2170
    %v2173 = vsub.s32 4, %v2149
    %v2174 = vsel %vm2051, %v2173, %v2149
    %v2175 = vsel %vm2050, %v28, %v2172
    %v2176 = vsel %vm2050, 0, %v2174
    %v2177 = vmul.f32 %v2175, %v2175
    %v2178 = vmul.f32 %v2177, -0.001358992
    %v2179 = vadd.f32 %v2178, 0.041655596
    %v2180 = vmul.f32 %v2177, %v2179
    %v2181 = vadd.f32 %v2180, -0.4999988
    %v2182 = vmul.f32 %v2177, %v2181
    %v2183 = vadd.f32 1.0, %v2182
    %v2184 = vmul.f32 %v2175, %v2175
    %v2185 = vmul.f32 %v2184, -0.00019511016
    %v2186 = vadd.f32 %v2185, 0.008332121
    %v2187 = vmul.f32 %v2184, %v2186
    %v2188 = vadd.f32 %v2187, -0.16666654
    %v2189 = vmul.f32 %v2184, %v2188
    %v2190 = vadd.f32 %v2189, 1.0
    %v2191 = vmul.f32 %v2190, %v2175
    %vm2192 = vweird.f32 %v28
    %v2193 = vand.u32 %v2176, 3
    %vm2194 = vcmp.lt.s32.totalorder %v2193, 2
    %vm2195 = vcmp.eq.s32.totalorder %v2193, 0
    %v2196 = vxor.u32 %v2191, 2147483648
    %v2197 = vsel %vm2195, %v2183, %v2196
    %vm2198 = vcmp.eq.s32.totalorder %v2193, 2
    %v2199 = vxor.u32 %v2183, 2147483648
    %v2200 = vsel %vm2198, %v2199, %v2191
    %v2201 = vsel %vm2194, %v2197, %v2200
    %v2202 = vsel %vm2192, nan, %v2201
    %v2203 = vand.u32 2147483647, %v29
    %vm2204 = vcmp.le.f32.partialorder %v2203, 0.7853982
    %vm2205 = vcmp.lt.s32.totalorder %v29, 0
    %v2206 = vand.u32 %v29, 2139095040
    %v2207 = vshrl.u32 %v2206, 23
    %v2208 = vsub.s32 %v2207, 127
    %v2209 = vand.u32 2147483647, %v29
    %v2210 = vand.u32 %v2209, 8388607
    %v2211 = vor.u32 %v2210, 8388608
    %v2212 = vsub.s32 0, %v2211
    %v2213 = vadd.s32 %v2208, 1
    %vm2214 = vcmp.gt.s32.totalorder %v2213, 0
    %v2215 = vsel %vm2214, %v2213, 0
    %v2216 = vshrl.u32 %v2215, 5
    %v2217 = vand.u32 %v2215, 31
    %v2218 = vsub.s32 32, %v2217
    %v2219 = vshrl.u32 683565275, %v2218
    %v2220 = vshll.u32 683565275, %v2217
    %v2221 = vshrl.u32 2475754826, %v2218
    %v2222 = vor.u32 %v2220, %v2221
    %v2223 = vshll.u32 2475754826, %v2217
    %v2224 = vshrl.u32 2131351028, %v2218
    %v2225 = vor.u32 %v2223, %v2224
    %v2226 = vshll.u32 2131351028, %v2217
    %v2227 = vshrl.u32 2102212464, %v2218
    %v2228 = vor.u32 %v2226, %v2227
    %v2229 = vshll.u32 2102212464, %v2217
    %v2230 = vshrl.u32 920167782, %v2218
    %v2231 = vor.u32 %v2229, %v2230
    %v2232 = vshll.u32 920167782, %v2217
    %v2233 = vshrl.u32 1326507024, %v2218
    %v2234 = vor.u32 %v2232, %v2233
    %vm2235 = vcmp.lt.s32.totalorder %v2216, 1
    %vm2236 = vcmp.lt.s32.totalorder %v2216, 2
    %vm2237 = vcmp.lt.s32.totalorder %v2216, 3
    %vm2238 = vcmp.lt.s32.totalorder %v2216, 4
    %v2239 = vsel %vm2235, %v2219, %v2222
    %v2240 = vsel %vm2238, %v2228, 2102212464
    %v2241 = vsel %vm2237, %v2225, %v2240
    %v2242 = vsel %vm2236, %v2239, %v2241
    %v2243 = vsel %vm2235, %v2222, %v2225
    %v2244 = vsel %vm2238, %v2231, 920167782
    %v2245 = vsel %vm2237, %v2228, %v2244
    %v2246 = vsel %vm2236, %v2243, %v2245
    %v2247 = vsel %vm2235, %v2225, %v2228
    %v2248 = vsel %vm2238, %v2234, 1326507024
    %v2249 = vsel %vm2237, %v2231, %v2248
    %v2250 = vsel %vm2236, %v2247, %v2249
    %v2251 = vshll.u32 %v2211, 8
    %v2252 = vand.u32 %v2251, 65535
    %v2253 = vshrl.u32 %v2251, 16
    %v2254 = vand.u32 %v2250, 65535
    %v2255 = vshrl.u32 %v2250, 16
    %v2256 = vmul.u32 %v2252, %v2254
    %v2257 = vmul.u32 %v2252, %v2255
    %v2258 = vmul.u32 %v2253, %v2254
    %v2259 = vmul.u32 %v2253, %v2255
    %v2260 = vshll.u32 %v2257, 16
    %v2261 = vshrl.u32 %v2257, 16
    %v2262 = vshll.u32 %v2258, 16
    %v2263 = vshrl.u32 %v2258, 16
    %vm2264 = vc.u32 %v2256, %v2260
    %v2265 = vsel %vm2264, 1, 0
    %v2266 = vadd.s32 %v2256, %v2260
    %v2267 = vadd.s32 %v2259, %v2265
    %vm2268 = vc.u32 %v2266, %v2262
    %v2269 = vsel %vm2268, 1, 0
    %v2270 = vadd.s32 %v2266, %v2262
    %v2271 = vadd.s32 %v2267, %v2269
    %v2272 = vadd.s32 %v2271, %v2261
    %v2273 = vadd.s32 %v2272, %v2263
    %v2274 = vand.u32 %v2251, 65535
    %v2275 = vshrl.u32 %v2251, 16
    %v2276 = vand.u32 %v2246, 65535
    %v2277 = vshrl.u32 %v2246, 16
    %v2278 = vmul.u32 %v2274, %v2276
    %v2279 = vmul.u32 %v2274, %v2277
    %v2280 = vmul.u32 %v2275, %v2276
    %v2281 = vmul.u32 %v2275, %v2277
    %v2282 = vshll.u32 %v2279, 16
    %v2283 = vshrl.u32 %v2279, 16
    %v2284 = vshll.u32 %v2280, 16
    %v2285 = vshrl.u32 %v2280, 16
    %vm2286 = vc.u32 %v2278, %v2282
    %v2287 = vsel %vm2286, 1, 0
    %v2288 = vadd.s32 %v2278, %v2282
    %v2289 = vadd.s32 %v2281, %v2287
    %vm2290 = vc.u32 %v2288, %v2284
    %v2291 = vsel %vm2290, 1, 0
    %v2292 = vadd.s32 %v2288, %v2284
    %v2293 = vadd.s32 %v2289, %v2291
    %v2294 = vadd.s32 %v2293, %v2283
    %v2295 = vadd.s32 %v2294, %v2285
    %v2296 = vmul.u32 %v2251, %v2242
    %v2297 = vadd.s32 %v2273, %v2292
    %vm2298 = vc.u32 %v2273, %v2292
    %v2299 = vadd.s32 %v2295, 1
    %v2300 = vsel %vm2298, %v2299, %v2295
    %v2301 = vadd.s32 %v2296, %v2300
    %v2302 = vadd.s32 %v2301, 536870912
    %v2303 = vshrl.u32 %v2302, 30
    %v2304 = vshll.u32 %v2303, 30
    %v2305 = vsub.s32 %v2301, %v2304
    %vm2306 = vcmp.lt.s32.totalorder %v2305, 0
    %v2307 = vsub.s32 0, %v2305
    %v2308 = vsel %vm2306, %v2307, %v2305
    %v2309 = vclz %v2308
    %v2310 = vsub.s32 %v2309, 2
    %vm2311 = vcmp.gt.s32.totalorder 0, %v2310
    %v2312 = vsel %vm2311, 0, %v2310
    %v2313 = vsub.s32 32, %v2312
    %v2314 = vshll.u32 %v2305, %v2312
    %v2315 = vshrl.u32 %v2297, %v2313
    %v2316 = vor.u32 %v2314, %v2315
    %v2317 = vsub.s32 4294967266, %v2312
    %v2318 = vadd.s32 %v2317, 127
    %v2319 = vshll.u32 %v2318, 23
    %v2320 = vor.u32 4788187, %v2319
    %v2321 = vand.u32 2147483647, %v2320
    %v2323 = vcvt.s32.f32 %v2316
    %v2324 = vmul.f32 %v2323, %v2321
    %v2325 = vxor.u32 %v2324, 2147483648
    %v2326 = vsel %vm2205, %v2325, %v2324
    %v2327 = vsub.s32 4, %v2303
    %v2328 = vsel %vm2205, %v2327, %v2303
    %v2329 = vsel %vm2204, %v29, %v2326
    %v2330 = vsel %vm2204, 0, %v2328
    %v2331 = vmul.f32 %v2329, %v2329
    %v2332 = vmul.f32 %v2331, -0.001358992
    %v2333 = vadd.f32 %v2332, 0.041655596
    %v2334 = vmul.f32 %v2331, %v2333
    %v2335 = vadd.f32 %v2334, -0.4999988
    %v2336 = vmul.f32 %v2331, %v2335
    %v2337 = vadd.f32 1.0, %v2336
    %v2338 = vmul.f32 %v2329, %v2329
    %v2339 = vmul.f32 %v2338, -0.00019511016
    %v2340 = vadd.f32 %v2339, 0.008332121
    %v2341 = vmul.f32 %v2338, %v2340
    %v2342 = vadd.f32 %v2341, -0.16666654
    %v2343 = vmul.f32 %v2338, %v2342
    %v2344 = vadd.f32 %v2343, 1.0
    %v2345 = vmul.f32 %v2344, %v2329
    %vm2346 = vweird.f32 %v29
    %v2347 = vand.u32 %v2330, 3
    %vm2348 = vcmp.lt.s32.totalorder %v2347, 2
    %vm2349 = vcmp.eq.s32.totalorder %v2347, 0
    %v2350 = vxor.u32 %v2345, 2147483648
    %v2351 = vsel %vm2349, %v2337, %v2350
    %vm2352 = vcmp.eq.s32.totalorder %v2347, 2
    %v2353 = vxor.u32 %v2337, 2147483648
    %v2354 = vsel %vm2352, %v2353, %v2345
    %v2355 = vsel %vm2348, %v2351, %v2354
    %v2356 = vsel %vm2346, nan, %v2355
    %v2357 = vand.u32 2147483647, %v30
    %vm2358 = vcmp.le.f32.partialorder %v2357, 0.7853982
    %vm2359 = vcmp.lt.s32.totalorder %v30, 0
    %v2360 = vand.u32 %v30, 2139095040
    %v2361 = vshrl.u32 %v2360, 23
    %v2362 = vsub.s32 %v2361, 127
    %v2363 = vand.u32 2147483647, %v30
    %v2364 = vand.u32 %v2363, 8388607
    %v2365 = vor.u32 %v2364, 8388608
    %v2366 = vsub.s32 0, %v2365
    %v2367 = vadd.s32 %v2362, 1
    %vm2368 = vcmp.gt.s32.totalorder %v2367, 0
    %v2369 = vsel %vm2368, %v2367, 0
    %v2370 = vshrl.u32 %v2369, 5
    %v2371 = vand.u32 %v2369, 31
    %v2372 = vsub.s32 32, %v2371
    %v2373 = vshrl.u32 683565275, %v2372
    %v2374 = vshll.u32 683565275, %v2371
    %v2375 = vshrl.u32 2475754826, %v2372
    %v2376 = vor.u32 %v2374, %v2375
    %v2377 = vshll.u32 2475754826, %v2371
    %v2378 = vshrl.u32 2131351028, %v2372
    %v2379 = vor.u32 %v2377, %v2378
    %v2380 = vshll.u32 2131351028, %v2371
    %v2381 = vshrl.u32 2102212464, %v2372
    %v2382 = vor.u32 %v2380, %v2381
    %v2383 = vshll.u32 2102212464, %v2371
    %v2384 = vshrl.u32 920167782, %v2372
    %v2385 = vor.u32 %v2383, %v2384
    %v2386 = vshll.u32 920167782, %v2371
    %v2387 = vshrl.u32 1326507024, %v2372
    %v2388 = vor.u32 %v2386, %v2387
    %vm2389 = vcmp.lt.s32.totalorder %v2370, 1
    %vm2390 = vcmp.lt.s32.totalorder %v2370, 2
    %vm2391 = vcmp.lt.s32.totalorder %v2370, 3
    %vm2392 = vcmp.lt.s32.totalorder %v2370, 4
    %v2393 = vsel %vm2389, %v2373, %v2376
    %v2394 = vsel %vm2392, %v2382, 2102212464
    %v2395 = vsel %vm2391, %v2379, %v2394
    %v2396 = vsel %vm2390, %v2393, %v2395
    %v2397 = vsel %vm2389, %v2376, %v2379
    %v2398 = vsel %vm2392, %v2385, 920167782
    %v2399 = vsel %vm2391, %v2382, %v2398
    %v2400 = vsel %vm2390, %v2397, %v2399
    %v2401 = vsel %vm2389, %v2379, %v2382
    %v2402 = vsel %vm2392, %v2388, 1326507024
    %v2403 = vsel %vm2391, %v2385, %v2402
    %v2404 = vsel %vm2390, %v2401, %v2403
    %v2405 = vshll.u32 %v2365, 8
    %v2406 = vand.u32 %v2405, 65535
    %v2407 = vshrl.u32 %v2405, 16
    %v2408 = vand.u32 %v2404, 65535
    %v2409 = vshrl.u32 %v2404, 16
    %v2410 = vmul.u32 %v2406, %v2408
    %v2411 = vmul.u32 %v2406, %v2409
    %v2412 = vmul.u32 %v2407, %v2408
    %v2413 = vmul.u32 %v2407, %v2409
    %v2414 = vshll.u32 %v2411, 16
    %v2415 = vshrl.u32 %v2411, 16
    %v2416 = vshll.u32 %v2412, 16
    %v2417 = vshrl.u32 %v2412, 16
    %vm2418 = vc.u32 %v2410, %v2414
    %v2419 = vsel %vm2418, 1, 0
    %v2420 = vadd.s32 %v2410, %v2414
    %v2421 = vadd.s32 %v2413, %v2419
    %vm2422 = vc.u32 %v2420, %v2416
    %v2423 = vsel %vm2422, 1, 0
    %v2424 = vadd.s32 %v2420, %v2416
    %v2425 = vadd.s32 %v2421, %v2423
    %v2426 = vadd.s32 %v2425, %v2415
    %v2427 = vadd.s32 %v2426, %v2417
    %v2428 = vand.u32 %v2405, 65535
    %v2429 = vshrl.u32 %v2405, 16
    %v2430 = vand.u32 %v2400, 65535
    %v2431 = vshrl.u32 %v2400, 16
    %v2432 = vmul.u32 %v2428, %v2430
    %v2433 = vmul.u32 %v2428, %v2431
    %v2434 = vmul.u32 %v2429, %v2430
    %v2435 = vmul.u32 %v2429, %v2431
    %v2436 = vshll.u32 %v2433, 16
    %v2437 = vshrl.u32 %v2433, 16
    %v2438 = vshll.u32 %v2434, 16
    %v2439 = vshrl.u32 %v2434, 16
    %vm2440 = vc.u32 %v2432, %v2436
    %v2441 = vsel %vm2440, 1, 0
    %v2442 = vadd.s32 %v2432, %v2436
    %v2443 = vadd.s32 %v2435, %v2441
    %vm2444 = vc.u32 %v2442, %v2438
    %v2445 = vsel %vm2444, 1, 0
    %v2446 = vadd.s32 %v2442, %v2438
    %v2447 = vadd.s32 %v2443, %v2445
    %v2448 = vadd.s32 %v2447, %v2437
    %v2449 = vadd.s32 %v2448, %v2439
    %v2450 = vmul.u32 %v2405, %v2396
    %v2451 = vadd.s32 %v2427, %v2446
    %vm2452 = vc.u32 %v2427, %v2446
    %v2453 = vadd.s32 %v2449, 1
    %v2454 = vsel %vm2452, %v2453, %v2449
    %v2455 = vadd.s32 %v2450, %v2454
    %v2456 = vadd.s32 %v2455, 536870912
    %v2457 = vshrl.u32 %v2456, 30
    %v2458 = vshll.u32 %v2457, 30
    %v2459 = vsub.s32 %v2455, %v2458
    %vm2460 = vcmp.lt.s32.totalorder %v2459, 0
    %v2461 = vsub.s32 0, %v2459
    %v2462 = vsel %vm2460, %v2461, %v2459
    %v2463 = vclz %v2462
    %v2464 = vsub.s32 %v2463, 2
    %vm2465 = vcmp.gt.s32.totalorder 0, %v2464
    %v2466 = vsel %vm2465, 0, %v2464
    %v2467 = vsub.s32 32, %v2466
    %v2468 = vshll.u32 %v2459, %v2466
    %v2469 = vshrl.u32 %v2451, %v2467
    %v2470 = vor.u32 %v2468, %v2469
    %v2471 = vsub.s32 4294967266, %v2466
    %v2472 = vadd.s32 %v2471, 127
    %v2473 = vshll.u32 %v2472, 23
    %v2474 = vor.u32 4788187, %v2473
    %v2475 = vand.u32 2147483647, %v2474
    %v2477 = vcvt.s32.f32 %v2470
    %v2478 = vmul.f32 %v2477, %v2475
    %v2479 = vxor.u32 %v2478, 2147483648
    %v2480 = vsel %vm2359, %v2479, %v2478
    %v2481 = vsub.s32 4, %v2457
    %v2482 = vsel %vm2359, %v2481, %v2457
    %v2483 = vsel %vm2358, %v30, %v2480
    %v2484 = vsel %vm2358, 0, %v2482
    %v2485 = vmul.f32 %v2483, %v2483
    %v2486 = vmul.f32 %v2485, -0.001358992
    %v2487 = vadd.f32 %v2486, 0.041655596
    %v2488 = vmul.f32 %v2485, %v2487
    %v2489 = vadd.f32 %v2488, -0.4999988
    %v2490 = vmul.f32 %v2485, %v2489
    %v2491 = vadd.f32 1.0, %v2490
    %v2492 = vmul.f32 %v2483, %v2483
    %v2493 = vmul.f32 %v2492, -0.00019511016
    %v2494 = vadd.f32 %v2493, 0.008332121
    %v2495 = vmul.f32 %v2492, %v2494
    %v2496 = vadd.f32 %v2495, -0.16666654
    %v2497 = vmul.f32 %v2492, %v2496
    %v2498 = vadd.f32 %v2497, 1.0
    %v2499 = vmul.f32 %v2498, %v2483
    %vm2500 = vweird.f32 %v30
    %v2501 = vand.u32 %v2484, 3
    %vm2502 = vcmp.lt.s32.totalorder %v2501, 2
    %vm2503 = vcmp.eq.s32.totalorder %v2501, 0
    %v2504 = vxor.u32 %v2499, 2147483648
    %v2505 = vsel %vm2503, %v2491, %v2504
    %vm2506 = vcmp.eq.s32.totalorder %v2501, 2
    %v2507 = vxor.u32 %v2491, 2147483648
    %v2508 = vsel %vm2506, %v2507, %v2499
    %v2509 = vsel %vm2502, %v2505, %v2508
    %v2510 = vsel %vm2500, nan, %v2509
    %s2511 = scalar_lea.vmem [#allocation5], 64
    %2512 = vst [vmem:[%s2511] sm:$0xff] %v193
    %2513 = vst [vmem:[%s2511 + $0x8] sm:$0xff] %v348
    %2514 = vst [vmem:[%s2511 + $0x10] sm:$0xff] %v503
    %2515 = vst [vmem:[%s2511 + $0x18] sm:$0xff] %v658
    %2516 = vst [vmem:[%s2511 + $0x20] sm:$0xff] %v813
    %2517 = vst [vmem:[%s2511 + $0x28] sm:$0xff] %v968
    %2518 = vst [vmem:[%s2511 + $0x30] sm:$0xff] %v1123
    %2519 = vst [vmem:[%s2511 + $0x38] sm:$0xff] %v1278
    %s2520 = scalar_lea.vmem [#allocation5], 128
    %2521 = vst [vmem:[%s2520] sm:$0xff] %v1432
    %2522 = vst [vmem:[%s2520 + $0x8] sm:$0xff] %v1586
    %2523 = vst [vmem:[%s2520 + $0x10] sm:$0xff] %v1740
    %2524 = vst [vmem:[%s2520 + $0x18] sm:$0xff] %v1894
    %2525 = vst [vmem:[%s2520 + $0x20] sm:$0xff] %v2048
    %2526 = vst [vmem:[%s2520 + $0x28] sm:$0xff] %v2202
    %2527 = vst [vmem:[%s2520 + $0x30] sm:$0xff] %v2356
    %2528 = vst [vmem:[%s2520 + $0x38] sm:$0xff] %v2510
    %v2529 = vmul.f32 %v193, %v1432
    %v2530 = vmul.f32 %v348, %v1586
    %v2531 = vmul.f32 %v503, %v1740
    %v2532 = vmul.f32 %v658, %v1894
    %v2533 = vmul.f32 %v813, %v2048
    %v2534 = vmul.f32 %v968, %v2202
    %v2535 = vmul.f32 %v1123, %v2356
    %v2536 = vmul.f32 %v1278, %v2510
    %v2537 = vadd.f32 %v2529, %v2529
    %v2538 = vadd.f32 %v2530, %v2530
    %v2539 = vadd.f32 %v2531, %v2531
    %v2540 = vadd.f32 %v2532, %v2532
    %v2541 = vadd.f32 %v2533, %v2533
    %v2542 = vadd.f32 %v2534, %v2534
    %v2543 = vadd.f32 %v2535, %v2535
    %v2544 = vadd.f32 %v2536, %v2536
    %v2545 = vmul.f32 %v1432, %v1432
    %v2546 = vmul.f32 %v1586, %v1586
    %v2547 = vmul.f32 %v1740, %v1740
    %v2548 = vmul.f32 %v1894, %v1894
    %v2549 = vmul.f32 %v2048, %v2048
    %v2550 = vmul.f32 %v2202, %v2202
    %v2551 = vmul.f32 %v2356, %v2356
    %v2552 = vmul.f32 %v2510, %v2510
    %v2553 = vmul.f32 %v193, %v193
    %v2554 = vmul.f32 %v348, %v348
    %v2555 = vmul.f32 %v503, %v503
    %v2556 = vmul.f32 %v658, %v658
    %v2557 = vmul.f32 %v813, %v813
    %v2558 = vmul.f32 %v968, %v968
    %v2559 = vmul.f32 %v1123, %v1123
    %v2560 = vmul.f32 %v1278, %v1278
    %v2561 = vsub.f32 %v2545, %v2553
    %v2562 = vsub.f32 %v2546, %v2554
    %v2563 = vsub.f32 %v2547, %v2555
    %v2564 = vsub.f32 %v2548, %v2556
    %v2565 = vsub.f32 %v2549, %v2557
    %v2566 = vsub.f32 %v2550, %v2558
    %v2567 = vsub.f32 %v2551, %v2559
    %v2568 = vsub.f32 %v2552, %v2560
    %s2569 = scalar_lea.vmem [#allocation5], 192
    %2570 = vst [vmem:[%s2569] sm:$0xff] %v2537
    %2571 = vst [vmem:[%s2569 + $0x8] sm:$0xff] %v2538
    %2572 = vst [vmem:[%s2569 + $0x10] sm:$0xff] %v2539
    %2573 = vst [vmem:[%s2569 + $0x18] sm:$0xff] %v2540
    %2574 = vst [vmem:[%s2569 + $0x20] sm:$0xff] %v2541
    %2575 = vst [vmem:[%s2569 + $0x28] sm:$0xff] %v2542
    %2576 = vst [vmem:[%s2569 + $0x30] sm:$0xff] %v2543
    %2577 = vst [vmem:[%s2569 + $0x38] sm:$0xff] %v2544
    %s2578 = scalar_lea.vmem [#allocation5], 256
    %2579 = vst [vmem:[%s2578] sm:$0xff] %v2561
    %2580 = vst [vmem:[%s2578 + $0x8] sm:$0xff] %v2562
    %2581 = vst [vmem:[%s2578 + $0x10] sm:$0xff] %v2563
    %2582 = vst [vmem:[%s2578 + $0x18] sm:$0xff] %v2564
    %2583 = vst [vmem:[%s2578 + $0x20] sm:$0xff] %v2565
    %2584 = vst [vmem:[%s2578 + $0x28] sm:$0xff] %v2566
    %2585 = vst [vmem:[%s2578 + $0x30] sm:$0xff] %v2567
    %2586 = vst [vmem:[%s2578 + $0x38] sm:$0xff] %v2568
    %v2587 = vmul.f32 %v2537, %v2561
    %v2588 = vmul.f32 %v2538, %v2562
    %v2589 = vmul.f32 %v2539, %v2563
    %v2590 = vmul.f32 %v2540, %v2564
    %v2591 = vmul.f32 %v2541, %v2565
    %v2592 = vmul.f32 %v2542, %v2566
    %v2593 = vmul.f32 %v2543, %v2567
    %v2594 = vmul.f32 %v2544, %v2568
    %v2595 = vadd.f32 %v2587, %v2587
    %v2596 = vadd.f32 %v2588, %v2588
    %v2597 = vadd.f32 %v2589, %v2589
    %v2598 = vadd.f32 %v2590, %v2590
    %v2599 = vadd.f32 %v2591, %v2591
    %v2600 = vadd.f32 %v2592, %v2592
    %v2601 = vadd.f32 %v2593, %v2593
    %v2602 = vadd.f32 %v2594, %v2594
    %v2603 = vmul.f32 %v2561, %v2561
    %v2604 = vmul.f32 %v2562, %v2562
    %v2605 = vmul.f32 %v2563, %v2563
    %v2606 = vmul.f32 %v2564, %v2564
    %v2607 = vmul.f32 %v2565, %v2565
    %v2608 = vmul.f32 %v2566, %v2566
    %v2609 = vmul.f32 %v2567, %v2567
    %v2610 = vmul.f32 %v2568, %v2568
    %v2611 = vmul.f32 %v2537, %v2537
    %v2612 = vmul.f32 %v2538, %v2538
    %v2613 = vmul.f32 %v2539, %v2539
    %v2614 = vmul.f32 %v2540, %v2540
    %v2615 = vmul.f32 %v2541, %v2541
    %v2616 = vmul.f32 %v2542, %v2542
    %v2617 = vmul.f32 %v2543, %v2543
    %v2618 = vmul.f32 %v2544, %v2544
    %v2619 = vsub.f32 %v2603, %v2611
    %v2620 = vsub.f32 %v2604, %v2612
    %v2621 = vsub.f32 %v2605, %v2613
    %v2622 = vsub.f32 %v2606, %v2614
    %v2623 = vsub.f32 %v2607, %v2615
    %v2624 = vsub.f32 %v2608, %v2616
    %v2625 = vsub.f32 %v2609, %v2617
    %v2626 = vsub.f32 %v2610, %v2618
    %s2627 = scalar_lea.vmem [#allocation5], 320
    %2628 = vst [vmem:[%s2627] sm:$0xff] %v2595
    %2629 = vst [vmem:[%s2627 + $0x8] sm:$0xff] %v2596
    %2630 = vst [vmem:[%s2627 + $0x10] sm:$0xff] %v2597
    %2631 = vst [vmem:[%s2627 + $0x18] sm:$0xff] %v2598
    %2632 = vst [vmem:[%s2627 + $0x20] sm:$0xff] %v2599
    %2633 = vst [vmem:[%s2627 + $0x28] sm:$0xff] %v2600
    %2634 = vst [vmem:[%s2627 + $0x30] sm:$0xff] %v2601
    %2635 = vst [vmem:[%s2627 + $0x38] sm:$0xff] %v2602
    %s2636 = scalar_lea.vmem [#allocation5], 384
    %2637 = vst [vmem:[%s2636] sm:$0xff] %v2619
    %2638 = vst [vmem:[%s2636 + $0x8] sm:$0xff] %v2620
    %2639 = vst [vmem:[%s2636 + $0x10] sm:$0xff] %v2621
    %2640 = vst [vmem:[%s2636 + $0x18] sm:$0xff] %v2622
    %2641 = vst [vmem:[%s2636 + $0x20] sm:$0xff] %v2623
    %2642 = vst [vmem:[%s2636 + $0x28] sm:$0xff] %v2624
    %2643 = vst [vmem:[%s2636 + $0x30] sm:$0xff] %v2625
    %2644 = vst [vmem:[%s2636 + $0x38] sm:$0xff] %v2626
    %v2645 = vmul.f32 %v2595, %v2619
    %v2646 = vmul.f32 %v2596, %v2620
    %v2647 = vmul.f32 %v2597, %v2621
    %v2648 = vmul.f32 %v2598, %v2622
    %v2649 = vmul.f32 %v2599, %v2623
    %v2650 = vmul.f32 %v2600, %v2624
    %v2651 = vmul.f32 %v2601, %v2625
    %v2652 = vmul.f32 %v2602, %v2626
    %v2653 = vadd.f32 %v2645, %v2645
    %v2654 = vadd.f32 %v2646, %v2646
    %v2655 = vadd.f32 %v2647, %v2647
    %v2656 = vadd.f32 %v2648, %v2648
    %v2657 = vadd.f32 %v2649, %v2649
    %v2658 = vadd.f32 %v2650, %v2650
    %v2659 = vadd.f32 %v2651, %v2651
    %v2660 = vadd.f32 %v2652, %v2652
    %v2661 = vmul.f32 %v2619, %v2619
    %v2662 = vmul.f32 %v2620, %v2620
    %v2663 = vmul.f32 %v2621, %v2621
    %v2664 = vmul.f32 %v2622, %v2622
    %v2665 = vmul.f32 %v2623, %v2623
    %v2666 = vmul.f32 %v2624, %v2624
    %v2667 = vmul.f32 %v2625, %v2625
    %v2668 = vmul.f32 %v2626, %v2626
    %v2669 = vmul.f32 %v2595, %v2595
    %v2670 = vmul.f32 %v2596, %v2596
    %v2671 = vmul.f32 %v2597, %v2597
    %v2672 = vmul.f32 %v2598, %v2598
    %v2673 = vmul.f32 %v2599, %v2599
    %v2674 = vmul.f32 %v2600, %v2600
    %v2675 = vmul.f32 %v2601, %v2601
    %v2676 = vmul.f32 %v2602, %v2602
    %v2677 = vsub.f32 %v2661, %v2669
    %v2678 = vsub.f32 %v2662, %v2670
    %v2679 = vsub.f32 %v2663, %v2671
    %v2680 = vsub.f32 %v2664, %v2672
    %v2681 = vsub.f32 %v2665, %v2673
    %v2682 = vsub.f32 %v2666, %v2674
    %v2683 = vsub.f32 %v2667, %v2675
    %v2684 = vsub.f32 %v2668, %v2676
    %s2685 = scalar_lea.vmem [#allocation5], 448
    %2686 = vst [vmem:[%s2685] sm:$0xff] %v2653
    %2687 = vst [vmem:[%s2685 + $0x8] sm:$0xff] %v2654
    %2688 = vst [vmem:[%s2685 + $0x10] sm:$0xff] %v2655
    %2689 = vst [vmem:[%s2685 + $0x18] sm:$0xff] %v2656
    %2690 = vst [vmem:[%s2685 + $0x20] sm:$0xff] %v2657
    %2691 = vst [vmem:[%s2685 + $0x28] sm:$0xff] %v2658
    %2692 = vst [vmem:[%s2685 + $0x30] sm:$0xff] %v2659
    %2693 = vst [vmem:[%s2685 + $0x38] sm:$0xff] %v2660
    %s2694 = scalar_lea.vmem [#allocation5], 512
    %2695 = vst [vmem:[%s2694] sm:$0xff] %v2677
    %2696 = vst [vmem:[%s2694 + $0x8] sm:$0xff] %v2678
    %2697 = vst [vmem:[%s2694 + $0x10] sm:$0xff] %v2679
    %2698 = vst [vmem:[%s2694 + $0x18] sm:$0xff] %v2680
    %2699 = vst [vmem:[%s2694 + $0x20] sm:$0xff] %v2681
    %2700 = vst [vmem:[%s2694 + $0x28] sm:$0xff] %v2682
    %2701 = vst [vmem:[%s2694 + $0x30] sm:$0xff] %v2683
    %2702 = vst [vmem:[%s2694 + $0x38] sm:$0xff] %v2684
    %v2703 = vmul.f32 %v23, 16.0
    %v2704 = vmul.f32 %v24, 16.0
    %v2705 = vmul.f32 %v25, 16.0
    %v2706 = vmul.f32 %v26, 16.0
    %v2707 = vmul.f32 %v27, 16.0
    %v2708 = vmul.f32 %v28, 16.0
    %v2709 = vmul.f32 %v29, 16.0
    %v2710 = vmul.f32 %v30, 16.0
    %v2711 = vand.u32 2147483647, %v2703
    %vm2712 = vcmp.le.f32.partialorder %v2711, 0.7853982
    %vm2713 = vcmp.lt.s32.totalorder %v2703, 0
    %v2714 = vand.u32 %v2703, 2139095040
    %v2715 = vshrl.u32 %v2714, 23
    %v2716 = vsub.s32 %v2715, 127
    %v2717 = vand.u32 2147483647, %v2703
    %v2718 = vand.u32 %v2717, 8388607
    %v2719 = vor.u32 %v2718, 8388608
    %v2720 = vsub.s32 0, %v2719
    %v2721 = vadd.s32 %v2716, 1
    %vm2722 = vcmp.gt.s32.totalorder %v2721, 0
    %v2723 = vsel %vm2722, %v2721, 0
    %v2724 = vshrl.u32 %v2723, 5
    %v2725 = vand.u32 %v2723, 31
    %v2726 = vsub.s32 32, %v2725
    %v2727 = vshrl.u32 683565275, %v2726
    %v2728 = vshll.u32 683565275, %v2725
    %v2729 = vshrl.u32 2475754826, %v2726
    %v2730 = vor.u32 %v2728, %v2729
    %v2731 = vshll.u32 2475754826, %v2725
    %v2732 = vshrl.u32 2131351028, %v2726
    %v2733 = vor.u32 %v2731, %v2732
    %v2734 = vshll.u32 2131351028, %v2725
    %v2735 = vshrl.u32 2102212464, %v2726
    %v2736 = vor.u32 %v2734, %v2735
    %v2737 = vshll.u32 2102212464, %v2725
    %v2738 = vshrl.u32 920167782, %v2726
    %v2739 = vor.u32 %v2737, %v2738
    %v2740 = vshll.u32 920167782, %v2725
    %v2741 = vshrl.u32 1326507024, %v2726
    %v2742 = vor.u32 %v2740, %v2741
    %vm2743 = vcmp.lt.s32.totalorder %v2724, 1
    %vm2744 = vcmp.lt.s32.totalorder %v2724, 2
    %vm2745 = vcmp.lt.s32.totalorder %v2724, 3
    %vm2746 = vcmp.lt.s32.totalorder %v2724, 4
    %v2747 = vsel %vm2743, %v2727, %v2730
    %v2748 = vsel %vm2746, %v2736, 2102212464
    %v2749 = vsel %vm2745, %v2733, %v2748
    %v2750 = vsel %vm2744, %v2747, %v2749
    %v2751 = vsel %vm2743, %v2730, %v2733
    %v2752 = vsel %vm2746, %v2739, 920167782
    %v2753 = vsel %vm2745, %v2736, %v2752
    %v2754 = vsel %vm2744, %v2751, %v2753
    %v2755 = vsel %vm2743, %v2733, %v2736
    %v2756 = vsel %vm2746, %v2742, 1326507024
    %v2757 = vsel %vm2745, %v2739, %v2756
    %v2758 = vsel %vm2744, %v2755, %v2757
    %v2759 = vshll.u32 %v2719, 8
    %v2760 = vand.u32 %v2759, 65535
    %v2761 = vshrl.u32 %v2759, 16
    %v2762 = vand.u32 %v2758, 65535
    %v2763 = vshrl.u32 %v2758, 16
    %v2764 = vmul.u32 %v2760, %v2762
    %v2765 = vmul.u32 %v2760, %v2763
    %v2766 = vmul.u32 %v2761, %v2762
    %v2767 = vmul.u32 %v2761, %v2763
    %v2768 = vshll.u32 %v2765, 16
    %v2769 = vshrl.u32 %v2765, 16
    %v2770 = vshll.u32 %v2766, 16
    %v2771 = vshrl.u32 %v2766, 16
    %vm2772 = vc.u32 %v2764, %v2768
    %v2773 = vsel %vm2772, 1, 0
    %v2774 = vadd.s32 %v2764, %v2768
    %v2775 = vadd.s32 %v2767, %v2773
    %vm2776 = vc.u32 %v2774, %v2770
    %v2777 = vsel %vm2776, 1, 0
    %v2778 = vadd.s32 %v2774, %v2770
    %v2779 = vadd.s32 %v2775, %v2777
    %v2780 = vadd.s32 %v2779, %v2769
    %v2781 = vadd.s32 %v2780, %v2771
    %v2782 = vand.u32 %v2759, 65535
    %v2783 = vshrl.u32 %v2759, 16
    %v2784 = vand.u32 %v2754, 65535
    %v2785 = vshrl.u32 %v2754, 16
    %v2786 = vmul.u32 %v2782, %v2784
    %v2787 = vmul.u32 %v2782, %v2785
    %v2788 = vmul.u32 %v2783, %v2784
    %v2789 = vmul.u32 %v2783, %v2785
    %v2790 = vshll.u32 %v2787, 16
    %v2791 = vshrl.u32 %v2787, 16
    %v2792 = vshll.u32 %v2788, 16
    %v2793 = vshrl.u32 %v2788, 16
    %vm2794 = vc.u32 %v2786, %v2790
    %v2795 = vsel %vm2794, 1, 0
    %v2796 = vadd.s32 %v2786, %v2790
    %v2797 = vadd.s32 %v2789, %v2795
    %vm2798 = vc.u32 %v2796, %v2792
    %v2799 = vsel %vm2798, 1, 0
    %v2800 = vadd.s32 %v2796, %v2792
    %v2801 = vadd.s32 %v2797, %v2799
    %v2802 = vadd.s32 %v2801, %v2791
    %v2803 = vadd.s32 %v2802, %v2793
    %v2804 = vmul.u32 %v2759, %v2750
    %v2805 = vadd.s32 %v2781, %v2800
    %vm2806 = vc.u32 %v2781, %v2800
    %v2807 = vadd.s32 %v2803, 1
    %v2808 = vsel %vm2806, %v2807, %v2803
    %v2809 = vadd.s32 %v2804, %v2808
    %v2810 = vadd.s32 %v2809, 536870912
    %v2811 = vshrl.u32 %v2810, 30
    %v2812 = vshll.u32 %v2811, 30
    %v2813 = vsub.s32 %v2809, %v2812
    %vm2814 = vcmp.lt.s32.totalorder %v2813, 0
    %v2815 = vsub.s32 0, %v2813
    %v2816 = vsel %vm2814, %v2815, %v2813
    %v2817 = vclz %v2816
    %v2818 = vsub.s32 %v2817, 2
    %vm2819 = vcmp.gt.s32.totalorder 0, %v2818
    %v2820 = vsel %vm2819, 0, %v2818
    %v2821 = vsub.s32 32, %v2820
    %v2822 = vshll.u32 %v2813, %v2820
    %v2823 = vshrl.u32 %v2805, %v2821
    %v2824 = vor.u32 %v2822, %v2823
    %v2825 = vsub.s32 4294967266, %v2820
    %v2826 = vadd.s32 %v2825, 127
    %v2827 = vshll.u32 %v2826, 23
    %v2828 = vor.u32 4788187, %v2827
    %v2829 = vand.u32 2147483647, %v2828
    %v2831 = vcvt.s32.f32 %v2824
    %v2832 = vmul.f32 %v2831, %v2829
    %v2833 = vxor.u32 %v2832, 2147483648
    %v2834 = vsel %vm2713, %v2833, %v2832
    %v2835 = vsub.s32 4, %v2811
    %v2836 = vsel %vm2713, %v2835, %v2811
    %v2837 = vsel %vm2712, %v2703, %v2834
    %v2838 = vsel %vm2712, 0, %v2836
    %v2839 = vmul.f32 %v2837, %v2837
    %v2840 = vmul.f32 %v2839, -0.001358992
    %v2841 = vadd.f32 %v2840, 0.041655596
    %v2842 = vmul.f32 %v2839, %v2841
    %v2843 = vadd.f32 %v2842, -0.4999988
    %v2844 = vmul.f32 %v2839, %v2843
    %v2845 = vadd.f32 1.0, %v2844
    %v2846 = vmul.f32 %v2837, %v2837
    %v2847 = vmul.f32 %v2846, -0.00019511016
    %v2848 = vadd.f32 %v2847, 0.008332121
    %v2849 = vmul.f32 %v2846, %v2848
    %v2850 = vadd.f32 %v2849, -0.16666654
    %v2851 = vmul.f32 %v2846, %v2850
    %v2852 = vadd.f32 %v2851, 1.0
    %v2853 = vmul.f32 %v2852, %v2837
    %vm2854 = vweird.f32 %v2703
    %v2855 = vadd.s32 %v2838, 3
    %v2856 = vand.u32 %v2855, 3
    %vm2857 = vcmp.lt.s32.totalorder %v2856, 2
    %vm2858 = vcmp.eq.s32.totalorder %v2856, 0
    %v2859 = vxor.u32 %v2853, 2147483648
    %v2860 = vsel %vm2858, %v2845, %v2859
    %vm2861 = vcmp.eq.s32.totalorder %v2856, 2
    %v2862 = vxor.u32 %v2845, 2147483648
    %v2863 = vsel %vm2861, %v2862, %v2853
    %v2864 = vsel %vm2857, %v2860, %v2863
    %v2865 = vsel %vm2854, nan, %v2864
    %v2866 = vand.u32 2147483647, %v2704
    %vm2867 = vcmp.le.f32.partialorder %v2866, 0.7853982
    %vm2868 = vcmp.lt.s32.totalorder %v2704, 0
    %v2869 = vand.u32 %v2704, 2139095040
    %v2870 = vshrl.u32 %v2869, 23
    %v2871 = vsub.s32 %v2870, 127
    %v2872 = vand.u32 2147483647, %v2704
    %v2873 = vand.u32 %v2872, 8388607
    %v2874 = vor.u32 %v2873, 8388608
    %v2875 = vsub.s32 0, %v2874
    %v2876 = vadd.s32 %v2871, 1
    %vm2877 = vcmp.gt.s32.totalorder %v2876, 0
    %v2878 = vsel %vm2877, %v2876, 0
    %v2879 = vshrl.u32 %v2878, 5
    %v2880 = vand.u32 %v2878, 31
    %v2881 = vsub.s32 32, %v2880
    %v2882 = vshrl.u32 683565275, %v2881
    %v2883 = vshll.u32 683565275, %v2880
    %v2884 = vshrl.u32 2475754826, %v2881
    %v2885 = vor.u32 %v2883, %v2884
    %v2886 = vshll.u32 2475754826, %v2880
    %v2887 = vshrl.u32 2131351028, %v2881
    %v2888 = vor.u32 %v2886, %v2887
    %v2889 = vshll.u32 2131351028, %v2880
    %v2890 = vshrl.u32 2102212464, %v2881
    %v2891 = vor.u32 %v2889, %v2890
    %v2892 = vshll.u32 2102212464, %v2880
    %v2893 = vshrl.u32 920167782, %v2881
    %v2894 = vor.u32 %v2892, %v2893
    %v2895 = vshll.u32 920167782, %v2880
    %v2896 = vshrl.u32 1326507024, %v2881
    %v2897 = vor.u32 %v2895, %v2896
    %vm2898 = vcmp.lt.s32.totalorder %v2879, 1
    %vm2899 = vcmp.lt.s32.totalorder %v2879, 2
    %vm2900 = vcmp.lt.s32.totalorder %v2879, 3
    %vm2901 = vcmp.lt.s32.totalorder %v2879, 4
    %v2902 = vsel %vm2898, %v2882, %v2885
    %v2903 = vsel %vm2901, %v2891, 2102212464
    %v2904 = vsel %vm2900, %v2888, %v2903
    %v2905 = vsel %vm2899, %v2902, %v2904
    %v2906 = vsel %vm2898, %v2885, %v2888
    %v2907 = vsel %vm2901, %v2894, 920167782
    %v2908 = vsel %vm2900, %v2891, %v2907
    %v2909 = vsel %vm2899, %v2906, %v2908
    %v2910 = vsel %vm2898, %v2888, %v2891
    %v2911 = vsel %vm2901, %v2897, 1326507024
    %v2912 = vsel %vm2900, %v2894, %v2911
    %v2913 = vsel %vm2899, %v2910, %v2912
    %v2914 = vshll.u32 %v2874, 8
    %v2915 = vand.u32 %v2914, 65535
    %v2916 = vshrl.u32 %v2914, 16
    %v2917 = vand.u32 %v2913, 65535
    %v2918 = vshrl.u32 %v2913, 16
    %v2919 = vmul.u32 %v2915, %v2917
    %v2920 = vmul.u32 %v2915, %v2918
    %v2921 = vmul.u32 %v2916, %v2917
    %v2922 = vmul.u32 %v2916, %v2918
    %v2923 = vshll.u32 %v2920, 16
    %v2924 = vshrl.u32 %v2920, 16
    %v2925 = vshll.u32 %v2921, 16
    %v2926 = vshrl.u32 %v2921, 16
    %vm2927 = vc.u32 %v2919, %v2923
    %v2928 = vsel %vm2927, 1, 0
    %v2929 = vadd.s32 %v2919, %v2923
    %v2930 = vadd.s32 %v2922, %v2928
    %vm2931 = vc.u32 %v2929, %v2925
    %v2932 = vsel %vm2931, 1, 0
    %v2933 = vadd.s32 %v2929, %v2925
    %v2934 = vadd.s32 %v2930, %v2932
    %v2935 = vadd.s32 %v2934, %v2924
    %v2936 = vadd.s32 %v2935, %v2926
    %v2937 = vand.u32 %v2914, 65535
    %v2938 = vshrl.u32 %v2914, 16
    %v2939 = vand.u32 %v2909, 65535
    %v2940 = vshrl.u32 %v2909, 16
    %v2941 = vmul.u32 %v2937, %v2939
    %v2942 = vmul.u32 %v2937, %v2940
    %v2943 = vmul.u32 %v2938, %v2939
    %v2944 = vmul.u32 %v2938, %v2940
    %v2945 = vshll.u32 %v2942, 16
    %v2946 = vshrl.u32 %v2942, 16
    %v2947 = vshll.u32 %v2943, 16
    %v2948 = vshrl.u32 %v2943, 16
    %vm2949 = vc.u32 %v2941, %v2945
    %v2950 = vsel %vm2949, 1, 0
    %v2951 = vadd.s32 %v2941, %v2945
    %v2952 = vadd.s32 %v2944, %v2950
    %vm2953 = vc.u32 %v2951, %v2947
    %v2954 = vsel %vm2953, 1, 0
    %v2955 = vadd.s32 %v2951, %v2947
    %v2956 = vadd.s32 %v2952, %v2954
    %v2957 = vadd.s32 %v2956, %v2946
    %v2958 = vadd.s32 %v2957, %v2948
    %v2959 = vmul.u32 %v2914, %v2905
    %v2960 = vadd.s32 %v2936, %v2955
    %vm2961 = vc.u32 %v2936, %v2955
    %v2962 = vadd.s32 %v2958, 1
    %v2963 = vsel %vm2961, %v2962, %v2958
    %v2964 = vadd.s32 %v2959, %v2963
    %v2965 = vadd.s32 %v2964, 536870912
    %v2966 = vshrl.u32 %v2965, 30
    %v2967 = vshll.u32 %v2966, 30
    %v2968 = vsub.s32 %v2964, %v2967
    %vm2969 = vcmp.lt.s32.totalorder %v2968, 0
    %v2970 = vsub.s32 0, %v2968
    %v2971 = vsel %vm2969, %v2970, %v2968
    %v2972 = vclz %v2971
    %v2973 = vsub.s32 %v2972, 2
    %vm2974 = vcmp.gt.s32.totalorder 0, %v2973
    %v2975 = vsel %vm2974, 0, %v2973
    %v2976 = vsub.s32 32, %v2975
    %v2977 = vshll.u32 %v2968, %v2975
    %v2978 = vshrl.u32 %v2960, %v2976
    %v2979 = vor.u32 %v2977, %v2978
    %v2980 = vsub.s32 4294967266, %v2975
    %v2981 = vadd.s32 %v2980, 127
    %v2982 = vshll.u32 %v2981, 23
    %v2983 = vor.u32 4788187, %v2982
    %v2984 = vand.u32 2147483647, %v2983
    %v2986 = vcvt.s32.f32 %v2979
    %v2987 = vmul.f32 %v2986, %v2984
    %v2988 = vxor.u32 %v2987, 2147483648
    %v2989 = vsel %vm2868, %v2988, %v2987
    %v2990 = vsub.s32 4, %v2966
    %v2991 = vsel %vm2868, %v2990, %v2966
    %v2992 = vsel %vm2867, %v2704, %v2989
    %v2993 = vsel %vm2867, 0, %v2991
    %v2994 = vmul.f32 %v2992, %v2992
    %v2995 = vmul.f32 %v2994, -0.001358992
    %v2996 = vadd.f32 %v2995, 0.041655596
    %v2997 = vmul.f32 %v2994, %v2996
    %v2998 = vadd.f32 %v2997, -0.4999988
    %v2999 = vmul.f32 %v2994, %v2998
    %v3000 = vadd.f32 1.0, %v2999
    %v3001 = vmul.f32 %v2992, %v2992
    %v3002 = vmul.f32 %v3001, -0.00019511016
    %v3003 = vadd.f32 %v3002, 0.008332121
    %v3004 = vmul.f32 %v3001, %v3003
    %v3005 = vadd.f32 %v3004, -0.16666654
    %v3006 = vmul.f32 %v3001, %v3005
    %v3007 = vadd.f32 %v3006, 1.0
    %v3008 = vmul.f32 %v3007, %v2992
    %vm3009 = vweird.f32 %v2704
    %v3010 = vadd.s32 %v2993, 3
    %v3011 = vand.u32 %v3010, 3
    %vm3012 = vcmp.lt.s32.totalorder %v3011, 2
    %vm3013 = vcmp.eq.s32.totalorder %v3011, 0
    %v3014 = vxor.u32 %v3008, 2147483648
    %v3015 = vsel %vm3013, %v3000, %v3014
    %vm3016 = vcmp.eq.s32.totalorder %v3011, 2
    %v3017 = vxor.u32 %v3000, 2147483648
    %v3018 = vsel %vm3016, %v3017, %v3008
    %v3019 = vsel %vm3012, %v3015, %v3018
    %v3020 = vsel %vm3009, nan, %v3019
    %v3021 = vand.u32 2147483647, %v2705
    %vm3022 = vcmp.le.f32.partialorder %v3021, 0.7853982
    %vm3023 = vcmp.lt.s32.totalorder %v2705, 0
    %v3024 = vand.u32 %v2705, 2139095040
    %v3025 = vshrl.u32 %v3024, 23
    %v3026 = vsub.s32 %v3025, 127
    %v3027 = vand.u32 2147483647, %v2705
    %v3028 = vand.u32 %v3027, 8388607
    %v3029 = vor.u32 %v3028, 8388608
    %v3030 = vsub.s32 0, %v3029
    %v3031 = vadd.s32 %v3026, 1
    %vm3032 = vcmp.gt.s32.totalorder %v3031, 0
    %v3033 = vsel %vm3032, %v3031, 0
    %v3034 = vshrl.u32 %v3033, 5
    %v3035 = vand.u32 %v3033, 31
    %v3036 = vsub.s32 32, %v3035
    %v3037 = vshrl.u32 683565275, %v3036
    %v3038 = vshll.u32 683565275, %v3035
    %v3039 = vshrl.u32 2475754826, %v3036
    %v3040 = vor.u32 %v3038, %v3039
    %v3041 = vshll.u32 2475754826, %v3035
    %v3042 = vshrl.u32 2131351028, %v3036
    %v3043 = vor.u32 %v3041, %v3042
    %v3044 = vshll.u32 2131351028, %v3035
    %v3045 = vshrl.u32 2102212464, %v3036
    %v3046 = vor.u32 %v3044, %v3045
    %v3047 = vshll.u32 2102212464, %v3035
    %v3048 = vshrl.u32 920167782, %v3036
    %v3049 = vor.u32 %v3047, %v3048
    %v3050 = vshll.u32 920167782, %v3035
    %v3051 = vshrl.u32 1326507024, %v3036
    %v3052 = vor.u32 %v3050, %v3051
    %vm3053 = vcmp.lt.s32.totalorder %v3034, 1
    %vm3054 = vcmp.lt.s32.totalorder %v3034, 2
    %vm3055 = vcmp.lt.s32.totalorder %v3034, 3
    %vm3056 = vcmp.lt.s32.totalorder %v3034, 4
    %v3057 = vsel %vm3053, %v3037, %v3040
    %v3058 = vsel %vm3056, %v3046, 2102212464
    %v3059 = vsel %vm3055, %v3043, %v3058
    %v3060 = vsel %vm3054, %v3057, %v3059
    %v3061 = vsel %vm3053, %v3040, %v3043
    %v3062 = vsel %vm3056, %v3049, 920167782
    %v3063 = vsel %vm3055, %v3046, %v3062
    %v3064 = vsel %vm3054, %v3061, %v3063
    %v3065 = vsel %vm3053, %v3043, %v3046
    %v3066 = vsel %vm3056, %v3052, 1326507024
    %v3067 = vsel %vm3055, %v3049, %v3066
    %v3068 = vsel %vm3054, %v3065, %v3067
    %v3069 = vshll.u32 %v3029, 8
    %v3070 = vand.u32 %v3069, 65535
    %v3071 = vshrl.u32 %v3069, 16
    %v3072 = vand.u32 %v3068, 65535
    %v3073 = vshrl.u32 %v3068, 16
    %v3074 = vmul.u32 %v3070, %v3072
    %v3075 = vmul.u32 %v3070, %v3073
    %v3076 = vmul.u32 %v3071, %v3072
    %v3077 = vmul.u32 %v3071, %v3073
    %v3078 = vshll.u32 %v3075, 16
    %v3079 = vshrl.u32 %v3075, 16
    %v3080 = vshll.u32 %v3076, 16
    %v3081 = vshrl.u32 %v3076, 16
    %vm3082 = vc.u32 %v3074, %v3078
    %v3083 = vsel %vm3082, 1, 0
    %v3084 = vadd.s32 %v3074, %v3078
    %v3085 = vadd.s32 %v3077, %v3083
    %vm3086 = vc.u32 %v3084, %v3080
    %v3087 = vsel %vm3086, 1, 0
    %v3088 = vadd.s32 %v3084, %v3080
    %v3089 = vadd.s32 %v3085, %v3087
    %v3090 = vadd.s32 %v3089, %v3079
    %v3091 = vadd.s32 %v3090, %v3081
    %v3092 = vand.u32 %v3069, 65535
    %v3093 = vshrl.u32 %v3069, 16
    %v3094 = vand.u32 %v3064, 65535
    %v3095 = vshrl.u32 %v3064, 16
    %v3096 = vmul.u32 %v3092, %v3094
    %v3097 = vmul.u32 %v3092, %v3095
    %v3098 = vmul.u32 %v3093, %v3094
    %v3099 = vmul.u32 %v3093, %v3095
    %v3100 = vshll.u32 %v3097, 16
    %v3101 = vshrl.u32 %v3097, 16
    %v3102 = vshll.u32 %v3098, 16
    %v3103 = vshrl.u32 %v3098, 16
    %vm3104 = vc.u32 %v3096, %v3100
    %v3105 = vsel %vm3104, 1, 0
    %v3106 = vadd.s32 %v3096, %v3100
    %v3107 = vadd.s32 %v3099, %v3105
    %vm3108 = vc.u32 %v3106, %v3102
    %v3109 = vsel %vm3108, 1, 0
    %v3110 = vadd.s32 %v3106, %v3102
    %v3111 = vadd.s32 %v3107, %v3109
    %v3112 = vadd.s32 %v3111, %v3101
    %v3113 = vadd.s32 %v3112, %v3103
    %v3114 = vmul.u32 %v3069, %v3060
    %v3115 = vadd.s32 %v3091, %v3110
    %vm3116 = vc.u32 %v3091, %v3110
    %v3117 = vadd.s32 %v3113, 1
    %v3118 = vsel %vm3116, %v3117, %v3113
    %v3119 = vadd.s32 %v3114, %v3118
    %v3120 = vadd.s32 %v3119, 536870912
    %v3121 = vshrl.u32 %v3120, 30
    %v3122 = vshll.u32 %v3121, 30
    %v3123 = vsub.s32 %v3119, %v3122
    %vm3124 = vcmp.lt.s32.totalorder %v3123, 0
    %v3125 = vsub.s32 0, %v3123
    %v3126 = vsel %vm3124, %v3125, %v3123
    %v3127 = vclz %v3126
    %v3128 = vsub.s32 %v3127, 2
    %vm3129 = vcmp.gt.s32.totalorder 0, %v3128
    %v3130 = vsel %vm3129, 0, %v3128
    %v3131 = vsub.s32 32, %v3130
    %v3132 = vshll.u32 %v3123, %v3130
    %v3133 = vshrl.u32 %v3115, %v3131
    %v3134 = vor.u32 %v3132, %v3133
    %v3135 = vsub.s32 4294967266, %v3130
    %v3136 = vadd.s32 %v3135, 127
    %v3137 = vshll.u32 %v3136, 23
    %v3138 = vor.u32 4788187, %v3137
    %v3139 = vand.u32 2147483647, %v3138
    %v3141 = vcvt.s32.f32 %v3134
    %v3142 = vmul.f32 %v3141, %v3139
    %v3143 = vxor.u32 %v3142, 2147483648
    %v3144 = vsel %vm3023, %v3143, %v3142
    %v3145 = vsub.s32 4, %v3121
    %v3146 = vsel %vm3023, %v3145, %v3121
    %v3147 = vsel %vm3022, %v2705, %v3144
    %v3148 = vsel %vm3022, 0, %v3146
    %v3149 = vmul.f32 %v3147, %v3147
    %v3150 = vmul.f32 %v3149, -0.001358992
    %v3151 = vadd.f32 %v3150, 0.041655596
    %v3152 = vmul.f32 %v3149, %v3151
    %v3153 = vadd.f32 %v3152, -0.4999988
    %v3154 = vmul.f32 %v3149, %v3153
    %v3155 = vadd.f32 1.0, %v3154
    %v3156 = vmul.f32 %v3147, %v3147
    %v3157 = vmul.f32 %v3156, -0.00019511016
    %v3158 = vadd.f32 %v3157, 0.008332121
    %v3159 = vmul.f32 %v3156, %v3158
    %v3160 = vadd.f32 %v3159, -0.16666654
    %v3161 = vmul.f32 %v3156, %v3160
    %v3162 = vadd.f32 %v3161, 1.0
    %v3163 = vmul.f32 %v3162, %v3147
    %vm3164 = vweird.f32 %v2705
    %v3165 = vadd.s32 %v3148, 3
    %v3166 = vand.u32 %v3165, 3
    %vm3167 = vcmp.lt.s32.totalorder %v3166, 2
    %vm3168 = vcmp.eq.s32.totalorder %v3166, 0
    %v3169 = vxor.u32 %v3163, 2147483648
    %v3170 = vsel %vm3168, %v3155, %v3169
    %vm3171 = vcmp.eq.s32.totalorder %v3166, 2
    %v3172 = vxor.u32 %v3155, 2147483648
    %v3173 = vsel %vm3171, %v3172, %v3163
    %v3174 = vsel %vm3167, %v3170, %v3173
    %v3175 = vsel %vm3164, nan, %v3174
    %v3176 = vand.u32 2147483647, %v2706
    %vm3177 = vcmp.le.f32.partialorder %v3176, 0.7853982
    %vm3178 = vcmp.lt.s32.totalorder %v2706, 0
    %v3179 = vand.u32 %v2706, 2139095040
    %v3180 = vshrl.u32 %v3179, 23
    %v3181 = vsub.s32 %v3180, 127
    %v3182 = vand.u32 2147483647, %v2706
    %v3183 = vand.u32 %v3182, 8388607
    %v3184 = vor.u32 %v3183, 8388608
    %v3185 = vsub.s32 0, %v3184
    %v3186 = vadd.s32 %v3181, 1
    %vm3187 = vcmp.gt.s32.totalorder %v3186, 0
    %v3188 = vsel %vm3187, %v3186, 0
    %v3189 = vshrl.u32 %v3188, 5
    %v3190 = vand.u32 %v3188, 31
    %v3191 = vsub.s32 32, %v3190
    %v3192 = vshrl.u32 683565275, %v3191
    %v3193 = vshll.u32 683565275, %v3190
    %v3194 = vshrl.u32 2475754826, %v3191
    %v3195 = vor.u32 %v3193, %v3194
    %v3196 = vshll.u32 2475754826, %v3190
    %v3197 = vshrl.u32 2131351028, %v3191
    %v3198 = vor.u32 %v3196, %v3197
    %v3199 = vshll.u32 2131351028, %v3190
    %v3200 = vshrl.u32 2102212464, %v3191
    %v3201 = vor.u32 %v3199, %v3200
    %v3202 = vshll.u32 2102212464, %v3190
    %v3203 = vshrl.u32 920167782, %v3191
    %v3204 = vor.u32 %v3202, %v3203
    %v3205 = vshll.u32 920167782, %v3190
    %v3206 = vshrl.u32 1326507024, %v3191
    %v3207 = vor.u32 %v3205, %v3206
    %vm3208 = vcmp.lt.s32.totalorder %v3189, 1
    %vm3209 = vcmp.lt.s32.totalorder %v3189, 2
    %vm3210 = vcmp.lt.s32.totalorder %v3189, 3
    %vm3211 = vcmp.lt.s32.totalorder %v3189, 4
    %v3212 = vsel %vm3208, %v3192, %v3195
    %v3213 = vsel %vm3211, %v3201, 2102212464
    %v3214 = vsel %vm3210, %v3198, %v3213
    %v3215 = vsel %vm3209, %v3212, %v3214
    %v3216 = vsel %vm3208, %v3195, %v3198
    %v3217 = vsel %vm3211, %v3204, 920167782
    %v3218 = vsel %vm3210, %v3201, %v3217
    %v3219 = vsel %vm3209, %v3216, %v3218
    %v3220 = vsel %vm3208, %v3198, %v3201
    %v3221 = vsel %vm3211, %v3207, 1326507024
    %v3222 = vsel %vm3210, %v3204, %v3221
    %v3223 = vsel %vm3209, %v3220, %v3222
    %v3224 = vshll.u32 %v3184, 8
    %v3225 = vand.u32 %v3224, 65535
    %v3226 = vshrl.u32 %v3224, 16
    %v3227 = vand.u32 %v3223, 65535
    %v3228 = vshrl.u32 %v3223, 16
    %v3229 = vmul.u32 %v3225, %v3227
    %v3230 = vmul.u32 %v3225, %v3228
    %v3231 = vmul.u32 %v3226, %v3227
    %v3232 = vmul.u32 %v3226, %v3228
    %v3233 = vshll.u32 %v3230, 16
    %v3234 = vshrl.u32 %v3230, 16
    %v3235 = vshll.u32 %v3231, 16
    %v3236 = vshrl.u32 %v3231, 16
    %vm3237 = vc.u32 %v3229, %v3233
    %v3238 = vsel %vm3237, 1, 0
    %v3239 = vadd.s32 %v3229, %v3233
    %v3240 = vadd.s32 %v3232, %v3238
    %vm3241 = vc.u32 %v3239, %v3235
    %v3242 = vsel %vm3241, 1, 0
    %v3243 = vadd.s32 %v3239, %v3235
    %v3244 = vadd.s32 %v3240, %v3242
    %v3245 = vadd.s32 %v3244, %v3234
    %v3246 = vadd.s32 %v3245, %v3236
    %v3247 = vand.u32 %v3224, 65535
    %v3248 = vshrl.u32 %v3224, 16
    %v3249 = vand.u32 %v3219, 65535
    %v3250 = vshrl.u32 %v3219, 16
    %v3251 = vmul.u32 %v3247, %v3249
    %v3252 = vmul.u32 %v3247, %v3250
    %v3253 = vmul.u32 %v3248, %v3249
    %v3254 = vmul.u32 %v3248, %v3250
    %v3255 = vshll.u32 %v3252, 16
    %v3256 = vshrl.u32 %v3252, 16
    %v3257 = vshll.u32 %v3253, 16
    %v3258 = vshrl.u32 %v3253, 16
    %vm3259 = vc.u32 %v3251, %v3255
    %v3260 = vsel %vm3259, 1, 0
    %v3261 = vadd.s32 %v3251, %v3255
    %v3262 = vadd.s32 %v3254, %v3260
    %vm3263 = vc.u32 %v3261, %v3257
    %v3264 = vsel %vm3263, 1, 0
    %v3265 = vadd.s32 %v3261, %v3257
    %v3266 = vadd.s32 %v3262, %v3264
    %v3267 = vadd.s32 %v3266, %v3256
    %v3268 = vadd.s32 %v3267, %v3258
    %v3269 = vmul.u32 %v3224, %v3215
    %v3270 = vadd.s32 %v3246, %v3265
    %vm3271 = vc.u32 %v3246, %v3265
    %v3272 = vadd.s32 %v3268, 1
    %v3273 = vsel %vm3271, %v3272, %v3268
    %v3274 = vadd.s32 %v3269, %v3273
    %v3275 = vadd.s32 %v3274, 536870912
    %v3276 = vshrl.u32 %v3275, 30
    %v3277 = vshll.u32 %v3276, 30
    %v3278 = vsub.s32 %v3274, %v3277
    %vm3279 = vcmp.lt.s32.totalorder %v3278, 0
    %v3280 = vsub.s32 0, %v3278
    %v3281 = vsel %vm3279, %v3280, %v3278
    %v3282 = vclz %v3281
    %v3283 = vsub.s32 %v3282, 2
    %vm3284 = vcmp.gt.s32.totalorder 0, %v3283
    %v3285 = vsel %vm3284, 0, %v3283
    %v3286 = vsub.s32 32, %v3285
    %v3287 = vshll.u32 %v3278, %v3285
    %v3288 = vshrl.u32 %v3270, %v3286
    %v3289 = vor.u32 %v3287, %v3288
    %v3290 = vsub.s32 4294967266, %v3285
    %v3291 = vadd.s32 %v3290, 127
    %v3292 = vshll.u32 %v3291, 23
    %v3293 = vor.u32 4788187, %v3292
    %v3294 = vand.u32 2147483647, %v3293
    %v3296 = vcvt.s32.f32 %v3289
    %v3297 = vmul.f32 %v3296, %v3294
    %v3298 = vxor.u32 %v3297, 2147483648
    %v3299 = vsel %vm3178, %v3298, %v3297
    %v3300 = vsub.s32 4, %v3276
    %v3301 = vsel %vm3178, %v3300, %v3276
    %v3302 = vsel %vm3177, %v2706, %v3299
    %v3303 = vsel %vm3177, 0, %v3301
    %v3304 = vmul.f32 %v3302, %v3302
    %v3305 = vmul.f32 %v3304, -0.001358992
    %v3306 = vadd.f32 %v3305, 0.041655596
    %v3307 = vmul.f32 %v3304, %v3306
    %v3308 = vadd.f32 %v3307, -0.4999988
    %v3309 = vmul.f32 %v3304, %v3308
    %v3310 = vadd.f32 1.0, %v3309
    %v3311 = vmul.f32 %v3302, %v3302
    %v3312 = vmul.f32 %v3311, -0.00019511016
    %v3313 = vadd.f32 %v3312, 0.008332121
    %v3314 = vmul.f32 %v3311, %v3313
    %v3315 = vadd.f32 %v3314, -0.16666654
    %v3316 = vmul.f32 %v3311, %v3315
    %v3317 = vadd.f32 %v3316, 1.0
    %v3318 = vmul.f32 %v3317, %v3302
    %vm3319 = vweird.f32 %v2706
    %v3320 = vadd.s32 %v3303, 3
    %v3321 = vand.u32 %v3320, 3
    %vm3322 = vcmp.lt.s32.totalorder %v3321, 2
    %vm3323 = vcmp.eq.s32.totalorder %v3321, 0
    %v3324 = vxor.u32 %v3318, 2147483648
    %v3325 = vsel %vm3323, %v3310, %v3324
    %vm3326 = vcmp.eq.s32.totalorder %v3321, 2
    %v3327 = vxor.u32 %v3310, 2147483648
    %v3328 = vsel %vm3326, %v3327, %v3318
    %v3329 = vsel %vm3322, %v3325, %v3328
    %v3330 = vsel %vm3319, nan, %v3329
    %v3331 = vand.u32 2147483647, %v2707
    %vm3332 = vcmp.le.f32.partialorder %v3331, 0.7853982
    %vm3333 = vcmp.lt.s32.totalorder %v2707, 0
    %v3334 = vand.u32 %v2707, 2139095040
    %v3335 = vshrl.u32 %v3334, 23
    %v3336 = vsub.s32 %v3335, 127
    %v3337 = vand.u32 2147483647, %v2707
    %v3338 = vand.u32 %v3337, 8388607
    %v3339 = vor.u32 %v3338, 8388608
    %v3340 = vsub.s32 0, %v3339
    %v3341 = vadd.s32 %v3336, 1
    %vm3342 = vcmp.gt.s32.totalorder %v3341, 0
    %v3343 = vsel %vm3342, %v3341, 0
    %v3344 = vshrl.u32 %v3343, 5
    %v3345 = vand.u32 %v3343, 31
    %v3346 = vsub.s32 32, %v3345
    %v3347 = vshrl.u32 683565275, %v3346
    %v3348 = vshll.u32 683565275, %v3345
    %v3349 = vshrl.u32 2475754826, %v3346
    %v3350 = vor.u32 %v3348, %v3349
    %v3351 = vshll.u32 2475754826, %v3345
    %v3352 = vshrl.u32 2131351028, %v3346
    %v3353 = vor.u32 %v3351, %v3352
    %v3354 = vshll.u32 2131351028, %v3345
    %v3355 = vshrl.u32 2102212464, %v3346
    %v3356 = vor.u32 %v3354, %v3355
    %v3357 = vshll.u32 2102212464, %v3345
    %v3358 = vshrl.u32 920167782, %v3346
    %v3359 = vor.u32 %v3357, %v3358
    %v3360 = vshll.u32 920167782, %v3345
    %v3361 = vshrl.u32 1326507024, %v3346
    %v3362 = vor.u32 %v3360, %v3361
    %vm3363 = vcmp.lt.s32.totalorder %v3344, 1
    %vm3364 = vcmp.lt.s32.totalorder %v3344, 2
    %vm3365 = vcmp.lt.s32.totalorder %v3344, 3
    %vm3366 = vcmp.lt.s32.totalorder %v3344, 4
    %v3367 = vsel %vm3363, %v3347, %v3350
    %v3368 = vsel %vm3366, %v3356, 2102212464
    %v3369 = vsel %vm3365, %v3353, %v3368
    %v3370 = vsel %vm3364, %v3367, %v3369
    %v3371 = vsel %vm3363, %v3350, %v3353
    %v3372 = vsel %vm3366, %v3359, 920167782
    %v3373 = vsel %vm3365, %v3356, %v3372
    %v3374 = vsel %vm3364, %v3371, %v3373
    %v3375 = vsel %vm3363, %v3353, %v3356
    %v3376 = vsel %vm3366, %v3362, 1326507024
    %v3377 = vsel %vm3365, %v3359, %v3376
    %v3378 = vsel %vm3364, %v3375, %v3377
    %v3379 = vshll.u32 %v3339, 8
    %v3380 = vand.u32 %v3379, 65535
    %v3381 = vshrl.u32 %v3379, 16
    %v3382 = vand.u32 %v3378, 65535
    %v3383 = vshrl.u32 %v3378, 16
    %v3384 = vmul.u32 %v3380, %v3382
    %v3385 = vmul.u32 %v3380, %v3383
    %v3386 = vmul.u32 %v3381, %v3382
    %v3387 = vmul.u32 %v3381, %v3383
    %v3388 = vshll.u32 %v3385, 16
    %v3389 = vshrl.u32 %v3385, 16
    %v3390 = vshll.u32 %v3386, 16
    %v3391 = vshrl.u32 %v3386, 16
    %vm3392 = vc.u32 %v3384, %v3388
    %v3393 = vsel %vm3392, 1, 0
    %v3394 = vadd.s32 %v3384, %v3388
    %v3395 = vadd.s32 %v3387, %v3393
    %vm3396 = vc.u32 %v3394, %v3390
    %v3397 = vsel %vm3396, 1, 0
    %v3398 = vadd.s32 %v3394, %v3390
    %v3399 = vadd.s32 %v3395, %v3397
    %v3400 = vadd.s32 %v3399, %v3389
    %v3401 = vadd.s32 %v3400, %v3391
    %v3402 = vand.u32 %v3379, 65535
    %v3403 = vshrl.u32 %v3379, 16
    %v3404 = vand.u32 %v3374, 65535
    %v3405 = vshrl.u32 %v3374, 16
    %v3406 = vmul.u32 %v3402, %v3404
    %v3407 = vmul.u32 %v3402, %v3405
    %v3408 = vmul.u32 %v3403, %v3404
    %v3409 = vmul.u32 %v3403, %v3405
    %v3410 = vshll.u32 %v3407, 16
    %v3411 = vshrl.u32 %v3407, 16
    %v3412 = vshll.u32 %v3408, 16
    %v3413 = vshrl.u32 %v3408, 16
    %vm3414 = vc.u32 %v3406, %v3410
    %v3415 = vsel %vm3414, 1, 0
    %v3416 = vadd.s32 %v3406, %v3410
    %v3417 = vadd.s32 %v3409, %v3415
    %vm3418 = vc.u32 %v3416, %v3412
    %v3419 = vsel %vm3418, 1, 0
    %v3420 = vadd.s32 %v3416, %v3412
    %v3421 = vadd.s32 %v3417, %v3419
    %v3422 = vadd.s32 %v3421, %v3411
    %v3423 = vadd.s32 %v3422, %v3413
    %v3424 = vmul.u32 %v3379, %v3370
    %v3425 = vadd.s32 %v3401, %v3420
    %vm3426 = vc.u32 %v3401, %v3420
    %v3427 = vadd.s32 %v3423, 1
    %v3428 = vsel %vm3426, %v3427, %v3423
    %v3429 = vadd.s32 %v3424, %v3428
    %v3430 = vadd.s32 %v3429, 536870912
    %v3431 = vshrl.u32 %v3430, 30
    %v3432 = vshll.u32 %v3431, 30
    %v3433 = vsub.s32 %v3429, %v3432
    %vm3434 = vcmp.lt.s32.totalorder %v3433, 0
    %v3435 = vsub.s32 0, %v3433
    %v3436 = vsel %vm3434, %v3435, %v3433
    %v3437 = vclz %v3436
    %v3438 = vsub.s32 %v3437, 2
    %vm3439 = vcmp.gt.s32.totalorder 0, %v3438
    %v3440 = vsel %vm3439, 0, %v3438
    %v3441 = vsub.s32 32, %v3440
    %v3442 = vshll.u32 %v3433, %v3440
    %v3443 = vshrl.u32 %v3425, %v3441
    %v3444 = vor.u32 %v3442, %v3443
    %v3445 = vsub.s32 4294967266, %v3440
    %v3446 = vadd.s32 %v3445, 127
    %v3447 = vshll.u32 %v3446, 23
    %v3448 = vor.u32 4788187, %v3447
    %v3449 = vand.u32 2147483647, %v3448
    %v3451 = vcvt.s32.f32 %v3444
    %v3452 = vmul.f32 %v3451, %v3449
    %v3453 = vxor.u32 %v3452, 2147483648
    %v3454 = vsel %vm3333, %v3453, %v3452
    %v3455 = vsub.s32 4, %v3431
    %v3456 = vsel %vm3333, %v3455, %v3431
    %v3457 = vsel %vm3332, %v2707, %v3454
    %v3458 = vsel %vm3332, 0, %v3456
    %v3459 = vmul.f32 %v3457, %v3457
    %v3460 = vmul.f32 %v3459, -0.001358992
    %v3461 = vadd.f32 %v3460, 0.041655596
    %v3462 = vmul.f32 %v3459, %v3461
    %v3463 = vadd.f32 %v3462, -0.4999988
    %v3464 = vmul.f32 %v3459, %v3463
    %v3465 = vadd.f32 1.0, %v3464
    %v3466 = vmul.f32 %v3457, %v3457
    %v3467 = vmul.f32 %v3466, -0.00019511016
    %v3468 = vadd.f32 %v3467, 0.008332121
    %v3469 = vmul.f32 %v3466, %v3468
    %v3470 = vadd.f32 %v3469, -0.16666654
    %v3471 = vmul.f32 %v3466, %v3470
    %v3472 = vadd.f32 %v3471, 1.0
    %v3473 = vmul.f32 %v3472, %v3457
    %vm3474 = vweird.f32 %v2707
    %v3475 = vadd.s32 %v3458, 3
    %v3476 = vand.u32 %v3475, 3
    %vm3477 = vcmp.lt.s32.totalorder %v3476, 2
    %vm3478 = vcmp.eq.s32.totalorder %v3476, 0
    %v3479 = vxor.u32 %v3473, 2147483648
    %v3480 = vsel %vm3478, %v3465, %v3479
    %vm3481 = vcmp.eq.s32.totalorder %v3476, 2
    %v3482 = vxor.u32 %v3465, 2147483648
    %v3483 = vsel %vm3481, %v3482, %v3473
    %v3484 = vsel %vm3477, %v3480, %v3483
    %v3485 = vsel %vm3474, nan, %v3484
    %v3486 = vand.u32 2147483647, %v2708
    %vm3487 = vcmp.le.f32.partialorder %v3486, 0.7853982
    %vm3488 = vcmp.lt.s32.totalorder %v2708, 0
    %v3489 = vand.u32 %v2708, 2139095040
    %v3490 = vshrl.u32 %v3489, 23
    %v3491 = vsub.s32 %v3490, 127
    %v3492 = vand.u32 2147483647, %v2708
    %v3493 = vand.u32 %v3492, 8388607
    %v3494 = vor.u32 %v3493, 8388608
    %v3495 = vsub.s32 0, %v3494
    %v3496 = vadd.s32 %v3491, 1
    %vm3497 = vcmp.gt.s32.totalorder %v3496, 0
    %v3498 = vsel %vm3497, %v3496, 0
    %v3499 = vshrl.u32 %v3498, 5
    %v3500 = vand.u32 %v3498, 31
    %v3501 = vsub.s32 32, %v3500
    %v3502 = vshrl.u32 683565275, %v3501
    %v3503 = vshll.u32 683565275, %v3500
    %v3504 = vshrl.u32 2475754826, %v3501
    %v3505 = vor.u32 %v3503, %v3504
    %v3506 = vshll.u32 2475754826, %v3500
    %v3507 = vshrl.u32 2131351028, %v3501
    %v3508 = vor.u32 %v3506, %v3507
    %v3509 = vshll.u32 2131351028, %v3500
    %v3510 = vshrl.u32 2102212464, %v3501
    %v3511 = vor.u32 %v3509, %v3510
    %v3512 = vshll.u32 2102212464, %v3500
    %v3513 = vshrl.u32 920167782, %v3501
    %v3514 = vor.u32 %v3512, %v3513
    %v3515 = vshll.u32 920167782, %v3500
    %v3516 = vshrl.u32 1326507024, %v3501
    %v3517 = vor.u32 %v3515, %v3516
    %vm3518 = vcmp.lt.s32.totalorder %v3499, 1
    %vm3519 = vcmp.lt.s32.totalorder %v3499, 2
    %vm3520 = vcmp.lt.s32.totalorder %v3499, 3
    %vm3521 = vcmp.lt.s32.totalorder %v3499, 4
    %v3522 = vsel %vm3518, %v3502, %v3505
    %v3523 = vsel %vm3521, %v3511, 2102212464
    %v3524 = vsel %vm3520, %v3508, %v3523
    %v3525 = vsel %vm3519, %v3522, %v3524
    %v3526 = vsel %vm3518, %v3505, %v3508
    %v3527 = vsel %vm3521, %v3514, 920167782
    %v3528 = vsel %vm3520, %v3511, %v3527
    %v3529 = vsel %vm3519, %v3526, %v3528
    %v3530 = vsel %vm3518, %v3508, %v3511
    %v3531 = vsel %vm3521, %v3517, 1326507024
    %v3532 = vsel %vm3520, %v3514, %v3531
    %v3533 = vsel %vm3519, %v3530, %v3532
    %v3534 = vshll.u32 %v3494, 8
    %v3535 = vand.u32 %v3534, 65535
    %v3536 = vshrl.u32 %v3534, 16
    %v3537 = vand.u32 %v3533, 65535
    %v3538 = vshrl.u32 %v3533, 16
    %v3539 = vmul.u32 %v3535, %v3537
    %v3540 = vmul.u32 %v3535, %v3538
    %v3541 = vmul.u32 %v3536, %v3537
    %v3542 = vmul.u32 %v3536, %v3538
    %v3543 = vshll.u32 %v3540, 16
    %v3544 = vshrl.u32 %v3540, 16
    %v3545 = vshll.u32 %v3541, 16
    %v3546 = vshrl.u32 %v3541, 16
    %vm3547 = vc.u32 %v3539, %v3543
    %v3548 = vsel %vm3547, 1, 0
    %v3549 = vadd.s32 %v3539, %v3543
    %v3550 = vadd.s32 %v3542, %v3548
    %vm3551 = vc.u32 %v3549, %v3545
    %v3552 = vsel %vm3551, 1, 0
    %v3553 = vadd.s32 %v3549, %v3545
    %v3554 = vadd.s32 %v3550, %v3552
    %v3555 = vadd.s32 %v3554, %v3544
    %v3556 = vadd.s32 %v3555, %v3546
    %v3557 = vand.u32 %v3534, 65535
    %v3558 = vshrl.u32 %v3534, 16
    %v3559 = vand.u32 %v3529, 65535
    %v3560 = vshrl.u32 %v3529, 16
    %v3561 = vmul.u32 %v3557, %v3559
    %v3562 = vmul.u32 %v3557, %v3560
    %v3563 = vmul.u32 %v3558, %v3559
    %v3564 = vmul.u32 %v3558, %v3560
    %v3565 = vshll.u32 %v3562, 16
    %v3566 = vshrl.u32 %v3562, 16
    %v3567 = vshll.u32 %v3563, 16
    %v3568 = vshrl.u32 %v3563, 16
    %vm3569 = vc.u32 %v3561, %v3565
    %v3570 = vsel %vm3569, 1, 0
    %v3571 = vadd.s32 %v3561, %v3565
    %v3572 = vadd.s32 %v3564, %v3570
    %vm3573 = vc.u32 %v3571, %v3567
    %v3574 = vsel %vm3573, 1, 0
    %v3575 = vadd.s32 %v3571, %v3567
    %v3576 = vadd.s32 %v3572, %v3574
    %v3577 = vadd.s32 %v3576, %v3566
    %v3578 = vadd.s32 %v3577, %v3568
    %v3579 = vmul.u32 %v3534, %v3525
    %v3580 = vadd.s32 %v3556, %v3575
    %vm3581 = vc.u32 %v3556, %v3575
    %v3582 = vadd.s32 %v3578, 1
    %v3583 = vsel %vm3581, %v3582, %v3578
    %v3584 = vadd.s32 %v3579, %v3583
    %v3585 = vadd.s32 %v3584, 536870912
    %v3586 = vshrl.u32 %v3585, 30
    %v3587 = vshll.u32 %v3586, 30
    %v3588 = vsub.s32 %v3584, %v3587
    %vm3589 = vcmp.lt.s32.totalorder %v3588, 0
    %v3590 = vsub.s32 0, %v3588
    %v3591 = vsel %vm3589, %v3590, %v3588
    %v3592 = vclz %v3591
    %v3593 = vsub.s32 %v3592, 2
    %vm3594 = vcmp.gt.s32.totalorder 0, %v3593
    %v3595 = vsel %vm3594, 0, %v3593
    %v3596 = vsub.s32 32, %v3595
    %v3597 = vshll.u32 %v3588, %v3595
    %v3598 = vshrl.u32 %v3580, %v3596
    %v3599 = vor.u32 %v3597, %v3598
    %v3600 = vsub.s32 4294967266, %v3595
    %v3601 = vadd.s32 %v3600, 127
    %v3602 = vshll.u32 %v3601, 23
    %v3603 = vor.u32 4788187, %v3602
    %v3604 = vand.u32 2147483647, %v3603
    %v3606 = vcvt.s32.f32 %v3599
    %v3607 = vmul.f32 %v3606, %v3604
    %v3608 = vxor.u32 %v3607, 2147483648
    %v3609 = vsel %vm3488, %v3608, %v3607
    %v3610 = vsub.s32 4, %v3586
    %v3611 = vsel %vm3488, %v3610, %v3586
    %v3612 = vsel %vm3487, %v2708, %v3609
    %v3613 = vsel %vm3487, 0, %v3611
    %v3614 = vmul.f32 %v3612, %v3612
    %v3615 = vmul.f32 %v3614, -0.001358992
    %v3616 = vadd.f32 %v3615, 0.041655596
    %v3617 = vmul.f32 %v3614, %v3616
    %v3618 = vadd.f32 %v3617, -0.4999988
    %v3619 = vmul.f32 %v3614, %v3618
    %v3620 = vadd.f32 1.0, %v3619
    %v3621 = vmul.f32 %v3612, %v3612
    %v3622 = vmul.f32 %v3621, -0.00019511016
    %v3623 = vadd.f32 %v3622, 0.008332121
    %v3624 = vmul.f32 %v3621, %v3623
    %v3625 = vadd.f32 %v3624, -0.16666654
    %v3626 = vmul.f32 %v3621, %v3625
    %v3627 = vadd.f32 %v3626, 1.0
    %v3628 = vmul.f32 %v3627, %v3612
    %vm3629 = vweird.f32 %v2708
    %v3630 = vadd.s32 %v3613, 3
    %v3631 = vand.u32 %v3630, 3
    %vm3632 = vcmp.lt.s32.totalorder %v3631, 2
    %vm3633 = vcmp.eq.s32.totalorder %v3631, 0
    %v3634 = vxor.u32 %v3628, 2147483648
    %v3635 = vsel %vm3633, %v3620, %v3634
    %vm3636 = vcmp.eq.s32.totalorder %v3631, 2
    %v3637 = vxor.u32 %v3620, 2147483648
    %v3638 = vsel %vm3636, %v3637, %v3628
    %v3639 = vsel %vm3632, %v3635, %v3638
    %v3640 = vsel %vm3629, nan, %v3639
    %v3641 = vand.u32 2147483647, %v2709
    %vm3642 = vcmp.le.f32.partialorder %v3641, 0.7853982
    %vm3643 = vcmp.lt.s32.totalorder %v2709, 0
    %v3644 = vand.u32 %v2709, 2139095040
    %v3645 = vshrl.u32 %v3644, 23
    %v3646 = vsub.s32 %v3645, 127
    %v3647 = vand.u32 2147483647, %v2709
    %v3648 = vand.u32 %v3647, 8388607
    %v3649 = vor.u32 %v3648, 8388608
    %v3650 = vsub.s32 0, %v3649
    %v3651 = vadd.s32 %v3646, 1
    %vm3652 = vcmp.gt.s32.totalorder %v3651, 0
    %v3653 = vsel %vm3652, %v3651, 0
    %v3654 = vshrl.u32 %v3653, 5
    %v3655 = vand.u32 %v3653, 31
    %v3656 = vsub.s32 32, %v3655
    %v3657 = vshrl.u32 683565275, %v3656
    %v3658 = vshll.u32 683565275, %v3655
    %v3659 = vshrl.u32 2475754826, %v3656
    %v3660 = vor.u32 %v3658, %v3659
    %v3661 = vshll.u32 2475754826, %v3655
    %v3662 = vshrl.u32 2131351028, %v3656
    %v3663 = vor.u32 %v3661, %v3662
    %v3664 = vshll.u32 2131351028, %v3655
    %v3665 = vshrl.u32 2102212464, %v3656
    %v3666 = vor.u32 %v3664, %v3665
    %v3667 = vshll.u32 2102212464, %v3655
    %v3668 = vshrl.u32 920167782, %v3656
    %v3669 = vor.u32 %v3667, %v3668
    %v3670 = vshll.u32 920167782, %v3655
    %v3671 = vshrl.u32 1326507024, %v3656
    %v3672 = vor.u32 %v3670, %v3671
    %vm3673 = vcmp.lt.s32.totalorder %v3654, 1
    %vm3674 = vcmp.lt.s32.totalorder %v3654, 2
    %vm3675 = vcmp.lt.s32.totalorder %v3654, 3
    %vm3676 = vcmp.lt.s32.totalorder %v3654, 4
    %v3677 = vsel %vm3673, %v3657, %v3660
    %v3678 = vsel %vm3676, %v3666, 2102212464
    %v3679 = vsel %vm3675, %v3663, %v3678
    %v3680 = vsel %vm3674, %v3677, %v3679
    %v3681 = vsel %vm3673, %v3660, %v3663
    %v3682 = vsel %vm3676, %v3669, 920167782
    %v3683 = vsel %vm3675, %v3666, %v3682
    %v3684 = vsel %vm3674, %v3681, %v3683
    %v3685 = vsel %vm3673, %v3663, %v3666
    %v3686 = vsel %vm3676, %v3672, 1326507024
    %v3687 = vsel %vm3675, %v3669, %v3686
    %v3688 = vsel %vm3674, %v3685, %v3687
    %v3689 = vshll.u32 %v3649, 8
    %v3690 = vand.u32 %v3689, 65535
    %v3691 = vshrl.u32 %v3689, 16
    %v3692 = vand.u32 %v3688, 65535
    %v3693 = vshrl.u32 %v3688, 16
    %v3694 = vmul.u32 %v3690, %v3692
    %v3695 = vmul.u32 %v3690, %v3693
    %v3696 = vmul.u32 %v3691, %v3692
    %v3697 = vmul.u32 %v3691, %v3693
    %v3698 = vshll.u32 %v3695, 16
    %v3699 = vshrl.u32 %v3695, 16
    %v3700 = vshll.u32 %v3696, 16
    %v3701 = vshrl.u32 %v3696, 16
    %vm3702 = vc.u32 %v3694, %v3698
    %v3703 = vsel %vm3702, 1, 0
    %v3704 = vadd.s32 %v3694, %v3698
    %v3705 = vadd.s32 %v3697, %v3703
    %vm3706 = vc.u32 %v3704, %v3700
    %v3707 = vsel %vm3706, 1, 0
    %v3708 = vadd.s32 %v3704, %v3700
    %v3709 = vadd.s32 %v3705, %v3707
    %v3710 = vadd.s32 %v3709, %v3699
    %v3711 = vadd.s32 %v3710, %v3701
    %v3712 = vand.u32 %v3689, 65535
    %v3713 = vshrl.u32 %v3689, 16
    %v3714 = vand.u32 %v3684, 65535
    %v3715 = vshrl.u32 %v3684, 16
    %v3716 = vmul.u32 %v3712, %v3714
    %v3717 = vmul.u32 %v3712, %v3715
    %v3718 = vmul.u32 %v3713, %v3714
    %v3719 = vmul.u32 %v3713, %v3715
    %v3720 = vshll.u32 %v3717, 16
    %v3721 = vshrl.u32 %v3717, 16
    %v3722 = vshll.u32 %v3718, 16
    %v3723 = vshrl.u32 %v3718, 16
    %vm3724 = vc.u32 %v3716, %v3720
    %v3725 = vsel %vm3724, 1, 0
    %v3726 = vadd.s32 %v3716, %v3720
    %v3727 = vadd.s32 %v3719, %v3725
    %vm3728 = vc.u32 %v3726, %v3722
    %v3729 = vsel %vm3728, 1, 0
    %v3730 = vadd.s32 %v3726, %v3722
    %v3731 = vadd.s32 %v3727, %v3729
    %v3732 = vadd.s32 %v3731, %v3721
    %v3733 = vadd.s32 %v3732, %v3723
    %v3734 = vmul.u32 %v3689, %v3680
    %v3735 = vadd.s32 %v3711, %v3730
    %vm3736 = vc.u32 %v3711, %v3730
    %v3737 = vadd.s32 %v3733, 1
    %v3738 = vsel %vm3736, %v3737, %v3733
    %v3739 = vadd.s32 %v3734, %v3738
    %v3740 = vadd.s32 %v3739, 536870912
    %v3741 = vshrl.u32 %v3740, 30
    %v3742 = vshll.u32 %v3741, 30
    %v3743 = vsub.s32 %v3739, %v3742
    %vm3744 = vcmp.lt.s32.totalorder %v3743, 0
    %v3745 = vsub.s32 0, %v3743
    %v3746 = vsel %vm3744, %v3745, %v3743
    %v3747 = vclz %v3746
    %v3748 = vsub.s32 %v3747, 2
    %vm3749 = vcmp.gt.s32.totalorder 0, %v3748
    %v3750 = vsel %vm3749, 0, %v3748
    %v3751 = vsub.s32 32, %v3750
    %v3752 = vshll.u32 %v3743, %v3750
    %v3753 = vshrl.u32 %v3735, %v3751
    %v3754 = vor.u32 %v3752, %v3753
    %v3755 = vsub.s32 4294967266, %v3750
    %v3756 = vadd.s32 %v3755, 127
    %v3757 = vshll.u32 %v3756, 23
    %v3758 = vor.u32 4788187, %v3757
    %v3759 = vand.u32 2147483647, %v3758
    %v3761 = vcvt.s32.f32 %v3754
    %v3762 = vmul.f32 %v3761, %v3759
    %v3763 = vxor.u32 %v3762, 2147483648
    %v3764 = vsel %vm3643, %v3763, %v3762
    %v3765 = vsub.s32 4, %v3741
    %v3766 = vsel %vm3643, %v3765, %v3741
    %v3767 = vsel %vm3642, %v2709, %v3764
    %v3768 = vsel %vm3642, 0, %v3766
    %v3769 = vmul.f32 %v3767, %v3767
    %v3770 = vmul.f32 %v3769, -0.001358992
    %v3771 = vadd.f32 %v3770, 0.041655596
    %v3772 = vmul.f32 %v3769, %v3771
    %v3773 = vadd.f32 %v3772, -0.4999988
    %v3774 = vmul.f32 %v3769, %v3773
    %v3775 = vadd.f32 1.0, %v3774
    %v3776 = vmul.f32 %v3767, %v3767
    %v3777 = vmul.f32 %v3776, -0.00019511016
    %v3778 = vadd.f32 %v3777, 0.008332121
    %v3779 = vmul.f32 %v3776, %v3778
    %v3780 = vadd.f32 %v3779, -0.16666654
    %v3781 = vmul.f32 %v3776, %v3780
    %v3782 = vadd.f32 %v3781, 1.0
    %v3783 = vmul.f32 %v3782, %v3767
    %vm3784 = vweird.f32 %v2709
    %v3785 = vadd.s32 %v3768, 3
    %v3786 = vand.u32 %v3785, 3
    %vm3787 = vcmp.lt.s32.totalorder %v3786, 2
    %vm3788 = vcmp.eq.s32.totalorder %v3786, 0
    %v3789 = vxor.u32 %v3783, 2147483648
    %v3790 = vsel %vm3788, %v3775, %v3789
    %vm3791 = vcmp.eq.s32.totalorder %v3786, 2
    %v3792 = vxor.u32 %v3775, 2147483648
    %v3793 = vsel %vm3791, %v3792, %v3783
    %v3794 = vsel %vm3787, %v3790, %v3793
    %v3795 = vsel %vm3784, nan, %v3794
    %v3796 = vand.u32 2147483647, %v2710
    %vm3797 = vcmp.le.f32.partialorder %v3796, 0.7853982
    %vm3798 = vcmp.lt.s32.totalorder %v2710, 0
    %v3799 = vand.u32 %v2710, 2139095040
    %v3800 = vshrl.u32 %v3799, 23
    %v3801 = vsub.s32 %v3800, 127
    %v3802 = vand.u32 2147483647, %v2710
    %v3803 = vand.u32 %v3802, 8388607
    %v3804 = vor.u32 %v3803, 8388608
    %v3805 = vsub.s32 0, %v3804
    %v3806 = vadd.s32 %v3801, 1
    %vm3807 = vcmp.gt.s32.totalorder %v3806, 0
    %v3808 = vsel %vm3807, %v3806, 0
    %v3809 = vshrl.u32 %v3808, 5
    %v3810 = vand.u32 %v3808, 31
    %v3811 = vsub.s32 32, %v3810
    %v3812 = vshrl.u32 683565275, %v3811
    %v3813 = vshll.u32 683565275, %v3810
    %v3814 = vshrl.u32 2475754826, %v3811
    %v3815 = vor.u32 %v3813, %v3814
    %v3816 = vshll.u32 2475754826, %v3810
    %v3817 = vshrl.u32 2131351028, %v3811
    %v3818 = vor.u32 %v3816, %v3817
    %v3819 = vshll.u32 2131351028, %v3810
    %v3820 = vshrl.u32 2102212464, %v3811
    %v3821 = vor.u32 %v3819, %v3820
    %v3822 = vshll.u32 2102212464, %v3810
    %v3823 = vshrl.u32 920167782, %v3811
    %v3824 = vor.u32 %v3822, %v3823
    %v3825 = vshll.u32 920167782, %v3810
    %v3826 = vshrl.u32 1326507024, %v3811
    %v3827 = vor.u32 %v3825, %v3826
    %vm3828 = vcmp.lt.s32.totalorder %v3809, 1
    %vm3829 = vcmp.lt.s32.totalorder %v3809, 2
    %vm3830 = vcmp.lt.s32.totalorder %v3809, 3
    %vm3831 = vcmp.lt.s32.totalorder %v3809, 4
    %v3832 = vsel %vm3828, %v3812, %v3815
    %v3833 = vsel %vm3831, %v3821, 2102212464
    %v3834 = vsel %vm3830, %v3818, %v3833
    %v3835 = vsel %vm3829, %v3832, %v3834
    %v3836 = vsel %vm3828, %v3815, %v3818
    %v3837 = vsel %vm3831, %v3824, 920167782
    %v3838 = vsel %vm3830, %v3821, %v3837
    %v3839 = vsel %vm3829, %v3836, %v3838
    %v3840 = vsel %vm3828, %v3818, %v3821
    %v3841 = vsel %vm3831, %v3827, 1326507024
    %v3842 = vsel %vm3830, %v3824, %v3841
    %v3843 = vsel %vm3829, %v3840, %v3842
    %v3844 = vshll.u32 %v3804, 8
    %v3845 = vand.u32 %v3844, 65535
    %v3846 = vshrl.u32 %v3844, 16
    %v3847 = vand.u32 %v3843, 65535
    %v3848 = vshrl.u32 %v3843, 16
    %v3849 = vmul.u32 %v3845, %v3847
    %v3850 = vmul.u32 %v3845, %v3848
    %v3851 = vmul.u32 %v3846, %v3847
    %v3852 = vmul.u32 %v3846, %v3848
    %v3853 = vshll.u32 %v3850, 16
    %v3854 = vshrl.u32 %v3850, 16
    %v3855 = vshll.u32 %v3851, 16
    %v3856 = vshrl.u32 %v3851, 16
    %vm3857 = vc.u32 %v3849, %v3853
    %v3858 = vsel %vm3857, 1, 0
    %v3859 = vadd.s32 %v3849, %v3853
    %v3860 = vadd.s32 %v3852, %v3858
    %vm3861 = vc.u32 %v3859, %v3855
    %v3862 = vsel %vm3861, 1, 0
    %v3863 = vadd.s32 %v3859, %v3855
    %v3864 = vadd.s32 %v3860, %v3862
    %v3865 = vadd.s32 %v3864, %v3854
    %v3866 = vadd.s32 %v3865, %v3856
    %v3867 = vand.u32 %v3844, 65535
    %v3868 = vshrl.u32 %v3844, 16
    %v3869 = vand.u32 %v3839, 65535
    %v3870 = vshrl.u32 %v3839, 16
    %v3871 = vmul.u32 %v3867, %v3869
    %v3872 = vmul.u32 %v3867, %v3870
    %v3873 = vmul.u32 %v3868, %v3869
    %v3874 = vmul.u32 %v3868, %v3870
    %v3875 = vshll.u32 %v3872, 16
    %v3876 = vshrl.u32 %v3872, 16
    %v3877 = vshll.u32 %v3873, 16
    %v3878 = vshrl.u32 %v3873, 16
    %vm3879 = vc.u32 %v3871, %v3875
    %v3880 = vsel %vm3879, 1, 0
    %v3881 = vadd.s32 %v3871, %v3875
    %v3882 = vadd.s32 %v3874, %v3880
    %vm3883 = vc.u32 %v3881, %v3877
    %v3884 = vsel %vm3883, 1, 0
    %v3885 = vadd.s32 %v3881, %v3877
    %v3886 = vadd.s32 %v3882, %v3884
    %v3887 = vadd.s32 %v3886, %v3876
    %v3888 = vadd.s32 %v3887, %v3878
    %v3889 = vmul.u32 %v3844, %v3835
    %v3890 = vadd.s32 %v3866, %v3885
    %vm3891 = vc.u32 %v3866, %v3885
    %v3892 = vadd.s32 %v3888, 1
    %v3893 = vsel %vm3891, %v3892, %v3888
    %v3894 = vadd.s32 %v3889, %v3893
    %v3895 = vadd.s32 %v3894, 536870912
    %v3896 = vshrl.u32 %v3895, 30
    %v3897 = vshll.u32 %v3896, 30
    %v3898 = vsub.s32 %v3894, %v3897
    %vm3899 = vcmp.lt.s32.totalorder %v3898, 0
    %v3900 = vsub.s32 0, %v3898
    %v3901 = vsel %vm3899, %v3900, %v3898
    %v3902 = vclz %v3901
    %v3903 = vsub.s32 %v3902, 2
    %vm3904 = vcmp.gt.s32.totalorder 0, %v3903
    %v3905 = vsel %vm3904, 0, %v3903
    %v3906 = vsub.s32 32, %v3905
    %v3907 = vshll.u32 %v3898, %v3905
    %v3908 = vshrl.u32 %v3890, %v3906
    %v3909 = vor.u32 %v3907, %v3908
    %v3910 = vsub.s32 4294967266, %v3905
    %v3911 = vadd.s32 %v3910, 127
    %v3912 = vshll.u32 %v3911, 23
    %v3913 = vor.u32 4788187, %v3912
    %v3914 = vand.u32 2147483647, %v3913
    %v3916 = vcvt.s32.f32 %v3909
    %v3917 = vmul.f32 %v3916, %v3914
    %v3918 = vxor.u32 %v3917, 2147483648
    %v3919 = vsel %vm3798, %v3918, %v3917
    %v3920 = vsub.s32 4, %v3896
    %v3921 = vsel %vm3798, %v3920, %v3896
    %v3922 = vsel %vm3797, %v2710, %v3919
    %v3923 = vsel %vm3797, 0, %v3921
    %v3924 = vmul.f32 %v3922, %v3922
    %v3925 = vmul.f32 %v3924, -0.001358992
    %v3926 = vadd.f32 %v3925, 0.041655596
    %v3927 = vmul.f32 %v3924, %v3926
    %v3928 = vadd.f32 %v3927, -0.4999988
    %v3929 = vmul.f32 %v3924, %v3928
    %v3930 = vadd.f32 1.0, %v3929
    %v3931 = vmul.f32 %v3922, %v3922
    %v3932 = vmul.f32 %v3931, -0.00019511016
    %v3933 = vadd.f32 %v3932, 0.008332121
    %v3934 = vmul.f32 %v3931, %v3933
    %v3935 = vadd.f32 %v3934, -0.16666654
    %v3936 = vmul.f32 %v3931, %v3935
    %v3937 = vadd.f32 %v3936, 1.0
    %v3938 = vmul.f32 %v3937, %v3922
    %vm3939 = vweird.f32 %v2710
    %v3940 = vadd.s32 %v3923, 3
    %v3941 = vand.u32 %v3940, 3
    %vm3942 = vcmp.lt.s32.totalorder %v3941, 2
    %vm3943 = vcmp.eq.s32.totalorder %v3941, 0
    %v3944 = vxor.u32 %v3938, 2147483648
    %v3945 = vsel %vm3943, %v3930, %v3944
    %vm3946 = vcmp.eq.s32.totalorder %v3941, 2
    %v3947 = vxor.u32 %v3930, 2147483648
    %v3948 = vsel %vm3946, %v3947, %v3938
    %v3949 = vsel %vm3942, %v3945, %v3948
    %v3950 = vsel %vm3939, nan, %v3949
    %v3951 = vand.u32 2147483647, %v2703
    %vm3952 = vcmp.le.f32.partialorder %v3951, 0.7853982
    %vm3953 = vcmp.lt.s32.totalorder %v2703, 0
    %v3954 = vand.u32 %v2703, 2139095040
    %v3955 = vshrl.u32 %v3954, 23
    %v3956 = vsub.s32 %v3955, 127
    %v3957 = vand.u32 2147483647, %v2703
    %v3958 = vand.u32 %v3957, 8388607
    %v3959 = vor.u32 %v3958, 8388608
    %v3960 = vsub.s32 0, %v3959
    %v3961 = vadd.s32 %v3956, 1
    %vm3962 = vcmp.gt.s32.totalorder %v3961, 0
    %v3963 = vsel %vm3962, %v3961, 0
    %v3964 = vshrl.u32 %v3963, 5
    %v3965 = vand.u32 %v3963, 31
    %v3966 = vsub.s32 32, %v3965
    %v3967 = vshrl.u32 683565275, %v3966
    %v3968 = vshll.u32 683565275, %v3965
    %v3969 = vshrl.u32 2475754826, %v3966
    %v3970 = vor.u32 %v3968, %v3969
    %v3971 = vshll.u32 2475754826, %v3965
    %v3972 = vshrl.u32 2131351028, %v3966
    %v3973 = vor.u32 %v3971, %v3972
    %v3974 = vshll.u32 2131351028, %v3965
    %v3975 = vshrl.u32 2102212464, %v3966
    %v3976 = vor.u32 %v3974, %v3975
    %v3977 = vshll.u32 2102212464, %v3965
    %v3978 = vshrl.u32 920167782, %v3966
    %v3979 = vor.u32 %v3977, %v3978
    %v3980 = vshll.u32 920167782, %v3965
    %v3981 = vshrl.u32 1326507024, %v3966
    %v3982 = vor.u32 %v3980, %v3981
    %vm3983 = vcmp.lt.s32.totalorder %v3964, 1
    %vm3984 = vcmp.lt.s32.totalorder %v3964, 2
    %vm3985 = vcmp.lt.s32.totalorder %v3964, 3
    %vm3986 = vcmp.lt.s32.totalorder %v3964, 4
    %v3987 = vsel %vm3983, %v3967, %v3970
    %v3988 = vsel %vm3986, %v3976, 2102212464
    %v3989 = vsel %vm3985, %v3973, %v3988
    %v3990 = vsel %vm3984, %v3987, %v3989
    %v3991 = vsel %vm3983, %v3970, %v3973
    %v3992 = vsel %vm3986, %v3979, 920167782
    %v3993 = vsel %vm3985, %v3976, %v3992
    %v3994 = vsel %vm3984, %v3991, %v3993
    %v3995 = vsel %vm3983, %v3973, %v3976
    %v3996 = vsel %vm3986, %v3982, 1326507024
    %v3997 = vsel %vm3985, %v3979, %v3996
    %v3998 = vsel %vm3984, %v3995, %v3997
    %v3999 = vshll.u32 %v3959, 8
    %v4000 = vand.u32 %v3999, 65535
    %v4001 = vshrl.u32 %v3999, 16
    %v4002 = vand.u32 %v3998, 65535
    %v4003 = vshrl.u32 %v3998, 16
    %v4004 = vmul.u32 %v4000, %v4002
    %v4005 = vmul.u32 %v4000, %v4003
    %v4006 = vmul.u32 %v4001, %v4002
    %v4007 = vmul.u32 %v4001, %v4003
    %v4008 = vshll.u32 %v4005, 16
    %v4009 = vshrl.u32 %v4005, 16
    %v4010 = vshll.u32 %v4006, 16
    %v4011 = vshrl.u32 %v4006, 16
    %vm4012 = vc.u32 %v4004, %v4008
    %v4013 = vsel %vm4012, 1, 0
    %v4014 = vadd.s32 %v4004, %v4008
    %v4015 = vadd.s32 %v4007, %v4013
    %vm4016 = vc.u32 %v4014, %v4010
    %v4017 = vsel %vm4016, 1, 0
    %v4018 = vadd.s32 %v4014, %v4010
    %v4019 = vadd.s32 %v4015, %v4017
    %v4020 = vadd.s32 %v4019, %v4009
    %v4021 = vadd.s32 %v4020, %v4011
    %v4022 = vand.u32 %v3999, 65535
    %v4023 = vshrl.u32 %v3999, 16
    %v4024 = vand.u32 %v3994, 65535
    %v4025 = vshrl.u32 %v3994, 16
    %v4026 = vmul.u32 %v4022, %v4024
    %v4027 = vmul.u32 %v4022, %v4025
    %v4028 = vmul.u32 %v4023, %v4024
    %v4029 = vmul.u32 %v4023, %v4025
    %v4030 = vshll.u32 %v4027, 16
    %v4031 = vshrl.u32 %v4027, 16
    %v4032 = vshll.u32 %v4028, 16
    %v4033 = vshrl.u32 %v4028, 16
    %vm4034 = vc.u32 %v4026, %v4030
    %v4035 = vsel %vm4034, 1, 0
    %v4036 = vadd.s32 %v4026, %v4030
    %v4037 = vadd.s32 %v4029, %v4035
    %vm4038 = vc.u32 %v4036, %v4032
    %v4039 = vsel %vm4038, 1, 0
    %v4040 = vadd.s32 %v4036, %v4032
    %v4041 = vadd.s32 %v4037, %v4039
    %v4042 = vadd.s32 %v4041, %v4031
    %v4043 = vadd.s32 %v4042, %v4033
    %v4044 = vmul.u32 %v3999, %v3990
    %v4045 = vadd.s32 %v4021, %v4040
    %vm4046 = vc.u32 %v4021, %v4040
    %v4047 = vadd.s32 %v4043, 1
    %v4048 = vsel %vm4046, %v4047, %v4043
    %v4049 = vadd.s32 %v4044, %v4048
    %v4050 = vadd.s32 %v4049, 536870912
    %v4051 = vshrl.u32 %v4050, 30
    %v4052 = vshll.u32 %v4051, 30
    %v4053 = vsub.s32 %v4049, %v4052
    %vm4054 = vcmp.lt.s32.totalorder %v4053, 0
    %v4055 = vsub.s32 0, %v4053
    %v4056 = vsel %vm4054, %v4055, %v4053
    %v4057 = vclz %v4056
    %v4058 = vsub.s32 %v4057, 2
    %vm4059 = vcmp.gt.s32.totalorder 0, %v4058
    %v4060 = vsel %vm4059, 0, %v4058
    %v4061 = vsub.s32 32, %v4060
    %v4062 = vshll.u32 %v4053, %v4060
    %v4063 = vshrl.u32 %v4045, %v4061
    %v4064 = vor.u32 %v4062, %v4063
    %v4065 = vsub.s32 4294967266, %v4060
    %v4066 = vadd.s32 %v4065, 127
    %v4067 = vshll.u32 %v4066, 23
    %v4068 = vor.u32 4788187, %v4067
    %v4069 = vand.u32 2147483647, %v4068
    %v4071 = vcvt.s32.f32 %v4064
    %v4072 = vmul.f32 %v4071, %v4069
    %v4073 = vxor.u32 %v4072, 2147483648
    %v4074 = vsel %vm3953, %v4073, %v4072
    %v4075 = vsub.s32 4, %v4051
    %v4076 = vsel %vm3953, %v4075, %v4051
    %v4077 = vsel %vm3952, %v2703, %v4074
    %v4078 = vsel %vm3952, 0, %v4076
    %v4079 = vmul.f32 %v4077, %v4077
    %v4080 = vmul.f32 %v4079, -0.001358992
    %v4081 = vadd.f32 %v4080, 0.041655596
    %v4082 = vmul.f32 %v4079, %v4081
    %v4083 = vadd.f32 %v4082, -0.4999988
    %v4084 = vmul.f32 %v4079, %v4083
    %v4085 = vadd.f32 1.0, %v4084
    %v4086 = vmul.f32 %v4077, %v4077
    %v4087 = vmul.f32 %v4086, -0.00019511016
    %v4088 = vadd.f32 %v4087, 0.008332121
    %v4089 = vmul.f32 %v4086, %v4088
    %v4090 = vadd.f32 %v4089, -0.16666654
    %v4091 = vmul.f32 %v4086, %v4090
    %v4092 = vadd.f32 %v4091, 1.0
    %v4093 = vmul.f32 %v4092, %v4077
    %vm4094 = vweird.f32 %v2703
    %v4095 = vand.u32 %v4078, 3
    %vm4096 = vcmp.lt.s32.totalorder %v4095, 2
    %vm4097 = vcmp.eq.s32.totalorder %v4095, 0
    %v4098 = vxor.u32 %v4093, 2147483648
    %v4099 = vsel %vm4097, %v4085, %v4098
    %vm4100 = vcmp.eq.s32.totalorder %v4095, 2
    %v4101 = vxor.u32 %v4085, 2147483648
    %v4102 = vsel %vm4100, %v4101, %v4093
    %v4103 = vsel %vm4096, %v4099, %v4102
    %v4104 = vsel %vm4094, nan, %v4103
    %v4105 = vand.u32 2147483647, %v2704
    %vm4106 = vcmp.le.f32.partialorder %v4105, 0.7853982
    %vm4107 = vcmp.lt.s32.totalorder %v2704, 0
    %v4108 = vand.u32 %v2704, 2139095040
    %v4109 = vshrl.u32 %v4108, 23
    %v4110 = vsub.s32 %v4109, 127
    %v4111 = vand.u32 2147483647, %v2704
    %v4112 = vand.u32 %v4111, 8388607
    %v4113 = vor.u32 %v4112, 8388608
    %v4114 = vsub.s32 0, %v4113
    %v4115 = vadd.s32 %v4110, 1
    %vm4116 = vcmp.gt.s32.totalorder %v4115, 0
    %v4117 = vsel %vm4116, %v4115, 0
    %v4118 = vshrl.u32 %v4117, 5
    %v4119 = vand.u32 %v4117, 31
    %v4120 = vsub.s32 32, %v4119
    %v4121 = vshrl.u32 683565275, %v4120
    %v4122 = vshll.u32 683565275, %v4119
    %v4123 = vshrl.u32 2475754826, %v4120
    %v4124 = vor.u32 %v4122, %v4123
    %v4125 = vshll.u32 2475754826, %v4119
    %v4126 = vshrl.u32 2131351028, %v4120
    %v4127 = vor.u32 %v4125, %v4126
    %v4128 = vshll.u32 2131351028, %v4119
    %v4129 = vshrl.u32 2102212464, %v4120
    %v4130 = vor.u32 %v4128, %v4129
    %v4131 = vshll.u32 2102212464, %v4119
    %v4132 = vshrl.u32 920167782, %v4120
    %v4133 = vor.u32 %v4131, %v4132
    %v4134 = vshll.u32 920167782, %v4119
    %v4135 = vshrl.u32 1326507024, %v4120
    %v4136 = vor.u32 %v4134, %v4135
    %vm4137 = vcmp.lt.s32.totalorder %v4118, 1
    %vm4138 = vcmp.lt.s32.totalorder %v4118, 2
    %vm4139 = vcmp.lt.s32.totalorder %v4118, 3
    %vm4140 = vcmp.lt.s32.totalorder %v4118, 4
    %v4141 = vsel %vm4137, %v4121, %v4124
    %v4142 = vsel %vm4140, %v4130, 2102212464
    %v4143 = vsel %vm4139, %v4127, %v4142
    %v4144 = vsel %vm4138, %v4141, %v4143
    %v4145 = vsel %vm4137, %v4124, %v4127
    %v4146 = vsel %vm4140, %v4133, 920167782
    %v4147 = vsel %vm4139, %v4130, %v4146
    %v4148 = vsel %vm4138, %v4145, %v4147
    %v4149 = vsel %vm4137, %v4127, %v4130
    %v4150 = vsel %vm4140, %v4136, 1326507024
    %v4151 = vsel %vm4139, %v4133, %v4150
    %v4152 = vsel %vm4138, %v4149, %v4151
    %v4153 = vshll.u32 %v4113, 8
    %v4154 = vand.u32 %v4153, 65535
    %v4155 = vshrl.u32 %v4153, 16
    %v4156 = vand.u32 %v4152, 65535
    %v4157 = vshrl.u32 %v4152, 16
    %v4158 = vmul.u32 %v4154, %v4156
    %v4159 = vmul.u32 %v4154, %v4157
    %v4160 = vmul.u32 %v4155, %v4156
    %v4161 = vmul.u32 %v4155, %v4157
    %v4162 = vshll.u32 %v4159, 16
    %v4163 = vshrl.u32 %v4159, 16
    %v4164 = vshll.u32 %v4160, 16
    %v4165 = vshrl.u32 %v4160, 16
    %vm4166 = vc.u32 %v4158, %v4162
    %v4167 = vsel %vm4166, 1, 0
    %v4168 = vadd.s32 %v4158, %v4162
    %v4169 = vadd.s32 %v4161, %v4167
    %vm4170 = vc.u32 %v4168, %v4164
    %v4171 = vsel %vm4170, 1, 0
    %v4172 = vadd.s32 %v4168, %v4164
    %v4173 = vadd.s32 %v4169, %v4171
    %v4174 = vadd.s32 %v4173, %v4163
    %v4175 = vadd.s32 %v4174, %v4165
    %v4176 = vand.u32 %v4153, 65535
    %v4177 = vshrl.u32 %v4153, 16
    %v4178 = vand.u32 %v4148, 65535
    %v4179 = vshrl.u32 %v4148, 16
    %v4180 = vmul.u32 %v4176, %v4178
    %v4181 = vmul.u32 %v4176, %v4179
    %v4182 = vmul.u32 %v4177, %v4178
    %v4183 = vmul.u32 %v4177, %v4179
    %v4184 = vshll.u32 %v4181, 16
    %v4185 = vshrl.u32 %v4181, 16
    %v4186 = vshll.u32 %v4182, 16
    %v4187 = vshrl.u32 %v4182, 16
    %vm4188 = vc.u32 %v4180, %v4184
    %v4189 = vsel %vm4188, 1, 0
    %v4190 = vadd.s32 %v4180, %v4184
    %v4191 = vadd.s32 %v4183, %v4189
    %vm4192 = vc.u32 %v4190, %v4186
    %v4193 = vsel %vm4192, 1, 0
    %v4194 = vadd.s32 %v4190, %v4186
    %v4195 = vadd.s32 %v4191, %v4193
    %v4196 = vadd.s32 %v4195, %v4185
    %v4197 = vadd.s32 %v4196, %v4187
    %v4198 = vmul.u32 %v4153, %v4144
    %v4199 = vadd.s32 %v4175, %v4194
    %vm4200 = vc.u32 %v4175, %v4194
    %v4201 = vadd.s32 %v4197, 1
    %v4202 = vsel %vm4200, %v4201, %v4197
    %v4203 = vadd.s32 %v4198, %v4202
    %v4204 = vadd.s32 %v4203, 536870912
    %v4205 = vshrl.u32 %v4204, 30
    %v4206 = vshll.u32 %v4205, 30
    %v4207 = vsub.s32 %v4203, %v4206
    %vm4208 = vcmp.lt.s32.totalorder %v4207, 0
    %v4209 = vsub.s32 0, %v4207
    %v4210 = vsel %vm4208, %v4209, %v4207
    %v4211 = vclz %v4210
    %v4212 = vsub.s32 %v4211, 2
    %vm4213 = vcmp.gt.s32.totalorder 0, %v4212
    %v4214 = vsel %vm4213, 0, %v4212
    %v4215 = vsub.s32 32, %v4214
    %v4216 = vshll.u32 %v4207, %v4214
    %v4217 = vshrl.u32 %v4199, %v4215
    %v4218 = vor.u32 %v4216, %v4217
    %v4219 = vsub.s32 4294967266, %v4214
    %v4220 = vadd.s32 %v4219, 127
    %v4221 = vshll.u32 %v4220, 23
    %v4222 = vor.u32 4788187, %v4221
    %v4223 = vand.u32 2147483647, %v4222
    %v4225 = vcvt.s32.f32 %v4218
    %v4226 = vmul.f32 %v4225, %v4223
    %v4227 = vxor.u32 %v4226, 2147483648
    %v4228 = vsel %vm4107, %v4227, %v4226
    %v4229 = vsub.s32 4, %v4205
    %v4230 = vsel %vm4107, %v4229, %v4205
    %v4231 = vsel %vm4106, %v2704, %v4228
    %v4232 = vsel %vm4106, 0, %v4230
    %v4233 = vmul.f32 %v4231, %v4231
    %v4234 = vmul.f32 %v4233, -0.001358992
    %v4235 = vadd.f32 %v4234, 0.041655596
    %v4236 = vmul.f32 %v4233, %v4235
    %v4237 = vadd.f32 %v4236, -0.4999988
    %v4238 = vmul.f32 %v4233, %v4237
    %v4239 = vadd.f32 1.0, %v4238
    %v4240 = vmul.f32 %v4231, %v4231
    %v4241 = vmul.f32 %v4240, -0.00019511016
    %v4242 = vadd.f32 %v4241, 0.008332121
    %v4243 = vmul.f32 %v4240, %v4242
    %v4244 = vadd.f32 %v4243, -0.16666654
    %v4245 = vmul.f32 %v4240, %v4244
    %v4246 = vadd.f32 %v4245, 1.0
    %v4247 = vmul.f32 %v4246, %v4231
    %vm4248 = vweird.f32 %v2704
    %v4249 = vand.u32 %v4232, 3
    %vm4250 = vcmp.lt.s32.totalorder %v4249, 2
    %vm4251 = vcmp.eq.s32.totalorder %v4249, 0
    %v4252 = vxor.u32 %v4247, 2147483648
    %v4253 = vsel %vm4251, %v4239, %v4252
    %vm4254 = vcmp.eq.s32.totalorder %v4249, 2
    %v4255 = vxor.u32 %v4239, 2147483648
    %v4256 = vsel %vm4254, %v4255, %v4247
    %v4257 = vsel %vm4250, %v4253, %v4256
    %v4258 = vsel %vm4248, nan, %v4257
    %v4259 = vand.u32 2147483647, %v2705
    %vm4260 = vcmp.le.f32.partialorder %v4259, 0.7853982
    %vm4261 = vcmp.lt.s32.totalorder %v2705, 0
    %v4262 = vand.u32 %v2705, 2139095040
    %v4263 = vshrl.u32 %v4262, 23
    %v4264 = vsub.s32 %v4263, 127
    %v4265 = vand.u32 2147483647, %v2705
    %v4266 = vand.u32 %v4265, 8388607
    %v4267 = vor.u32 %v4266, 8388608
    %v4268 = vsub.s32 0, %v4267
    %v4269 = vadd.s32 %v4264, 1
    %vm4270 = vcmp.gt.s32.totalorder %v4269, 0
    %v4271 = vsel %vm4270, %v4269, 0
    %v4272 = vshrl.u32 %v4271, 5
    %v4273 = vand.u32 %v4271, 31
    %v4274 = vsub.s32 32, %v4273
    %v4275 = vshrl.u32 683565275, %v4274
    %v4276 = vshll.u32 683565275, %v4273
    %v4277 = vshrl.u32 2475754826, %v4274
    %v4278 = vor.u32 %v4276, %v4277
    %v4279 = vshll.u32 2475754826, %v4273
    %v4280 = vshrl.u32 2131351028, %v4274
    %v4281 = vor.u32 %v4279, %v4280
    %v4282 = vshll.u32 2131351028, %v4273
    %v4283 = vshrl.u32 2102212464, %v4274
    %v4284 = vor.u32 %v4282, %v4283
    %v4285 = vshll.u32 2102212464, %v4273
    %v4286 = vshrl.u32 920167782, %v4274
    %v4287 = vor.u32 %v4285, %v4286
    %v4288 = vshll.u32 920167782, %v4273
    %v4289 = vshrl.u32 1326507024, %v4274
    %v4290 = vor.u32 %v4288, %v4289
    %vm4291 = vcmp.lt.s32.totalorder %v4272, 1
    %vm4292 = vcmp.lt.s32.totalorder %v4272, 2
    %vm4293 = vcmp.lt.s32.totalorder %v4272, 3
    %vm4294 = vcmp.lt.s32.totalorder %v4272, 4
    %v4295 = vsel %vm4291, %v4275, %v4278
    %v4296 = vsel %vm4294, %v4284, 2102212464
    %v4297 = vsel %vm4293, %v4281, %v4296
    %v4298 = vsel %vm4292, %v4295, %v4297
    %v4299 = vsel %vm4291, %v4278, %v4281
    %v4300 = vsel %vm4294, %v4287, 920167782
    %v4301 = vsel %vm4293, %v4284, %v4300
    %v4302 = vsel %vm4292, %v4299, %v4301
    %v4303 = vsel %vm4291, %v4281, %v4284
    %v4304 = vsel %vm4294, %v4290, 1326507024
    %v4305 = vsel %vm4293, %v4287, %v4304
    %v4306 = vsel %vm4292, %v4303, %v4305
    %v4307 = vshll.u32 %v4267, 8
    %v4308 = vand.u32 %v4307, 65535
    %v4309 = vshrl.u32 %v4307, 16
    %v4310 = vand.u32 %v4306, 65535
    %v4311 = vshrl.u32 %v4306, 16
    %v4312 = vmul.u32 %v4308, %v4310
    %v4313 = vmul.u32 %v4308, %v4311
    %v4314 = vmul.u32 %v4309, %v4310
    %v4315 = vmul.u32 %v4309, %v4311
    %v4316 = vshll.u32 %v4313, 16
    %v4317 = vshrl.u32 %v4313, 16
    %v4318 = vshll.u32 %v4314, 16
    %v4319 = vshrl.u32 %v4314, 16
    %vm4320 = vc.u32 %v4312, %v4316
    %v4321 = vsel %vm4320, 1, 0
    %v4322 = vadd.s32 %v4312, %v4316
    %v4323 = vadd.s32 %v4315, %v4321
    %vm4324 = vc.u32 %v4322, %v4318
    %v4325 = vsel %vm4324, 1, 0
    %v4326 = vadd.s32 %v4322, %v4318
    %v4327 = vadd.s32 %v4323, %v4325
    %v4328 = vadd.s32 %v4327, %v4317
    %v4329 = vadd.s32 %v4328, %v4319
    %v4330 = vand.u32 %v4307, 65535
    %v4331 = vshrl.u32 %v4307, 16
    %v4332 = vand.u32 %v4302, 65535
    %v4333 = vshrl.u32 %v4302, 16
    %v4334 = vmul.u32 %v4330, %v4332
    %v4335 = vmul.u32 %v4330, %v4333
    %v4336 = vmul.u32 %v4331, %v4332
    %v4337 = vmul.u32 %v4331, %v4333
    %v4338 = vshll.u32 %v4335, 16
    %v4339 = vshrl.u32 %v4335, 16
    %v4340 = vshll.u32 %v4336, 16
    %v4341 = vshrl.u32 %v4336, 16
    %vm4342 = vc.u32 %v4334, %v4338
    %v4343 = vsel %vm4342, 1, 0
    %v4344 = vadd.s32 %v4334, %v4338
    %v4345 = vadd.s32 %v4337, %v4343
    %vm4346 = vc.u32 %v4344, %v4340
    %v4347 = vsel %vm4346, 1, 0
    %v4348 = vadd.s32 %v4344, %v4340
    %v4349 = vadd.s32 %v4345, %v4347
    %v4350 = vadd.s32 %v4349, %v4339
    %v4351 = vadd.s32 %v4350, %v4341
    %v4352 = vmul.u32 %v4307, %v4298
    %v4353 = vadd.s32 %v4329, %v4348
    %vm4354 = vc.u32 %v4329, %v4348
    %v4355 = vadd.s32 %v4351, 1
    %v4356 = vsel %vm4354, %v4355, %v4351
    %v4357 = vadd.s32 %v4352, %v4356
    %v4358 = vadd.s32 %v4357, 536870912
    %v4359 = vshrl.u32 %v4358, 30
    %v4360 = vshll.u32 %v4359, 30
    %v4361 = vsub.s32 %v4357, %v4360
    %vm4362 = vcmp.lt.s32.totalorder %v4361, 0
    %v4363 = vsub.s32 0, %v4361
    %v4364 = vsel %vm4362, %v4363, %v4361
    %v4365 = vclz %v4364
    %v4366 = vsub.s32 %v4365, 2
    %vm4367 = vcmp.gt.s32.totalorder 0, %v4366
    %v4368 = vsel %vm4367, 0, %v4366
    %v4369 = vsub.s32 32, %v4368
    %v4370 = vshll.u32 %v4361, %v4368
    %v4371 = vshrl.u32 %v4353, %v4369
    %v4372 = vor.u32 %v4370, %v4371
    %v4373 = vsub.s32 4294967266, %v4368
    %v4374 = vadd.s32 %v4373, 127
    %v4375 = vshll.u32 %v4374, 23
    %v4376 = vor.u32 4788187, %v4375
    %v4377 = vand.u32 2147483647, %v4376
    %v4379 = vcvt.s32.f32 %v4372
    %v4380 = vmul.f32 %v4379, %v4377
    %v4381 = vxor.u32 %v4380, 2147483648
    %v4382 = vsel %vm4261, %v4381, %v4380
    %v4383 = vsub.s32 4, %v4359
    %v4384 = vsel %vm4261, %v4383, %v4359
    %v4385 = vsel %vm4260, %v2705, %v4382
    %v4386 = vsel %vm4260, 0, %v4384
    %v4387 = vmul.f32 %v4385, %v4385
    %v4388 = vmul.f32 %v4387, -0.001358992
    %v4389 = vadd.f32 %v4388, 0.041655596
    %v4390 = vmul.f32 %v4387, %v4389
    %v4391 = vadd.f32 %v4390, -0.4999988
    %v4392 = vmul.f32 %v4387, %v4391
    %v4393 = vadd.f32 1.0, %v4392
    %v4394 = vmul.f32 %v4385, %v4385
    %v4395 = vmul.f32 %v4394, -0.00019511016
    %v4396 = vadd.f32 %v4395, 0.008332121
    %v4397 = vmul.f32 %v4394, %v4396
    %v4398 = vadd.f32 %v4397, -0.16666654
    %v4399 = vmul.f32 %v4394, %v4398
    %v4400 = vadd.f32 %v4399, 1.0
    %v4401 = vmul.f32 %v4400, %v4385
    %vm4402 = vweird.f32 %v2705
    %v4403 = vand.u32 %v4386, 3
    %vm4404 = vcmp.lt.s32.totalorder %v4403, 2
    %vm4405 = vcmp.eq.s32.totalorder %v4403, 0
    %v4406 = vxor.u32 %v4401, 2147483648
    %v4407 = vsel %vm4405, %v4393, %v4406
    %vm4408 = vcmp.eq.s32.totalorder %v4403, 2
    %v4409 = vxor.u32 %v4393, 2147483648
    %v4410 = vsel %vm4408, %v4409, %v4401
    %v4411 = vsel %vm4404, %v4407, %v4410
    %v4412 = vsel %vm4402, nan, %v4411
    %v4413 = vand.u32 2147483647, %v2706
    %vm4414 = vcmp.le.f32.partialorder %v4413, 0.7853982
    %vm4415 = vcmp.lt.s32.totalorder %v2706, 0
    %v4416 = vand.u32 %v2706, 2139095040
    %v4417 = vshrl.u32 %v4416, 23
    %v4418 = vsub.s32 %v4417, 127
    %v4419 = vand.u32 2147483647, %v2706
    %v4420 = vand.u32 %v4419, 8388607
    %v4421 = vor.u32 %v4420, 8388608
    %v4422 = vsub.s32 0, %v4421
    %v4423 = vadd.s32 %v4418, 1
    %vm4424 = vcmp.gt.s32.totalorder %v4423, 0
    %v4425 = vsel %vm4424, %v4423, 0
    %v4426 = vshrl.u32 %v4425, 5
    %v4427 = vand.u32 %v4425, 31
    %v4428 = vsub.s32 32, %v4427
    %v4429 = vshrl.u32 683565275, %v4428
    %v4430 = vshll.u32 683565275, %v4427
    %v4431 = vshrl.u32 2475754826, %v4428
    %v4432 = vor.u32 %v4430, %v4431
    %v4433 = vshll.u32 2475754826, %v4427
    %v4434 = vshrl.u32 2131351028, %v4428
    %v4435 = vor.u32 %v4433, %v4434
    %v4436 = vshll.u32 2131351028, %v4427
    %v4437 = vshrl.u32 2102212464, %v4428
    %v4438 = vor.u32 %v4436, %v4437
    %v4439 = vshll.u32 2102212464, %v4427
    %v4440 = vshrl.u32 920167782, %v4428
    %v4441 = vor.u32 %v4439, %v4440
    %v4442 = vshll.u32 920167782, %v4427
    %v4443 = vshrl.u32 1326507024, %v4428
    %v4444 = vor.u32 %v4442, %v4443
    %vm4445 = vcmp.lt.s32.totalorder %v4426, 1
    %vm4446 = vcmp.lt.s32.totalorder %v4426, 2
    %vm4447 = vcmp.lt.s32.totalorder %v4426, 3
    %vm4448 = vcmp.lt.s32.totalorder %v4426, 4
    %v4449 = vsel %vm4445, %v4429, %v4432
    %v4450 = vsel %vm4448, %v4438, 2102212464
    %v4451 = vsel %vm4447, %v4435, %v4450
    %v4452 = vsel %vm4446, %v4449, %v4451
    %v4453 = vsel %vm4445, %v4432, %v4435
    %v4454 = vsel %vm4448, %v4441, 920167782
    %v4455 = vsel %vm4447, %v4438, %v4454
    %v4456 = vsel %vm4446, %v4453, %v4455
    %v4457 = vsel %vm4445, %v4435, %v4438
    %v4458 = vsel %vm4448, %v4444, 1326507024
    %v4459 = vsel %vm4447, %v4441, %v4458
    %v4460 = vsel %vm4446, %v4457, %v4459
    %v4461 = vshll.u32 %v4421, 8
    %v4462 = vand.u32 %v4461, 65535
    %v4463 = vshrl.u32 %v4461, 16
    %v4464 = vand.u32 %v4460, 65535
    %v4465 = vshrl.u32 %v4460, 16
    %v4466 = vmul.u32 %v4462, %v4464
    %v4467 = vmul.u32 %v4462, %v4465
    %v4468 = vmul.u32 %v4463, %v4464
    %v4469 = vmul.u32 %v4463, %v4465
    %v4470 = vshll.u32 %v4467, 16
    %v4471 = vshrl.u32 %v4467, 16
    %v4472 = vshll.u32 %v4468, 16
    %v4473 = vshrl.u32 %v4468, 16
    %vm4474 = vc.u32 %v4466, %v4470
    %v4475 = vsel %vm4474, 1, 0
    %v4476 = vadd.s32 %v4466, %v4470
    %v4477 = vadd.s32 %v4469, %v4475
    %vm4478 = vc.u32 %v4476, %v4472
    %v4479 = vsel %vm4478, 1, 0
    %v4480 = vadd.s32 %v4476, %v4472
    %v4481 = vadd.s32 %v4477, %v4479
    %v4482 = vadd.s32 %v4481, %v4471
    %v4483 = vadd.s32 %v4482, %v4473
    %v4484 = vand.u32 %v4461, 65535
    %v4485 = vshrl.u32 %v4461, 16
    %v4486 = vand.u32 %v4456, 65535
    %v4487 = vshrl.u32 %v4456, 16
    %v4488 = vmul.u32 %v4484, %v4486
    %v4489 = vmul.u32 %v4484, %v4487
    %v4490 = vmul.u32 %v4485, %v4486
    %v4491 = vmul.u32 %v4485, %v4487
    %v4492 = vshll.u32 %v4489, 16
    %v4493 = vshrl.u32 %v4489, 16
    %v4494 = vshll.u32 %v4490, 16
    %v4495 = vshrl.u32 %v4490, 16
    %vm4496 = vc.u32 %v4488, %v4492
    %v4497 = vsel %vm4496, 1, 0
    %v4498 = vadd.s32 %v4488, %v4492
    %v4499 = vadd.s32 %v4491, %v4497
    %vm4500 = vc.u32 %v4498, %v4494
    %v4501 = vsel %vm4500, 1, 0
    %v4502 = vadd.s32 %v4498, %v4494
    %v4503 = vadd.s32 %v4499, %v4501
    %v4504 = vadd.s32 %v4503, %v4493
    %v4505 = vadd.s32 %v4504, %v4495
    %v4506 = vmul.u32 %v4461, %v4452
    %v4507 = vadd.s32 %v4483, %v4502
    %vm4508 = vc.u32 %v4483, %v4502
    %v4509 = vadd.s32 %v4505, 1
    %v4510 = vsel %vm4508, %v4509, %v4505
    %v4511 = vadd.s32 %v4506, %v4510
    %v4512 = vadd.s32 %v4511, 536870912
    %v4513 = vshrl.u32 %v4512, 30
    %v4514 = vshll.u32 %v4513, 30
    %v4515 = vsub.s32 %v4511, %v4514
    %vm4516 = vcmp.lt.s32.totalorder %v4515, 0
    %v4517 = vsub.s32 0, %v4515
    %v4518 = vsel %vm4516, %v4517, %v4515
    %v4519 = vclz %v4518
    %v4520 = vsub.s32 %v4519, 2
    %vm4521 = vcmp.gt.s32.totalorder 0, %v4520
    %v4522 = vsel %vm4521, 0, %v4520
    %v4523 = vsub.s32 32, %v4522
    %v4524 = vshll.u32 %v4515, %v4522
    %v4525 = vshrl.u32 %v4507, %v4523
    %v4526 = vor.u32 %v4524, %v4525
    %v4527 = vsub.s32 4294967266, %v4522
    %v4528 = vadd.s32 %v4527, 127
    %v4529 = vshll.u32 %v4528, 23
    %v4530 = vor.u32 4788187, %v4529
    %v4531 = vand.u32 2147483647, %v4530
    %v4533 = vcvt.s32.f32 %v4526
    %v4534 = vmul.f32 %v4533, %v4531
    %v4535 = vxor.u32 %v4534, 2147483648
    %v4536 = vsel %vm4415, %v4535, %v4534
    %v4537 = vsub.s32 4, %v4513
    %v4538 = vsel %vm4415, %v4537, %v4513
    %v4539 = vsel %vm4414, %v2706, %v4536
    %v4540 = vsel %vm4414, 0, %v4538
    %v4541 = vmul.f32 %v4539, %v4539
    %v4542 = vmul.f32 %v4541, -0.001358992
    %v4543 = vadd.f32 %v4542, 0.041655596
    %v4544 = vmul.f32 %v4541, %v4543
    %v4545 = vadd.f32 %v4544, -0.4999988
    %v4546 = vmul.f32 %v4541, %v4545
    %v4547 = vadd.f32 1.0, %v4546
    %v4548 = vmul.f32 %v4539, %v4539
    %v4549 = vmul.f32 %v4548, -0.00019511016
    %v4550 = vadd.f32 %v4549, 0.008332121
    %v4551 = vmul.f32 %v4548, %v4550
    %v4552 = vadd.f32 %v4551, -0.16666654
    %v4553 = vmul.f32 %v4548, %v4552
    %v4554 = vadd.f32 %v4553, 1.0
    %v4555 = vmul.f32 %v4554, %v4539
    %vm4556 = vweird.f32 %v2706
    %v4557 = vand.u32 %v4540, 3
    %vm4558 = vcmp.lt.s32.totalorder %v4557, 2
    %vm4559 = vcmp.eq.s32.totalorder %v4557, 0
    %v4560 = vxor.u32 %v4555, 2147483648
    %v4561 = vsel %vm4559, %v4547, %v4560
    %vm4562 = vcmp.eq.s32.totalorder %v4557, 2
    %v4563 = vxor.u32 %v4547, 2147483648
    %v4564 = vsel %vm4562, %v4563, %v4555
    %v4565 = vsel %vm4558, %v4561, %v4564
    %v4566 = vsel %vm4556, nan, %v4565
    %v4567 = vand.u32 2147483647, %v2707
    %vm4568 = vcmp.le.f32.partialorder %v4567, 0.7853982
    %vm4569 = vcmp.lt.s32.totalorder %v2707, 0
    %v4570 = vand.u32 %v2707, 2139095040
    %v4571 = vshrl.u32 %v4570, 23
    %v4572 = vsub.s32 %v4571, 127
    %v4573 = vand.u32 2147483647, %v2707
    %v4574 = vand.u32 %v4573, 8388607
    %v4575 = vor.u32 %v4574, 8388608
    %v4576 = vsub.s32 0, %v4575
    %v4577 = vadd.s32 %v4572, 1
    %vm4578 = vcmp.gt.s32.totalorder %v4577, 0
    %v4579 = vsel %vm4578, %v4577, 0
    %v4580 = vshrl.u32 %v4579, 5
    %v4581 = vand.u32 %v4579, 31
    %v4582 = vsub.s32 32, %v4581
    %v4583 = vshrl.u32 683565275, %v4582
    %v4584 = vshll.u32 683565275, %v4581
    %v4585 = vshrl.u32 2475754826, %v4582
    %v4586 = vor.u32 %v4584, %v4585
    %v4587 = vshll.u32 2475754826, %v4581
    %v4588 = vshrl.u32 2131351028, %v4582
    %v4589 = vor.u32 %v4587, %v4588
    %v4590 = vshll.u32 2131351028, %v4581
    %v4591 = vshrl.u32 2102212464, %v4582
    %v4592 = vor.u32 %v4590, %v4591
    %v4593 = vshll.u32 2102212464, %v4581
    %v4594 = vshrl.u32 920167782, %v4582
    %v4595 = vor.u32 %v4593, %v4594
    %v4596 = vshll.u32 920167782, %v4581
    %v4597 = vshrl.u32 1326507024, %v4582
    %v4598 = vor.u32 %v4596, %v4597
    %vm4599 = vcmp.lt.s32.totalorder %v4580, 1
    %vm4600 = vcmp.lt.s32.totalorder %v4580, 2
    %vm4601 = vcmp.lt.s32.totalorder %v4580, 3
    %vm4602 = vcmp.lt.s32.totalorder %v4580, 4
    %v4603 = vsel %vm4599, %v4583, %v4586
    %v4604 = vsel %vm4602, %v4592, 2102212464
    %v4605 = vsel %vm4601, %v4589, %v4604
    %v4606 = vsel %vm4600, %v4603, %v4605
    %v4607 = vsel %vm4599, %v4586, %v4589
    %v4608 = vsel %vm4602, %v4595, 920167782
    %v4609 = vsel %vm4601, %v4592, %v4608
    %v4610 = vsel %vm4600, %v4607, %v4609
    %v4611 = vsel %vm4599, %v4589, %v4592
    %v4612 = vsel %vm4602, %v4598, 1326507024
    %v4613 = vsel %vm4601, %v4595, %v4612
    %v4614 = vsel %vm4600, %v4611, %v4613
    %v4615 = vshll.u32 %v4575, 8
    %v4616 = vand.u32 %v4615, 65535
    %v4617 = vshrl.u32 %v4615, 16
    %v4618 = vand.u32 %v4614, 65535
    %v4619 = vshrl.u32 %v4614, 16
    %v4620 = vmul.u32 %v4616, %v4618
    %v4621 = vmul.u32 %v4616, %v4619
    %v4622 = vmul.u32 %v4617, %v4618
    %v4623 = vmul.u32 %v4617, %v4619
    %v4624 = vshll.u32 %v4621, 16
    %v4625 = vshrl.u32 %v4621, 16
    %v4626 = vshll.u32 %v4622, 16
    %v4627 = vshrl.u32 %v4622, 16
    %vm4628 = vc.u32 %v4620, %v4624
    %v4629 = vsel %vm4628, 1, 0
    %v4630 = vadd.s32 %v4620, %v4624
    %v4631 = vadd.s32 %v4623, %v4629
    %vm4632 = vc.u32 %v4630, %v4626
    %v4633 = vsel %vm4632, 1, 0
    %v4634 = vadd.s32 %v4630, %v4626
    %v4635 = vadd.s32 %v4631, %v4633
    %v4636 = vadd.s32 %v4635, %v4625
    %v4637 = vadd.s32 %v4636, %v4627
    %v4638 = vand.u32 %v4615, 65535
    %v4639 = vshrl.u32 %v4615, 16
    %v4640 = vand.u32 %v4610, 65535
    %v4641 = vshrl.u32 %v4610, 16
    %v4642 = vmul.u32 %v4638, %v4640
    %v4643 = vmul.u32 %v4638, %v4641
    %v4644 = vmul.u32 %v4639, %v4640
    %v4645 = vmul.u32 %v4639, %v4641
    %v4646 = vshll.u32 %v4643, 16
    %v4647 = vshrl.u32 %v4643, 16
    %v4648 = vshll.u32 %v4644, 16
    %v4649 = vshrl.u32 %v4644, 16
    %vm4650 = vc.u32 %v4642, %v4646
    %v4651 = vsel %vm4650, 1, 0
    %v4652 = vadd.s32 %v4642, %v4646
    %v4653 = vadd.s32 %v4645, %v4651
    %vm4654 = vc.u32 %v4652, %v4648
    %v4655 = vsel %vm4654, 1, 0
    %v4656 = vadd.s32 %v4652, %v4648
    %v4657 = vadd.s32 %v4653, %v4655
    %v4658 = vadd.s32 %v4657, %v4647
    %v4659 = vadd.s32 %v4658, %v4649
    %v4660 = vmul.u32 %v4615, %v4606
    %v4661 = vadd.s32 %v4637, %v4656
    %vm4662 = vc.u32 %v4637, %v4656
    %v4663 = vadd.s32 %v4659, 1
    %v4664 = vsel %vm4662, %v4663, %v4659
    %v4665 = vadd.s32 %v4660, %v4664
    %v4666 = vadd.s32 %v4665, 536870912
    %v4667 = vshrl.u32 %v4666, 30
    %v4668 = vshll.u32 %v4667, 30
    %v4669 = vsub.s32 %v4665, %v4668
    %vm4670 = vcmp.lt.s32.totalorder %v4669, 0
    %v4671 = vsub.s32 0, %v4669
    %v4672 = vsel %vm4670, %v4671, %v4669
    %v4673 = vclz %v4672
    %v4674 = vsub.s32 %v4673, 2
    %vm4675 = vcmp.gt.s32.totalorder 0, %v4674
    %v4676 = vsel %vm4675, 0, %v4674
    %v4677 = vsub.s32 32, %v4676
    %v4678 = vshll.u32 %v4669, %v4676
    %v4679 = vshrl.u32 %v4661, %v4677
    %v4680 = vor.u32 %v4678, %v4679
    %v4681 = vsub.s32 4294967266, %v4676
    %v4682 = vadd.s32 %v4681, 127
    %v4683 = vshll.u32 %v4682, 23
    %v4684 = vor.u32 4788187, %v4683
    %v4685 = vand.u32 2147483647, %v4684
    %v4687 = vcvt.s32.f32 %v4680
    %v4688 = vmul.f32 %v4687, %v4685
    %v4689 = vxor.u32 %v4688, 2147483648
    %v4690 = vsel %vm4569, %v4689, %v4688
    %v4691 = vsub.s32 4, %v4667
    %v4692 = vsel %vm4569, %v4691, %v4667
    %v4693 = vsel %vm4568, %v2707, %v4690
    %v4694 = vsel %vm4568, 0, %v4692
    %v4695 = vmul.f32 %v4693, %v4693
    %v4696 = vmul.f32 %v4695, -0.001358992
    %v4697 = vadd.f32 %v4696, 0.041655596
    %v4698 = vmul.f32 %v4695, %v4697
    %v4699 = vadd.f32 %v4698, -0.4999988
    %v4700 = vmul.f32 %v4695, %v4699
    %v4701 = vadd.f32 1.0, %v4700
    %v4702 = vmul.f32 %v4693, %v4693
    %v4703 = vmul.f32 %v4702, -0.00019511016
    %v4704 = vadd.f32 %v4703, 0.008332121
    %v4705 = vmul.f32 %v4702, %v4704
    %v4706 = vadd.f32 %v4705, -0.16666654
    %v4707 = vmul.f32 %v4702, %v4706
    %v4708 = vadd.f32 %v4707, 1.0
    %v4709 = vmul.f32 %v4708, %v4693
    %vm4710 = vweird.f32 %v2707
    %v4711 = vand.u32 %v4694, 3
    %vm4712 = vcmp.lt.s32.totalorder %v4711, 2
    %vm4713 = vcmp.eq.s32.totalorder %v4711, 0
    %v4714 = vxor.u32 %v4709, 2147483648
    %v4715 = vsel %vm4713, %v4701, %v4714
    %vm4716 = vcmp.eq.s32.totalorder %v4711, 2
    %v4717 = vxor.u32 %v4701, 2147483648
    %v4718 = vsel %vm4716, %v4717, %v4709
    %v4719 = vsel %vm4712, %v4715, %v4718
    %v4720 = vsel %vm4710, nan, %v4719
    %v4721 = vand.u32 2147483647, %v2708
    %vm4722 = vcmp.le.f32.partialorder %v4721, 0.7853982
    %vm4723 = vcmp.lt.s32.totalorder %v2708, 0
    %v4724 = vand.u32 %v2708, 2139095040
    %v4725 = vshrl.u32 %v4724, 23
    %v4726 = vsub.s32 %v4725, 127
    %v4727 = vand.u32 2147483647, %v2708
    %v4728 = vand.u32 %v4727, 8388607
    %v4729 = vor.u32 %v4728, 8388608
    %v4730 = vsub.s32 0, %v4729
    %v4731 = vadd.s32 %v4726, 1
    %vm4732 = vcmp.gt.s32.totalorder %v4731, 0
    %v4733 = vsel %vm4732, %v4731, 0
    %v4734 = vshrl.u32 %v4733, 5
    %v4735 = vand.u32 %v4733, 31
    %v4736 = vsub.s32 32, %v4735
    %v4737 = vshrl.u32 683565275, %v4736
    %v4738 = vshll.u32 683565275, %v4735
    %v4739 = vshrl.u32 2475754826, %v4736
    %v4740 = vor.u32 %v4738, %v4739
    %v4741 = vshll.u32 2475754826, %v4735
    %v4742 = vshrl.u32 2131351028, %v4736
    %v4743 = vor.u32 %v4741, %v4742
    %v4744 = vshll.u32 2131351028, %v4735
    %v4745 = vshrl.u32 2102212464, %v4736
    %v4746 = vor.u32 %v4744, %v4745
    %v4747 = vshll.u32 2102212464, %v4735
    %v4748 = vshrl.u32 920167782, %v4736
    %v4749 = vor.u32 %v4747, %v4748
    %v4750 = vshll.u32 920167782, %v4735
    %v4751 = vshrl.u32 1326507024, %v4736
    %v4752 = vor.u32 %v4750, %v4751
    %vm4753 = vcmp.lt.s32.totalorder %v4734, 1
    %vm4754 = vcmp.lt.s32.totalorder %v4734, 2
    %vm4755 = vcmp.lt.s32.totalorder %v4734, 3
    %vm4756 = vcmp.lt.s32.totalorder %v4734, 4
    %v4757 = vsel %vm4753, %v4737, %v4740
    %v4758 = vsel %vm4756, %v4746, 2102212464
    %v4759 = vsel %vm4755, %v4743, %v4758
    %v4760 = vsel %vm4754, %v4757, %v4759
    %v4761 = vsel %vm4753, %v4740, %v4743
    %v4762 = vsel %vm4756, %v4749, 920167782
    %v4763 = vsel %vm4755, %v4746, %v4762
    %v4764 = vsel %vm4754, %v4761, %v4763
    %v4765 = vsel %vm4753, %v4743, %v4746
    %v4766 = vsel %vm4756, %v4752, 1326507024
    %v4767 = vsel %vm4755, %v4749, %v4766
    %v4768 = vsel %vm4754, %v4765, %v4767
    %v4769 = vshll.u32 %v4729, 8
    %v4770 = vand.u32 %v4769, 65535
    %v4771 = vshrl.u32 %v4769, 16
    %v4772 = vand.u32 %v4768, 65535
    %v4773 = vshrl.u32 %v4768, 16
    %v4774 = vmul.u32 %v4770, %v4772
    %v4775 = vmul.u32 %v4770, %v4773
    %v4776 = vmul.u32 %v4771, %v4772
    %v4777 = vmul.u32 %v4771, %v4773
    %v4778 = vshll.u32 %v4775, 16
    %v4779 = vshrl.u32 %v4775, 16
    %v4780 = vshll.u32 %v4776, 16
    %v4781 = vshrl.u32 %v4776, 16
    %vm4782 = vc.u32 %v4774, %v4778
    %v4783 = vsel %vm4782, 1, 0
    %v4784 = vadd.s32 %v4774, %v4778
    %v4785 = vadd.s32 %v4777, %v4783
    %vm4786 = vc.u32 %v4784, %v4780
    %v4787 = vsel %vm4786, 1, 0
    %v4788 = vadd.s32 %v4784, %v4780
    %v4789 = vadd.s32 %v4785, %v4787
    %v4790 = vadd.s32 %v4789, %v4779
    %v4791 = vadd.s32 %v4790, %v4781
    %v4792 = vand.u32 %v4769, 65535
    %v4793 = vshrl.u32 %v4769, 16
    %v4794 = vand.u32 %v4764, 65535
    %v4795 = vshrl.u32 %v4764, 16
    %v4796 = vmul.u32 %v4792, %v4794
    %v4797 = vmul.u32 %v4792, %v4795
    %v4798 = vmul.u32 %v4793, %v4794
    %v4799 = vmul.u32 %v4793, %v4795
    %v4800 = vshll.u32 %v4797, 16
    %v4801 = vshrl.u32 %v4797, 16
    %v4802 = vshll.u32 %v4798, 16
    %v4803 = vshrl.u32 %v4798, 16
    %vm4804 = vc.u32 %v4796, %v4800
    %v4805 = vsel %vm4804, 1, 0
    %v4806 = vadd.s32 %v4796, %v4800
    %v4807 = vadd.s32 %v4799, %v4805
    %vm4808 = vc.u32 %v4806, %v4802
    %v4809 = vsel %vm4808, 1, 0
    %v4810 = vadd.s32 %v4806, %v4802
    %v4811 = vadd.s32 %v4807, %v4809
    %v4812 = vadd.s32 %v4811, %v4801
    %v4813 = vadd.s32 %v4812, %v4803
    %v4814 = vmul.u32 %v4769, %v4760
    %v4815 = vadd.s32 %v4791, %v4810
    %vm4816 = vc.u32 %v4791, %v4810
    %v4817 = vadd.s32 %v4813, 1
    %v4818 = vsel %vm4816, %v4817, %v4813
    %v4819 = vadd.s32 %v4814, %v4818
    %v4820 = vadd.s32 %v4819, 536870912
    %v4821 = vshrl.u32 %v4820, 30
    %v4822 = vshll.u32 %v4821, 30
    %v4823 = vsub.s32 %v4819, %v4822
    %vm4824 = vcmp.lt.s32.totalorder %v4823, 0
    %v4825 = vsub.s32 0, %v4823
    %v4826 = vsel %vm4824, %v4825, %v4823
    %v4827 = vclz %v4826
    %v4828 = vsub.s32 %v4827, 2
    %vm4829 = vcmp.gt.s32.totalorder 0, %v4828
    %v4830 = vsel %vm4829, 0, %v4828
    %v4831 = vsub.s32 32, %v4830
    %v4832 = vshll.u32 %v4823, %v4830
    %v4833 = vshrl.u32 %v4815, %v4831
    %v4834 = vor.u32 %v4832, %v4833
    %v4835 = vsub.s32 4294967266, %v4830
    %v4836 = vadd.s32 %v4835, 127
    %v4837 = vshll.u32 %v4836, 23
    %v4838 = vor.u32 4788187, %v4837
    %v4839 = vand.u32 2147483647, %v4838
    %v4841 = vcvt.s32.f32 %v4834
    %v4842 = vmul.f32 %v4841, %v4839
    %v4843 = vxor.u32 %v4842, 2147483648
    %v4844 = vsel %vm4723, %v4843, %v4842
    %v4845 = vsub.s32 4, %v4821
    %v4846 = vsel %vm4723, %v4845, %v4821
    %v4847 = vsel %vm4722, %v2708, %v4844
    %v4848 = vsel %vm4722, 0, %v4846
    %v4849 = vmul.f32 %v4847, %v4847
    %v4850 = vmul.f32 %v4849, -0.001358992
    %v4851 = vadd.f32 %v4850, 0.041655596
    %v4852 = vmul.f32 %v4849, %v4851
    %v4853 = vadd.f32 %v4852, -0.4999988
    %v4854 = vmul.f32 %v4849, %v4853
    %v4855 = vadd.f32 1.0, %v4854
    %v4856 = vmul.f32 %v4847, %v4847
    %v4857 = vmul.f32 %v4856, -0.00019511016
    %v4858 = vadd.f32 %v4857, 0.008332121
    %v4859 = vmul.f32 %v4856, %v4858
    %v4860 = vadd.f32 %v4859, -0.16666654
    %v4861 = vmul.f32 %v4856, %v4860
    %v4862 = vadd.f32 %v4861, 1.0
    %v4863 = vmul.f32 %v4862, %v4847
    %vm4864 = vweird.f32 %v2708
    %v4865 = vand.u32 %v4848, 3
    %vm4866 = vcmp.lt.s32.totalorder %v4865, 2
    %vm4867 = vcmp.eq.s32.totalorder %v4865, 0
    %v4868 = vxor.u32 %v4863, 2147483648
    %v4869 = vsel %vm4867, %v4855, %v4868
    %vm4870 = vcmp.eq.s32.totalorder %v4865, 2
    %v4871 = vxor.u32 %v4855, 2147483648
    %v4872 = vsel %vm4870, %v4871, %v4863
    %v4873 = vsel %vm4866, %v4869, %v4872
    %v4874 = vsel %vm4864, nan, %v4873
    %v4875 = vand.u32 2147483647, %v2709
    %vm4876 = vcmp.le.f32.partialorder %v4875, 0.7853982
    %vm4877 = vcmp.lt.s32.totalorder %v2709, 0
    %v4878 = vand.u32 %v2709, 2139095040
    %v4879 = vshrl.u32 %v4878, 23
    %v4880 = vsub.s32 %v4879, 127
    %v4881 = vand.u32 2147483647, %v2709
    %v4882 = vand.u32 %v4881, 8388607
    %v4883 = vor.u32 %v4882, 8388608
    %v4884 = vsub.s32 0, %v4883
    %v4885 = vadd.s32 %v4880, 1
    %vm4886 = vcmp.gt.s32.totalorder %v4885, 0
    %v4887 = vsel %vm4886, %v4885, 0
    %v4888 = vshrl.u32 %v4887, 5
    %v4889 = vand.u32 %v4887, 31
    %v4890 = vsub.s32 32, %v4889
    %v4891 = vshrl.u32 683565275, %v4890
    %v4892 = vshll.u32 683565275, %v4889
    %v4893 = vshrl.u32 2475754826, %v4890
    %v4894 = vor.u32 %v4892, %v4893
    %v4895 = vshll.u32 2475754826, %v4889
    %v4896 = vshrl.u32 2131351028, %v4890
    %v4897 = vor.u32 %v4895, %v4896
    %v4898 = vshll.u32 2131351028, %v4889
    %v4899 = vshrl.u32 2102212464, %v4890
    %v4900 = vor.u32 %v4898, %v4899
    %v4901 = vshll.u32 2102212464, %v4889
    %v4902 = vshrl.u32 920167782, %v4890
    %v4903 = vor.u32 %v4901, %v4902
    %v4904 = vshll.u32 920167782, %v4889
    %v4905 = vshrl.u32 1326507024, %v4890
    %v4906 = vor.u32 %v4904, %v4905
    %vm4907 = vcmp.lt.s32.totalorder %v4888, 1
    %vm4908 = vcmp.lt.s32.totalorder %v4888, 2
    %vm4909 = vcmp.lt.s32.totalorder %v4888, 3
    %vm4910 = vcmp.lt.s32.totalorder %v4888, 4
    %v4911 = vsel %vm4907, %v4891, %v4894
    %v4912 = vsel %vm4910, %v4900, 2102212464
    %v4913 = vsel %vm4909, %v4897, %v4912
    %v4914 = vsel %vm4908, %v4911, %v4913
    %v4915 = vsel %vm4907, %v4894, %v4897
    %v4916 = vsel %vm4910, %v4903, 920167782
    %v4917 = vsel %vm4909, %v4900, %v4916
    %v4918 = vsel %vm4908, %v4915, %v4917
    %v4919 = vsel %vm4907, %v4897, %v4900
    %v4920 = vsel %vm4910, %v4906, 1326507024
    %v4921 = vsel %vm4909, %v4903, %v4920
    %v4922 = vsel %vm4908, %v4919, %v4921
    %v4923 = vshll.u32 %v4883, 8
    %v4924 = vand.u32 %v4923, 65535
    %v4925 = vshrl.u32 %v4923, 16
    %v4926 = vand.u32 %v4922, 65535
    %v4927 = vshrl.u32 %v4922, 16
    %v4928 = vmul.u32 %v4924, %v4926
    %v4929 = vmul.u32 %v4924, %v4927
    %v4930 = vmul.u32 %v4925, %v4926
    %v4931 = vmul.u32 %v4925, %v4927
    %v4932 = vshll.u32 %v4929, 16
    %v4933 = vshrl.u32 %v4929, 16
    %v4934 = vshll.u32 %v4930, 16
    %v4935 = vshrl.u32 %v4930, 16
    %vm4936 = vc.u32 %v4928, %v4932
    %v4937 = vsel %vm4936, 1, 0
    %v4938 = vadd.s32 %v4928, %v4932
    %v4939 = vadd.s32 %v4931, %v4937
    %vm4940 = vc.u32 %v4938, %v4934
    %v4941 = vsel %vm4940, 1, 0
    %v4942 = vadd.s32 %v4938, %v4934
    %v4943 = vadd.s32 %v4939, %v4941
    %v4944 = vadd.s32 %v4943, %v4933
    %v4945 = vadd.s32 %v4944, %v4935
    %v4946 = vand.u32 %v4923, 65535
    %v4947 = vshrl.u32 %v4923, 16
    %v4948 = vand.u32 %v4918, 65535
    %v4949 = vshrl.u32 %v4918, 16
    %v4950 = vmul.u32 %v4946, %v4948
    %v4951 = vmul.u32 %v4946, %v4949
    %v4952 = vmul.u32 %v4947, %v4948
    %v4953 = vmul.u32 %v4947, %v4949
    %v4954 = vshll.u32 %v4951, 16
    %v4955 = vshrl.u32 %v4951, 16
    %v4956 = vshll.u32 %v4952, 16
    %v4957 = vshrl.u32 %v4952, 16
    %vm4958 = vc.u32 %v4950, %v4954
    %v4959 = vsel %vm4958, 1, 0
    %v4960 = vadd.s32 %v4950, %v4954
    %v4961 = vadd.s32 %v4953, %v4959
    %vm4962 = vc.u32 %v4960, %v4956
    %v4963 = vsel %vm4962, 1, 0
    %v4964 = vadd.s32 %v4960, %v4956
    %v4965 = vadd.s32 %v4961, %v4963
    %v4966 = vadd.s32 %v4965, %v4955
    %v4967 = vadd.s32 %v4966, %v4957
    %v4968 = vmul.u32 %v4923, %v4914
    %v4969 = vadd.s32 %v4945, %v4964
    %vm4970 = vc.u32 %v4945, %v4964
    %v4971 = vadd.s32 %v4967, 1
    %v4972 = vsel %vm4970, %v4971, %v4967
    %v4973 = vadd.s32 %v4968, %v4972
    %v4974 = vadd.s32 %v4973, 536870912
    %v4975 = vshrl.u32 %v4974, 30
    %v4976 = vshll.u32 %v4975, 30
    %v4977 = vsub.s32 %v4973, %v4976
    %vm4978 = vcmp.lt.s32.totalorder %v4977, 0
    %v4979 = vsub.s32 0, %v4977
    %v4980 = vsel %vm4978, %v4979, %v4977
    %v4981 = vclz %v4980
    %v4982 = vsub.s32 %v4981, 2
    %vm4983 = vcmp.gt.s32.totalorder 0, %v4982
    %v4984 = vsel %vm4983, 0, %v4982
    %v4985 = vsub.s32 32, %v4984
    %v4986 = vshll.u32 %v4977, %v4984
    %v4987 = vshrl.u32 %v4969, %v4985
    %v4988 = vor.u32 %v4986, %v4987
    %v4989 = vsub.s32 4294967266, %v4984
    %v4990 = vadd.s32 %v4989, 127
    %v4991 = vshll.u32 %v4990, 23
    %v4992 = vor.u32 4788187, %v4991
    %v4993 = vand.u32 2147483647, %v4992
    %v4995 = vcvt.s32.f32 %v4988
    %v4996 = vmul.f32 %v4995, %v4993
    %v4997 = vxor.u32 %v4996, 2147483648
    %v4998 = vsel %vm4877, %v4997, %v4996
    %v4999 = vsub.s32 4, %v4975
    %v5000 = vsel %vm4877, %v4999, %v4975
    %v5001 = vsel %vm4876, %v2709, %v4998
    %v5002 = vsel %vm4876, 0, %v5000
    %v5003 = vmul.f32 %v5001, %v5001
    %v5004 = vmul.f32 %v5003, -0.001358992
    %v5005 = vadd.f32 %v5004, 0.041655596
    %v5006 = vmul.f32 %v5003, %v5005
    %v5007 = vadd.f32 %v5006, -0.4999988
    %v5008 = vmul.f32 %v5003, %v5007
    %v5009 = vadd.f32 1.0, %v5008
    %v5010 = vmul.f32 %v5001, %v5001
    %v5011 = vmul.f32 %v5010, -0.00019511016
    %v5012 = vadd.f32 %v5011, 0.008332121
    %v5013 = vmul.f32 %v5010, %v5012
    %v5014 = vadd.f32 %v5013, -0.16666654
    %v5015 = vmul.f32 %v5010, %v5014
    %v5016 = vadd.f32 %v5015, 1.0
    %v5017 = vmul.f32 %v5016, %v5001
    %vm5018 = vweird.f32 %v2709
    %v5019 = vand.u32 %v5002, 3
    %vm5020 = vcmp.lt.s32.totalorder %v5019, 2
    %vm5021 = vcmp.eq.s32.totalorder %v5019, 0
    %v5022 = vxor.u32 %v5017, 2147483648
    %v5023 = vsel %vm5021, %v5009, %v5022
    %vm5024 = vcmp.eq.s32.totalorder %v5019, 2
    %v5025 = vxor.u32 %v5009, 2147483648
    %v5026 = vsel %vm5024, %v5025, %v5017
    %v5027 = vsel %vm5020, %v5023, %v5026
    %v5028 = vsel %vm5018, nan, %v5027
    %v5029 = vand.u32 2147483647, %v2710
    %vm5030 = vcmp.le.f32.partialorder %v5029, 0.7853982
    %vm5031 = vcmp.lt.s32.totalorder %v2710, 0
    %v5032 = vand.u32 %v2710, 2139095040
    %v5033 = vshrl.u32 %v5032, 23
    %v5034 = vsub.s32 %v5033, 127
    %v5035 = vand.u32 2147483647, %v2710
    %v5036 = vand.u32 %v5035, 8388607
    %v5037 = vor.u32 %v5036, 8388608
    %v5038 = vsub.s32 0, %v5037
    %v5039 = vadd.s32 %v5034, 1
    %vm5040 = vcmp.gt.s32.totalorder %v5039, 0
    %v5041 = vsel %vm5040, %v5039, 0
    %v5042 = vshrl.u32 %v5041, 5
    %v5043 = vand.u32 %v5041, 31
    %v5044 = vsub.s32 32, %v5043
    %v5045 = vshrl.u32 683565275, %v5044
    %v5046 = vshll.u32 683565275, %v5043
    %v5047 = vshrl.u32 2475754826, %v5044
    %v5048 = vor.u32 %v5046, %v5047
    %v5049 = vshll.u32 2475754826, %v5043
    %v5050 = vshrl.u32 2131351028, %v5044
    %v5051 = vor.u32 %v5049, %v5050
    %v5052 = vshll.u32 2131351028, %v5043
    %v5053 = vshrl.u32 2102212464, %v5044
    %v5054 = vor.u32 %v5052, %v5053
    %v5055 = vshll.u32 2102212464, %v5043
    %v5056 = vshrl.u32 920167782, %v5044
    %v5057 = vor.u32 %v5055, %v5056
    %v5058 = vshll.u32 920167782, %v5043
    %v5059 = vshrl.u32 1326507024, %v5044
    %v5060 = vor.u32 %v5058, %v5059
    %vm5061 = vcmp.lt.s32.totalorder %v5042, 1
    %vm5062 = vcmp.lt.s32.totalorder %v5042, 2
    %vm5063 = vcmp.lt.s32.totalorder %v5042, 3
    %vm5064 = vcmp.lt.s32.totalorder %v5042, 4
    %v5065 = vsel %vm5061, %v5045, %v5048
    %v5066 = vsel %vm5064, %v5054, 2102212464
    %v5067 = vsel %vm5063, %v5051, %v5066
    %v5068 = vsel %vm5062, %v5065, %v5067
    %v5069 = vsel %vm5061, %v5048, %v5051
    %v5070 = vsel %vm5064, %v5057, 920167782
    %v5071 = vsel %vm5063, %v5054, %v5070
    %v5072 = vsel %vm5062, %v5069, %v5071
    %v5073 = vsel %vm5061, %v5051, %v5054
    %v5074 = vsel %vm5064, %v5060, 1326507024
    %v5075 = vsel %vm5063, %v5057, %v5074
    %v5076 = vsel %vm5062, %v5073, %v5075
    %v5077 = vshll.u32 %v5037, 8
    %v5078 = vand.u32 %v5077, 65535
    %v5079 = vshrl.u32 %v5077, 16
    %v5080 = vand.u32 %v5076, 65535
    %v5081 = vshrl.u32 %v5076, 16
    %v5082 = vmul.u32 %v5078, %v5080
    %v5083 = vmul.u32 %v5078, %v5081
    %v5084 = vmul.u32 %v5079, %v5080
    %v5085 = vmul.u32 %v5079, %v5081
    %v5086 = vshll.u32 %v5083, 16
    %v5087 = vshrl.u32 %v5083, 16
    %v5088 = vshll.u32 %v5084, 16
    %v5089 = vshrl.u32 %v5084, 16
    %vm5090 = vc.u32 %v5082, %v5086
    %v5091 = vsel %vm5090, 1, 0
    %v5092 = vadd.s32 %v5082, %v5086
    %v5093 = vadd.s32 %v5085, %v5091
    %vm5094 = vc.u32 %v5092, %v5088
    %v5095 = vsel %vm5094, 1, 0
    %v5096 = vadd.s32 %v5092, %v5088
    %v5097 = vadd.s32 %v5093, %v5095
    %v5098 = vadd.s32 %v5097, %v5087
    %v5099 = vadd.s32 %v5098, %v5089
    %v5100 = vand.u32 %v5077, 65535
    %v5101 = vshrl.u32 %v5077, 16
    %v5102 = vand.u32 %v5072, 65535
    %v5103 = vshrl.u32 %v5072, 16
    %v5104 = vmul.u32 %v5100, %v5102
    %v5105 = vmul.u32 %v5100, %v5103
    %v5106 = vmul.u32 %v5101, %v5102
    %v5107 = vmul.u32 %v5101, %v5103
    %v5108 = vshll.u32 %v5105, 16
    %v5109 = vshrl.u32 %v5105, 16
    %v5110 = vshll.u32 %v5106, 16
    %v5111 = vshrl.u32 %v5106, 16
    %vm5112 = vc.u32 %v5104, %v5108
    %v5113 = vsel %vm5112, 1, 0
    %v5114 = vadd.s32 %v5104, %v5108
    %v5115 = vadd.s32 %v5107, %v5113
    %vm5116 = vc.u32 %v5114, %v5110
    %v5117 = vsel %vm5116, 1, 0
    %v5118 = vadd.s32 %v5114, %v5110
    %v5119 = vadd.s32 %v5115, %v5117
    %v5120 = vadd.s32 %v5119, %v5109
    %v5121 = vadd.s32 %v5120, %v5111
    %v5122 = vmul.u32 %v5077, %v5068
    %v5123 = vadd.s32 %v5099, %v5118
    %vm5124 = vc.u32 %v5099, %v5118
    %v5125 = vadd.s32 %v5121, 1
    %v5126 = vsel %vm5124, %v5125, %v5121
    %v5127 = vadd.s32 %v5122, %v5126
    %v5128 = vadd.s32 %v5127, 536870912
    %v5129 = vshrl.u32 %v5128, 30
    %v5130 = vshll.u32 %v5129, 30
    %v5131 = vsub.s32 %v5127, %v5130
    %vm5132 = vcmp.lt.s32.totalorder %v5131, 0
    %v5133 = vsub.s32 0, %v5131
    %v5134 = vsel %vm5132, %v5133, %v5131
    %v5135 = vclz %v5134
    %v5136 = vsub.s32 %v5135, 2
    %vm5137 = vcmp.gt.s32.totalorder 0, %v5136
    %v5138 = vsel %vm5137, 0, %v5136
    %v5139 = vsub.s32 32, %v5138
    %v5140 = vshll.u32 %v5131, %v5138
    %v5141 = vshrl.u32 %v5123, %v5139
    %v5142 = vor.u32 %v5140, %v5141
    %v5143 = vsub.s32 4294967266, %v5138
    %v5144 = vadd.s32 %v5143, 127
    %v5145 = vshll.u32 %v5144, 23
    %v5146 = vor.u32 4788187, %v5145
    %v5147 = vand.u32 2147483647, %v5146
    %v5149 = vcvt.s32.f32 %v5142
    %v5150 = vmul.f32 %v5149, %v5147
    %v5151 = vxor.u32 %v5150, 2147483648
    %v5152 = vsel %vm5031, %v5151, %v5150
    %v5153 = vsub.s32 4, %v5129
    %v5154 = vsel %vm5031, %v5153, %v5129
    %v5155 = vsel %vm5030, %v2710, %v5152
    %v5156 = vsel %vm5030, 0, %v5154
    %v5157 = vmul.f32 %v5155, %v5155
    %v5158 = vmul.f32 %v5157, -0.001358992
    %v5159 = vadd.f32 %v5158, 0.041655596
    %v5160 = vmul.f32 %v5157, %v5159
    %v5161 = vadd.f32 %v5160, -0.4999988
    %v5162 = vmul.f32 %v5157, %v5161
    %v5163 = vadd.f32 1.0, %v5162
    %v5164 = vmul.f32 %v5155, %v5155
    %v5165 = vmul.f32 %v5164, -0.00019511016
    %v5166 = vadd.f32 %v5165, 0.008332121
    %v5167 = vmul.f32 %v5164, %v5166
    %v5168 = vadd.f32 %v5167, -0.16666654
    %v5169 = vmul.f32 %v5164, %v5168
    %v5170 = vadd.f32 %v5169, 1.0
    %v5171 = vmul.f32 %v5170, %v5155
    %vm5172 = vweird.f32 %v2710
    %v5173 = vand.u32 %v5156, 3
    %vm5174 = vcmp.lt.s32.totalorder %v5173, 2
    %vm5175 = vcmp.eq.s32.totalorder %v5173, 0
    %v5176 = vxor.u32 %v5171, 2147483648
    %v5177 = vsel %vm5175, %v5163, %v5176
    %vm5178 = vcmp.eq.s32.totalorder %v5173, 2
    %v5179 = vxor.u32 %v5163, 2147483648
    %v5180 = vsel %vm5178, %v5179, %v5171
    %v5181 = vsel %vm5174, %v5177, %v5180
    %v5182 = vsel %vm5172, nan, %v5181
    %s5183 = scalar_lea.vmem [#allocation5], 576
    %5184 = vst [vmem:[%s5183] sm:$0xff] %v2865
    %5185 = vst [vmem:[%s5183 + $0x8] sm:$0xff] %v3020
    %5186 = vst [vmem:[%s5183 + $0x10] sm:$0xff] %v3175
    %5187 = vst [vmem:[%s5183 + $0x18] sm:$0xff] %v3330
    %5188 = vst [vmem:[%s5183 + $0x20] sm:$0xff] %v3485
    %5189 = vst [vmem:[%s5183 + $0x28] sm:$0xff] %v3640
    %5190 = vst [vmem:[%s5183 + $0x30] sm:$0xff] %v3795
    %5191 = vst [vmem:[%s5183 + $0x38] sm:$0xff] %v3950
    %s5192 = scalar_lea.vmem [#allocation5], 640
    %5193 = vst [vmem:[%s5192] sm:$0xff] %v4104
    %5194 = vst [vmem:[%s5192 + $0x8] sm:$0xff] %v4258
    %5195 = vst [vmem:[%s5192 + $0x10] sm:$0xff] %v4412
    %5196 = vst [vmem:[%s5192 + $0x18] sm:$0xff] %v4566
    %5197 = vst [vmem:[%s5192 + $0x20] sm:$0xff] %v4720
    %5198 = vst [vmem:[%s5192 + $0x28] sm:$0xff] %v4874
    %5199 = vst [vmem:[%s5192 + $0x30] sm:$0xff] %v5028
    %5200 = vst [vmem:[%s5192 + $0x38] sm:$0xff] %v5182
    %v5201 = vmul.f32 %v2865, %v4104
    %v5202 = vmul.f32 %v3020, %v4258
    %v5203 = vmul.f32 %v3175, %v4412
    %v5204 = vmul.f32 %v3330, %v4566
    %v5205 = vmul.f32 %v3485, %v4720
    %v5206 = vmul.f32 %v3640, %v4874
    %v5207 = vmul.f32 %v3795, %v5028
    %v5208 = vmul.f32 %v3950, %v5182
    %v5209 = vadd.f32 %v5201, %v5201
    %v5210 = vadd.f32 %v5202, %v5202
    %v5211 = vadd.f32 %v5203, %v5203
    %v5212 = vadd.f32 %v5204, %v5204
    %v5213 = vadd.f32 %v5205, %v5205
    %v5214 = vadd.f32 %v5206, %v5206
    %v5215 = vadd.f32 %v5207, %v5207
    %v5216 = vadd.f32 %v5208, %v5208
    %v5217 = vmul.f32 %v4104, %v4104
    %v5218 = vmul.f32 %v4258, %v4258
    %v5219 = vmul.f32 %v4412, %v4412
    %v5220 = vmul.f32 %v4566, %v4566
    %v5221 = vmul.f32 %v4720, %v4720
    %v5222 = vmul.f32 %v4874, %v4874
    %v5223 = vmul.f32 %v5028, %v5028
    %v5224 = vmul.f32 %v5182, %v5182
    %v5225 = vmul.f32 %v2865, %v2865
    %v5226 = vmul.f32 %v3020, %v3020
    %v5227 = vmul.f32 %v3175, %v3175
    %v5228 = vmul.f32 %v3330, %v3330
    %v5229 = vmul.f32 %v3485, %v3485
    %v5230 = vmul.f32 %v3640, %v3640
    %v5231 = vmul.f32 %v3795, %v3795
    %v5232 = vmul.f32 %v3950, %v3950
    %v5233 = vsub.f32 %v5217, %v5225
    %v5234 = vsub.f32 %v5218, %v5226
    %v5235 = vsub.f32 %v5219, %v5227
    %v5236 = vsub.f32 %v5220, %v5228
    %v5237 = vsub.f32 %v5221, %v5229
    %v5238 = vsub.f32 %v5222, %v5230
    %v5239 = vsub.f32 %v5223, %v5231
    %v5240 = vsub.f32 %v5224, %v5232
    %s5241 = scalar_lea.vmem [#allocation5], 704
    %5242 = vst [vmem:[%s5241] sm:$0xff] %v5209
    %5243 = vst [vmem:[%s5241 + $0x8] sm:$0xff] %v5210
    %5244 = vst [vmem:[%s5241 + $0x10] sm:$0xff] %v5211
    %5245 = vst [vmem:[%s5241 + $0x18] sm:$0xff] %v5212
    %5246 = vst [vmem:[%s5241 + $0x20] sm:$0xff] %v5213
    %5247 = vst [vmem:[%s5241 + $0x28] sm:$0xff] %v5214
    %5248 = vst [vmem:[%s5241 + $0x30] sm:$0xff] %v5215
    %5249 = vst [vmem:[%s5241 + $0x38] sm:$0xff] %v5216
    %s5250 = scalar_lea.vmem [#allocation5], 768
    %5251 = vst [vmem:[%s5250] sm:$0xff] %v5233
    %5252 = vst [vmem:[%s5250 + $0x8] sm:$0xff] %v5234
    %5253 = vst [vmem:[%s5250 + $0x10] sm:$0xff] %v5235
    %5254 = vst [vmem:[%s5250 + $0x18] sm:$0xff] %v5236
    %5255 = vst [vmem:[%s5250 + $0x20] sm:$0xff] %v5237
    %5256 = vst [vmem:[%s5250 + $0x28] sm:$0xff] %v5238
    %5257 = vst [vmem:[%s5250 + $0x30] sm:$0xff] %v5239
    %5258 = vst [vmem:[%s5250 + $0x38] sm:$0xff] %v5240
    %v5259 = vmul.f32 %v5209, %v5233
    %v5260 = vmul.f32 %v5210, %v5234
    %v5261 = vmul.f32 %v5211, %v5235
    %v5262 = vmul.f32 %v5212, %v5236
    %v5263 = vmul.f32 %v5213, %v5237
    %v5264 = vmul.f32 %v5214, %v5238
    %v5265 = vmul.f32 %v5215, %v5239
    %v5266 = vmul.f32 %v5216, %v5240
    %v5267 = vadd.f32 %v5259, %v5259
    %v5268 = vadd.f32 %v5260, %v5260
    %v5269 = vadd.f32 %v5261, %v5261
    %v5270 = vadd.f32 %v5262, %v5262
    %v5271 = vadd.f32 %v5263, %v5263
    %v5272 = vadd.f32 %v5264, %v5264
    %v5273 = vadd.f32 %v5265, %v5265
    %v5274 = vadd.f32 %v5266, %v5266
    %v5275 = vmul.f32 %v5233, %v5233
    %v5276 = vmul.f32 %v5234, %v5234
    %v5277 = vmul.f32 %v5235, %v5235
    %v5278 = vmul.f32 %v5236, %v5236
    %v5279 = vmul.f32 %v5237, %v5237
    %v5280 = vmul.f32 %v5238, %v5238
    %v5281 = vmul.f32 %v5239, %v5239
    %v5282 = vmul.f32 %v5240, %v5240
    %v5283 = vmul.f32 %v5209, %v5209
    %v5284 = vmul.f32 %v5210, %v5210
    %v5285 = vmul.f32 %v5211, %v5211
    %v5286 = vmul.f32 %v5212, %v5212
    %v5287 = vmul.f32 %v5213, %v5213
    %v5288 = vmul.f32 %v5214, %v5214
    %v5289 = vmul.f32 %v5215, %v5215
    %v5290 = vmul.f32 %v5216, %v5216
    %v5291 = vsub.f32 %v5275, %v5283
    %v5292 = vsub.f32 %v5276, %v5284
    %v5293 = vsub.f32 %v5277, %v5285
    %v5294 = vsub.f32 %v5278, %v5286
    %v5295 = vsub.f32 %v5279, %v5287
    %v5296 = vsub.f32 %v5280, %v5288
    %v5297 = vsub.f32 %v5281, %v5289
    %v5298 = vsub.f32 %v5282, %v5290
    %s5299 = scalar_lea.vmem [#allocation5], 832
    %5300 = vst [vmem:[%s5299] sm:$0xff] %v5267
    %5301 = vst [vmem:[%s5299 + $0x8] sm:$0xff] %v5268
    %5302 = vst [vmem:[%s5299 + $0x10] sm:$0xff] %v5269
    %5303 = vst [vmem:[%s5299 + $0x18] sm:$0xff] %v5270
    %5304 = vst [vmem:[%s5299 + $0x20] sm:$0xff] %v5271
    %5305 = vst [vmem:[%s5299 + $0x28] sm:$0xff] %v5272
    %5306 = vst [vmem:[%s5299 + $0x30] sm:$0xff] %v5273
    %5307 = vst [vmem:[%s5299 + $0x38] sm:$0xff] %v5274
    %s5308 = scalar_lea.vmem [#allocation5], 896
    %5309 = vst [vmem:[%s5308] sm:$0xff] %v5291
    %5310 = vst [vmem:[%s5308 + $0x8] sm:$0xff] %v5292
    %5311 = vst [vmem:[%s5308 + $0x10] sm:$0xff] %v5293
    %5312 = vst [vmem:[%s5308 + $0x18] sm:$0xff] %v5294
    %5313 = vst [vmem:[%s5308 + $0x20] sm:$0xff] %v5295
    %5314 = vst [vmem:[%s5308 + $0x28] sm:$0xff] %v5296
    %5315 = vst [vmem:[%s5308 + $0x30] sm:$0xff] %v5297
    %5316 = vst [vmem:[%s5308 + $0x38] sm:$0xff] %v5298
    %v5317 = vmul.f32 %v5267, %v5291
    %v5318 = vmul.f32 %v5268, %v5292
    %v5319 = vmul.f32 %v5269, %v5293
    %v5320 = vmul.f32 %v5270, %v5294
    %v5321 = vmul.f32 %v5271, %v5295
    %v5322 = vmul.f32 %v5272, %v5296
    %v5323 = vmul.f32 %v5273, %v5297
    %v5324 = vmul.f32 %v5274, %v5298
    %v5325 = vadd.f32 %v5317, %v5317
    %v5326 = vadd.f32 %v5318, %v5318
    %v5327 = vadd.f32 %v5319, %v5319
    %v5328 = vadd.f32 %v5320, %v5320
    %v5329 = vadd.f32 %v5321, %v5321
    %v5330 = vadd.f32 %v5322, %v5322
    %v5331 = vadd.f32 %v5323, %v5323
    %v5332 = vadd.f32 %v5324, %v5324
    %v5333 = vmul.f32 %v5291, %v5291
    %v5334 = vmul.f32 %v5292, %v5292
    %v5335 = vmul.f32 %v5293, %v5293
    %v5336 = vmul.f32 %v5294, %v5294
    %v5337 = vmul.f32 %v5295, %v5295
    %v5338 = vmul.f32 %v5296, %v5296
    %v5339 = vmul.f32 %v5297, %v5297
    %v5340 = vmul.f32 %v5298, %v5298
    %v5341 = vmul.f32 %v5267, %v5267
    %v5342 = vmul.f32 %v5268, %v5268
    %v5343 = vmul.f32 %v5269, %v5269
    %v5344 = vmul.f32 %v5270, %v5270
    %v5345 = vmul.f32 %v5271, %v5271
    %v5346 = vmul.f32 %v5272, %v5272
    %v5347 = vmul.f32 %v5273, %v5273
    %v5348 = vmul.f32 %v5274, %v5274
    %v5349 = vsub.f32 %v5333, %v5341
    %v5350 = vsub.f32 %v5334, %v5342
    %v5351 = vsub.f32 %v5335, %v5343
    %v5352 = vsub.f32 %v5336, %v5344
    %v5353 = vsub.f32 %v5337, %v5345
    %v5354 = vsub.f32 %v5338, %v5346
    %v5355 = vsub.f32 %v5339, %v5347
    %v5356 = vsub.f32 %v5340, %v5348
    %s5357 = scalar_lea.vmem [#allocation5], 960
    %5358 = vst [vmem:[%s5357] sm:$0xff] %v5325
    %5359 = vst [vmem:[%s5357 + $0x8] sm:$0xff] %v5326
    %5360 = vst [vmem:[%s5357 + $0x10] sm:$0xff] %v5327
    %5361 = vst [vmem:[%s5357 + $0x18] sm:$0xff] %v5328
    %5362 = vst [vmem:[%s5357 + $0x20] sm:$0xff] %v5329
    %5363 = vst [vmem:[%s5357 + $0x28] sm:$0xff] %v5330
    %5364 = vst [vmem:[%s5357 + $0x30] sm:$0xff] %v5331
    %5365 = vst [vmem:[%s5357 + $0x38] sm:$0xff] %v5332
    %s5366 = scalar_lea.vmem [#allocation5], 1024
    %5367 = vst [vmem:[%s5366] sm:$0xff] %v5349
    %5368 = vst [vmem:[%s5366 + $0x8] sm:$0xff] %v5350
    %5369 = vst [vmem:[%s5366 + $0x10] sm:$0xff] %v5351
    %5370 = vst [vmem:[%s5366 + $0x18] sm:$0xff] %v5352
    %5371 = vst [vmem:[%s5366 + $0x20] sm:$0xff] %v5353
    %5372 = vst [vmem:[%s5366 + $0x28] sm:$0xff] %v5354
    %5373 = vst [vmem:[%s5366 + $0x30] sm:$0xff] %v5355
    %5374 = vst [vmem:[%s5366 + $0x38] sm:$0xff] %v5356
    %v5375 = vmul.f32 %v23, 256.0
    %v5376 = vmul.f32 %v24, 256.0
    %v5377 = vmul.f32 %v25, 256.0
    %v5378 = vmul.f32 %v26, 256.0
    %v5379 = vmul.f32 %v27, 256.0
    %v5380 = vmul.f32 %v28, 256.0
    %v5381 = vmul.f32 %v29, 256.0
    %v5382 = vmul.f32 %v30, 256.0
    %v5383 = vand.u32 2147483647, %v5375
    %vm5384 = vcmp.le.f32.partialorder %v5383, 0.7853982
    %vm5385 = vcmp.lt.s32.totalorder %v5375, 0
    %v5386 = vand.u32 %v5375, 2139095040
    %v5387 = vshrl.u32 %v5386, 23
    %v5388 = vsub.s32 %v5387, 127
    %v5389 = vand.u32 2147483647, %v5375
    %v5390 = vand.u32 %v5389, 8388607
    %v5391 = vor.u32 %v5390, 8388608
    %v5392 = vsub.s32 0, %v5391
    %v5393 = vadd.s32 %v5388, 1
    %vm5394 = vcmp.gt.s32.totalorder %v5393, 0
    %v5395 = vsel %vm5394, %v5393, 0
    %v5396 = vshrl.u32 %v5395, 5
    %v5397 = vand.u32 %v5395, 31
    %v5398 = vsub.s32 32, %v5397
    %v5399 = vshrl.u32 683565275, %v5398
    %v5400 = vshll.u32 683565275, %v5397
    %v5401 = vshrl.u32 2475754826, %v5398
    %v5402 = vor.u32 %v5400, %v5401
    %v5403 = vshll.u32 2475754826, %v5397
    %v5404 = vshrl.u32 2131351028, %v5398
    %v5405 = vor.u32 %v5403, %v5404
    %v5406 = vshll.u32 2131351028, %v5397
    %v5407 = vshrl.u32 2102212464, %v5398
    %v5408 = vor.u32 %v5406, %v5407
    %v5409 = vshll.u32 2102212464, %v5397
    %v5410 = vshrl.u32 920167782, %v5398
    %v5411 = vor.u32 %v5409, %v5410
    %v5412 = vshll.u32 920167782, %v5397
    %v5413 = vshrl.u32 1326507024, %v5398
    %v5414 = vor.u32 %v5412, %v5413
    %vm5415 = vcmp.lt.s32.totalorder %v5396, 1
    %vm5416 = vcmp.lt.s32.totalorder %v5396, 2
    %vm5417 = vcmp.lt.s32.totalorder %v5396, 3
    %vm5418 = vcmp.lt.s32.totalorder %v5396, 4
    %v5419 = vsel %vm5415, %v5399, %v5402
    %v5420 = vsel %vm5418, %v5408, 2102212464
    %v5421 = vsel %vm5417, %v5405, %v5420
    %v5422 = vsel %vm5416, %v5419, %v5421
    %v5423 = vsel %vm5415, %v5402, %v5405
    %v5424 = vsel %vm5418, %v5411, 920167782
    %v5425 = vsel %vm5417, %v5408, %v5424
    %v5426 = vsel %vm5416, %v5423, %v5425
    %v5427 = vsel %vm5415, %v5405, %v5408
    %v5428 = vsel %vm5418, %v5414, 1326507024
    %v5429 = vsel %vm5417, %v5411, %v5428
    %v5430 = vsel %vm5416, %v5427, %v5429
    %v5431 = vshll.u32 %v5391, 8
    %v5432 = vand.u32 %v5431, 65535
    %v5433 = vshrl.u32 %v5431, 16
    %v5434 = vand.u32 %v5430, 65535
    %v5435 = vshrl.u32 %v5430, 16
    %v5436 = vmul.u32 %v5432, %v5434
    %v5437 = vmul.u32 %v5432, %v5435
    %v5438 = vmul.u32 %v5433, %v5434
    %v5439 = vmul.u32 %v5433, %v5435
    %v5440 = vshll.u32 %v5437, 16
    %v5441 = vshrl.u32 %v5437, 16
    %v5442 = vshll.u32 %v5438, 16
    %v5443 = vshrl.u32 %v5438, 16
    %vm5444 = vc.u32 %v5436, %v5440
    %v5445 = vsel %vm5444, 1, 0
    %v5446 = vadd.s32 %v5436, %v5440
    %v5447 = vadd.s32 %v5439, %v5445
    %vm5448 = vc.u32 %v5446, %v5442
    %v5449 = vsel %vm5448, 1, 0
    %v5450 = vadd.s32 %v5446, %v5442
    %v5451 = vadd.s32 %v5447, %v5449
    %v5452 = vadd.s32 %v5451, %v5441
    %v5453 = vadd.s32 %v5452, %v5443
    %v5454 = vand.u32 %v5431, 65535
    %v5455 = vshrl.u32 %v5431, 16
    %v5456 = vand.u32 %v5426, 65535
    %v5457 = vshrl.u32 %v5426, 16
    %v5458 = vmul.u32 %v5454, %v5456
    %v5459 = vmul.u32 %v5454, %v5457
    %v5460 = vmul.u32 %v5455, %v5456
    %v5461 = vmul.u32 %v5455, %v5457
    %v5462 = vshll.u32 %v5459, 16
    %v5463 = vshrl.u32 %v5459, 16
    %v5464 = vshll.u32 %v5460, 16
    %v5465 = vshrl.u32 %v5460, 16
    %vm5466 = vc.u32 %v5458, %v5462
    %v5467 = vsel %vm5466, 1, 0
    %v5468 = vadd.s32 %v5458, %v5462
    %v5469 = vadd.s32 %v5461, %v5467
    %vm5470 = vc.u32 %v5468, %v5464
    %v5471 = vsel %vm5470, 1, 0
    %v5472 = vadd.s32 %v5468, %v5464
    %v5473 = vadd.s32 %v5469, %v5471
    %v5474 = vadd.s32 %v5473, %v5463
    %v5475 = vadd.s32 %v5474, %v5465
    %v5476 = vmul.u32 %v5431, %v5422
    %v5477 = vadd.s32 %v5453, %v5472
    %vm5478 = vc.u32 %v5453, %v5472
    %v5479 = vadd.s32 %v5475, 1
    %v5480 = vsel %vm5478, %v5479, %v5475
    %v5481 = vadd.s32 %v5476, %v5480
    %v5482 = vadd.s32 %v5481, 536870912
    %v5483 = vshrl.u32 %v5482, 30
    %v5484 = vshll.u32 %v5483, 30
    %v5485 = vsub.s32 %v5481, %v5484
    %vm5486 = vcmp.lt.s32.totalorder %v5485, 0
    %v5487 = vsub.s32 0, %v5485
    %v5488 = vsel %vm5486, %v5487, %v5485
    %v5489 = vclz %v5488
    %v5490 = vsub.s32 %v5489, 2
    %vm5491 = vcmp.gt.s32.totalorder 0, %v5490
    %v5492 = vsel %vm5491, 0, %v5490
    %v5493 = vsub.s32 32, %v5492
    %v5494 = vshll.u32 %v5485, %v5492
    %v5495 = vshrl.u32 %v5477, %v5493
    %v5496 = vor.u32 %v5494, %v5495
    %v5497 = vsub.s32 4294967266, %v5492
    %v5498 = vadd.s32 %v5497, 127
    %v5499 = vshll.u32 %v5498, 23
    %v5500 = vor.u32 4788187, %v5499
    %v5501 = vand.u32 2147483647, %v5500
    %v5503 = vcvt.s32.f32 %v5496
    %v5504 = vmul.f32 %v5503, %v5501
    %v5505 = vxor.u32 %v5504, 2147483648
    %v5506 = vsel %vm5385, %v5505, %v5504
    %v5507 = vsub.s32 4, %v5483
    %v5508 = vsel %vm5385, %v5507, %v5483
    %v5509 = vsel %vm5384, %v5375, %v5506
    %v5510 = vsel %vm5384, 0, %v5508
    %v5511 = vmul.f32 %v5509, %v5509
    %v5512 = vmul.f32 %v5511, -0.001358992
    %v5513 = vadd.f32 %v5512, 0.041655596
    %v5514 = vmul.f32 %v5511, %v5513
    %v5515 = vadd.f32 %v5514, -0.4999988
    %v5516 = vmul.f32 %v5511, %v5515
    %v5517 = vadd.f32 1.0, %v5516
    %v5518 = vmul.f32 %v5509, %v5509
    %v5519 = vmul.f32 %v5518, -0.00019511016
    %v5520 = vadd.f32 %v5519, 0.008332121
    %v5521 = vmul.f32 %v5518, %v5520
    %v5522 = vadd.f32 %v5521, -0.16666654
    %v5523 = vmul.f32 %v5518, %v5522
    %v5524 = vadd.f32 %v5523, 1.0
    %v5525 = vmul.f32 %v5524, %v5509
    %vm5526 = vweird.f32 %v5375
    %v5527 = vadd.s32 %v5510, 3
    %v5528 = vand.u32 %v5527, 3
    %vm5529 = vcmp.lt.s32.totalorder %v5528, 2
    %vm5530 = vcmp.eq.s32.totalorder %v5528, 0
    %v5531 = vxor.u32 %v5525, 2147483648
    %v5532 = vsel %vm5530, %v5517, %v5531
    %vm5533 = vcmp.eq.s32.totalorder %v5528, 2
    %v5534 = vxor.u32 %v5517, 2147483648
    %v5535 = vsel %vm5533, %v5534, %v5525
    %v5536 = vsel %vm5529, %v5532, %v5535
    %v5537 = vsel %vm5526, nan, %v5536
    %v5538 = vand.u32 2147483647, %v5376
    %vm5539 = vcmp.le.f32.partialorder %v5538, 0.7853982
    %vm5540 = vcmp.lt.s32.totalorder %v5376, 0
    %v5541 = vand.u32 %v5376, 2139095040
    %v5542 = vshrl.u32 %v5541, 23
    %v5543 = vsub.s32 %v5542, 127
    %v5544 = vand.u32 2147483647, %v5376
    %v5545 = vand.u32 %v5544, 8388607
    %v5546 = vor.u32 %v5545, 8388608
    %v5547 = vsub.s32 0, %v5546
    %v5548 = vadd.s32 %v5543, 1
    %vm5549 = vcmp.gt.s32.totalorder %v5548, 0
    %v5550 = vsel %vm5549, %v5548, 0
    %v5551 = vshrl.u32 %v5550, 5
    %v5552 = vand.u32 %v5550, 31
    %v5553 = vsub.s32 32, %v5552
    %v5554 = vshrl.u32 683565275, %v5553
    %v5555 = vshll.u32 683565275, %v5552
    %v5556 = vshrl.u32 2475754826, %v5553
    %v5557 = vor.u32 %v5555, %v5556
    %v5558 = vshll.u32 2475754826, %v5552
    %v5559 = vshrl.u32 2131351028, %v5553
    %v5560 = vor.u32 %v5558, %v5559
    %v5561 = vshll.u32 2131351028, %v5552
    %v5562 = vshrl.u32 2102212464, %v5553
    %v5563 = vor.u32 %v5561, %v5562
    %v5564 = vshll.u32 2102212464, %v5552
    %v5565 = vshrl.u32 920167782, %v5553
    %v5566 = vor.u32 %v5564, %v5565
    %v5567 = vshll.u32 920167782, %v5552
    %v5568 = vshrl.u32 1326507024, %v5553
    %v5569 = vor.u32 %v5567, %v5568
    %vm5570 = vcmp.lt.s32.totalorder %v5551, 1
    %vm5571 = vcmp.lt.s32.totalorder %v5551, 2
    %vm5572 = vcmp.lt.s32.totalorder %v5551, 3
    %vm5573 = vcmp.lt.s32.totalorder %v5551, 4
    %v5574 = vsel %vm5570, %v5554, %v5557
    %v5575 = vsel %vm5573, %v5563, 2102212464
    %v5576 = vsel %vm5572, %v5560, %v5575
    %v5577 = vsel %vm5571, %v5574, %v5576
    %v5578 = vsel %vm5570, %v5557, %v5560
    %v5579 = vsel %vm5573, %v5566, 920167782
    %v5580 = vsel %vm5572, %v5563, %v5579
    %v5581 = vsel %vm5571, %v5578, %v5580
    %v5582 = vsel %vm5570, %v5560, %v5563
    %v5583 = vsel %vm5573, %v5569, 1326507024
    %v5584 = vsel %vm5572, %v5566, %v5583
    %v5585 = vsel %vm5571, %v5582, %v5584
    %v5586 = vshll.u32 %v5546, 8
    %v5587 = vand.u32 %v5586, 65535
    %v5588 = vshrl.u32 %v5586, 16
    %v5589 = vand.u32 %v5585, 65535
    %v5590 = vshrl.u32 %v5585, 16
    %v5591 = vmul.u32 %v5587, %v5589
    %v5592 = vmul.u32 %v5587, %v5590
    %v5593 = vmul.u32 %v5588, %v5589
    %v5594 = vmul.u32 %v5588, %v5590
    %v5595 = vshll.u32 %v5592, 16
    %v5596 = vshrl.u32 %v5592, 16
    %v5597 = vshll.u32 %v5593, 16
    %v5598 = vshrl.u32 %v5593, 16
    %vm5599 = vc.u32 %v5591, %v5595
    %v5600 = vsel %vm5599, 1, 0
    %v5601 = vadd.s32 %v5591, %v5595
    %v5602 = vadd.s32 %v5594, %v5600
    %vm5603 = vc.u32 %v5601, %v5597
    %v5604 = vsel %vm5603, 1, 0
    %v5605 = vadd.s32 %v5601, %v5597
    %v5606 = vadd.s32 %v5602, %v5604
    %v5607 = vadd.s32 %v5606, %v5596
    %v5608 = vadd.s32 %v5607, %v5598
    %v5609 = vand.u32 %v5586, 65535
    %v5610 = vshrl.u32 %v5586, 16
    %v5611 = vand.u32 %v5581, 65535
    %v5612 = vshrl.u32 %v5581, 16
    %v5613 = vmul.u32 %v5609, %v5611
    %v5614 = vmul.u32 %v5609, %v5612
    %v5615 = vmul.u32 %v5610, %v5611
    %v5616 = vmul.u32 %v5610, %v5612
    %v5617 = vshll.u32 %v5614, 16
    %v5618 = vshrl.u32 %v5614, 16
    %v5619 = vshll.u32 %v5615, 16
    %v5620 = vshrl.u32 %v5615, 16
    %vm5621 = vc.u32 %v5613, %v5617
    %v5622 = vsel %vm5621, 1, 0
    %v5623 = vadd.s32 %v5613, %v5617
    %v5624 = vadd.s32 %v5616, %v5622
    %vm5625 = vc.u32 %v5623, %v5619
    %v5626 = vsel %vm5625, 1, 0
    %v5627 = vadd.s32 %v5623, %v5619
    %v5628 = vadd.s32 %v5624, %v5626
    %v5629 = vadd.s32 %v5628, %v5618
    %v5630 = vadd.s32 %v5629, %v5620
    %v5631 = vmul.u32 %v5586, %v5577
    %v5632 = vadd.s32 %v5608, %v5627
    %vm5633 = vc.u32 %v5608, %v5627
    %v5634 = vadd.s32 %v5630, 1
    %v5635 = vsel %vm5633, %v5634, %v5630
    %v5636 = vadd.s32 %v5631, %v5635
    %v5637 = vadd.s32 %v5636, 536870912
    %v5638 = vshrl.u32 %v5637, 30
    %v5639 = vshll.u32 %v5638, 30
    %v5640 = vsub.s32 %v5636, %v5639
    %vm5641 = vcmp.lt.s32.totalorder %v5640, 0
    %v5642 = vsub.s32 0, %v5640
    %v5643 = vsel %vm5641, %v5642, %v5640
    %v5644 = vclz %v5643
    %v5645 = vsub.s32 %v5644, 2
    %vm5646 = vcmp.gt.s32.totalorder 0, %v5645
    %v5647 = vsel %vm5646, 0, %v5645
    %v5648 = vsub.s32 32, %v5647
    %v5649 = vshll.u32 %v5640, %v5647
    %v5650 = vshrl.u32 %v5632, %v5648
    %v5651 = vor.u32 %v5649, %v5650
    %v5652 = vsub.s32 4294967266, %v5647
    %v5653 = vadd.s32 %v5652, 127
    %v5654 = vshll.u32 %v5653, 23
    %v5655 = vor.u32 4788187, %v5654
    %v5656 = vand.u32 2147483647, %v5655
    %v5658 = vcvt.s32.f32 %v5651
    %v5659 = vmul.f32 %v5658, %v5656
    %v5660 = vxor.u32 %v5659, 2147483648
    %v5661 = vsel %vm5540, %v5660, %v5659
    %v5662 = vsub.s32 4, %v5638
    %v5663 = vsel %vm5540, %v5662, %v5638
    %v5664 = vsel %vm5539, %v5376, %v5661
    %v5665 = vsel %vm5539, 0, %v5663
    %v5666 = vmul.f32 %v5664, %v5664
    %v5667 = vmul.f32 %v5666, -0.001358992
    %v5668 = vadd.f32 %v5667, 0.041655596
    %v5669 = vmul.f32 %v5666, %v5668
    %v5670 = vadd.f32 %v5669, -0.4999988
    %v5671 = vmul.f32 %v5666, %v5670
    %v5672 = vadd.f32 1.0, %v5671
    %v5673 = vmul.f32 %v5664, %v5664
    %v5674 = vmul.f32 %v5673, -0.00019511016
    %v5675 = vadd.f32 %v5674, 0.008332121
    %v5676 = vmul.f32 %v5673, %v5675
    %v5677 = vadd.f32 %v5676, -0.16666654
    %v5678 = vmul.f32 %v5673, %v5677
    %v5679 = vadd.f32 %v5678, 1.0
    %v5680 = vmul.f32 %v5679, %v5664
    %vm5681 = vweird.f32 %v5376
    %v5682 = vadd.s32 %v5665, 3
    %v5683 = vand.u32 %v5682, 3
    %vm5684 = vcmp.lt.s32.totalorder %v5683, 2
    %vm5685 = vcmp.eq.s32.totalorder %v5683, 0
    %v5686 = vxor.u32 %v5680, 2147483648
    %v5687 = vsel %vm5685, %v5672, %v5686
    %vm5688 = vcmp.eq.s32.totalorder %v5683, 2
    %v5689 = vxor.u32 %v5672, 2147483648
    %v5690 = vsel %vm5688, %v5689, %v5680
    %v5691 = vsel %vm5684, %v5687, %v5690
    %v5692 = vsel %vm5681, nan, %v5691
    %v5693 = vand.u32 2147483647, %v5377
    %vm5694 = vcmp.le.f32.partialorder %v5693, 0.7853982
    %vm5695 = vcmp.lt.s32.totalorder %v5377, 0
    %v5696 = vand.u32 %v5377, 2139095040
    %v5697 = vshrl.u32 %v5696, 23
    %v5698 = vsub.s32 %v5697, 127
    %v5699 = vand.u32 2147483647, %v5377
    %v5700 = vand.u32 %v5699, 8388607
    %v5701 = vor.u32 %v5700, 8388608
    %v5702 = vsub.s32 0, %v5701
    %v5703 = vadd.s32 %v5698, 1
    %vm5704 = vcmp.gt.s32.totalorder %v5703, 0
    %v5705 = vsel %vm5704, %v5703, 0
    %v5706 = vshrl.u32 %v5705, 5
    %v5707 = vand.u32 %v5705, 31
    %v5708 = vsub.s32 32, %v5707
    %v5709 = vshrl.u32 683565275, %v5708
    %v5710 = vshll.u32 683565275, %v5707
    %v5711 = vshrl.u32 2475754826, %v5708
    %v5712 = vor.u32 %v5710, %v5711
    %v5713 = vshll.u32 2475754826, %v5707
    %v5714 = vshrl.u32 2131351028, %v5708
    %v5715 = vor.u32 %v5713, %v5714
    %v5716 = vshll.u32 2131351028, %v5707
    %v5717 = vshrl.u32 2102212464, %v5708
    %v5718 = vor.u32 %v5716, %v5717
    %v5719 = vshll.u32 2102212464, %v5707
    %v5720 = vshrl.u32 920167782, %v5708
    %v5721 = vor.u32 %v5719, %v5720
    %v5722 = vshll.u32 920167782, %v5707
    %v5723 = vshrl.u32 1326507024, %v5708
    %v5724 = vor.u32 %v5722, %v5723
    %vm5725 = vcmp.lt.s32.totalorder %v5706, 1
    %vm5726 = vcmp.lt.s32.totalorder %v5706, 2
    %vm5727 = vcmp.lt.s32.totalorder %v5706, 3
    %vm5728 = vcmp.lt.s32.totalorder %v5706, 4
    %v5729 = vsel %vm5725, %v5709, %v5712
    %v5730 = vsel %vm5728, %v5718, 2102212464
    %v5731 = vsel %vm5727, %v5715, %v5730
    %v5732 = vsel %vm5726, %v5729, %v5731
    %v5733 = vsel %vm5725, %v5712, %v5715
    %v5734 = vsel %vm5728, %v5721, 920167782
    %v5735 = vsel %vm5727, %v5718, %v5734
    %v5736 = vsel %vm5726, %v5733, %v5735
    %v5737 = vsel %vm5725, %v5715, %v5718
    %v5738 = vsel %vm5728, %v5724, 1326507024
    %v5739 = vsel %vm5727, %v5721, %v5738
    %v5740 = vsel %vm5726, %v5737, %v5739
    %v5741 = vshll.u32 %v5701, 8
    %v5742 = vand.u32 %v5741, 65535
    %v5743 = vshrl.u32 %v5741, 16
    %v5744 = vand.u32 %v5740, 65535
    %v5745 = vshrl.u32 %v5740, 16
    %v5746 = vmul.u32 %v5742, %v5744
    %v5747 = vmul.u32 %v5742, %v5745
    %v5748 = vmul.u32 %v5743, %v5744
    %v5749 = vmul.u32 %v5743, %v5745
    %v5750 = vshll.u32 %v5747, 16
    %v5751 = vshrl.u32 %v5747, 16
    %v5752 = vshll.u32 %v5748, 16
    %v5753 = vshrl.u32 %v5748, 16
    %vm5754 = vc.u32 %v5746, %v5750
    %v5755 = vsel %vm5754, 1, 0
    %v5756 = vadd.s32 %v5746, %v5750
    %v5757 = vadd.s32 %v5749, %v5755
    %vm5758 = vc.u32 %v5756, %v5752
    %v5759 = vsel %vm5758, 1, 0
    %v5760 = vadd.s32 %v5756, %v5752
    %v5761 = vadd.s32 %v5757, %v5759
    %v5762 = vadd.s32 %v5761, %v5751
    %v5763 = vadd.s32 %v5762, %v5753
    %v5764 = vand.u32 %v5741, 65535
    %v5765 = vshrl.u32 %v5741, 16
    %v5766 = vand.u32 %v5736, 65535
    %v5767 = vshrl.u32 %v5736, 16
    %v5768 = vmul.u32 %v5764, %v5766
    %v5769 = vmul.u32 %v5764, %v5767
    %v5770 = vmul.u32 %v5765, %v5766
    %v5771 = vmul.u32 %v5765, %v5767
    %v5772 = vshll.u32 %v5769, 16
    %v5773 = vshrl.u32 %v5769, 16
    %v5774 = vshll.u32 %v5770, 16
    %v5775 = vshrl.u32 %v5770, 16
    %vm5776 = vc.u32 %v5768, %v5772
    %v5777 = vsel %vm5776, 1, 0
    %v5778 = vadd.s32 %v5768, %v5772
    %v5779 = vadd.s32 %v5771, %v5777
    %vm5780 = vc.u32 %v5778, %v5774
    %v5781 = vsel %vm5780, 1, 0
    %v5782 = vadd.s32 %v5778, %v5774
    %v5783 = vadd.s32 %v5779, %v5781
    %v5784 = vadd.s32 %v5783, %v5773
    %v5785 = vadd.s32 %v5784, %v5775
    %v5786 = vmul.u32 %v5741, %v5732
    %v5787 = vadd.s32 %v5763, %v5782
    %vm5788 = vc.u32 %v5763, %v5782
    %v5789 = vadd.s32 %v5785, 1
    %v5790 = vsel %vm5788, %v5789, %v5785
    %v5791 = vadd.s32 %v5786, %v5790
    %v5792 = vadd.s32 %v5791, 536870912
    %v5793 = vshrl.u32 %v5792, 30
    %v5794 = vshll.u32 %v5793, 30
    %v5795 = vsub.s32 %v5791, %v5794
    %vm5796 = vcmp.lt.s32.totalorder %v5795, 0
    %v5797 = vsub.s32 0, %v5795
    %v5798 = vsel %vm5796, %v5797, %v5795
    %v5799 = vclz %v5798
    %v5800 = vsub.s32 %v5799, 2
    %vm5801 = vcmp.gt.s32.totalorder 0, %v5800
    %v5802 = vsel %vm5801, 0, %v5800
    %v5803 = vsub.s32 32, %v5802
    %v5804 = vshll.u32 %v5795, %v5802
    %v5805 = vshrl.u32 %v5787, %v5803
    %v5806 = vor.u32 %v5804, %v5805
    %v5807 = vsub.s32 4294967266, %v5802
    %v5808 = vadd.s32 %v5807, 127
    %v5809 = vshll.u32 %v5808, 23
    %v5810 = vor.u32 4788187, %v5809
    %v5811 = vand.u32 2147483647, %v5810
    %v5813 = vcvt.s32.f32 %v5806
    %v5814 = vmul.f32 %v5813, %v5811
    %v5815 = vxor.u32 %v5814, 2147483648
    %v5816 = vsel %vm5695, %v5815, %v5814
    %v5817 = vsub.s32 4, %v5793
    %v5818 = vsel %vm5695, %v5817, %v5793
    %v5819 = vsel %vm5694, %v5377, %v5816
    %v5820 = vsel %vm5694, 0, %v5818
    %v5821 = vmul.f32 %v5819, %v5819
    %v5822 = vmul.f32 %v5821, -0.001358992
    %v5823 = vadd.f32 %v5822, 0.041655596
    %v5824 = vmul.f32 %v5821, %v5823
    %v5825 = vadd.f32 %v5824, -0.4999988
    %v5826 = vmul.f32 %v5821, %v5825
    %v5827 = vadd.f32 1.0, %v5826
    %v5828 = vmul.f32 %v5819, %v5819
    %v5829 = vmul.f32 %v5828, -0.00019511016
    %v5830 = vadd.f32 %v5829, 0.008332121
    %v5831 = vmul.f32 %v5828, %v5830
    %v5832 = vadd.f32 %v5831, -0.16666654
    %v5833 = vmul.f32 %v5828, %v5832
    %v5834 = vadd.f32 %v5833, 1.0
    %v5835 = vmul.f32 %v5834, %v5819
    %vm5836 = vweird.f32 %v5377
    %v5837 = vadd.s32 %v5820, 3
    %v5838 = vand.u32 %v5837, 3
    %vm5839 = vcmp.lt.s32.totalorder %v5838, 2
    %vm5840 = vcmp.eq.s32.totalorder %v5838, 0
    %v5841 = vxor.u32 %v5835, 2147483648
    %v5842 = vsel %vm5840, %v5827, %v5841
    %vm5843 = vcmp.eq.s32.totalorder %v5838, 2
    %v5844 = vxor.u32 %v5827, 2147483648
    %v5845 = vsel %vm5843, %v5844, %v5835
    %v5846 = vsel %vm5839, %v5842, %v5845
    %v5847 = vsel %vm5836, nan, %v5846
    %v5848 = vand.u32 2147483647, %v5378
    %vm5849 = vcmp.le.f32.partialorder %v5848, 0.7853982
    %vm5850 = vcmp.lt.s32.totalorder %v5378, 0
    %v5851 = vand.u32 %v5378, 2139095040
    %v5852 = vshrl.u32 %v5851, 23
    %v5853 = vsub.s32 %v5852, 127
    %v5854 = vand.u32 2147483647, %v5378
    %v5855 = vand.u32 %v5854, 8388607
    %v5856 = vor.u32 %v5855, 8388608
    %v5857 = vsub.s32 0, %v5856
    %v5858 = vadd.s32 %v5853, 1
    %vm5859 = vcmp.gt.s32.totalorder %v5858, 0
    %v5860 = vsel %vm5859, %v5858, 0
    %v5861 = vshrl.u32 %v5860, 5
    %v5862 = vand.u32 %v5860, 31
    %v5863 = vsub.s32 32, %v5862
    %v5864 = vshrl.u32 683565275, %v5863
    %v5865 = vshll.u32 683565275, %v5862
    %v5866 = vshrl.u32 2475754826, %v5863
    %v5867 = vor.u32 %v5865, %v5866
    %v5868 = vshll.u32 2475754826, %v5862
    %v5869 = vshrl.u32 2131351028, %v5863
    %v5870 = vor.u32 %v5868, %v5869
    %v5871 = vshll.u32 2131351028, %v5862
    %v5872 = vshrl.u32 2102212464, %v5863
    %v5873 = vor.u32 %v5871, %v5872
    %v5874 = vshll.u32 2102212464, %v5862
    %v5875 = vshrl.u32 920167782, %v5863
    %v5876 = vor.u32 %v5874, %v5875
    %v5877 = vshll.u32 920167782, %v5862
    %v5878 = vshrl.u32 1326507024, %v5863
    %v5879 = vor.u32 %v5877, %v5878
    %vm5880 = vcmp.lt.s32.totalorder %v5861, 1
    %vm5881 = vcmp.lt.s32.totalorder %v5861, 2
    %vm5882 = vcmp.lt.s32.totalorder %v5861, 3
    %vm5883 = vcmp.lt.s32.totalorder %v5861, 4
    %v5884 = vsel %vm5880, %v5864, %v5867
    %v5885 = vsel %vm5883, %v5873, 2102212464
    %v5886 = vsel %vm5882, %v5870, %v5885
    %v5887 = vsel %vm5881, %v5884, %v5886
    %v5888 = vsel %vm5880, %v5867, %v5870
    %v5889 = vsel %vm5883, %v5876, 920167782
    %v5890 = vsel %vm5882, %v5873, %v5889
    %v5891 = vsel %vm5881, %v5888, %v5890
    %v5892 = vsel %vm5880, %v5870, %v5873
    %v5893 = vsel %vm5883, %v5879, 1326507024
    %v5894 = vsel %vm5882, %v5876, %v5893
    %v5895 = vsel %vm5881, %v5892, %v5894
    %v5896 = vshll.u32 %v5856, 8
    %v5897 = vand.u32 %v5896, 65535
    %v5898 = vshrl.u32 %v5896, 16
    %v5899 = vand.u32 %v5895, 65535
    %v5900 = vshrl.u32 %v5895, 16
    %v5901 = vmul.u32 %v5897, %v5899
    %v5902 = vmul.u32 %v5897, %v5900
    %v5903 = vmul.u32 %v5898, %v5899
    %v5904 = vmul.u32 %v5898, %v5900
    %v5905 = vshll.u32 %v5902, 16
    %v5906 = vshrl.u32 %v5902, 16
    %v5907 = vshll.u32 %v5903, 16
    %v5908 = vshrl.u32 %v5903, 16
    %vm5909 = vc.u32 %v5901, %v5905
    %v5910 = vsel %vm5909, 1, 0
    %v5911 = vadd.s32 %v5901, %v5905
    %v5912 = vadd.s32 %v5904, %v5910
    %vm5913 = vc.u32 %v5911, %v5907
    %v5914 = vsel %vm5913, 1, 0
    %v5915 = vadd.s32 %v5911, %v5907
    %v5916 = vadd.s32 %v5912, %v5914
    %v5917 = vadd.s32 %v5916, %v5906
    %v5918 = vadd.s32 %v5917, %v5908
    %v5919 = vand.u32 %v5896, 65535
    %v5920 = vshrl.u32 %v5896, 16
    %v5921 = vand.u32 %v5891, 65535
    %v5922 = vshrl.u32 %v5891, 16
    %v5923 = vmul.u32 %v5919, %v5921
    %v5924 = vmul.u32 %v5919, %v5922
    %v5925 = vmul.u32 %v5920, %v5921
    %v5926 = vmul.u32 %v5920, %v5922
    %v5927 = vshll.u32 %v5924, 16
    %v5928 = vshrl.u32 %v5924, 16
    %v5929 = vshll.u32 %v5925, 16
    %v5930 = vshrl.u32 %v5925, 16
    %vm5931 = vc.u32 %v5923, %v5927
    %v5932 = vsel %vm5931, 1, 0
    %v5933 = vadd.s32 %v5923, %v5927
    %v5934 = vadd.s32 %v5926, %v5932
    %vm5935 = vc.u32 %v5933, %v5929
    %v5936 = vsel %vm5935, 1, 0
    %v5937 = vadd.s32 %v5933, %v5929
    %v5938 = vadd.s32 %v5934, %v5936
    %v5939 = vadd.s32 %v5938, %v5928
    %v5940 = vadd.s32 %v5939, %v5930
    %v5941 = vmul.u32 %v5896, %v5887
    %v5942 = vadd.s32 %v5918, %v5937
    %vm5943 = vc.u32 %v5918, %v5937
    %v5944 = vadd.s32 %v5940, 1
    %v5945 = vsel %vm5943, %v5944, %v5940
    %v5946 = vadd.s32 %v5941, %v5945
    %v5947 = vadd.s32 %v5946, 536870912
    %v5948 = vshrl.u32 %v5947, 30
    %v5949 = vshll.u32 %v5948, 30
    %v5950 = vsub.s32 %v5946, %v5949
    %vm5951 = vcmp.lt.s32.totalorder %v5950, 0
    %v5952 = vsub.s32 0, %v5950
    %v5953 = vsel %vm5951, %v5952, %v5950
    %v5954 = vclz %v5953
    %v5955 = vsub.s32 %v5954, 2
    %vm5956 = vcmp.gt.s32.totalorder 0, %v5955
    %v5957 = vsel %vm5956, 0, %v5955
    %v5958 = vsub.s32 32, %v5957
    %v5959 = vshll.u32 %v5950, %v5957
    %v5960 = vshrl.u32 %v5942, %v5958
    %v5961 = vor.u32 %v5959, %v5960
    %v5962 = vsub.s32 4294967266, %v5957
    %v5963 = vadd.s32 %v5962, 127
    %v5964 = vshll.u32 %v5963, 23
    %v5965 = vor.u32 4788187, %v5964
    %v5966 = vand.u32 2147483647, %v5965
    %v5968 = vcvt.s32.f32 %v5961
    %v5969 = vmul.f32 %v5968, %v5966
    %v5970 = vxor.u32 %v5969, 2147483648
    %v5971 = vsel %vm5850, %v5970, %v5969
    %v5972 = vsub.s32 4, %v5948
    %v5973 = vsel %vm5850, %v5972, %v5948
    %v5974 = vsel %vm5849, %v5378, %v5971
    %v5975 = vsel %vm5849, 0, %v5973
    %v5976 = vmul.f32 %v5974, %v5974
    %v5977 = vmul.f32 %v5976, -0.001358992
    %v5978 = vadd.f32 %v5977, 0.041655596
    %v5979 = vmul.f32 %v5976, %v5978
    %v5980 = vadd.f32 %v5979, -0.4999988
    %v5981 = vmul.f32 %v5976, %v5980
    %v5982 = vadd.f32 1.0, %v5981
    %v5983 = vmul.f32 %v5974, %v5974
    %v5984 = vmul.f32 %v5983, -0.00019511016
    %v5985 = vadd.f32 %v5984, 0.008332121
    %v5986 = vmul.f32 %v5983, %v5985
    %v5987 = vadd.f32 %v5986, -0.16666654
    %v5988 = vmul.f32 %v5983, %v5987
    %v5989 = vadd.f32 %v5988, 1.0
    %v5990 = vmul.f32 %v5989, %v5974
    %vm5991 = vweird.f32 %v5378
    %v5992 = vadd.s32 %v5975, 3
    %v5993 = vand.u32 %v5992, 3
    %vm5994 = vcmp.lt.s32.totalorder %v5993, 2
    %vm5995 = vcmp.eq.s32.totalorder %v5993, 0
    %v5996 = vxor.u32 %v5990, 2147483648
    %v5997 = vsel %vm5995, %v5982, %v5996
    %vm5998 = vcmp.eq.s32.totalorder %v5993, 2
    %v5999 = vxor.u32 %v5982, 2147483648
    %v6000 = vsel %vm5998, %v5999, %v5990
    %v6001 = vsel %vm5994, %v5997, %v6000
    %v6002 = vsel %vm5991, nan, %v6001
    %v6003 = vand.u32 2147483647, %v5379
    %vm6004 = vcmp.le.f32.partialorder %v6003, 0.7853982
    %vm6005 = vcmp.lt.s32.totalorder %v5379, 0
    %v6006 = vand.u32 %v5379, 2139095040
    %v6007 = vshrl.u32 %v6006, 23
    %v6008 = vsub.s32 %v6007, 127
    %v6009 = vand.u32 2147483647, %v5379
    %v6010 = vand.u32 %v6009, 8388607
    %v6011 = vor.u32 %v6010, 8388608
    %v6012 = vsub.s32 0, %v6011
    %v6013 = vadd.s32 %v6008, 1
    %vm6014 = vcmp.gt.s32.totalorder %v6013, 0
    %v6015 = vsel %vm6014, %v6013, 0
    %v6016 = vshrl.u32 %v6015, 5
    %v6017 = vand.u32 %v6015, 31
    %v6018 = vsub.s32 32, %v6017
    %v6019 = vshrl.u32 683565275, %v6018
    %v6020 = vshll.u32 683565275, %v6017
    %v6021 = vshrl.u32 2475754826, %v6018
    %v6022 = vor.u32 %v6020, %v6021
    %v6023 = vshll.u32 2475754826, %v6017
    %v6024 = vshrl.u32 2131351028, %v6018
    %v6025 = vor.u32 %v6023, %v6024
    %v6026 = vshll.u32 2131351028, %v6017
    %v6027 = vshrl.u32 2102212464, %v6018
    %v6028 = vor.u32 %v6026, %v6027
    %v6029 = vshll.u32 2102212464, %v6017
    %v6030 = vshrl.u32 920167782, %v6018
    %v6031 = vor.u32 %v6029, %v6030
    %v6032 = vshll.u32 920167782, %v6017
    %v6033 = vshrl.u32 1326507024, %v6018
    %v6034 = vor.u32 %v6032, %v6033
    %vm6035 = vcmp.lt.s32.totalorder %v6016, 1
    %vm6036 = vcmp.lt.s32.totalorder %v6016, 2
    %vm6037 = vcmp.lt.s32.totalorder %v6016, 3
    %vm6038 = vcmp.lt.s32.totalorder %v6016, 4
    %v6039 = vsel %vm6035, %v6019, %v6022
    %v6040 = vsel %vm6038, %v6028, 2102212464
    %v6041 = vsel %vm6037, %v6025, %v6040
    %v6042 = vsel %vm6036, %v6039, %v6041
    %v6043 = vsel %vm6035, %v6022, %v6025
    %v6044 = vsel %vm6038, %v6031, 920167782
    %v6045 = vsel %vm6037, %v6028, %v6044
    %v6046 = vsel %vm6036, %v6043, %v6045
    %v6047 = vsel %vm6035, %v6025, %v6028
    %v6048 = vsel %vm6038, %v6034, 1326507024
    %v6049 = vsel %vm6037, %v6031, %v6048
    %v6050 = vsel %vm6036, %v6047, %v6049
    %v6051 = vshll.u32 %v6011, 8
    %v6052 = vand.u32 %v6051, 65535
    %v6053 = vshrl.u32 %v6051, 16
    %v6054 = vand.u32 %v6050, 65535
    %v6055 = vshrl.u32 %v6050, 16
    %v6056 = vmul.u32 %v6052, %v6054
    %v6057 = vmul.u32 %v6052, %v6055
    %v6058 = vmul.u32 %v6053, %v6054
    %v6059 = vmul.u32 %v6053, %v6055
    %v6060 = vshll.u32 %v6057, 16
    %v6061 = vshrl.u32 %v6057, 16
    %v6062 = vshll.u32 %v6058, 16
    %v6063 = vshrl.u32 %v6058, 16
    %vm6064 = vc.u32 %v6056, %v6060
    %v6065 = vsel %vm6064, 1, 0
    %v6066 = vadd.s32 %v6056, %v6060
    %v6067 = vadd.s32 %v6059, %v6065
    %vm6068 = vc.u32 %v6066, %v6062
    %v6069 = vsel %vm6068, 1, 0
    %v6070 = vadd.s32 %v6066, %v6062
    %v6071 = vadd.s32 %v6067, %v6069
    %v6072 = vadd.s32 %v6071, %v6061
    %v6073 = vadd.s32 %v6072, %v6063
    %v6074 = vand.u32 %v6051, 65535
    %v6075 = vshrl.u32 %v6051, 16
    %v6076 = vand.u32 %v6046, 65535
    %v6077 = vshrl.u32 %v6046, 16
    %v6078 = vmul.u32 %v6074, %v6076
    %v6079 = vmul.u32 %v6074, %v6077
    %v6080 = vmul.u32 %v6075, %v6076
    %v6081 = vmul.u32 %v6075, %v6077
    %v6082 = vshll.u32 %v6079, 16
    %v6083 = vshrl.u32 %v6079, 16
    %v6084 = vshll.u32 %v6080, 16
    %v6085 = vshrl.u32 %v6080, 16
    %vm6086 = vc.u32 %v6078, %v6082
    %v6087 = vsel %vm6086, 1, 0
    %v6088 = vadd.s32 %v6078, %v6082
    %v6089 = vadd.s32 %v6081, %v6087
    %vm6090 = vc.u32 %v6088, %v6084
    %v6091 = vsel %vm6090, 1, 0
    %v6092 = vadd.s32 %v6088, %v6084
    %v6093 = vadd.s32 %v6089, %v6091
    %v6094 = vadd.s32 %v6093, %v6083
    %v6095 = vadd.s32 %v6094, %v6085
    %v6096 = vmul.u32 %v6051, %v6042
    %v6097 = vadd.s32 %v6073, %v6092
    %vm6098 = vc.u32 %v6073, %v6092
    %v6099 = vadd.s32 %v6095, 1
    %v6100 = vsel %vm6098, %v6099, %v6095
    %v6101 = vadd.s32 %v6096, %v6100
    %v6102 = vadd.s32 %v6101, 536870912
    %v6103 = vshrl.u32 %v6102, 30
    %v6104 = vshll.u32 %v6103, 30
    %v6105 = vsub.s32 %v6101, %v6104
    %vm6106 = vcmp.lt.s32.totalorder %v6105, 0
    %v6107 = vsub.s32 0, %v6105
    %v6108 = vsel %vm6106, %v6107, %v6105
    %v6109 = vclz %v6108
    %v6110 = vsub.s32 %v6109, 2
    %vm6111 = vcmp.gt.s32.totalorder 0, %v6110
    %v6112 = vsel %vm6111, 0, %v6110
    %v6113 = vsub.s32 32, %v6112
    %v6114 = vshll.u32 %v6105, %v6112
    %v6115 = vshrl.u32 %v6097, %v6113
    %v6116 = vor.u32 %v6114, %v6115
    %v6117 = vsub.s32 4294967266, %v6112
    %v6118 = vadd.s32 %v6117, 127
    %v6119 = vshll.u32 %v6118, 23
    %v6120 = vor.u32 4788187, %v6119
    %v6121 = vand.u32 2147483647, %v6120
    %v6123 = vcvt.s32.f32 %v6116
    %v6124 = vmul.f32 %v6123, %v6121
    %v6125 = vxor.u32 %v6124, 2147483648
    %v6126 = vsel %vm6005, %v6125, %v6124
    %v6127 = vsub.s32 4, %v6103
    %v6128 = vsel %vm6005, %v6127, %v6103
    %v6129 = vsel %vm6004, %v5379, %v6126
    %v6130 = vsel %vm6004, 0, %v6128
    %v6131 = vmul.f32 %v6129, %v6129
    %v6132 = vmul.f32 %v6131, -0.001358992
    %v6133 = vadd.f32 %v6132, 0.041655596
    %v6134 = vmul.f32 %v6131, %v6133
    %v6135 = vadd.f32 %v6134, -0.4999988
    %v6136 = vmul.f32 %v6131, %v6135
    %v6137 = vadd.f32 1.0, %v6136
    %v6138 = vmul.f32 %v6129, %v6129
    %v6139 = vmul.f32 %v6138, -0.00019511016
    %v6140 = vadd.f32 %v6139, 0.008332121
    %v6141 = vmul.f32 %v6138, %v6140
    %v6142 = vadd.f32 %v6141, -0.16666654
    %v6143 = vmul.f32 %v6138, %v6142
    %v6144 = vadd.f32 %v6143, 1.0
    %v6145 = vmul.f32 %v6144, %v6129
    %vm6146 = vweird.f32 %v5379
    %v6147 = vadd.s32 %v6130, 3
    %v6148 = vand.u32 %v6147, 3
    %vm6149 = vcmp.lt.s32.totalorder %v6148, 2
    %vm6150 = vcmp.eq.s32.totalorder %v6148, 0
    %v6151 = vxor.u32 %v6145, 2147483648
    %v6152 = vsel %vm6150, %v6137, %v6151
    %vm6153 = vcmp.eq.s32.totalorder %v6148, 2
    %v6154 = vxor.u32 %v6137, 2147483648
    %v6155 = vsel %vm6153, %v6154, %v6145
    %v6156 = vsel %vm6149, %v6152, %v6155
    %v6157 = vsel %vm6146, nan, %v6156
    %v6158 = vand.u32 2147483647, %v5380
    %vm6159 = vcmp.le.f32.partialorder %v6158, 0.7853982
    %vm6160 = vcmp.lt.s32.totalorder %v5380, 0
    %v6161 = vand.u32 %v5380, 2139095040
    %v6162 = vshrl.u32 %v6161, 23
    %v6163 = vsub.s32 %v6162, 127
    %v6164 = vand.u32 2147483647, %v5380
    %v6165 = vand.u32 %v6164, 8388607
    %v6166 = vor.u32 %v6165, 8388608
    %v6167 = vsub.s32 0, %v6166
    %v6168 = vadd.s32 %v6163, 1
    %vm6169 = vcmp.gt.s32.totalorder %v6168, 0
    %v6170 = vsel %vm6169, %v6168, 0
    %v6171 = vshrl.u32 %v6170, 5
    %v6172 = vand.u32 %v6170, 31
    %v6173 = vsub.s32 32, %v6172
    %v6174 = vshrl.u32 683565275, %v6173
    %v6175 = vshll.u32 683565275, %v6172
    %v6176 = vshrl.u32 2475754826, %v6173
    %v6177 = vor.u32 %v6175, %v6176
    %v6178 = vshll.u32 2475754826, %v6172
    %v6179 = vshrl.u32 2131351028, %v6173
    %v6180 = vor.u32 %v6178, %v6179
    %v6181 = vshll.u32 2131351028, %v6172
    %v6182 = vshrl.u32 2102212464, %v6173
    %v6183 = vor.u32 %v6181, %v6182
    %v6184 = vshll.u32 2102212464, %v6172
    %v6185 = vshrl.u32 920167782, %v6173
    %v6186 = vor.u32 %v6184, %v6185
    %v6187 = vshll.u32 920167782, %v6172
    %v6188 = vshrl.u32 1326507024, %v6173
    %v6189 = vor.u32 %v6187, %v6188
    %vm6190 = vcmp.lt.s32.totalorder %v6171, 1
    %vm6191 = vcmp.lt.s32.totalorder %v6171, 2
    %vm6192 = vcmp.lt.s32.totalorder %v6171, 3
    %vm6193 = vcmp.lt.s32.totalorder %v6171, 4
    %v6194 = vsel %vm6190, %v6174, %v6177
    %v6195 = vsel %vm6193, %v6183, 2102212464
    %v6196 = vsel %vm6192, %v6180, %v6195
    %v6197 = vsel %vm6191, %v6194, %v6196
    %v6198 = vsel %vm6190, %v6177, %v6180
    %v6199 = vsel %vm6193, %v6186, 920167782
    %v6200 = vsel %vm6192, %v6183, %v6199
    %v6201 = vsel %vm6191, %v6198, %v6200
    %v6202 = vsel %vm6190, %v6180, %v6183
    %v6203 = vsel %vm6193, %v6189, 1326507024
    %v6204 = vsel %vm6192, %v6186, %v6203
    %v6205 = vsel %vm6191, %v6202, %v6204
    %v6206 = vshll.u32 %v6166, 8
    %v6207 = vand.u32 %v6206, 65535
    %v6208 = vshrl.u32 %v6206, 16
    %v6209 = vand.u32 %v6205, 65535
    %v6210 = vshrl.u32 %v6205, 16
    %v6211 = vmul.u32 %v6207, %v6209
    %v6212 = vmul.u32 %v6207, %v6210
    %v6213 = vmul.u32 %v6208, %v6209
    %v6214 = vmul.u32 %v6208, %v6210
    %v6215 = vshll.u32 %v6212, 16
    %v6216 = vshrl.u32 %v6212, 16
    %v6217 = vshll.u32 %v6213, 16
    %v6218 = vshrl.u32 %v6213, 16
    %vm6219 = vc.u32 %v6211, %v6215
    %v6220 = vsel %vm6219, 1, 0
    %v6221 = vadd.s32 %v6211, %v6215
    %v6222 = vadd.s32 %v6214, %v6220
    %vm6223 = vc.u32 %v6221, %v6217
    %v6224 = vsel %vm6223, 1, 0
    %v6225 = vadd.s32 %v6221, %v6217
    %v6226 = vadd.s32 %v6222, %v6224
    %v6227 = vadd.s32 %v6226, %v6216
    %v6228 = vadd.s32 %v6227, %v6218
    %v6229 = vand.u32 %v6206, 65535
    %v6230 = vshrl.u32 %v6206, 16
    %v6231 = vand.u32 %v6201, 65535
    %v6232 = vshrl.u32 %v6201, 16
    %v6233 = vmul.u32 %v6229, %v6231
    %v6234 = vmul.u32 %v6229, %v6232
    %v6235 = vmul.u32 %v6230, %v6231
    %v6236 = vmul.u32 %v6230, %v6232
    %v6237 = vshll.u32 %v6234, 16
    %v6238 = vshrl.u32 %v6234, 16
    %v6239 = vshll.u32 %v6235, 16
    %v6240 = vshrl.u32 %v6235, 16
    %vm6241 = vc.u32 %v6233, %v6237
    %v6242 = vsel %vm6241, 1, 0
    %v6243 = vadd.s32 %v6233, %v6237
    %v6244 = vadd.s32 %v6236, %v6242
    %vm6245 = vc.u32 %v6243, %v6239
    %v6246 = vsel %vm6245, 1, 0
    %v6247 = vadd.s32 %v6243, %v6239
    %v6248 = vadd.s32 %v6244, %v6246
    %v6249 = vadd.s32 %v6248, %v6238
    %v6250 = vadd.s32 %v6249, %v6240
    %v6251 = vmul.u32 %v6206, %v6197
    %v6252 = vadd.s32 %v6228, %v6247
    %vm6253 = vc.u32 %v6228, %v6247
    %v6254 = vadd.s32 %v6250, 1
    %v6255 = vsel %vm6253, %v6254, %v6250
    %v6256 = vadd.s32 %v6251, %v6255
    %v6257 = vadd.s32 %v6256, 536870912
    %v6258 = vshrl.u32 %v6257, 30
    %v6259 = vshll.u32 %v6258, 30
    %v6260 = vsub.s32 %v6256, %v6259
    %vm6261 = vcmp.lt.s32.totalorder %v6260, 0
    %v6262 = vsub.s32 0, %v6260
    %v6263 = vsel %vm6261, %v6262, %v6260
    %v6264 = vclz %v6263
    %v6265 = vsub.s32 %v6264, 2
    %vm6266 = vcmp.gt.s32.totalorder 0, %v6265
    %v6267 = vsel %vm6266, 0, %v6265
    %v6268 = vsub.s32 32, %v6267
    %v6269 = vshll.u32 %v6260, %v6267
    %v6270 = vshrl.u32 %v6252, %v6268
    %v6271 = vor.u32 %v6269, %v6270
    %v6272 = vsub.s32 4294967266, %v6267
    %v6273 = vadd.s32 %v6272, 127
    %v6274 = vshll.u32 %v6273, 23
    %v6275 = vor.u32 4788187, %v6274
    %v6276 = vand.u32 2147483647, %v6275
    %v6278 = vcvt.s32.f32 %v6271
    %v6279 = vmul.f32 %v6278, %v6276
    %v6280 = vxor.u32 %v6279, 2147483648
    %v6281 = vsel %vm6160, %v6280, %v6279
    %v6282 = vsub.s32 4, %v6258
    %v6283 = vsel %vm6160, %v6282, %v6258
    %v6284 = vsel %vm6159, %v5380, %v6281
    %v6285 = vsel %vm6159, 0, %v6283
    %v6286 = vmul.f32 %v6284, %v6284
    %v6287 = vmul.f32 %v6286, -0.001358992
    %v6288 = vadd.f32 %v6287, 0.041655596
    %v6289 = vmul.f32 %v6286, %v6288
    %v6290 = vadd.f32 %v6289, -0.4999988
    %v6291 = vmul.f32 %v6286, %v6290
    %v6292 = vadd.f32 1.0, %v6291
    %v6293 = vmul.f32 %v6284, %v6284
    %v6294 = vmul.f32 %v6293, -0.00019511016
    %v6295 = vadd.f32 %v6294, 0.008332121
    %v6296 = vmul.f32 %v6293, %v6295
    %v6297 = vadd.f32 %v6296, -0.16666654
    %v6298 = vmul.f32 %v6293, %v6297
    %v6299 = vadd.f32 %v6298, 1.0
    %v6300 = vmul.f32 %v6299, %v6284
    %vm6301 = vweird.f32 %v5380
    %v6302 = vadd.s32 %v6285, 3
    %v6303 = vand.u32 %v6302, 3
    %vm6304 = vcmp.lt.s32.totalorder %v6303, 2
    %vm6305 = vcmp.eq.s32.totalorder %v6303, 0
    %v6306 = vxor.u32 %v6300, 2147483648
    %v6307 = vsel %vm6305, %v6292, %v6306
    %vm6308 = vcmp.eq.s32.totalorder %v6303, 2
    %v6309 = vxor.u32 %v6292, 2147483648
    %v6310 = vsel %vm6308, %v6309, %v6300
    %v6311 = vsel %vm6304, %v6307, %v6310
    %v6312 = vsel %vm6301, nan, %v6311
    %v6313 = vand.u32 2147483647, %v5381
    %vm6314 = vcmp.le.f32.partialorder %v6313, 0.7853982
    %vm6315 = vcmp.lt.s32.totalorder %v5381, 0
    %v6316 = vand.u32 %v5381, 2139095040
    %v6317 = vshrl.u32 %v6316, 23
    %v6318 = vsub.s32 %v6317, 127
    %v6319 = vand.u32 2147483647, %v5381
    %v6320 = vand.u32 %v6319, 8388607
    %v6321 = vor.u32 %v6320, 8388608
    %v6322 = vsub.s32 0, %v6321
    %v6323 = vadd.s32 %v6318, 1
    %vm6324 = vcmp.gt.s32.totalorder %v6323, 0
    %v6325 = vsel %vm6324, %v6323, 0
    %v6326 = vshrl.u32 %v6325, 5
    %v6327 = vand.u32 %v6325, 31
    %v6328 = vsub.s32 32, %v6327
    %v6329 = vshrl.u32 683565275, %v6328
    %v6330 = vshll.u32 683565275, %v6327
    %v6331 = vshrl.u32 2475754826, %v6328
    %v6332 = vor.u32 %v6330, %v6331
    %v6333 = vshll.u32 2475754826, %v6327
    %v6334 = vshrl.u32 2131351028, %v6328
    %v6335 = vor.u32 %v6333, %v6334
    %v6336 = vshll.u32 2131351028, %v6327
    %v6337 = vshrl.u32 2102212464, %v6328
    %v6338 = vor.u32 %v6336, %v6337
    %v6339 = vshll.u32 2102212464, %v6327
    %v6340 = vshrl.u32 920167782, %v6328
    %v6341 = vor.u32 %v6339, %v6340
    %v6342 = vshll.u32 920167782, %v6327
    %v6343 = vshrl.u32 1326507024, %v6328
    %v6344 = vor.u32 %v6342, %v6343
    %vm6345 = vcmp.lt.s32.totalorder %v6326, 1
    %vm6346 = vcmp.lt.s32.totalorder %v6326, 2
    %vm6347 = vcmp.lt.s32.totalorder %v6326, 3
    %vm6348 = vcmp.lt.s32.totalorder %v6326, 4
    %v6349 = vsel %vm6345, %v6329, %v6332
    %v6350 = vsel %vm6348, %v6338, 2102212464
    %v6351 = vsel %vm6347, %v6335, %v6350
    %v6352 = vsel %vm6346, %v6349, %v6351
    %v6353 = vsel %vm6345, %v6332, %v6335
    %v6354 = vsel %vm6348, %v6341, 920167782
    %v6355 = vsel %vm6347, %v6338, %v6354
    %v6356 = vsel %vm6346, %v6353, %v6355
    %v6357 = vsel %vm6345, %v6335, %v6338
    %v6358 = vsel %vm6348, %v6344, 1326507024
    %v6359 = vsel %vm6347, %v6341, %v6358
    %v6360 = vsel %vm6346, %v6357, %v6359
    %v6361 = vshll.u32 %v6321, 8
    %v6362 = vand.u32 %v6361, 65535
    %v6363 = vshrl.u32 %v6361, 16
    %v6364 = vand.u32 %v6360, 65535
    %v6365 = vshrl.u32 %v6360, 16
    %v6366 = vmul.u32 %v6362, %v6364
    %v6367 = vmul.u32 %v6362, %v6365
    %v6368 = vmul.u32 %v6363, %v6364
    %v6369 = vmul.u32 %v6363, %v6365
    %v6370 = vshll.u32 %v6367, 16
    %v6371 = vshrl.u32 %v6367, 16
    %v6372 = vshll.u32 %v6368, 16
    %v6373 = vshrl.u32 %v6368, 16
    %vm6374 = vc.u32 %v6366, %v6370
    %v6375 = vsel %vm6374, 1, 0
    %v6376 = vadd.s32 %v6366, %v6370
    %v6377 = vadd.s32 %v6369, %v6375
    %vm6378 = vc.u32 %v6376, %v6372
    %v6379 = vsel %vm6378, 1, 0
    %v6380 = vadd.s32 %v6376, %v6372
    %v6381 = vadd.s32 %v6377, %v6379
    %v6382 = vadd.s32 %v6381, %v6371
    %v6383 = vadd.s32 %v6382, %v6373
    %v6384 = vand.u32 %v6361, 65535
    %v6385 = vshrl.u32 %v6361, 16
    %v6386 = vand.u32 %v6356, 65535
    %v6387 = vshrl.u32 %v6356, 16
    %v6388 = vmul.u32 %v6384, %v6386
    %v6389 = vmul.u32 %v6384, %v6387
    %v6390 = vmul.u32 %v6385, %v6386
    %v6391 = vmul.u32 %v6385, %v6387
    %v6392 = vshll.u32 %v6389, 16
    %v6393 = vshrl.u32 %v6389, 16
    %v6394 = vshll.u32 %v6390, 16
    %v6395 = vshrl.u32 %v6390, 16
    %vm6396 = vc.u32 %v6388, %v6392
    %v6397 = vsel %vm6396, 1, 0
    %v6398 = vadd.s32 %v6388, %v6392
    %v6399 = vadd.s32 %v6391, %v6397
    %vm6400 = vc.u32 %v6398, %v6394
    %v6401 = vsel %vm6400, 1, 0
    %v6402 = vadd.s32 %v6398, %v6394
    %v6403 = vadd.s32 %v6399, %v6401
    %v6404 = vadd.s32 %v6403, %v6393
    %v6405 = vadd.s32 %v6404, %v6395
    %v6406 = vmul.u32 %v6361, %v6352
    %v6407 = vadd.s32 %v6383, %v6402
    %vm6408 = vc.u32 %v6383, %v6402
    %v6409 = vadd.s32 %v6405, 1
    %v6410 = vsel %vm6408, %v6409, %v6405
    %v6411 = vadd.s32 %v6406, %v6410
    %v6412 = vadd.s32 %v6411, 536870912
    %v6413 = vshrl.u32 %v6412, 30
    %v6414 = vshll.u32 %v6413, 30
    %v6415 = vsub.s32 %v6411, %v6414
    %vm6416 = vcmp.lt.s32.totalorder %v6415, 0
    %v6417 = vsub.s32 0, %v6415
    %v6418 = vsel %vm6416, %v6417, %v6415
    %v6419 = vclz %v6418
    %v6420 = vsub.s32 %v6419, 2
    %vm6421 = vcmp.gt.s32.totalorder 0, %v6420
    %v6422 = vsel %vm6421, 0, %v6420
    %v6423 = vsub.s32 32, %v6422
    %v6424 = vshll.u32 %v6415, %v6422
    %v6425 = vshrl.u32 %v6407, %v6423
    %v6426 = vor.u32 %v6424, %v6425
    %v6427 = vsub.s32 4294967266, %v6422
    %v6428 = vadd.s32 %v6427, 127
    %v6429 = vshll.u32 %v6428, 23
    %v6430 = vor.u32 4788187, %v6429
    %v6431 = vand.u32 2147483647, %v6430
    %v6433 = vcvt.s32.f32 %v6426
    %v6434 = vmul.f32 %v6433, %v6431
    %v6435 = vxor.u32 %v6434, 2147483648
    %v6436 = vsel %vm6315, %v6435, %v6434
    %v6437 = vsub.s32 4, %v6413
    %v6438 = vsel %vm6315, %v6437, %v6413
    %v6439 = vsel %vm6314, %v5381, %v6436
    %v6440 = vsel %vm6314, 0, %v6438
    %v6441 = vmul.f32 %v6439, %v6439
    %v6442 = vmul.f32 %v6441, -0.001358992
    %v6443 = vadd.f32 %v6442, 0.041655596
    %v6444 = vmul.f32 %v6441, %v6443
    %v6445 = vadd.f32 %v6444, -0.4999988
    %v6446 = vmul.f32 %v6441, %v6445
    %v6447 = vadd.f32 1.0, %v6446
    %v6448 = vmul.f32 %v6439, %v6439
    %v6449 = vmul.f32 %v6448, -0.00019511016
    %v6450 = vadd.f32 %v6449, 0.008332121
    %v6451 = vmul.f32 %v6448, %v6450
    %v6452 = vadd.f32 %v6451, -0.16666654
    %v6453 = vmul.f32 %v6448, %v6452
    %v6454 = vadd.f32 %v6453, 1.0
    %v6455 = vmul.f32 %v6454, %v6439
    %vm6456 = vweird.f32 %v5381
    %v6457 = vadd.s32 %v6440, 3
    %v6458 = vand.u32 %v6457, 3
    %vm6459 = vcmp.lt.s32.totalorder %v6458, 2
    %vm6460 = vcmp.eq.s32.totalorder %v6458, 0
    %v6461 = vxor.u32 %v6455, 2147483648
    %v6462 = vsel %vm6460, %v6447, %v6461
    %vm6463 = vcmp.eq.s32.totalorder %v6458, 2
    %v6464 = vxor.u32 %v6447, 2147483648
    %v6465 = vsel %vm6463, %v6464, %v6455
    %v6466 = vsel %vm6459, %v6462, %v6465
    %v6467 = vsel %vm6456, nan, %v6466
    %v6468 = vand.u32 2147483647, %v5382
    %vm6469 = vcmp.le.f32.partialorder %v6468, 0.7853982
    %vm6470 = vcmp.lt.s32.totalorder %v5382, 0
    %v6471 = vand.u32 %v5382, 2139095040
    %v6472 = vshrl.u32 %v6471, 23
    %v6473 = vsub.s32 %v6472, 127
    %v6474 = vand.u32 2147483647, %v5382
    %v6475 = vand.u32 %v6474, 8388607
    %v6476 = vor.u32 %v6475, 8388608
    %v6477 = vsub.s32 0, %v6476
    %v6478 = vadd.s32 %v6473, 1
    %vm6479 = vcmp.gt.s32.totalorder %v6478, 0
    %v6480 = vsel %vm6479, %v6478, 0
    %v6481 = vshrl.u32 %v6480, 5
    %v6482 = vand.u32 %v6480, 31
    %v6483 = vsub.s32 32, %v6482
    %v6484 = vshrl.u32 683565275, %v6483
    %v6485 = vshll.u32 683565275, %v6482
    %v6486 = vshrl.u32 2475754826, %v6483
    %v6487 = vor.u32 %v6485, %v6486
    %v6488 = vshll.u32 2475754826, %v6482
    %v6489 = vshrl.u32 2131351028, %v6483
    %v6490 = vor.u32 %v6488, %v6489
    %v6491 = vshll.u32 2131351028, %v6482
    %v6492 = vshrl.u32 2102212464, %v6483
    %v6493 = vor.u32 %v6491, %v6492
    %v6494 = vshll.u32 2102212464, %v6482
    %v6495 = vshrl.u32 920167782, %v6483
    %v6496 = vor.u32 %v6494, %v6495
    %v6497 = vshll.u32 920167782, %v6482
    %v6498 = vshrl.u32 1326507024, %v6483
    %v6499 = vor.u32 %v6497, %v6498
    %vm6500 = vcmp.lt.s32.totalorder %v6481, 1
    %vm6501 = vcmp.lt.s32.totalorder %v6481, 2
    %vm6502 = vcmp.lt.s32.totalorder %v6481, 3
    %vm6503 = vcmp.lt.s32.totalorder %v6481, 4
    %v6504 = vsel %vm6500, %v6484, %v6487
    %v6505 = vsel %vm6503, %v6493, 2102212464
    %v6506 = vsel %vm6502, %v6490, %v6505
    %v6507 = vsel %vm6501, %v6504, %v6506
    %v6508 = vsel %vm6500, %v6487, %v6490
    %v6509 = vsel %vm6503, %v6496, 920167782
    %v6510 = vsel %vm6502, %v6493, %v6509
    %v6511 = vsel %vm6501, %v6508, %v6510
    %v6512 = vsel %vm6500, %v6490, %v6493
    %v6513 = vsel %vm6503, %v6499, 1326507024
    %v6514 = vsel %vm6502, %v6496, %v6513
    %v6515 = vsel %vm6501, %v6512, %v6514
    %v6516 = vshll.u32 %v6476, 8
    %v6517 = vand.u32 %v6516, 65535
    %v6518 = vshrl.u32 %v6516, 16
    %v6519 = vand.u32 %v6515, 65535
    %v6520 = vshrl.u32 %v6515, 16
    %v6521 = vmul.u32 %v6517, %v6519
    %v6522 = vmul.u32 %v6517, %v6520
    %v6523 = vmul.u32 %v6518, %v6519
    %v6524 = vmul.u32 %v6518, %v6520
    %v6525 = vshll.u32 %v6522, 16
    %v6526 = vshrl.u32 %v6522, 16
    %v6527 = vshll.u32 %v6523, 16
    %v6528 = vshrl.u32 %v6523, 16
    %vm6529 = vc.u32 %v6521, %v6525
    %v6530 = vsel %vm6529, 1, 0
    %v6531 = vadd.s32 %v6521, %v6525
    %v6532 = vadd.s32 %v6524, %v6530
    %vm6533 = vc.u32 %v6531, %v6527
    %v6534 = vsel %vm6533, 1, 0
    %v6535 = vadd.s32 %v6531, %v6527
    %v6536 = vadd.s32 %v6532, %v6534
    %v6537 = vadd.s32 %v6536, %v6526
    %v6538 = vadd.s32 %v6537, %v6528
    %v6539 = vand.u32 %v6516, 65535
    %v6540 = vshrl.u32 %v6516, 16
    %v6541 = vand.u32 %v6511, 65535
    %v6542 = vshrl.u32 %v6511, 16
    %v6543 = vmul.u32 %v6539, %v6541
    %v6544 = vmul.u32 %v6539, %v6542
    %v6545 = vmul.u32 %v6540, %v6541
    %v6546 = vmul.u32 %v6540, %v6542
    %v6547 = vshll.u32 %v6544, 16
    %v6548 = vshrl.u32 %v6544, 16
    %v6549 = vshll.u32 %v6545, 16
    %v6550 = vshrl.u32 %v6545, 16
    %vm6551 = vc.u32 %v6543, %v6547
    %v6552 = vsel %vm6551, 1, 0
    %v6553 = vadd.s32 %v6543, %v6547
    %v6554 = vadd.s32 %v6546, %v6552
    %vm6555 = vc.u32 %v6553, %v6549
    %v6556 = vsel %vm6555, 1, 0
    %v6557 = vadd.s32 %v6553, %v6549
    %v6558 = vadd.s32 %v6554, %v6556
    %v6559 = vadd.s32 %v6558, %v6548
    %v6560 = vadd.s32 %v6559, %v6550
    %v6561 = vmul.u32 %v6516, %v6507
    %v6562 = vadd.s32 %v6538, %v6557
    %vm6563 = vc.u32 %v6538, %v6557
    %v6564 = vadd.s32 %v6560, 1
    %v6565 = vsel %vm6563, %v6564, %v6560
    %v6566 = vadd.s32 %v6561, %v6565
    %v6567 = vadd.s32 %v6566, 536870912
    %v6568 = vshrl.u32 %v6567, 30
    %v6569 = vshll.u32 %v6568, 30
    %v6570 = vsub.s32 %v6566, %v6569
    %vm6571 = vcmp.lt.s32.totalorder %v6570, 0
    %v6572 = vsub.s32 0, %v6570
    %v6573 = vsel %vm6571, %v6572, %v6570
    %v6574 = vclz %v6573
    %v6575 = vsub.s32 %v6574, 2
    %vm6576 = vcmp.gt.s32.totalorder 0, %v6575
    %v6577 = vsel %vm6576, 0, %v6575
    %v6578 = vsub.s32 32, %v6577
    %v6579 = vshll.u32 %v6570, %v6577
    %v6580 = vshrl.u32 %v6562, %v6578
    %v6581 = vor.u32 %v6579, %v6580
    %v6582 = vsub.s32 4294967266, %v6577
    %v6583 = vadd.s32 %v6582, 127
    %v6584 = vshll.u32 %v6583, 23
    %v6585 = vor.u32 4788187, %v6584
    %v6586 = vand.u32 2147483647, %v6585
    %v6588 = vcvt.s32.f32 %v6581
    %v6589 = vmul.f32 %v6588, %v6586
    %v6590 = vxor.u32 %v6589, 2147483648
    %v6591 = vsel %vm6470, %v6590, %v6589
    %v6592 = vsub.s32 4, %v6568
    %v6593 = vsel %vm6470, %v6592, %v6568
    %v6594 = vsel %vm6469, %v5382, %v6591
    %v6595 = vsel %vm6469, 0, %v6593
    %v6596 = vmul.f32 %v6594, %v6594
    %v6597 = vmul.f32 %v6596, -0.001358992
    %v6598 = vadd.f32 %v6597, 0.041655596
    %v6599 = vmul.f32 %v6596, %v6598
    %v6600 = vadd.f32 %v6599, -0.4999988
    %v6601 = vmul.f32 %v6596, %v6600
    %v6602 = vadd.f32 1.0, %v6601
    %v6603 = vmul.f32 %v6594, %v6594
    %v6604 = vmul.f32 %v6603, -0.00019511016
    %v6605 = vadd.f32 %v6604, 0.008332121
    %v6606 = vmul.f32 %v6603, %v6605
    %v6607 = vadd.f32 %v6606, -0.16666654
    %v6608 = vmul.f32 %v6603, %v6607
    %v6609 = vadd.f32 %v6608, 1.0
    %v6610 = vmul.f32 %v6609, %v6594
    %vm6611 = vweird.f32 %v5382
    %v6612 = vadd.s32 %v6595, 3
    %v6613 = vand.u32 %v6612, 3
    %vm6614 = vcmp.lt.s32.totalorder %v6613, 2
    %vm6615 = vcmp.eq.s32.totalorder %v6613, 0
    %v6616 = vxor.u32 %v6610, 2147483648
    %v6617 = vsel %vm6615, %v6602, %v6616
    %vm6618 = vcmp.eq.s32.totalorder %v6613, 2
    %v6619 = vxor.u32 %v6602, 2147483648
    %v6620 = vsel %vm6618, %v6619, %v6610
    %v6621 = vsel %vm6614, %v6617, %v6620
    %v6622 = vsel %vm6611, nan, %v6621
    %v6623 = vand.u32 2147483647, %v5375
    %vm6624 = vcmp.le.f32.partialorder %v6623, 0.7853982
    %vm6625 = vcmp.lt.s32.totalorder %v5375, 0
    %v6626 = vand.u32 %v5375, 2139095040
    %v6627 = vshrl.u32 %v6626, 23
    %v6628 = vsub.s32 %v6627, 127
    %v6629 = vand.u32 2147483647, %v5375
    %v6630 = vand.u32 %v6629, 8388607
    %v6631 = vor.u32 %v6630, 8388608
    %v6632 = vsub.s32 0, %v6631
    %v6633 = vadd.s32 %v6628, 1
    %vm6634 = vcmp.gt.s32.totalorder %v6633, 0
    %v6635 = vsel %vm6634, %v6633, 0
    %v6636 = vshrl.u32 %v6635, 5
    %v6637 = vand.u32 %v6635, 31
    %v6638 = vsub.s32 32, %v6637
    %v6639 = vshrl.u32 683565275, %v6638
    %v6640 = vshll.u32 683565275, %v6637
    %v6641 = vshrl.u32 2475754826, %v6638
    %v6642 = vor.u32 %v6640, %v6641
    %v6643 = vshll.u32 2475754826, %v6637
    %v6644 = vshrl.u32 2131351028, %v6638
    %v6645 = vor.u32 %v6643, %v6644
    %v6646 = vshll.u32 2131351028, %v6637
    %v6647 = vshrl.u32 2102212464, %v6638
    %v6648 = vor.u32 %v6646, %v6647
    %v6649 = vshll.u32 2102212464, %v6637
    %v6650 = vshrl.u32 920167782, %v6638
    %v6651 = vor.u32 %v6649, %v6650
    %v6652 = vshll.u32 920167782, %v6637
    %v6653 = vshrl.u32 1326507024, %v6638
    %v6654 = vor.u32 %v6652, %v6653
    %vm6655 = vcmp.lt.s32.totalorder %v6636, 1
    %vm6656 = vcmp.lt.s32.totalorder %v6636, 2
    %vm6657 = vcmp.lt.s32.totalorder %v6636, 3
    %vm6658 = vcmp.lt.s32.totalorder %v6636, 4
    %v6659 = vsel %vm6655, %v6639, %v6642
    %v6660 = vsel %vm6658, %v6648, 2102212464
    %v6661 = vsel %vm6657, %v6645, %v6660
    %v6662 = vsel %vm6656, %v6659, %v6661
    %v6663 = vsel %vm6655, %v6642, %v6645
    %v6664 = vsel %vm6658, %v6651, 920167782
    %v6665 = vsel %vm6657, %v6648, %v6664
    %v6666 = vsel %vm6656, %v6663, %v6665
    %v6667 = vsel %vm6655, %v6645, %v6648
    %v6668 = vsel %vm6658, %v6654, 1326507024
    %v6669 = vsel %vm6657, %v6651, %v6668
    %v6670 = vsel %vm6656, %v6667, %v6669
    %v6671 = vshll.u32 %v6631, 8
    %v6672 = vand.u32 %v6671, 65535
    %v6673 = vshrl.u32 %v6671, 16
    %v6674 = vand.u32 %v6670, 65535
    %v6675 = vshrl.u32 %v6670, 16
    %v6676 = vmul.u32 %v6672, %v6674
    %v6677 = vmul.u32 %v6672, %v6675
    %v6678 = vmul.u32 %v6673, %v6674
    %v6679 = vmul.u32 %v6673, %v6675
    %v6680 = vshll.u32 %v6677, 16
    %v6681 = vshrl.u32 %v6677, 16
    %v6682 = vshll.u32 %v6678, 16
    %v6683 = vshrl.u32 %v6678, 16
    %vm6684 = vc.u32 %v6676, %v6680
    %v6685 = vsel %vm6684, 1, 0
    %v6686 = vadd.s32 %v6676, %v6680
    %v6687 = vadd.s32 %v6679, %v6685
    %vm6688 = vc.u32 %v6686, %v6682
    %v6689 = vsel %vm6688, 1, 0
    %v6690 = vadd.s32 %v6686, %v6682
    %v6691 = vadd.s32 %v6687, %v6689
    %v6692 = vadd.s32 %v6691, %v6681
    %v6693 = vadd.s32 %v6692, %v6683
    %v6694 = vand.u32 %v6671, 65535
    %v6695 = vshrl.u32 %v6671, 16
    %v6696 = vand.u32 %v6666, 65535
    %v6697 = vshrl.u32 %v6666, 16
    %v6698 = vmul.u32 %v6694, %v6696
    %v6699 = vmul.u32 %v6694, %v6697
    %v6700 = vmul.u32 %v6695, %v6696
    %v6701 = vmul.u32 %v6695, %v6697
    %v6702 = vshll.u32 %v6699, 16
    %v6703 = vshrl.u32 %v6699, 16
    %v6704 = vshll.u32 %v6700, 16
    %v6705 = vshrl.u32 %v6700, 16
    %vm6706 = vc.u32 %v6698, %v6702
    %v6707 = vsel %vm6706, 1, 0
    %v6708 = vadd.s32 %v6698, %v6702
    %v6709 = vadd.s32 %v6701, %v6707
    %vm6710 = vc.u32 %v6708, %v6704
    %v6711 = vsel %vm6710, 1, 0
    %v6712 = vadd.s32 %v6708, %v6704
    %v6713 = vadd.s32 %v6709, %v6711
    %v6714 = vadd.s32 %v6713, %v6703
    %v6715 = vadd.s32 %v6714, %v6705
    %v6716 = vmul.u32 %v6671, %v6662
    %v6717 = vadd.s32 %v6693, %v6712
    %vm6718 = vc.u32 %v6693, %v6712
    %v6719 = vadd.s32 %v6715, 1
    %v6720 = vsel %vm6718, %v6719, %v6715
    %v6721 = vadd.s32 %v6716, %v6720
    %v6722 = vadd.s32 %v6721, 536870912
    %v6723 = vshrl.u32 %v6722, 30
    %v6724 = vshll.u32 %v6723, 30
    %v6725 = vsub.s32 %v6721, %v6724
    %vm6726 = vcmp.lt.s32.totalorder %v6725, 0
    %v6727 = vsub.s32 0, %v6725
    %v6728 = vsel %vm6726, %v6727, %v6725
    %v6729 = vclz %v6728
    %v6730 = vsub.s32 %v6729, 2
    %vm6731 = vcmp.gt.s32.totalorder 0, %v6730
    %v6732 = vsel %vm6731, 0, %v6730
    %v6733 = vsub.s32 32, %v6732
    %v6734 = vshll.u32 %v6725, %v6732
    %v6735 = vshrl.u32 %v6717, %v6733
    %v6736 = vor.u32 %v6734, %v6735
    %v6737 = vsub.s32 4294967266, %v6732
    %v6738 = vadd.s32 %v6737, 127
    %v6739 = vshll.u32 %v6738, 23
    %v6740 = vor.u32 4788187, %v6739
    %v6741 = vand.u32 2147483647, %v6740
    %v6743 = vcvt.s32.f32 %v6736
    %v6744 = vmul.f32 %v6743, %v6741
    %v6745 = vxor.u32 %v6744, 2147483648
    %v6746 = vsel %vm6625, %v6745, %v6744
    %v6747 = vsub.s32 4, %v6723
    %v6748 = vsel %vm6625, %v6747, %v6723
    %v6749 = vsel %vm6624, %v5375, %v6746
    %v6750 = vsel %vm6624, 0, %v6748
    %v6751 = vmul.f32 %v6749, %v6749
    %v6752 = vmul.f32 %v6751, -0.001358992
    %v6753 = vadd.f32 %v6752, 0.041655596
    %v6754 = vmul.f32 %v6751, %v6753
    %v6755 = vadd.f32 %v6754, -0.4999988
    %v6756 = vmul.f32 %v6751, %v6755
    %v6757 = vadd.f32 1.0, %v6756
    %v6758 = vmul.f32 %v6749, %v6749
    %v6759 = vmul.f32 %v6758, -0.00019511016
    %v6760 = vadd.f32 %v6759, 0.008332121
    %v6761 = vmul.f32 %v6758, %v6760
    %v6762 = vadd.f32 %v6761, -0.16666654
    %v6763 = vmul.f32 %v6758, %v6762
    %v6764 = vadd.f32 %v6763, 1.0
    %v6765 = vmul.f32 %v6764, %v6749
    %vm6766 = vweird.f32 %v5375
    %v6767 = vand.u32 %v6750, 3
    %vm6768 = vcmp.lt.s32.totalorder %v6767, 2
    %vm6769 = vcmp.eq.s32.totalorder %v6767, 0
    %v6770 = vxor.u32 %v6765, 2147483648
    %v6771 = vsel %vm6769, %v6757, %v6770
    %vm6772 = vcmp.eq.s32.totalorder %v6767, 2
    %v6773 = vxor.u32 %v6757, 2147483648
    %v6774 = vsel %vm6772, %v6773, %v6765
    %v6775 = vsel %vm6768, %v6771, %v6774
    %v6776 = vsel %vm6766, nan, %v6775
    %v6777 = vand.u32 2147483647, %v5376
    %vm6778 = vcmp.le.f32.partialorder %v6777, 0.7853982
    %vm6779 = vcmp.lt.s32.totalorder %v5376, 0
    %v6780 = vand.u32 %v5376, 2139095040
    %v6781 = vshrl.u32 %v6780, 23
    %v6782 = vsub.s32 %v6781, 127
    %v6783 = vand.u32 2147483647, %v5376
    %v6784 = vand.u32 %v6783, 8388607
    %v6785 = vor.u32 %v6784, 8388608
    %v6786 = vsub.s32 0, %v6785
    %v6787 = vadd.s32 %v6782, 1
    %vm6788 = vcmp.gt.s32.totalorder %v6787, 0
    %v6789 = vsel %vm6788, %v6787, 0
    %v6790 = vshrl.u32 %v6789, 5
    %v6791 = vand.u32 %v6789, 31
    %v6792 = vsub.s32 32, %v6791
    %v6793 = vshrl.u32 683565275, %v6792
    %v6794 = vshll.u32 683565275, %v6791
    %v6795 = vshrl.u32 2475754826, %v6792
    %v6796 = vor.u32 %v6794, %v6795
    %v6797 = vshll.u32 2475754826, %v6791
    %v6798 = vshrl.u32 2131351028, %v6792
    %v6799 = vor.u32 %v6797, %v6798
    %v6800 = vshll.u32 2131351028, %v6791
    %v6801 = vshrl.u32 2102212464, %v6792
    %v6802 = vor.u32 %v6800, %v6801
    %v6803 = vshll.u32 2102212464, %v6791
    %v6804 = vshrl.u32 920167782, %v6792
    %v6805 = vor.u32 %v6803, %v6804
    %v6806 = vshll.u32 920167782, %v6791
    %v6807 = vshrl.u32 1326507024, %v6792
    %v6808 = vor.u32 %v6806, %v6807
    %vm6809 = vcmp.lt.s32.totalorder %v6790, 1
    %vm6810 = vcmp.lt.s32.totalorder %v6790, 2
    %vm6811 = vcmp.lt.s32.totalorder %v6790, 3
    %vm6812 = vcmp.lt.s32.totalorder %v6790, 4
    %v6813 = vsel %vm6809, %v6793, %v6796
    %v6814 = vsel %vm6812, %v6802, 2102212464
    %v6815 = vsel %vm6811, %v6799, %v6814
    %v6816 = vsel %vm6810, %v6813, %v6815
    %v6817 = vsel %vm6809, %v6796, %v6799
    %v6818 = vsel %vm6812, %v6805, 920167782
    %v6819 = vsel %vm6811, %v6802, %v6818
    %v6820 = vsel %vm6810, %v6817, %v6819
    %v6821 = vsel %vm6809, %v6799, %v6802
    %v6822 = vsel %vm6812, %v6808, 1326507024
    %v6823 = vsel %vm6811, %v6805, %v6822
    %v6824 = vsel %vm6810, %v6821, %v6823
    %v6825 = vshll.u32 %v6785, 8
    %v6826 = vand.u32 %v6825, 65535
    %v6827 = vshrl.u32 %v6825, 16
    %v6828 = vand.u32 %v6824, 65535
    %v6829 = vshrl.u32 %v6824, 16
    %v6830 = vmul.u32 %v6826, %v6828
    %v6831 = vmul.u32 %v6826, %v6829
    %v6832 = vmul.u32 %v6827, %v6828
    %v6833 = vmul.u32 %v6827, %v6829
    %v6834 = vshll.u32 %v6831, 16
    %v6835 = vshrl.u32 %v6831, 16
    %v6836 = vshll.u32 %v6832, 16
    %v6837 = vshrl.u32 %v6832, 16
    %vm6838 = vc.u32 %v6830, %v6834
    %v6839 = vsel %vm6838, 1, 0
    %v6840 = vadd.s32 %v6830, %v6834
    %v6841 = vadd.s32 %v6833, %v6839
    %vm6842 = vc.u32 %v6840, %v6836
    %v6843 = vsel %vm6842, 1, 0
    %v6844 = vadd.s32 %v6840, %v6836
    %v6845 = vadd.s32 %v6841, %v6843
    %v6846 = vadd.s32 %v6845, %v6835
    %v6847 = vadd.s32 %v6846, %v6837
    %v6848 = vand.u32 %v6825, 65535
    %v6849 = vshrl.u32 %v6825, 16
    %v6850 = vand.u32 %v6820, 65535
    %v6851 = vshrl.u32 %v6820, 16
    %v6852 = vmul.u32 %v6848, %v6850
    %v6853 = vmul.u32 %v6848, %v6851
    %v6854 = vmul.u32 %v6849, %v6850
    %v6855 = vmul.u32 %v6849, %v6851
    %v6856 = vshll.u32 %v6853, 16
    %v6857 = vshrl.u32 %v6853, 16
    %v6858 = vshll.u32 %v6854, 16
    %v6859 = vshrl.u32 %v6854, 16
    %vm6860 = vc.u32 %v6852, %v6856
    %v6861 = vsel %vm6860, 1, 0
    %v6862 = vadd.s32 %v6852, %v6856
    %v6863 = vadd.s32 %v6855, %v6861
    %vm6864 = vc.u32 %v6862, %v6858
    %v6865 = vsel %vm6864, 1, 0
    %v6866 = vadd.s32 %v6862, %v6858
    %v6867 = vadd.s32 %v6863, %v6865
    %v6868 = vadd.s32 %v6867, %v6857
    %v6869 = vadd.s32 %v6868, %v6859
    %v6870 = vmul.u32 %v6825, %v6816
    %v6871 = vadd.s32 %v6847, %v6866
    %vm6872 = vc.u32 %v6847, %v6866
    %v6873 = vadd.s32 %v6869, 1
    %v6874 = vsel %vm6872, %v6873, %v6869
    %v6875 = vadd.s32 %v6870, %v6874
    %v6876 = vadd.s32 %v6875, 536870912
    %v6877 = vshrl.u32 %v6876, 30
    %v6878 = vshll.u32 %v6877, 30
    %v6879 = vsub.s32 %v6875, %v6878
    %vm6880 = vcmp.lt.s32.totalorder %v6879, 0
    %v6881 = vsub.s32 0, %v6879
    %v6882 = vsel %vm6880, %v6881, %v6879
    %v6883 = vclz %v6882
    %v6884 = vsub.s32 %v6883, 2
    %vm6885 = vcmp.gt.s32.totalorder 0, %v6884
    %v6886 = vsel %vm6885, 0, %v6884
    %v6887 = vsub.s32 32, %v6886
    %v6888 = vshll.u32 %v6879, %v6886
    %v6889 = vshrl.u32 %v6871, %v6887
    %v6890 = vor.u32 %v6888, %v6889
    %v6891 = vsub.s32 4294967266, %v6886
    %v6892 = vadd.s32 %v6891, 127
    %v6893 = vshll.u32 %v6892, 23
    %v6894 = vor.u32 4788187, %v6893
    %v6895 = vand.u32 2147483647, %v6894
    %v6897 = vcvt.s32.f32 %v6890
    %v6898 = vmul.f32 %v6897, %v6895
    %v6899 = vxor.u32 %v6898, 2147483648
    %v6900 = vsel %vm6779, %v6899, %v6898
    %v6901 = vsub.s32 4, %v6877
    %v6902 = vsel %vm6779, %v6901, %v6877
    %v6903 = vsel %vm6778, %v5376, %v6900
    %v6904 = vsel %vm6778, 0, %v6902
    %v6905 = vmul.f32 %v6903, %v6903
    %v6906 = vmul.f32 %v6905, -0.001358992
    %v6907 = vadd.f32 %v6906, 0.041655596
    %v6908 = vmul.f32 %v6905, %v6907
    %v6909 = vadd.f32 %v6908, -0.4999988
    %v6910 = vmul.f32 %v6905, %v6909
    %v6911 = vadd.f32 1.0, %v6910
    %v6912 = vmul.f32 %v6903, %v6903
    %v6913 = vmul.f32 %v6912, -0.00019511016
    %v6914 = vadd.f32 %v6913, 0.008332121
    %v6915 = vmul.f32 %v6912, %v6914
    %v6916 = vadd.f32 %v6915, -0.16666654
    %v6917 = vmul.f32 %v6912, %v6916
    %v6918 = vadd.f32 %v6917, 1.0
    %v6919 = vmul.f32 %v6918, %v6903
    %vm6920 = vweird.f32 %v5376
    %v6921 = vand.u32 %v6904, 3
    %vm6922 = vcmp.lt.s32.totalorder %v6921, 2
    %vm6923 = vcmp.eq.s32.totalorder %v6921, 0
    %v6924 = vxor.u32 %v6919, 2147483648
    %v6925 = vsel %vm6923, %v6911, %v6924
    %vm6926 = vcmp.eq.s32.totalorder %v6921, 2
    %v6927 = vxor.u32 %v6911, 2147483648
    %v6928 = vsel %vm6926, %v6927, %v6919
    %v6929 = vsel %vm6922, %v6925, %v6928
    %v6930 = vsel %vm6920, nan, %v6929
    %v6931 = vand.u32 2147483647, %v5377
    %vm6932 = vcmp.le.f32.partialorder %v6931, 0.7853982
    %vm6933 = vcmp.lt.s32.totalorder %v5377, 0
    %v6934 = vand.u32 %v5377, 2139095040
    %v6935 = vshrl.u32 %v6934, 23
    %v6936 = vsub.s32 %v6935, 127
    %v6937 = vand.u32 2147483647, %v5377
    %v6938 = vand.u32 %v6937, 8388607
    %v6939 = vor.u32 %v6938, 8388608
    %v6940 = vsub.s32 0, %v6939
    %v6941 = vadd.s32 %v6936, 1
    %vm6942 = vcmp.gt.s32.totalorder %v6941, 0
    %v6943 = vsel %vm6942, %v6941, 0
    %v6944 = vshrl.u32 %v6943, 5
    %v6945 = vand.u32 %v6943, 31
    %v6946 = vsub.s32 32, %v6945
    %v6947 = vshrl.u32 683565275, %v6946
    %v6948 = vshll.u32 683565275, %v6945
    %v6949 = vshrl.u32 2475754826, %v6946
    %v6950 = vor.u32 %v6948, %v6949
    %v6951 = vshll.u32 2475754826, %v6945
    %v6952 = vshrl.u32 2131351028, %v6946
    %v6953 = vor.u32 %v6951, %v6952
    %v6954 = vshll.u32 2131351028, %v6945
    %v6955 = vshrl.u32 2102212464, %v6946
    %v6956 = vor.u32 %v6954, %v6955
    %v6957 = vshll.u32 2102212464, %v6945
    %v6958 = vshrl.u32 920167782, %v6946
    %v6959 = vor.u32 %v6957, %v6958
    %v6960 = vshll.u32 920167782, %v6945
    %v6961 = vshrl.u32 1326507024, %v6946
    %v6962 = vor.u32 %v6960, %v6961
    %vm6963 = vcmp.lt.s32.totalorder %v6944, 1
    %vm6964 = vcmp.lt.s32.totalorder %v6944, 2
    %vm6965 = vcmp.lt.s32.totalorder %v6944, 3
    %vm6966 = vcmp.lt.s32.totalorder %v6944, 4
    %v6967 = vsel %vm6963, %v6947, %v6950
    %v6968 = vsel %vm6966, %v6956, 2102212464
    %v6969 = vsel %vm6965, %v6953, %v6968
    %v6970 = vsel %vm6964, %v6967, %v6969
    %v6971 = vsel %vm6963, %v6950, %v6953
    %v6972 = vsel %vm6966, %v6959, 920167782
    %v6973 = vsel %vm6965, %v6956, %v6972
    %v6974 = vsel %vm6964, %v6971, %v6973
    %v6975 = vsel %vm6963, %v6953, %v6956
    %v6976 = vsel %vm6966, %v6962, 1326507024
    %v6977 = vsel %vm6965, %v6959, %v6976
    %v6978 = vsel %vm6964, %v6975, %v6977
    %v6979 = vshll.u32 %v6939, 8
    %v6980 = vand.u32 %v6979, 65535
    %v6981 = vshrl.u32 %v6979, 16
    %v6982 = vand.u32 %v6978, 65535
    %v6983 = vshrl.u32 %v6978, 16
    %v6984 = vmul.u32 %v6980, %v6982
    %v6985 = vmul.u32 %v6980, %v6983
    %v6986 = vmul.u32 %v6981, %v6982
    %v6987 = vmul.u32 %v6981, %v6983
    %v6988 = vshll.u32 %v6985, 16
    %v6989 = vshrl.u32 %v6985, 16
    %v6990 = vshll.u32 %v6986, 16
    %v6991 = vshrl.u32 %v6986, 16
    %vm6992 = vc.u32 %v6984, %v6988
    %v6993 = vsel %vm6992, 1, 0
    %v6994 = vadd.s32 %v6984, %v6988
    %v6995 = vadd.s32 %v6987, %v6993
    %vm6996 = vc.u32 %v6994, %v6990
    %v6997 = vsel %vm6996, 1, 0
    %v6998 = vadd.s32 %v6994, %v6990
    %v6999 = vadd.s32 %v6995, %v6997
    %v7000 = vadd.s32 %v6999, %v6989
    %v7001 = vadd.s32 %v7000, %v6991
    %v7002 = vand.u32 %v6979, 65535
    %v7003 = vshrl.u32 %v6979, 16
    %v7004 = vand.u32 %v6974, 65535
    %v7005 = vshrl.u32 %v6974, 16
    %v7006 = vmul.u32 %v7002, %v7004
    %v7007 = vmul.u32 %v7002, %v7005
    %v7008 = vmul.u32 %v7003, %v7004
    %v7009 = vmul.u32 %v7003, %v7005
    %v7010 = vshll.u32 %v7007, 16
    %v7011 = vshrl.u32 %v7007, 16
    %v7012 = vshll.u32 %v7008, 16
    %v7013 = vshrl.u32 %v7008, 16
    %vm7014 = vc.u32 %v7006, %v7010
    %v7015 = vsel %vm7014, 1, 0
    %v7016 = vadd.s32 %v7006, %v7010
    %v7017 = vadd.s32 %v7009, %v7015
    %vm7018 = vc.u32 %v7016, %v7012
    %v7019 = vsel %vm7018, 1, 0
    %v7020 = vadd.s32 %v7016, %v7012
    %v7021 = vadd.s32 %v7017, %v7019
    %v7022 = vadd.s32 %v7021, %v7011
    %v7023 = vadd.s32 %v7022, %v7013
    %v7024 = vmul.u32 %v6979, %v6970
    %v7025 = vadd.s32 %v7001, %v7020
    %vm7026 = vc.u32 %v7001, %v7020
    %v7027 = vadd.s32 %v7023, 1
    %v7028 = vsel %vm7026, %v7027, %v7023
    %v7029 = vadd.s32 %v7024, %v7028
    %v7030 = vadd.s32 %v7029, 536870912
    %v7031 = vshrl.u32 %v7030, 30
    %v7032 = vshll.u32 %v7031, 30
    %v7033 = vsub.s32 %v7029, %v7032
    %vm7034 = vcmp.lt.s32.totalorder %v7033, 0
    %v7035 = vsub.s32 0, %v7033
    %v7036 = vsel %vm7034, %v7035, %v7033
    %v7037 = vclz %v7036
    %v7038 = vsub.s32 %v7037, 2
    %vm7039 = vcmp.gt.s32.totalorder 0, %v7038
    %v7040 = vsel %vm7039, 0, %v7038
    %v7041 = vsub.s32 32, %v7040
    %v7042 = vshll.u32 %v7033, %v7040
    %v7043 = vshrl.u32 %v7025, %v7041
    %v7044 = vor.u32 %v7042, %v7043
    %v7045 = vsub.s32 4294967266, %v7040
    %v7046 = vadd.s32 %v7045, 127
    %v7047 = vshll.u32 %v7046, 23
    %v7048 = vor.u32 4788187, %v7047
    %v7049 = vand.u32 2147483647, %v7048
    %v7051 = vcvt.s32.f32 %v7044
    %v7052 = vmul.f32 %v7051, %v7049
    %v7053 = vxor.u32 %v7052, 2147483648
    %v7054 = vsel %vm6933, %v7053, %v7052
    %v7055 = vsub.s32 4, %v7031
    %v7056 = vsel %vm6933, %v7055, %v7031
    %v7057 = vsel %vm6932, %v5377, %v7054
    %v7058 = vsel %vm6932, 0, %v7056
    %v7059 = vmul.f32 %v7057, %v7057
    %v7060 = vmul.f32 %v7059, -0.001358992
    %v7061 = vadd.f32 %v7060, 0.041655596
    %v7062 = vmul.f32 %v7059, %v7061
    %v7063 = vadd.f32 %v7062, -0.4999988
    %v7064 = vmul.f32 %v7059, %v7063
    %v7065 = vadd.f32 1.0, %v7064
    %v7066 = vmul.f32 %v7057, %v7057
    %v7067 = vmul.f32 %v7066, -0.00019511016
    %v7068 = vadd.f32 %v7067, 0.008332121
    %v7069 = vmul.f32 %v7066, %v7068
    %v7070 = vadd.f32 %v7069, -0.16666654
    %v7071 = vmul.f32 %v7066, %v7070
    %v7072 = vadd.f32 %v7071, 1.0
    %v7073 = vmul.f32 %v7072, %v7057
    %vm7074 = vweird.f32 %v5377
    %v7075 = vand.u32 %v7058, 3
    %vm7076 = vcmp.lt.s32.totalorder %v7075, 2
    %vm7077 = vcmp.eq.s32.totalorder %v7075, 0
    %v7078 = vxor.u32 %v7073, 2147483648
    %v7079 = vsel %vm7077, %v7065, %v7078
    %vm7080 = vcmp.eq.s32.totalorder %v7075, 2
    %v7081 = vxor.u32 %v7065, 2147483648
    %v7082 = vsel %vm7080, %v7081, %v7073
    %v7083 = vsel %vm7076, %v7079, %v7082
    %v7084 = vsel %vm7074, nan, %v7083
    %v7085 = vand.u32 2147483647, %v5378
    %vm7086 = vcmp.le.f32.partialorder %v7085, 0.7853982
    %vm7087 = vcmp.lt.s32.totalorder %v5378, 0
    %v7088 = vand.u32 %v5378, 2139095040
    %v7089 = vshrl.u32 %v7088, 23
    %v7090 = vsub.s32 %v7089, 127
    %v7091 = vand.u32 2147483647, %v5378
    %v7092 = vand.u32 %v7091, 8388607
    %v7093 = vor.u32 %v7092, 8388608
    %v7094 = vsub.s32 0, %v7093
    %v7095 = vadd.s32 %v7090, 1
    %vm7096 = vcmp.gt.s32.totalorder %v7095, 0
    %v7097 = vsel %vm7096, %v7095, 0
    %v7098 = vshrl.u32 %v7097, 5
    %v7099 = vand.u32 %v7097, 31
    %v7100 = vsub.s32 32, %v7099
    %v7101 = vshrl.u32 683565275, %v7100
    %v7102 = vshll.u32 683565275, %v7099
    %v7103 = vshrl.u32 2475754826, %v7100
    %v7104 = vor.u32 %v7102, %v7103
    %v7105 = vshll.u32 2475754826, %v7099
    %v7106 = vshrl.u32 2131351028, %v7100
    %v7107 = vor.u32 %v7105, %v7106
    %v7108 = vshll.u32 2131351028, %v7099
    %v7109 = vshrl.u32 2102212464, %v7100
    %v7110 = vor.u32 %v7108, %v7109
    %v7111 = vshll.u32 2102212464, %v7099
    %v7112 = vshrl.u32 920167782, %v7100
    %v7113 = vor.u32 %v7111, %v7112
    %v7114 = vshll.u32 920167782, %v7099
    %v7115 = vshrl.u32 1326507024, %v7100
    %v7116 = vor.u32 %v7114, %v7115
    %vm7117 = vcmp.lt.s32.totalorder %v7098, 1
    %vm7118 = vcmp.lt.s32.totalorder %v7098, 2
    %vm7119 = vcmp.lt.s32.totalorder %v7098, 3
    %vm7120 = vcmp.lt.s32.totalorder %v7098, 4
    %v7121 = vsel %vm7117, %v7101, %v7104
    %v7122 = vsel %vm7120, %v7110, 2102212464
    %v7123 = vsel %vm7119, %v7107, %v7122
    %v7124 = vsel %vm7118, %v7121, %v7123
    %v7125 = vsel %vm7117, %v7104, %v7107
    %v7126 = vsel %vm7120, %v7113, 920167782
    %v7127 = vsel %vm7119, %v7110, %v7126
    %v7128 = vsel %vm7118, %v7125, %v7127
    %v7129 = vsel %vm7117, %v7107, %v7110
    %v7130 = vsel %vm7120, %v7116, 1326507024
    %v7131 = vsel %vm7119, %v7113, %v7130
    %v7132 = vsel %vm7118, %v7129, %v7131
    %v7133 = vshll.u32 %v7093, 8
    %v7134 = vand.u32 %v7133, 65535
    %v7135 = vshrl.u32 %v7133, 16
    %v7136 = vand.u32 %v7132, 65535
    %v7137 = vshrl.u32 %v7132, 16
    %v7138 = vmul.u32 %v7134, %v7136
    %v7139 = vmul.u32 %v7134, %v7137
    %v7140 = vmul.u32 %v7135, %v7136
    %v7141 = vmul.u32 %v7135, %v7137
    %v7142 = vshll.u32 %v7139, 16
    %v7143 = vshrl.u32 %v7139, 16
    %v7144 = vshll.u32 %v7140, 16
    %v7145 = vshrl.u32 %v7140, 16
    %vm7146 = vc.u32 %v7138, %v7142
    %v7147 = vsel %vm7146, 1, 0
    %v7148 = vadd.s32 %v7138, %v7142
    %v7149 = vadd.s32 %v7141, %v7147
    %vm7150 = vc.u32 %v7148, %v7144
    %v7151 = vsel %vm7150, 1, 0
    %v7152 = vadd.s32 %v7148, %v7144
    %v7153 = vadd.s32 %v7149, %v7151
    %v7154 = vadd.s32 %v7153, %v7143
    %v7155 = vadd.s32 %v7154, %v7145
    %v7156 = vand.u32 %v7133, 65535
    %v7157 = vshrl.u32 %v7133, 16
    %v7158 = vand.u32 %v7128, 65535
    %v7159 = vshrl.u32 %v7128, 16
    %v7160 = vmul.u32 %v7156, %v7158
    %v7161 = vmul.u32 %v7156, %v7159
    %v7162 = vmul.u32 %v7157, %v7158
    %v7163 = vmul.u32 %v7157, %v7159
    %v7164 = vshll.u32 %v7161, 16
    %v7165 = vshrl.u32 %v7161, 16
    %v7166 = vshll.u32 %v7162, 16
    %v7167 = vshrl.u32 %v7162, 16
    %vm7168 = vc.u32 %v7160, %v7164
    %v7169 = vsel %vm7168, 1, 0
    %v7170 = vadd.s32 %v7160, %v7164
    %v7171 = vadd.s32 %v7163, %v7169
    %vm7172 = vc.u32 %v7170, %v7166
    %v7173 = vsel %vm7172, 1, 0
    %v7174 = vadd.s32 %v7170, %v7166
    %v7175 = vadd.s32 %v7171, %v7173
    %v7176 = vadd.s32 %v7175, %v7165
    %v7177 = vadd.s32 %v7176, %v7167
    %v7178 = vmul.u32 %v7133, %v7124
    %v7179 = vadd.s32 %v7155, %v7174
    %vm7180 = vc.u32 %v7155, %v7174
    %v7181 = vadd.s32 %v7177, 1
    %v7182 = vsel %vm7180, %v7181, %v7177
    %v7183 = vadd.s32 %v7178, %v7182
    %v7184 = vadd.s32 %v7183, 536870912
    %v7185 = vshrl.u32 %v7184, 30
    %v7186 = vshll.u32 %v7185, 30
    %v7187 = vsub.s32 %v7183, %v7186
    %vm7188 = vcmp.lt.s32.totalorder %v7187, 0
    %v7189 = vsub.s32 0, %v7187
    %v7190 = vsel %vm7188, %v7189, %v7187
    %v7191 = vclz %v7190
    %v7192 = vsub.s32 %v7191, 2
    %vm7193 = vcmp.gt.s32.totalorder 0, %v7192
    %v7194 = vsel %vm7193, 0, %v7192
    %v7195 = vsub.s32 32, %v7194
    %v7196 = vshll.u32 %v7187, %v7194
    %v7197 = vshrl.u32 %v7179, %v7195
    %v7198 = vor.u32 %v7196, %v7197
    %v7199 = vsub.s32 4294967266, %v7194
    %v7200 = vadd.s32 %v7199, 127
    %v7201 = vshll.u32 %v7200, 23
    %v7202 = vor.u32 4788187, %v7201
    %v7203 = vand.u32 2147483647, %v7202
    %v7205 = vcvt.s32.f32 %v7198
    %v7206 = vmul.f32 %v7205, %v7203
    %v7207 = vxor.u32 %v7206, 2147483648
    %v7208 = vsel %vm7087, %v7207, %v7206
    %v7209 = vsub.s32 4, %v7185
    %v7210 = vsel %vm7087, %v7209, %v7185
    %v7211 = vsel %vm7086, %v5378, %v7208
    %v7212 = vsel %vm7086, 0, %v7210
    %v7213 = vmul.f32 %v7211, %v7211
    %v7214 = vmul.f32 %v7213, -0.001358992
    %v7215 = vadd.f32 %v7214, 0.041655596
    %v7216 = vmul.f32 %v7213, %v7215
    %v7217 = vadd.f32 %v7216, -0.4999988
    %v7218 = vmul.f32 %v7213, %v7217
    %v7219 = vadd.f32 1.0, %v7218
    %v7220 = vmul.f32 %v7211, %v7211
    %v7221 = vmul.f32 %v7220, -0.00019511016
    %v7222 = vadd.f32 %v7221, 0.008332121
    %v7223 = vmul.f32 %v7220, %v7222
    %v7224 = vadd.f32 %v7223, -0.16666654
    %v7225 = vmul.f32 %v7220, %v7224
    %v7226 = vadd.f32 %v7225, 1.0
    %v7227 = vmul.f32 %v7226, %v7211
    %vm7228 = vweird.f32 %v5378
    %v7229 = vand.u32 %v7212, 3
    %vm7230 = vcmp.lt.s32.totalorder %v7229, 2
    %vm7231 = vcmp.eq.s32.totalorder %v7229, 0
    %v7232 = vxor.u32 %v7227, 2147483648
    %v7233 = vsel %vm7231, %v7219, %v7232
    %vm7234 = vcmp.eq.s32.totalorder %v7229, 2
    %v7235 = vxor.u32 %v7219, 2147483648
    %v7236 = vsel %vm7234, %v7235, %v7227
    %v7237 = vsel %vm7230, %v7233, %v7236
    %v7238 = vsel %vm7228, nan, %v7237
    %v7239 = vand.u32 2147483647, %v5379
    %vm7240 = vcmp.le.f32.partialorder %v7239, 0.7853982
    %vm7241 = vcmp.lt.s32.totalorder %v5379, 0
    %v7242 = vand.u32 %v5379, 2139095040
    %v7243 = vshrl.u32 %v7242, 23
    %v7244 = vsub.s32 %v7243, 127
    %v7245 = vand.u32 2147483647, %v5379
    %v7246 = vand.u32 %v7245, 8388607
    %v7247 = vor.u32 %v7246, 8388608
    %v7248 = vsub.s32 0, %v7247
    %v7249 = vadd.s32 %v7244, 1
    %vm7250 = vcmp.gt.s32.totalorder %v7249, 0
    %v7251 = vsel %vm7250, %v7249, 0
    %v7252 = vshrl.u32 %v7251, 5
    %v7253 = vand.u32 %v7251, 31
    %v7254 = vsub.s32 32, %v7253
    %v7255 = vshrl.u32 683565275, %v7254
    %v7256 = vshll.u32 683565275, %v7253
    %v7257 = vshrl.u32 2475754826, %v7254
    %v7258 = vor.u32 %v7256, %v7257
    %v7259 = vshll.u32 2475754826, %v7253
    %v7260 = vshrl.u32 2131351028, %v7254
    %v7261 = vor.u32 %v7259, %v7260
    %v7262 = vshll.u32 2131351028, %v7253
    %v7263 = vshrl.u32 2102212464, %v7254
    %v7264 = vor.u32 %v7262, %v7263
    %v7265 = vshll.u32 2102212464, %v7253
    %v7266 = vshrl.u32 920167782, %v7254
    %v7267 = vor.u32 %v7265, %v7266
    %v7268 = vshll.u32 920167782, %v7253
    %v7269 = vshrl.u32 1326507024, %v7254
    %v7270 = vor.u32 %v7268, %v7269
    %vm7271 = vcmp.lt.s32.totalorder %v7252, 1
    %vm7272 = vcmp.lt.s32.totalorder %v7252, 2
    %vm7273 = vcmp.lt.s32.totalorder %v7252, 3
    %vm7274 = vcmp.lt.s32.totalorder %v7252, 4
    %v7275 = vsel %vm7271, %v7255, %v7258
    %v7276 = vsel %vm7274, %v7264, 2102212464
    %v7277 = vsel %vm7273, %v7261, %v7276
    %v7278 = vsel %vm7272, %v7275, %v7277
    %v7279 = vsel %vm7271, %v7258, %v7261
    %v7280 = vsel %vm7274, %v7267, 920167782
    %v7281 = vsel %vm7273, %v7264, %v7280
    %v7282 = vsel %vm7272, %v7279, %v7281
    %v7283 = vsel %vm7271, %v7261, %v7264
    %v7284 = vsel %vm7274, %v7270, 1326507024
    %v7285 = vsel %vm7273, %v7267, %v7284
    %v7286 = vsel %vm7272, %v7283, %v7285
    %v7287 = vshll.u32 %v7247, 8
    %v7288 = vand.u32 %v7287, 65535
    %v7289 = vshrl.u32 %v7287, 16
    %v7290 = vand.u32 %v7286, 65535
    %v7291 = vshrl.u32 %v7286, 16
    %v7292 = vmul.u32 %v7288, %v7290
    %v7293 = vmul.u32 %v7288, %v7291
    %v7294 = vmul.u32 %v7289, %v7290
    %v7295 = vmul.u32 %v7289, %v7291
    %v7296 = vshll.u32 %v7293, 16
    %v7297 = vshrl.u32 %v7293, 16
    %v7298 = vshll.u32 %v7294, 16
    %v7299 = vshrl.u32 %v7294, 16
    %vm7300 = vc.u32 %v7292, %v7296
    %v7301 = vsel %vm7300, 1, 0
    %v7302 = vadd.s32 %v7292, %v7296
    %v7303 = vadd.s32 %v7295, %v7301
    %vm7304 = vc.u32 %v7302, %v7298
    %v7305 = vsel %vm7304, 1, 0
    %v7306 = vadd.s32 %v7302, %v7298
    %v7307 = vadd.s32 %v7303, %v7305
    %v7308 = vadd.s32 %v7307, %v7297
    %v7309 = vadd.s32 %v7308, %v7299
    %v7310 = vand.u32 %v7287, 65535
    %v7311 = vshrl.u32 %v7287, 16
    %v7312 = vand.u32 %v7282, 65535
    %v7313 = vshrl.u32 %v7282, 16
    %v7314 = vmul.u32 %v7310, %v7312
    %v7315 = vmul.u32 %v7310, %v7313
    %v7316 = vmul.u32 %v7311, %v7312
    %v7317 = vmul.u32 %v7311, %v7313
    %v7318 = vshll.u32 %v7315, 16
    %v7319 = vshrl.u32 %v7315, 16
    %v7320 = vshll.u32 %v7316, 16
    %v7321 = vshrl.u32 %v7316, 16
    %vm7322 = vc.u32 %v7314, %v7318
    %v7323 = vsel %vm7322, 1, 0
    %v7324 = vadd.s32 %v7314, %v7318
    %v7325 = vadd.s32 %v7317, %v7323
    %vm7326 = vc.u32 %v7324, %v7320
    %v7327 = vsel %vm7326, 1, 0
    %v7328 = vadd.s32 %v7324, %v7320
    %v7329 = vadd.s32 %v7325, %v7327
    %v7330 = vadd.s32 %v7329, %v7319
    %v7331 = vadd.s32 %v7330, %v7321
    %v7332 = vmul.u32 %v7287, %v7278
    %v7333 = vadd.s32 %v7309, %v7328
    %vm7334 = vc.u32 %v7309, %v7328
    %v7335 = vadd.s32 %v7331, 1
    %v7336 = vsel %vm7334, %v7335, %v7331
    %v7337 = vadd.s32 %v7332, %v7336
    %v7338 = vadd.s32 %v7337, 536870912
    %v7339 = vshrl.u32 %v7338, 30
    %v7340 = vshll.u32 %v7339, 30
    %v7341 = vsub.s32 %v7337, %v7340
    %vm7342 = vcmp.lt.s32.totalorder %v7341, 0
    %v7343 = vsub.s32 0, %v7341
    %v7344 = vsel %vm7342, %v7343, %v7341
    %v7345 = vclz %v7344
    %v7346 = vsub.s32 %v7345, 2
    %vm7347 = vcmp.gt.s32.totalorder 0, %v7346
    %v7348 = vsel %vm7347, 0, %v7346
    %v7349 = vsub.s32 32, %v7348
    %v7350 = vshll.u32 %v7341, %v7348
    %v7351 = vshrl.u32 %v7333, %v7349
    %v7352 = vor.u32 %v7350, %v7351
    %v7353 = vsub.s32 4294967266, %v7348
    %v7354 = vadd.s32 %v7353, 127
    %v7355 = vshll.u32 %v7354, 23
    %v7356 = vor.u32 4788187, %v7355
    %v7357 = vand.u32 2147483647, %v7356
    %v7359 = vcvt.s32.f32 %v7352
    %v7360 = vmul.f32 %v7359, %v7357
    %v7361 = vxor.u32 %v7360, 2147483648
    %v7362 = vsel %vm7241, %v7361, %v7360
    %v7363 = vsub.s32 4, %v7339
    %v7364 = vsel %vm7241, %v7363, %v7339
    %v7365 = vsel %vm7240, %v5379, %v7362
    %v7366 = vsel %vm7240, 0, %v7364
    %v7367 = vmul.f32 %v7365, %v7365
    %v7368 = vmul.f32 %v7367, -0.001358992
    %v7369 = vadd.f32 %v7368, 0.041655596
    %v7370 = vmul.f32 %v7367, %v7369
    %v7371 = vadd.f32 %v7370, -0.4999988
    %v7372 = vmul.f32 %v7367, %v7371
    %v7373 = vadd.f32 1.0, %v7372
    %v7374 = vmul.f32 %v7365, %v7365
    %v7375 = vmul.f32 %v7374, -0.00019511016
    %v7376 = vadd.f32 %v7375, 0.008332121
    %v7377 = vmul.f32 %v7374, %v7376
    %v7378 = vadd.f32 %v7377, -0.16666654
    %v7379 = vmul.f32 %v7374, %v7378
    %v7380 = vadd.f32 %v7379, 1.0
    %v7381 = vmul.f32 %v7380, %v7365
    %vm7382 = vweird.f32 %v5379
    %v7383 = vand.u32 %v7366, 3
    %vm7384 = vcmp.lt.s32.totalorder %v7383, 2
    %vm7385 = vcmp.eq.s32.totalorder %v7383, 0
    %v7386 = vxor.u32 %v7381, 2147483648
    %v7387 = vsel %vm7385, %v7373, %v7386
    %vm7388 = vcmp.eq.s32.totalorder %v7383, 2
    %v7389 = vxor.u32 %v7373, 2147483648
    %v7390 = vsel %vm7388, %v7389, %v7381
    %v7391 = vsel %vm7384, %v7387, %v7390
    %v7392 = vsel %vm7382, nan, %v7391
    %v7393 = vand.u32 2147483647, %v5380
    %vm7394 = vcmp.le.f32.partialorder %v7393, 0.7853982
    %vm7395 = vcmp.lt.s32.totalorder %v5380, 0
    %v7396 = vand.u32 %v5380, 2139095040
    %v7397 = vshrl.u32 %v7396, 23
    %v7398 = vsub.s32 %v7397, 127
    %v7399 = vand.u32 2147483647, %v5380
    %v7400 = vand.u32 %v7399, 8388607
    %v7401 = vor.u32 %v7400, 8388608
    %v7402 = vsub.s32 0, %v7401
    %v7403 = vadd.s32 %v7398, 1
    %vm7404 = vcmp.gt.s32.totalorder %v7403, 0
    %v7405 = vsel %vm7404, %v7403, 0
    %v7406 = vshrl.u32 %v7405, 5
    %v7407 = vand.u32 %v7405, 31
    %v7408 = vsub.s32 32, %v7407
    %v7409 = vshrl.u32 683565275, %v7408
    %v7410 = vshll.u32 683565275, %v7407
    %v7411 = vshrl.u32 2475754826, %v7408
    %v7412 = vor.u32 %v7410, %v7411
    %v7413 = vshll.u32 2475754826, %v7407
    %v7414 = vshrl.u32 2131351028, %v7408
    %v7415 = vor.u32 %v7413, %v7414
    %v7416 = vshll.u32 2131351028, %v7407
    %v7417 = vshrl.u32 2102212464, %v7408
    %v7418 = vor.u32 %v7416, %v7417
    %v7419 = vshll.u32 2102212464, %v7407
    %v7420 = vshrl.u32 920167782, %v7408
    %v7421 = vor.u32 %v7419, %v7420
    %v7422 = vshll.u32 920167782, %v7407
    %v7423 = vshrl.u32 1326507024, %v7408
    %v7424 = vor.u32 %v7422, %v7423
    %vm7425 = vcmp.lt.s32.totalorder %v7406, 1
    %vm7426 = vcmp.lt.s32.totalorder %v7406, 2
    %vm7427 = vcmp.lt.s32.totalorder %v7406, 3
    %vm7428 = vcmp.lt.s32.totalorder %v7406, 4
    %v7429 = vsel %vm7425, %v7409, %v7412
    %v7430 = vsel %vm7428, %v7418, 2102212464
    %v7431 = vsel %vm7427, %v7415, %v7430
    %v7432 = vsel %vm7426, %v7429, %v7431
    %v7433 = vsel %vm7425, %v7412, %v7415
    %v7434 = vsel %vm7428, %v7421, 920167782
    %v7435 = vsel %vm7427, %v7418, %v7434
    %v7436 = vsel %vm7426, %v7433, %v7435
    %v7437 = vsel %vm7425, %v7415, %v7418
    %v7438 = vsel %vm7428, %v7424, 1326507024
    %v7439 = vsel %vm7427, %v7421, %v7438
    %v7440 = vsel %vm7426, %v7437, %v7439
    %v7441 = vshll.u32 %v7401, 8
    %v7442 = vand.u32 %v7441, 65535
    %v7443 = vshrl.u32 %v7441, 16
    %v7444 = vand.u32 %v7440, 65535
    %v7445 = vshrl.u32 %v7440, 16
    %v7446 = vmul.u32 %v7442, %v7444
    %v7447 = vmul.u32 %v7442, %v7445
    %v7448 = vmul.u32 %v7443, %v7444
    %v7449 = vmul.u32 %v7443, %v7445
    %v7450 = vshll.u32 %v7447, 16
    %v7451 = vshrl.u32 %v7447, 16
    %v7452 = vshll.u32 %v7448, 16
    %v7453 = vshrl.u32 %v7448, 16
    %vm7454 = vc.u32 %v7446, %v7450
    %v7455 = vsel %vm7454, 1, 0
    %v7456 = vadd.s32 %v7446, %v7450
    %v7457 = vadd.s32 %v7449, %v7455
    %vm7458 = vc.u32 %v7456, %v7452
    %v7459 = vsel %vm7458, 1, 0
    %v7460 = vadd.s32 %v7456, %v7452
    %v7461 = vadd.s32 %v7457, %v7459
    %v7462 = vadd.s32 %v7461, %v7451
    %v7463 = vadd.s32 %v7462, %v7453
    %v7464 = vand.u32 %v7441, 65535
    %v7465 = vshrl.u32 %v7441, 16
    %v7466 = vand.u32 %v7436, 65535
    %v7467 = vshrl.u32 %v7436, 16
    %v7468 = vmul.u32 %v7464, %v7466
    %v7469 = vmul.u32 %v7464, %v7467
    %v7470 = vmul.u32 %v7465, %v7466
    %v7471 = vmul.u32 %v7465, %v7467
    %v7472 = vshll.u32 %v7469, 16
    %v7473 = vshrl.u32 %v7469, 16
    %v7474 = vshll.u32 %v7470, 16
    %v7475 = vshrl.u32 %v7470, 16
    %vm7476 = vc.u32 %v7468, %v7472
    %v7477 = vsel %vm7476, 1, 0
    %v7478 = vadd.s32 %v7468, %v7472
    %v7479 = vadd.s32 %v7471, %v7477
    %vm7480 = vc.u32 %v7478, %v7474
    %v7481 = vsel %vm7480, 1, 0
    %v7482 = vadd.s32 %v7478, %v7474
    %v7483 = vadd.s32 %v7479, %v7481
    %v7484 = vadd.s32 %v7483, %v7473
    %v7485 = vadd.s32 %v7484, %v7475
    %v7486 = vmul.u32 %v7441, %v7432
    %v7487 = vadd.s32 %v7463, %v7482
    %vm7488 = vc.u32 %v7463, %v7482
    %v7489 = vadd.s32 %v7485, 1
    %v7490 = vsel %vm7488, %v7489, %v7485
    %v7491 = vadd.s32 %v7486, %v7490
    %v7492 = vadd.s32 %v7491, 536870912
    %v7493 = vshrl.u32 %v7492, 30
    %v7494 = vshll.u32 %v7493, 30
    %v7495 = vsub.s32 %v7491, %v7494
    %vm7496 = vcmp.lt.s32.totalorder %v7495, 0
    %v7497 = vsub.s32 0, %v7495
    %v7498 = vsel %vm7496, %v7497, %v7495
    %v7499 = vclz %v7498
    %v7500 = vsub.s32 %v7499, 2
    %vm7501 = vcmp.gt.s32.totalorder 0, %v7500
    %v7502 = vsel %vm7501, 0, %v7500
    %v7503 = vsub.s32 32, %v7502
    %v7504 = vshll.u32 %v7495, %v7502
    %v7505 = vshrl.u32 %v7487, %v7503
    %v7506 = vor.u32 %v7504, %v7505
    %v7507 = vsub.s32 4294967266, %v7502
    %v7508 = vadd.s32 %v7507, 127
    %v7509 = vshll.u32 %v7508, 23
    %v7510 = vor.u32 4788187, %v7509
    %v7511 = vand.u32 2147483647, %v7510
    %v7513 = vcvt.s32.f32 %v7506
    %v7514 = vmul.f32 %v7513, %v7511
    %v7515 = vxor.u32 %v7514, 2147483648
    %v7516 = vsel %vm7395, %v7515, %v7514
    %v7517 = vsub.s32 4, %v7493
    %v7518 = vsel %vm7395, %v7517, %v7493
    %v7519 = vsel %vm7394, %v5380, %v7516
    %v7520 = vsel %vm7394, 0, %v7518
    %v7521 = vmul.f32 %v7519, %v7519
    %v7522 = vmul.f32 %v7521, -0.001358992
    %v7523 = vadd.f32 %v7522, 0.041655596
    %v7524 = vmul.f32 %v7521, %v7523
    %v7525 = vadd.f32 %v7524, -0.4999988
    %v7526 = vmul.f32 %v7521, %v7525
    %v7527 = vadd.f32 1.0, %v7526
    %v7528 = vmul.f32 %v7519, %v7519
    %v7529 = vmul.f32 %v7528, -0.00019511016
    %v7530 = vadd.f32 %v7529, 0.008332121
    %v7531 = vmul.f32 %v7528, %v7530
    %v7532 = vadd.f32 %v7531, -0.16666654
    %v7533 = vmul.f32 %v7528, %v7532
    %v7534 = vadd.f32 %v7533, 1.0
    %v7535 = vmul.f32 %v7534, %v7519
    %vm7536 = vweird.f32 %v5380
    %v7537 = vand.u32 %v7520, 3
    %vm7538 = vcmp.lt.s32.totalorder %v7537, 2
    %vm7539 = vcmp.eq.s32.totalorder %v7537, 0
    %v7540 = vxor.u32 %v7535, 2147483648
    %v7541 = vsel %vm7539, %v7527, %v7540
    %vm7542 = vcmp.eq.s32.totalorder %v7537, 2
    %v7543 = vxor.u32 %v7527, 2147483648
    %v7544 = vsel %vm7542, %v7543, %v7535
    %v7545 = vsel %vm7538, %v7541, %v7544
    %v7546 = vsel %vm7536, nan, %v7545
    %v7547 = vand.u32 2147483647, %v5381
    %vm7548 = vcmp.le.f32.partialorder %v7547, 0.7853982
    %vm7549 = vcmp.lt.s32.totalorder %v5381, 0
    %v7550 = vand.u32 %v5381, 2139095040
    %v7551 = vshrl.u32 %v7550, 23
    %v7552 = vsub.s32 %v7551, 127
    %v7553 = vand.u32 2147483647, %v5381
    %v7554 = vand.u32 %v7553, 8388607
    %v7555 = vor.u32 %v7554, 8388608
    %v7556 = vsub.s32 0, %v7555
    %v7557 = vadd.s32 %v7552, 1
    %vm7558 = vcmp.gt.s32.totalorder %v7557, 0
    %v7559 = vsel %vm7558, %v7557, 0
    %v7560 = vshrl.u32 %v7559, 5
    %v7561 = vand.u32 %v7559, 31
    %v7562 = vsub.s32 32, %v7561
    %v7563 = vshrl.u32 683565275, %v7562
    %v7564 = vshll.u32 683565275, %v7561
    %v7565 = vshrl.u32 2475754826, %v7562
    %v7566 = vor.u32 %v7564, %v7565
    %v7567 = vshll.u32 2475754826, %v7561
    %v7568 = vshrl.u32 2131351028, %v7562
    %v7569 = vor.u32 %v7567, %v7568
    %v7570 = vshll.u32 2131351028, %v7561
    %v7571 = vshrl.u32 2102212464, %v7562
    %v7572 = vor.u32 %v7570, %v7571
    %v7573 = vshll.u32 2102212464, %v7561
    %v7574 = vshrl.u32 920167782, %v7562
    %v7575 = vor.u32 %v7573, %v7574
    %v7576 = vshll.u32 920167782, %v7561
    %v7577 = vshrl.u32 1326507024, %v7562
    %v7578 = vor.u32 %v7576, %v7577
    %vm7579 = vcmp.lt.s32.totalorder %v7560, 1
    %vm7580 = vcmp.lt.s32.totalorder %v7560, 2
    %vm7581 = vcmp.lt.s32.totalorder %v7560, 3
    %vm7582 = vcmp.lt.s32.totalorder %v7560, 4
    %v7583 = vsel %vm7579, %v7563, %v7566
    %v7584 = vsel %vm7582, %v7572, 2102212464
    %v7585 = vsel %vm7581, %v7569, %v7584
    %v7586 = vsel %vm7580, %v7583, %v7585
    %v7587 = vsel %vm7579, %v7566, %v7569
    %v7588 = vsel %vm7582, %v7575, 920167782
    %v7589 = vsel %vm7581, %v7572, %v7588
    %v7590 = vsel %vm7580, %v7587, %v7589
    %v7591 = vsel %vm7579, %v7569, %v7572
    %v7592 = vsel %vm7582, %v7578, 1326507024
    %v7593 = vsel %vm7581, %v7575, %v7592
    %v7594 = vsel %vm7580, %v7591, %v7593
    %v7595 = vshll.u32 %v7555, 8
    %v7596 = vand.u32 %v7595, 65535
    %v7597 = vshrl.u32 %v7595, 16
    %v7598 = vand.u32 %v7594, 65535
    %v7599 = vshrl.u32 %v7594, 16
    %v7600 = vmul.u32 %v7596, %v7598
    %v7601 = vmul.u32 %v7596, %v7599
    %v7602 = vmul.u32 %v7597, %v7598
    %v7603 = vmul.u32 %v7597, %v7599
    %v7604 = vshll.u32 %v7601, 16
    %v7605 = vshrl.u32 %v7601, 16
    %v7606 = vshll.u32 %v7602, 16
    %v7607 = vshrl.u32 %v7602, 16
    %vm7608 = vc.u32 %v7600, %v7604
    %v7609 = vsel %vm7608, 1, 0
    %v7610 = vadd.s32 %v7600, %v7604
    %v7611 = vadd.s32 %v7603, %v7609
    %vm7612 = vc.u32 %v7610, %v7606
    %v7613 = vsel %vm7612, 1, 0
    %v7614 = vadd.s32 %v7610, %v7606
    %v7615 = vadd.s32 %v7611, %v7613
    %v7616 = vadd.s32 %v7615, %v7605
    %v7617 = vadd.s32 %v7616, %v7607
    %v7618 = vand.u32 %v7595, 65535
    %v7619 = vshrl.u32 %v7595, 16
    %v7620 = vand.u32 %v7590, 65535
    %v7621 = vshrl.u32 %v7590, 16
    %v7622 = vmul.u32 %v7618, %v7620
    %v7623 = vmul.u32 %v7618, %v7621
    %v7624 = vmul.u32 %v7619, %v7620
    %v7625 = vmul.u32 %v7619, %v7621
    %v7626 = vshll.u32 %v7623, 16
    %v7627 = vshrl.u32 %v7623, 16
    %v7628 = vshll.u32 %v7624, 16
    %v7629 = vshrl.u32 %v7624, 16
    %vm7630 = vc.u32 %v7622, %v7626
    %v7631 = vsel %vm7630, 1, 0
    %v7632 = vadd.s32 %v7622, %v7626
    %v7633 = vadd.s32 %v7625, %v7631
    %vm7634 = vc.u32 %v7632, %v7628
    %v7635 = vsel %vm7634, 1, 0
    %v7636 = vadd.s32 %v7632, %v7628
    %v7637 = vadd.s32 %v7633, %v7635
    %v7638 = vadd.s32 %v7637, %v7627
    %v7639 = vadd.s32 %v7638, %v7629
    %v7640 = vmul.u32 %v7595, %v7586
    %v7641 = vadd.s32 %v7617, %v7636
    %vm7642 = vc.u32 %v7617, %v7636
    %v7643 = vadd.s32 %v7639, 1
    %v7644 = vsel %vm7642, %v7643, %v7639
    %v7645 = vadd.s32 %v7640, %v7644
    %v7646 = vadd.s32 %v7645, 536870912
    %v7647 = vshrl.u32 %v7646, 30
    %v7648 = vshll.u32 %v7647, 30
    %v7649 = vsub.s32 %v7645, %v7648
    %vm7650 = vcmp.lt.s32.totalorder %v7649, 0
    %v7651 = vsub.s32 0, %v7649
    %v7652 = vsel %vm7650, %v7651, %v7649
    %v7653 = vclz %v7652
    %v7654 = vsub.s32 %v7653, 2
    %vm7655 = vcmp.gt.s32.totalorder 0, %v7654
    %v7656 = vsel %vm7655, 0, %v7654
    %v7657 = vsub.s32 32, %v7656
    %v7658 = vshll.u32 %v7649, %v7656
    %v7659 = vshrl.u32 %v7641, %v7657
    %v7660 = vor.u32 %v7658, %v7659
    %v7661 = vsub.s32 4294967266, %v7656
    %v7662 = vadd.s32 %v7661, 127
    %v7663 = vshll.u32 %v7662, 23
    %v7664 = vor.u32 4788187, %v7663
    %v7665 = vand.u32 2147483647, %v7664
    %v7667 = vcvt.s32.f32 %v7660
    %v7668 = vmul.f32 %v7667, %v7665
    %v7669 = vxor.u32 %v7668, 2147483648
    %v7670 = vsel %vm7549, %v7669, %v7668
    %v7671 = vsub.s32 4, %v7647
    %v7672 = vsel %vm7549, %v7671, %v7647
    %v7673 = vsel %vm7548, %v5381, %v7670
    %v7674 = vsel %vm7548, 0, %v7672
    %v7675 = vmul.f32 %v7673, %v7673
    %v7676 = vmul.f32 %v7675, -0.001358992
    %v7677 = vadd.f32 %v7676, 0.041655596
    %v7678 = vmul.f32 %v7675, %v7677
    %v7679 = vadd.f32 %v7678, -0.4999988
    %v7680 = vmul.f32 %v7675, %v7679
    %v7681 = vadd.f32 1.0, %v7680
    %v7682 = vmul.f32 %v7673, %v7673
    %v7683 = vmul.f32 %v7682, -0.00019511016
    %v7684 = vadd.f32 %v7683, 0.008332121
    %v7685 = vmul.f32 %v7682, %v7684
    %v7686 = vadd.f32 %v7685, -0.16666654
    %v7687 = vmul.f32 %v7682, %v7686
    %v7688 = vadd.f32 %v7687, 1.0
    %v7689 = vmul.f32 %v7688, %v7673
    %vm7690 = vweird.f32 %v5381
    %v7691 = vand.u32 %v7674, 3
    %vm7692 = vcmp.lt.s32.totalorder %v7691, 2
    %vm7693 = vcmp.eq.s32.totalorder %v7691, 0
    %v7694 = vxor.u32 %v7689, 2147483648
    %v7695 = vsel %vm7693, %v7681, %v7694
    %vm7696 = vcmp.eq.s32.totalorder %v7691, 2
    %v7697 = vxor.u32 %v7681, 2147483648
    %v7698 = vsel %vm7696, %v7697, %v7689
    %v7699 = vsel %vm7692, %v7695, %v7698
    %v7700 = vsel %vm7690, nan, %v7699
    %v7701 = vand.u32 2147483647, %v5382
    %vm7702 = vcmp.le.f32.partialorder %v7701, 0.7853982
    %vm7703 = vcmp.lt.s32.totalorder %v5382, 0
    %v7704 = vand.u32 %v5382, 2139095040
    %v7705 = vshrl.u32 %v7704, 23
    %v7706 = vsub.s32 %v7705, 127
    %v7707 = vand.u32 2147483647, %v5382
    %v7708 = vand.u32 %v7707, 8388607
    %v7709 = vor.u32 %v7708, 8388608
    %v7710 = vsub.s32 0, %v7709
    %v7711 = vadd.s32 %v7706, 1
    %vm7712 = vcmp.gt.s32.totalorder %v7711, 0
    %v7713 = vsel %vm7712, %v7711, 0
    %v7714 = vshrl.u32 %v7713, 5
    %v7715 = vand.u32 %v7713, 31
    %v7716 = vsub.s32 32, %v7715
    %v7717 = vshrl.u32 683565275, %v7716
    %v7718 = vshll.u32 683565275, %v7715
    %v7719 = vshrl.u32 2475754826, %v7716
    %v7720 = vor.u32 %v7718, %v7719
    %v7721 = vshll.u32 2475754826, %v7715
    %v7722 = vshrl.u32 2131351028, %v7716
    %v7723 = vor.u32 %v7721, %v7722
    %v7724 = vshll.u32 2131351028, %v7715
    %v7725 = vshrl.u32 2102212464, %v7716
    %v7726 = vor.u32 %v7724, %v7725
    %v7727 = vshll.u32 2102212464, %v7715
    %v7728 = vshrl.u32 920167782, %v7716
    %v7729 = vor.u32 %v7727, %v7728
    %v7730 = vshll.u32 920167782, %v7715
    %v7731 = vshrl.u32 1326507024, %v7716
    %v7732 = vor.u32 %v7730, %v7731
    %vm7733 = vcmp.lt.s32.totalorder %v7714, 1
    %vm7734 = vcmp.lt.s32.totalorder %v7714, 2
    %vm7735 = vcmp.lt.s32.totalorder %v7714, 3
    %vm7736 = vcmp.lt.s32.totalorder %v7714, 4
    %v7737 = vsel %vm7733, %v7717, %v7720
    %v7738 = vsel %vm7736, %v7726, 2102212464
    %v7739 = vsel %vm7735, %v7723, %v7738
    %v7740 = vsel %vm7734, %v7737, %v7739
    %v7741 = vsel %vm7733, %v7720, %v7723
    %v7742 = vsel %vm7736, %v7729, 920167782
    %v7743 = vsel %vm7735, %v7726, %v7742
    %v7744 = vsel %vm7734, %v7741, %v7743
    %v7745 = vsel %vm7733, %v7723, %v7726
    %v7746 = vsel %vm7736, %v7732, 1326507024
    %v7747 = vsel %vm7735, %v7729, %v7746
    %v7748 = vsel %vm7734, %v7745, %v7747
    %v7749 = vshll.u32 %v7709, 8
    %v7750 = vand.u32 %v7749, 65535
    %v7751 = vshrl.u32 %v7749, 16
    %v7752 = vand.u32 %v7748, 65535
    %v7753 = vshrl.u32 %v7748, 16
    %v7754 = vmul.u32 %v7750, %v7752
    %v7755 = vmul.u32 %v7750, %v7753
    %v7756 = vmul.u32 %v7751, %v7752
    %v7757 = vmul.u32 %v7751, %v7753
    %v7758 = vshll.u32 %v7755, 16
    %v7759 = vshrl.u32 %v7755, 16
    %v7760 = vshll.u32 %v7756, 16
    %v7761 = vshrl.u32 %v7756, 16
    %vm7762 = vc.u32 %v7754, %v7758
    %v7763 = vsel %vm7762, 1, 0
    %v7764 = vadd.s32 %v7754, %v7758
    %v7765 = vadd.s32 %v7757, %v7763
    %vm7766 = vc.u32 %v7764, %v7760
    %v7767 = vsel %vm7766, 1, 0
    %v7768 = vadd.s32 %v7764, %v7760
    %v7769 = vadd.s32 %v7765, %v7767
    %v7770 = vadd.s32 %v7769, %v7759
    %v7771 = vadd.s32 %v7770, %v7761
    %v7772 = vand.u32 %v7749, 65535
    %v7773 = vshrl.u32 %v7749, 16
    %v7774 = vand.u32 %v7744, 65535
    %v7775 = vshrl.u32 %v7744, 16
    %v7776 = vmul.u32 %v7772, %v7774
    %v7777 = vmul.u32 %v7772, %v7775
    %v7778 = vmul.u32 %v7773, %v7774
    %v7779 = vmul.u32 %v7773, %v7775
    %v7780 = vshll.u32 %v7777, 16
    %v7781 = vshrl.u32 %v7777, 16
    %v7782 = vshll.u32 %v7778, 16
    %v7783 = vshrl.u32 %v7778, 16
    %vm7784 = vc.u32 %v7776, %v7780
    %v7785 = vsel %vm7784, 1, 0
    %v7786 = vadd.s32 %v7776, %v7780
    %v7787 = vadd.s32 %v7779, %v7785
    %vm7788 = vc.u32 %v7786, %v7782
    %v7789 = vsel %vm7788, 1, 0
    %v7790 = vadd.s32 %v7786, %v7782
    %v7791 = vadd.s32 %v7787, %v7789
    %v7792 = vadd.s32 %v7791, %v7781
    %v7793 = vadd.s32 %v7792, %v7783
    %v7794 = vmul.u32 %v7749, %v7740
    %v7795 = vadd.s32 %v7771, %v7790
    %vm7796 = vc.u32 %v7771, %v7790
    %v7797 = vadd.s32 %v7793, 1
    %v7798 = vsel %vm7796, %v7797, %v7793
    %v7799 = vadd.s32 %v7794, %v7798
    %v7800 = vadd.s32 %v7799, 536870912
    %v7801 = vshrl.u32 %v7800, 30
    %v7802 = vshll.u32 %v7801, 30
    %v7803 = vsub.s32 %v7799, %v7802
    %vm7804 = vcmp.lt.s32.totalorder %v7803, 0
    %v7805 = vsub.s32 0, %v7803
    %v7806 = vsel %vm7804, %v7805, %v7803
    %v7807 = vclz %v7806
    %v7808 = vsub.s32 %v7807, 2
    %vm7809 = vcmp.gt.s32.totalorder 0, %v7808
    %v7810 = vsel %vm7809, 0, %v7808
    %v7811 = vsub.s32 32, %v7810
    %v7812 = vshll.u32 %v7803, %v7810
    %v7813 = vshrl.u32 %v7795, %v7811
    %v7814 = vor.u32 %v7812, %v7813
    %v7815 = vsub.s32 4294967266, %v7810
    %v7816 = vadd.s32 %v7815, 127
    %v7817 = vshll.u32 %v7816, 23
    %v7818 = vor.u32 4788187, %v7817
    %v7819 = vand.u32 2147483647, %v7818
    %v7821 = vcvt.s32.f32 %v7814
    %v7822 = vmul.f32 %v7821, %v7819
    %v7823 = vxor.u32 %v7822, 2147483648
    %v7824 = vsel %vm7703, %v7823, %v7822
    %v7825 = vsub.s32 4, %v7801
    %v7826 = vsel %vm7703, %v7825, %v7801
    %v7827 = vsel %vm7702, %v5382, %v7824
    %v7828 = vsel %vm7702, 0, %v7826
    %v7829 = vmul.f32 %v7827, %v7827
    %v7830 = vmul.f32 %v7829, -0.001358992
    %v7831 = vadd.f32 %v7830, 0.041655596
    %v7832 = vmul.f32 %v7829, %v7831
    %v7833 = vadd.f32 %v7832, -0.4999988
    %v7834 = vmul.f32 %v7829, %v7833
    %v7835 = vadd.f32 1.0, %v7834
    %v7836 = vmul.f32 %v7827, %v7827
    %v7837 = vmul.f32 %v7836, -0.00019511016
    %v7838 = vadd.f32 %v7837, 0.008332121
    %v7839 = vmul.f32 %v7836, %v7838
    %v7840 = vadd.f32 %v7839, -0.16666654
    %v7841 = vmul.f32 %v7836, %v7840
    %v7842 = vadd.f32 %v7841, 1.0
    %v7843 = vmul.f32 %v7842, %v7827
    %vm7844 = vweird.f32 %v5382
    %v7845 = vand.u32 %v7828, 3
    %vm7846 = vcmp.lt.s32.totalorder %v7845, 2
    %vm7847 = vcmp.eq.s32.totalorder %v7845, 0
    %v7848 = vxor.u32 %v7843, 2147483648
    %v7849 = vsel %vm7847, %v7835, %v7848
    %vm7850 = vcmp.eq.s32.totalorder %v7845, 2
    %v7851 = vxor.u32 %v7835, 2147483648
    %v7852 = vsel %vm7850, %v7851, %v7843
    %v7853 = vsel %vm7846, %v7849, %v7852
    %v7854 = vsel %vm7844, nan, %v7853
    %s7855 = scalar_lea.vmem [#allocation5], 1088
    %7856 = vst [vmem:[%s7855] sm:$0xff] %v5537
    %7857 = vst [vmem:[%s7855 + $0x8] sm:$0xff] %v5692
    %7858 = vst [vmem:[%s7855 + $0x10] sm:$0xff] %v5847
    %7859 = vst [vmem:[%s7855 + $0x18] sm:$0xff] %v6002
    %7860 = vst [vmem:[%s7855 + $0x20] sm:$0xff] %v6157
    %7861 = vst [vmem:[%s7855 + $0x28] sm:$0xff] %v6312
    %7862 = vst [vmem:[%s7855 + $0x30] sm:$0xff] %v6467
    %7863 = vst [vmem:[%s7855 + $0x38] sm:$0xff] %v6622
    %s7864 = scalar_lea.vmem [#allocation5], 1152
    %7865 = vst [vmem:[%s7864] sm:$0xff] %v6776
    %7866 = vst [vmem:[%s7864 + $0x8] sm:$0xff] %v6930
    %7867 = vst [vmem:[%s7864 + $0x10] sm:$0xff] %v7084
    %7868 = vst [vmem:[%s7864 + $0x18] sm:$0xff] %v7238
    %7869 = vst [vmem:[%s7864 + $0x20] sm:$0xff] %v7392
    %7870 = vst [vmem:[%s7864 + $0x28] sm:$0xff] %v7546
    %7871 = vst [vmem:[%s7864 + $0x30] sm:$0xff] %v7700
    %7872 = vst [vmem:[%s7864 + $0x38] sm:$0xff] %v7854
    %v7873 = vmul.f32 %v5537, %v6776
    %v7874 = vmul.f32 %v5692, %v6930
    %v7875 = vmul.f32 %v5847, %v7084
    %v7876 = vmul.f32 %v6002, %v7238
    %v7877 = vmul.f32 %v6157, %v7392
    %v7878 = vmul.f32 %v6312, %v7546
    %v7879 = vmul.f32 %v6467, %v7700
    %v7880 = vmul.f32 %v6622, %v7854
    %v7881 = vadd.f32 %v7873, %v7873
    %v7882 = vadd.f32 %v7874, %v7874
    %v7883 = vadd.f32 %v7875, %v7875
    %v7884 = vadd.f32 %v7876, %v7876
    %v7885 = vadd.f32 %v7877, %v7877
    %v7886 = vadd.f32 %v7878, %v7878
    %v7887 = vadd.f32 %v7879, %v7879
    %v7888 = vadd.f32 %v7880, %v7880
    %v7889 = vmul.f32 %v6776, %v6776
    %v7890 = vmul.f32 %v6930, %v6930
    %v7891 = vmul.f32 %v7084, %v7084
    %v7892 = vmul.f32 %v7238, %v7238
    %v7893 = vmul.f32 %v7392, %v7392
    %v7894 = vmul.f32 %v7546, %v7546
    %v7895 = vmul.f32 %v7700, %v7700
    %v7896 = vmul.f32 %v7854, %v7854
    %v7897 = vmul.f32 %v5537, %v5537
    %v7898 = vmul.f32 %v5692, %v5692
    %v7899 = vmul.f32 %v5847, %v5847
    %v7900 = vmul.f32 %v6002, %v6002
    %v7901 = vmul.f32 %v6157, %v6157
    %v7902 = vmul.f32 %v6312, %v6312
    %v7903 = vmul.f32 %v6467, %v6467
    %v7904 = vmul.f32 %v6622, %v6622
    %v7905 = vsub.f32 %v7889, %v7897
    %v7906 = vsub.f32 %v7890, %v7898
    %v7907 = vsub.f32 %v7891, %v7899
    %v7908 = vsub.f32 %v7892, %v7900
    %v7909 = vsub.f32 %v7893, %v7901
    %v7910 = vsub.f32 %v7894, %v7902
    %v7911 = vsub.f32 %v7895, %v7903
    %v7912 = vsub.f32 %v7896, %v7904
    %s7913 = scalar_lea.vmem [#allocation5], 1216
    %7914 = vst [vmem:[%s7913] sm:$0xff] %v7881
    %7915 = vst [vmem:[%s7913 + $0x8] sm:$0xff] %v7882
    %7916 = vst [vmem:[%s7913 + $0x10] sm:$0xff] %v7883
    %7917 = vst [vmem:[%s7913 + $0x18] sm:$0xff] %v7884
    %7918 = vst [vmem:[%s7913 + $0x20] sm:$0xff] %v7885
    %7919 = vst [vmem:[%s7913 + $0x28] sm:$0xff] %v7886
    %7920 = vst [vmem:[%s7913 + $0x30] sm:$0xff] %v7887
    %7921 = vst [vmem:[%s7913 + $0x38] sm:$0xff] %v7888
    %s7922 = scalar_lea.vmem [#allocation5], 1280
    %7923 = vst [vmem:[%s7922] sm:$0xff] %v7905
    %7924 = vst [vmem:[%s7922 + $0x8] sm:$0xff] %v7906
    %7925 = vst [vmem:[%s7922 + $0x10] sm:$0xff] %v7907
    %7926 = vst [vmem:[%s7922 + $0x18] sm:$0xff] %v7908
    %7927 = vst [vmem:[%s7922 + $0x20] sm:$0xff] %v7909
    %7928 = vst [vmem:[%s7922 + $0x28] sm:$0xff] %v7910
    %7929 = vst [vmem:[%s7922 + $0x30] sm:$0xff] %v7911
    %7930 = vst [vmem:[%s7922 + $0x38] sm:$0xff] %v7912
    // Predicated region
    $region10: #{tpu_custom_call.1} parent=1 // pred_check
      _
    $region11: #{tpu_custom_call.1} parent=1 // pred_check_branch
      %7932 = sbr.rel (0) target = $region13
    $region12: #{tpu_custom_call.1} parent=1 // pred_region
      %7934 = vsyncadd [#allocation4], 0
      %s7935 = sshll.u32 [#allocation5], 4
      %s7936 = int_to_ptr.vmem [resolvable:$true] %s7935
      %s7937 = sshll.u32 %s1, 4
      %s7938 = int_to_ptr.hbm [resolvable:$true] %s7937
      %7943 = dma.vmem_to_hbm [thread:$0]  %s7936, 21504, %s7938, [#allocation4], 1024, 1024, 64
    $region13: #{tpu_custom_call.1} parent=1 // pred_fallthru
      _
    // Predicated region
    $region14: #{tpu_custom_call.1} parent=1 // pred_check
      _
    $region15: #{tpu_custom_call.1} parent=1 // pred_check_branch
      %7945 = sbr.rel (0) target = $region17
    $region16: #{tpu_custom_call.1} parent=1 // pred_region
      %7947 = dma.done [#allocation4], 21504
    $region17: #{tpu_custom_call.1} parent=1 // pred_fallthru
      _
    %7948 = vsyncpa [#allocation3], 1
    %7949 = vsyncpa [#allocation4], 1

</llo_original>
